<compile_context>
chip_gen: v7x
topology: tpu7x:2x2x1
jax: 0.10.0
libtpu: 0.0.40
codegen_flags: <defaults>
</compile_context>

<pallas_src>
import math

import jax
import jax.numpy as jnp
import jax.scipy.linalg as jsl
from jax.experimental import pallas as pl
from jax.experimental.pallas import tpu as pltpu

# ---- model dimensions (T1=15 / D1=144 hard-coded by getBreakDowns; D4=3/T4=1 forced) ----
D1, T1 = 144, 15
D2, T2 = 32, 10
D3, T3 = 32, 5
D4, T4 = 3, 1
NUM_BRANCH = 6
BRANCH_DEPTHS = [3, 5, 10, 15, 15, 15]     # timeDepthAttentions after in-place appends
BRANCH_MULT = [1, 1, 1, 0, 0, 3]           # dict-overwrite / triple-count behaviour
ACTIVE = [i for i, m in enumerate(BRANCH_MULT) if m != 0]   # [0, 1, 2, 5]
G = len(ACTIVE)                                             # 4 contributing towers

F1 = D2 * T2          # 320  BL1 features per branch
F2 = D3 * T3          # 160  BL2 features per branch
F3 = D4 * T3          # 15   TABL features per branch
KIN = T1 * D1         # 2160 flattened input features per sample


def _round_up(n, m):
    return ((n + m - 1) // m) * m


# ---- Pallas kernel ---------------------------------------------------------------------
def mt_ctabl_kernel(x_ref, m1_ref, b1_ref, m2_ref, b2_ref, m3_ref, we_ref,
                    gs1_ref, l60_ref, wy_ref, by_ref, gs2_ref, c_ref, out_ref):
    f32 = jnp.float32

    # Stage 1: fused BL1 (mask * x -> W1 @ X @ W2 + B) for all 4 branches: one lane-dense
    # MXU matmul (TB, 2160) @ (2160, 1280).  bf16 operands, f32 accumulation.
    xb = x_ref[...].astype(jnp.bfloat16)
    h = jnp.dot(xb, m1_ref[...], preferred_element_type=f32) + b1_ref[...]
    h = jnp.maximum(h, 0.0)                                    # (TB, 1280)
    # TODO(synk): nn.Dropout(0.1) between layers is identity in eval mode; not modeled.

    # Stage 2: fused BL2 (block-diagonal over branches): (TB, 1280) @ (1280, 640).
    h2 = jnp.dot(h.astype(jnp.bfloat16), m2_ref[...], preferred_element_type=f32) + b2_ref[...]
    h2 = jnp.maximum(h2, 0.0)                                  # (TB, 640)

    # Stage 3: TABL W1 projection, all branches: (TB, 640) @ (640, 60).
    x3 = jnp.dot(h2, m3_ref[...], preferred_element_type=f32)  # (TB, 60)

    # Attention logits E = X3 @ Wbar (block-diagonal over the 12 (branch,class) groups).
    e = jnp.dot(x3, we_ref[...], preferred_element_type=f32)   # (TB, 60)
    # Grouped softmax over the 5 time steps of each group; subtracting the row-wide max
    # is a constant within every group, so it is a valid softmax shift.
    e = e - jnp.max(e, axis=-1, keepdims=True)
    p = jnp.exp(e)
    denom = jnp.dot(p, gs1_ref[...], preferred_element_type=f32)   # per-group sums, broadcast
    a = p * pl.reciprocal(denom, approx=True)
    l60 = l60_ref[...]
    x3 = x3 * (l60 * a + (1.0 - l60))                          # l*X*A + (1-l)*X

    # y = X3 @ W2 + B  (T4 == 1, torch.squeeze): (TB, 60) @ (60, 12) -> one col per
    # (branch, class).
    y = jnp.dot(x3, wy_ref[...], preferred_element_type=f32) + by_ref[...]

    # Per-branch class softmax (groups of 3) then weighted sum by attentionRate1 coeffs.
    y = y - jnp.max(y, axis=-1, keepdims=True)
    q = jnp.exp(y)
    qden = jnp.dot(q, gs2_ref[...], preferred_element_type=f32)
    probs = q * pl.reciprocal(qden, approx=True)
    acc = jnp.dot(probs, c_ref[...], preferred_element_type=f32)   # (TB, 3)

    # Final class softmax — exact division so rows sum to 1.
    acc = acc - jnp.max(acc, axis=-1, keepdims=True)
    ea = jnp.exp(acc)
    out_ref[...] = ea / jnp.sum(ea, axis=-1, keepdims=True)


# ---- host-side weight fusion -------------------------------------------------------------
def pack_fused(params):
    """Fold the 4 contributing CTABL towers into block-diagonal fused operators."""
    (mask, blW1, blW2, blB, bl2W1, bl2W2, bl2B,
     tW1, tW, tW2, tB, l_arr, coeff) = params
    f32 = jnp.float32
    eye5 = jnp.eye(T3, dtype=f32)
    eye3 = jnp.eye(D4, dtype=f32)

    m1_cols, b1c = [], []
    m2_blk, b2c = [], []
    m3_blk, we_blk, wy_blk, byc = [], [], [], []
    lam_list, coeff_list = [], []
    for g in ACTIVE:
        mvec = mask[g][:, 0]                               # (T1,) 0/1 depth mask
        w2m = blW2[g] * mvec[:, None]                      # depth mask folded into W2
        # BL1: h[(d,s)] = sum_{t,i} W1[d,i] * W2m[t,s] * x[t,i]
        m1_cols.append(jnp.einsum('di,ts->tids', blW1[g], w2m).reshape(KIN, F1))
        b1c.append(blB[g].reshape(-1))
        # BL2: h2[(c,u)] = sum_{d,s} W1'[c,d] * W2'[s,u] * h[(d,s)]
        m2_blk.append(jnp.einsum('cd,su->dscu', bl2W1[g], bl2W2[g]).reshape(F1, F2))
        b2c.append(bl2B[g].reshape(-1))
        # TABL projection: x3[(e,s)] = sum_c W1''[e,c] * h2[(c,s)]
        m3_blk.append(jnp.einsum('ec,us->cues', tW1[g], eye5).reshape(F2, F3))
        # Wbar = W - W*I + I/T3 (precomputed), block per (class) group
        wbar = tW[g] - tW[g] * eye5 + eye5 / T3
        we_blk.append(jnp.einsum('ef,uv->eufv', eye3, wbar).reshape(F3, F3))
        # y[(e)] = sum_u x3n[(e,u)] * W2''[u]  (T4 == 1)
        wy_blk.append(jnp.einsum('ef,u->euf', eye3, tW2[g][:, 0]).reshape(F3, D4))
        byc.append(tB[g][:, 0])
        lam_list.append(jnp.clip(l_arr[g], 0.0, 1.0))      # TABL forward l-clamp
        coeff_list.append(coeff[g])

    M1 = jnp.concatenate(m1_cols, axis=1).astype(jnp.bfloat16)          # (2160, 1280)
    b1 = jnp.concatenate(b1c)[None, :].astype(f32)                      # (1, 1280)
    M2 = jsl.block_diag(*m2_blk).astype(jnp.bfloat16)                   # (1280, 640)
    b2 = jnp.concatenate(b2c)[None, :].astype(f32)                      # (1, 640)
    M3 = jsl.block_diag(*m3_blk).astype(f32)                            # (640, 60)
    WE = jsl.block_diag(*we_blk).astype(f32)                            # (60, 60)
    Wy = jsl.block_diag(*wy_blk).astype(f32)                            # (60, 12)
    by = jnp.concatenate(byc)[None, :].astype(f32)                      # (1, 12)
    # group-sum-and-broadcast matrices (ones blocks on the diagonal)
    GS1 = jnp.kron(jnp.eye(G * D4, dtype=f32), jnp.ones((T3, T3), f32))  # (60, 60)
    GS2 = jnp.kron(jnp.eye(G, dtype=f32), jnp.ones((D4, D4), f32))       # (12, 12)
    # per-branch coefficients scattered onto the 3 output classes
    C = jnp.kron(jnp.stack(coeff_list)[:, None], eye3).astype(f32)       # (12, 3)
    l60 = jnp.repeat(jnp.stack(lam_list), F3)[None, :].astype(f32)       # (1, 60)

    return (M1, b1, M2, b2, M3, WE, GS1, l60, Wy, by, GS2, C)


# ---- wrapper -----------------------------------------------------------------------------
def mt_ctabl_forward(x, fused, *, batch_tile=None):
    weights = fused
    B = x.shape[0]
    x2d = x.reshape(B, KIN).astype(jnp.float32)          # free view: (B, T1*D1)

    # Batch tile: big enough to amortize the ~0.35 us per-grid-step overhead, small enough
    # to stay comfortably inside v7x's 64 MiB VMEM (v6e/v5e can use larger tiles).
    if batch_tile is None:
        TB = 512 if B >= 512 else _round_up(B, 8)
    else:
        TB = _round_up(batch_tile, 8)
    Bp = _round_up(B, TB)
    if Bp != B:
        x2d = jnp.pad(x2d, ((0, Bp - B), (0, 0)))        # zero rows; sliced off below

    grid = (Bp // TB,)
    weight_specs = [pl.BlockSpec(w.shape, lambda b: (0, 0)) for w in weights]

    out = pl.pallas_call(
        mt_ctabl_kernel,
        grid=grid,
        in_specs=[pl.BlockSpec((TB, KIN), lambda b: (b, 0))] + weight_specs,
        out_specs=pl.BlockSpec((TB, D4), lambda b: (b, 0)),
        out_shape=jax.ShapeDtypeStruct((Bp, D4), jnp.float32),
        compiler_params=pltpu.CompilerParams(
            dimension_semantics=("parallel",),           # v7x: shard batch over both TCs
            vmem_limit_bytes=56 * 1024 * 1024),
    )(x2d, *weights)
    return out[:B]


# ---- deterministic parameter construction (plain JAX glue) ------------------------------
def _kaiming_uniform(key, shape):
    fan_in = shape[1]
    bound = math.sqrt(2.0) * math.sqrt(3.0 / fan_in)     # kaiming_uniform_, relu gain
    return jax.random.uniform(key, shape, jnp.float32, minval=-bound, maxval=bound)


def _max_norm(w):
    n = jnp.sqrt(jnp.sum(w * w))
    return w * jnp.where(n > 10.0, 10.0 / (1e-8 + n), 1.0)


def init_params(key):
    blW1, blW2, blB = [], [], []
    bl2W1, bl2W2, bl2B = [], [], []
    tW1, tW, tW2, tB = [], [], [], []
    branch_keys = jax.random.split(key, NUM_BRANCH)
    for c in range(NUM_BRANCH):
        k = jax.random.split(branch_keys[c], 6)
        blW1.append(_max_norm(_kaiming_uniform(k[0], (D2, D1))))
        blW2.append(_max_norm(_kaiming_uniform(k[1], (T1, T2))))
        blB.append(jnp.zeros((D2, T2), jnp.float32))
        bl2W1.append(_max_norm(_kaiming_uniform(k[2], (D3, D2))))
        bl2W2.append(_max_norm(_kaiming_uniform(k[3], (T2, T3))))
        bl2B.append(jnp.zeros((D3, T3), jnp.float32))
        tW1.append(_max_norm(_kaiming_uniform(k[4], (D4, D3))))
        tW.append(_max_norm(jnp.full((T3, T3), 1.0 / T3, jnp.float32)))
        tW2.append(_max_norm(_kaiming_uniform(k[5], (T3, T4))))
        tB.append(jnp.zeros((D4, T4), jnp.float32))

    row = jnp.arange(T1, dtype=jnp.int32)[:, None]
    mask = jnp.stack([(row < d).astype(jnp.float32) * jnp.ones((T1, D1), jnp.float32)
                      for d in BRANCH_DEPTHS])                               # (6, T1, D1)

    total = float(sum(BRANCH_DEPTHS))                                        # 63
    coeff = jnp.array([mlt * d / total for mlt, d in zip(BRANCH_MULT, BRANCH_DEPTHS)],
                      jnp.float32)                                           # (6,)
    l_arr = jnp.full((NUM_BRANCH,), 0.5, jnp.float32)                        # TABL lambda

    st = jnp.stack
    return (mask, st(blW1), st(blW2), st(blB), st(bl2W1), st(bl2W2), st(bl2B),
            st(tW1), st(tW), st(tW2), st(tB), l_arr, coeff)


# ---- pure-JAX reference (full 6-branch semantics, exact softmax, f32) --------------------
def reference(x, params):
    (mask, blW1, blW2, blB, bl2W1, bl2W2, bl2B,
     tW1, tW, tW2, tB, l_arr, coeff) = params
    B = x.shape[0]
    acc = jnp.zeros((B, D4), jnp.float32)
    eye = jnp.eye(T3, dtype=jnp.float32)
    for g in range(NUM_BRANCH):
        xi = x * mask[g][None]
        X = jnp.transpose(xi, (0, 2, 1))                       # (B, D1, T1)
        h = jnp.maximum(jnp.einsum('di,bit->bdt', blW1[g], X) @ blW2[g] + blB[g][None], 0.0)
        h2 = jnp.maximum(jnp.einsum('di,bit->bdt', bl2W1[g], h) @ bl2W2[g] + bl2B[g][None], 0.0)
        X3 = jnp.einsum('di,bit->bdt', tW1[g], h2)
        Wbar = tW[g] - tW[g] * eye + eye / T3
        A = jax.nn.softmax(X3 @ Wbar, axis=-1)
        lam = jnp.clip(l_arr[g], 0.0, 1.0)
        X3 = lam * X3 * A + (1.0 - lam) * X3
        y = (X3 @ tW2[g] + tB[g][None])[:, :, 0]
        acc = acc + coeff[g] * jax.nn.softmax(y, axis=1)
    return jax.nn.softmax(acc, axis=1)


if __name__ == "__main__":
    key = jax.random.PRNGKey(0)
    kx, kp, kx2 = jax.random.split(key, 3)
    params = init_params(kp)
    fused = pack_fused(params)

    # small demo batch (single-tile path)
    B = 2
    x = jax.random.normal(kx, (B, T1, D1), dtype=jnp.float32)
    out = jax.block_until_ready(mt_ctabl_forward(x, fused))
    ref = reference(x, params)
    assert out.shape == (B, D4), out.shape
    assert bool(jnp.all(jnp.isfinite(out)))
    assert jnp.allclose(jnp.sum(out, axis=-1), 1.0, atol=1e-5)   # exact final softmax
    # Tolerance covers the bf16 BL1/BL2 matmul operands and the approx-reciprocal
    # inner softmaxes (ref is full f32 / exact softmax).
    assert jnp.allclose(out, ref, atol=2e-2, rtol=2e-2), (out, ref)

    # larger batch exercising the batch grid + padding path
    B2 = 20
    x2 = jax.random.normal(kx2, (B2, T1, D1), dtype=jnp.float32)
    out2 = jax.block_until_ready(mt_ctabl_forward(x2, fused, batch_tile=8))
    ref2 = reference(x2, params)
    assert out2.shape == (B2, D4)
    assert jnp.allclose(out2, ref2, atol=2e-2, rtol=2e-2), (out2, ref2)

    print("KERNEL_OK")
</pallas_src>

<mosaic_0001>
module attributes {stable_mosaic.version = 11 : i64} {
  func.func @mt_ctabl_kernel(%arg0: i32, %arg1: memref<8x2160xf32, #tpu.memory_space<vmem>>, %arg2: memref<2160x1280xbf16, #tpu.memory_space<vmem>>, %arg3: memref<1x1280xf32, #tpu.memory_space<vmem>>, %arg4: memref<1280x640xbf16, #tpu.memory_space<vmem>>, %arg5: memref<1x640xf32, #tpu.memory_space<vmem>>, %arg6: memref<640x60xf32, #tpu.memory_space<vmem>>, %arg7: memref<60x60xf32, #tpu.memory_space<vmem>>, %arg8: memref<60x60xf32, #tpu.memory_space<vmem>>, %arg9: memref<1x60xf32, #tpu.memory_space<vmem>>, %arg10: memref<60x12xf32, #tpu.memory_space<vmem>>, %arg11: memref<1x12xf32, #tpu.memory_space<vmem>>, %arg12: memref<12x12xf32, #tpu.memory_space<vmem>>, %arg13: memref<12x3xf32, #tpu.memory_space<vmem>>, %arg14: memref<8x3xf32, #tpu.memory_space<vmem>>) attributes {dimension_semantics = [#tpu.dimension_semantics<parallel>], iteration_bounds = array<i64: 1>, scalar_prefetch = 0 : i64, scratch_operands = 0 : i64, tpu.core_type = #tpu.core_type<tc>, window_params = [{transform_indices = @transform_0, window_bounds = array<i64: 8, 2160>}, {pipeline_mode = #tpu.pipeline_mode<synchronous>, transform_indices = @transform_1, window_bounds = array<i64: 2160, 1280>}, {pipeline_mode = #tpu.pipeline_mode<synchronous>, transform_indices = @transform_2, window_bounds = array<i64: 1, 1280>}, {pipeline_mode = #tpu.pipeline_mode<synchronous>, transform_indices = @transform_3, window_bounds = array<i64: 1280, 640>}, {pipeline_mode = #tpu.pipeline_mode<synchronous>, transform_indices = @transform_4, window_bounds = array<i64: 1, 640>}, {pipeline_mode = #tpu.pipeline_mode<synchronous>, transform_indices = @transform_5, window_bounds = array<i64: 640, 60>}, {pipeline_mode = #tpu.pipeline_mode<synchronous>, transform_indices = @transform_6, window_bounds = array<i64: 60, 60>}, {pipeline_mode = #tpu.pipeline_mode<synchronous>, transform_indices = @transform_7, window_bounds = array<i64: 60, 60>}, {pipeline_mode = #tpu.pipeline_mode<synchronous>, transform_indices = @transform_8, window_bounds = array<i64: 1, 60>}, {pipeline_mode = #tpu.pipeline_mode<synchronous>, transform_indices = @transform_9, window_bounds = array<i64: 60, 12>}, {pipeline_mode = #tpu.pipeline_mode<synchronous>, transform_indices = @transform_10, window_bounds = array<i64: 1, 12>}, {pipeline_mode = #tpu.pipeline_mode<synchronous>, transform_indices = @transform_11, window_bounds = array<i64: 12, 12>}, {pipeline_mode = #tpu.pipeline_mode<synchronous>, transform_indices = @transform_12, window_bounds = array<i64: 12, 3>}, {transform_indices = @transform_13, window_bounds = array<i64: 8, 3>}]} {
    %c0 = arith.constant 0 : index
    %c0_0 = arith.constant 0 : index
    %0 = vector.load %arg1[%c0, %c0_0] : memref<8x2160xf32, #tpu.memory_space<vmem>>, vector<8x2160xf32>
    %1 = arith.truncf %0 : vector<8x2160xf32> to vector<8x2160xbf16>
    %c0_1 = arith.constant 0 : index
    %c0_2 = arith.constant 0 : index
    %2 = vector.load %arg2[%c0_1, %c0_2] : memref<2160x1280xbf16, #tpu.memory_space<vmem>>, vector<2160x1280xbf16>
    %cst = arith.constant dense<0.000000e+00> : vector<8x1280xf32>
    %3 = tpu.matmul %1, %2, %cst {dimension_numbers = #tpu.dot_dimension_numbers<[1], [0], [0], [1], [0, 0, 1, 1], [], []>} : vector<8x2160xbf16>, vector<2160x1280xbf16>, vector<8x1280xf32> -> vector<8x1280xf32>
    %c0_3 = arith.constant 0 : index
    %c0_4 = arith.constant 0 : index
    %4 = vector.load %arg3[%c0_3, %c0_4] : memref<1x1280xf32, #tpu.memory_space<vmem>>, vector<1x1280xf32>
    %5 = vector.broadcast %4 : vector<1x1280xf32> to vector<8x1280xf32>
    %6 = arith.addf %3, %5 : vector<8x1280xf32>
    %cst_5 = arith.constant 0.000000e+00 : f32
    %7 = vector.broadcast %cst_5 : f32 to vector<8x1280xf32>
    %8 = arith.maximumf %6, %7 : vector<8x1280xf32>
    %9 = arith.truncf %8 : vector<8x1280xf32> to vector<8x1280xbf16>
    %c0_6 = arith.constant 0 : index
    %c0_7 = arith.constant 0 : index
    %10 = vector.load %arg4[%c0_6, %c0_7] : memref<1280x640xbf16, #tpu.memory_space<vmem>>, vector<1280x640xbf16>
    %cst_8 = arith.constant dense<0.000000e+00> : vector<8x640xf32>
    %11 = tpu.matmul %9, %10, %cst_8 {dimension_numbers = #tpu.dot_dimension_numbers<[1], [0], [0], [1], [0, 0, 1, 1], [], []>} : vector<8x1280xbf16>, vector<1280x640xbf16>, vector<8x640xf32> -> vector<8x640xf32>
    %c0_9 = arith.constant 0 : index
    %c0_10 = arith.constant 0 : index
    %12 = vector.load %arg5[%c0_9, %c0_10] : memref<1x640xf32, #tpu.memory_space<vmem>>, vector<1x640xf32>
    %13 = vector.broadcast %12 : vector<1x640xf32> to vector<8x640xf32>
    %14 = arith.addf %11, %13 : vector<8x640xf32>
    %cst_11 = arith.constant 0.000000e+00 : f32
    %15 = vector.broadcast %cst_11 : f32 to vector<8x640xf32>
    %16 = arith.maximumf %14, %15 : vector<8x640xf32>
    %c0_12 = arith.constant 0 : index
    %c0_13 = arith.constant 0 : index
    %17 = vector.load %arg6[%c0_12, %c0_13] : memref<640x60xf32, #tpu.memory_space<vmem>>, vector<640x60xf32>
    %cst_14 = arith.constant dense<0.000000e+00> : vector<8x60xf32>
    %18 = tpu.matmul %16, %17, %cst_14 {dimension_numbers = #tpu.dot_dimension_numbers<[1], [0], [0], [1], [0, 0, 1, 1], [], []>} : vector<8x640xf32>, vector<640x60xf32>, vector<8x60xf32> -> vector<8x60xf32>
    %c0_15 = arith.constant 0 : index
    %c0_16 = arith.constant 0 : index
    %19 = vector.load %arg7[%c0_15, %c0_16] : memref<60x60xf32, #tpu.memory_space<vmem>>, vector<60x60xf32>
    %cst_17 = arith.constant dense<0.000000e+00> : vector<8x60xf32>
    %20 = tpu.matmul %18, %19, %cst_17 {dimension_numbers = #tpu.dot_dimension_numbers<[1], [0], [0], [1], [0, 0, 1, 1], [], []>} : vector<8x60xf32>, vector<60x60xf32>, vector<8x60xf32> -> vector<8x60xf32>
    %cst_18 = arith.constant dense<0xFF800000> : vector<8xf32>
    %21 = vector.multi_reduction <maximumf>, %20, %cst_18 [1] : vector<8x60xf32> to vector<8xf32>
    %22 = vector.shape_cast %21 : vector<8xf32> to vector<8x1xf32>
    %23 = vector.broadcast %22 : vector<8x1xf32> to vector<8x60xf32>
    %24 = arith.subf %20, %23 : vector<8x60xf32>
    %25 = math.exp %24 : vector<8x60xf32>
    %c0_19 = arith.constant 0 : index
    %c0_20 = arith.constant 0 : index
    %26 = vector.load %arg8[%c0_19, %c0_20] : memref<60x60xf32, #tpu.memory_space<vmem>>, vector<60x60xf32>
    %cst_21 = arith.constant dense<0.000000e+00> : vector<8x60xf32>
    %27 = tpu.matmul %25, %26, %cst_21 {dimension_numbers = #tpu.dot_dimension_numbers<[1], [0], [0], [1], [0, 0, 1, 1], [], []>} : vector<8x60xf32>, vector<60x60xf32>, vector<8x60xf32> -> vector<8x60xf32>
    %28 = tpu.reciprocal %27 {approx = true} : vector<8x60xf32> -> vector<8x60xf32>
    %29 = arith.mulf %25, %28 : vector<8x60xf32>
    %c0_22 = arith.constant 0 : index
    %c0_23 = arith.constant 0 : index
    %30 = vector.load %arg9[%c0_22, %c0_23] : memref<1x60xf32, #tpu.memory_space<vmem>>, vector<1x60xf32>
    %31 = vector.broadcast %30 : vector<1x60xf32> to vector<8x60xf32>
    %32 = arith.mulf %31, %29 : vector<8x60xf32>
    %cst_24 = arith.constant 1.000000e+00 : f32
    %33 = vector.broadcast %cst_24 : f32 to vector<1x60xf32>
    %34 = arith.subf %33, %30 : vector<1x60xf32>
    %35 = vector.broadcast %34 : vector<1x60xf32> to vector<8x60xf32>
    %36 = arith.addf %32, %35 : vector<8x60xf32>
    %37 = arith.mulf %18, %36 : vector<8x60xf32>
    %c0_25 = arith.constant 0 : index
    %c0_26 = arith.constant 0 : index
    %38 = vector.load %arg10[%c0_25, %c0_26] : memref<60x12xf32, #tpu.memory_space<vmem>>, vector<60x12xf32>
    %cst_27 = arith.constant dense<0.000000e+00> : vector<8x12xf32>
    %39 = tpu.matmul %37, %38, %cst_27 {dimension_numbers = #tpu.dot_dimension_numbers<[1], [0], [0], [1], [0, 0, 1, 1], [], []>} : vector<8x60xf32>, vector<60x12xf32>, vector<8x12xf32> -> vector<8x12xf32>
    %c0_28 = arith.constant 0 : index
    %c0_29 = arith.constant 0 : index
    %40 = vector.load %arg11[%c0_28, %c0_29] : memref<1x12xf32, #tpu.memory_space<vmem>>, vector<1x12xf32>
    %41 = vector.broadcast %40 : vector<1x12xf32> to vector<8x12xf32>
    %42 = arith.addf %39, %41 : vector<8x12xf32>
    %cst_30 = arith.constant dense<0xFF800000> : vector<8xf32>
    %43 = vector.multi_reduction <maximumf>, %42, %cst_30 [1] : vector<8x12xf32> to vector<8xf32>
    %44 = vector.shape_cast %43 : vector<8xf32> to vector<8x1xf32>
    %45 = vector.broadcast %44 : vector<8x1xf32> to vector<8x12xf32>
    %46 = arith.subf %42, %45 : vector<8x12xf32>
    %47 = math.exp %46 : vector<8x12xf32>
    %c0_31 = arith.constant 0 : index
    %c0_32 = arith.constant 0 : index
    %48 = vector.load %arg12[%c0_31, %c0_32] : memref<12x12xf32, #tpu.memory_space<vmem>>, vector<12x12xf32>
    %cst_33 = arith.constant dense<0.000000e+00> : vector<8x12xf32>
    %49 = tpu.matmul %47, %48, %cst_33 {dimension_numbers = #tpu.dot_dimension_numbers<[1], [0], [0], [1], [0, 0, 1, 1], [], []>} : vector<8x12xf32>, vector<12x12xf32>, vector<8x12xf32> -> vector<8x12xf32>
    %50 = tpu.reciprocal %49 {approx = true} : vector<8x12xf32> -> vector<8x12xf32>
    %51 = arith.mulf %47, %50 : vector<8x12xf32>
    %c0_34 = arith.constant 0 : index
    %c0_35 = arith.constant 0 : index
    %52 = vector.load %arg13[%c0_34, %c0_35] : memref<12x3xf32, #tpu.memory_space<vmem>>, vector<12x3xf32>
    %cst_36 = arith.constant dense<0.000000e+00> : vector<8x3xf32>
    %53 = tpu.matmul %51, %52, %cst_36 {dimension_numbers = #tpu.dot_dimension_numbers<[1], [0], [0], [1], [0, 0, 1, 1], [], []>} : vector<8x12xf32>, vector<12x3xf32>, vector<8x3xf32> -> vector<8x3xf32>
    %cst_37 = arith.constant dense<0xFF800000> : vector<8xf32>
    %54 = vector.multi_reduction <maximumf>, %53, %cst_37 [1] : vector<8x3xf32> to vector<8xf32>
    %55 = vector.shape_cast %54 : vector<8xf32> to vector<8x1xf32>
    %56 = vector.broadcast %55 : vector<8x1xf32> to vector<8x3xf32>
    %57 = arith.subf %53, %56 : vector<8x3xf32>
    %58 = math.exp %57 : vector<8x3xf32>
    %cst_38 = arith.constant dense<0.000000e+00> : vector<8xf32>
    %59 = vector.multi_reduction <add>, %58, %cst_38 [1] : vector<8x3xf32> to vector<8xf32>
    %60 = vector.shape_cast %59 : vector<8xf32> to vector<8x1xf32>
    %61 = vector.broadcast %60 : vector<8x1xf32> to vector<8x3xf32>
    %62 = arith.divf %58, %61 : vector<8x3xf32>
    %c0_39 = arith.constant 0 : index
    %c0_40 = arith.constant 0 : index
    %63 = vector.load %arg14[%c0_39, %c0_40] : memref<8x3xf32, #tpu.memory_space<vmem>>, vector<8x3xf32>
    tpu.vector_store %arg14[%c0_39, %c0_40], %62 {strides = array<i32>} : memref<8x3xf32, #tpu.memory_space<vmem>>, vector<8x3xf32>,
    return
  }
  func.func @transform_0(%arg0: i32) -> (i32, i32) {
    %c0_i32 = arith.constant 0 : i32
    %c0_i32_0 = arith.constant 0 : i32
    return %arg0, %c0_i32 : i32, i32
  }
  func.func @transform_1(%arg0: i32) -> (i32, i32) {
    %c0_i32 = arith.constant 0 : i32
    %c0_i32_0 = arith.constant 0 : i32
    %c0_i32_1 = arith.constant 0 : i32
    return %c0_i32, %c0_i32_0 : i32, i32
  }
  func.func @transform_2(%arg0: i32) -> (i32, i32) {
    %c0_i32 = arith.constant 0 : i32
    %c0_i32_0 = arith.constant 0 : i32
    %c0_i32_1 = arith.constant 0 : i32
    return %c0_i32, %c0_i32_0 : i32, i32
  }
  func.func @transform_3(%arg0: i32) -> (i32, i32) {
    %c0_i32 = arith.constant 0 : i32
    %c0_i32_0 = arith.constant 0 : i32
    %c0_i32_1 = arith.constant 0 : i32
    return %c0_i32, %c0_i32_0 : i32, i32
  }
  func.func @transform_4(%arg0: i32) -> (i32, i32) {
    %c0_i32 = arith.constant 0 : i32
    %c0_i32_0 = arith.constant 0 : i32
    %c0_i32_1 = arith.constant 0 : i32
    return %c0_i32, %c0_i32_0 : i32, i32
  }
  func.func @transform_5(%arg0: i32) -> (i32, i32) {
    %c0_i32 = arith.constant 0 : i32
    %c0_i32_0 = arith.constant 0 : i32
    %c0_i32_1 = arith.constant 0 : i32
    return %c0_i32, %c0_i32_0 : i32, i32
  }
  func.func @transform_6(%arg0: i32) -> (i32, i32) {
    %c0_i32 = arith.constant 0 : i32
    %c0_i32_0 = arith.constant 0 : i32
    %c0_i32_1 = arith.constant 0 : i32
    return %c0_i32, %c0_i32_0 : i32, i32
  }
  func.func @transform_7(%arg0: i32) -> (i32, i32) {
    %c0_i32 = arith.constant 0 : i32
    %c0_i32_0 = arith.constant 0 : i32
    %c0_i32_1 = arith.constant 0 : i32
    return %c0_i32, %c0_i32_0 : i32, i32
  }
  func.func @transform_8(%arg0: i32) -> (i32, i32) {
    %c0_i32 = arith.constant 0 : i32
    %c0_i32_0 = arith.constant 0 : i32
    %c0_i32_1 = arith.constant 0 : i32
    return %c0_i32, %c0_i32_0 : i32, i32
  }
  func.func @transform_9(%arg0: i32) -> (i32, i32) {
    %c0_i32 = arith.constant 0 : i32
    %c0_i32_0 = arith.constant 0 : i32
    %c0_i32_1 = arith.constant 0 : i32
    return %c0_i32, %c0_i32_0 : i32, i32
  }
  func.func @transform_10(%arg0: i32) -> (i32, i32) {
    %c0_i32 = arith.constant 0 : i32
    %c0_i32_0 = arith.constant 0 : i32
    %c0_i32_1 = arith.constant 0 : i32
    return %c0_i32, %c0_i32_0 : i32, i32
  }
  func.func @transform_11(%arg0: i32) -> (i32, i32) {
    %c0_i32 = arith.constant 0 : i32
    %c0_i32_0 = arith.constant 0 : i32
    %c0_i32_1 = arith.constant 0 : i32
    return %c0_i32, %c0_i32_0 : i32, i32
  }
  func.func @transform_12(%arg0: i32) -> (i32, i32) {
    %c0_i32 = arith.constant 0 : i32
    %c0_i32_0 = arith.constant 0 : i32
    %c0_i32_1 = arith.constant 0 : i32
    return %c0_i32, %c0_i32_0 : i32, i32
  }
  func.func @transform_13(%arg0: i32) -> (i32, i32) {
    %c0_i32 = arith.constant 0 : i32
    %c0_i32_0 = arith.constant 0 : i32
    return %arg0, %c0_i32 : i32, i32
  }
}

</mosaic_0001>

<llo_original>
// kernel: tpu_custom_call.1
$region0: #{tpu_custom_call.1}
  #allocation0 [shape = 'u32[]', space=smem, size = 0x4, offset = 0x4, fixed_abs, tag = 'smem constant byte address 0x4 - core index']
  #allocation1 [shape = 'u32[144,128]{1,0:T(1,128)}', space=vmem, size = 0x12000, scoped, tag = 'internal scratch']
  %s0 = inlined_call_operand.hbm [shape: f32[8,2160], index: 0, kind: input, shape index: {}]
  %s1 = inlined_call_operand.hbm [shape: bf16[2160,1280], index: 1, kind: input, shape index: {}]
  %s2 = inlined_call_operand.hbm [shape: f32[1,1280], index: 2, kind: input, shape index: {}]
  %s3 = inlined_call_operand.hbm [shape: bf16[1280,640], index: 3, kind: input, shape index: {}]
  %s4 = inlined_call_operand.hbm [shape: f32[1,640], index: 4, kind: input, shape index: {}]
  %s5 = inlined_call_operand.vmem [shape: f32[640,60], index: 5, kind: input, shape index: {}]
  %s6 = inlined_call_operand.hbm [shape: f32[60,60], index: 6, kind: input, shape index: {}]
  %s7 = inlined_call_operand.hbm [shape: f32[60,60], index: 7, kind: input, shape index: {}]
  %s8 = inlined_call_operand.hbm [shape: f32[1,60], index: 8, kind: input, shape index: {}]
  %s9 = inlined_call_operand.vmem [shape: f32[60,12], index: 9, kind: input, shape index: {}]
  %s10 = inlined_call_operand.hbm [shape: f32[1,12], index: 10, kind: input, shape index: {}]
  %s11 = inlined_call_operand.hbm [shape: f32[12,12], index: 11, kind: input, shape index: {}]
  %s12 = inlined_call_operand.vmem [shape: f32[12,3], index: 12, kind: input, shape index: {}]
  %s13 = inlined_call_operand.vmem [shape: f32[8,3], index: 13, kind: output, shape index: {}]
  %s14 = sld [smem:[#allocation0]]
  $region102: #{tpu_custom_call.1} parent=0
    _
  %s16 = ssub.s32 1, %s14
  %s17 = scalar_select 0, %s16, %s14
  $region1: #{tpu_custom_call.1} parent=0
    #allocation2 [shape = 'u8[69632]{0}', space=vmem, size = 0x11000, scoped, tag = 'input window, operand 0, single buffered']
    #allocation3 [shape = 's32[1]{0}', space=sflag, size = 0x4, scoped, tag = 'scoped memory for tpu_custom_call.1']
    #allocation4 [shape = 'u8[5529600]{0}', space=vmem, size = 0x546000, scoped, tag = 'input window, operand 1, single buffered']
    #allocation5 [shape = 's32[1]{0}', space=sflag, size = 0x4, scoped, tag = 'scoped memory for tpu_custom_call.1']
    #allocation6 [shape = 'u8[5120]{0}', space=vmem, size = 0x1400, scoped, tag = 'input window, operand 2, single buffered']
    #allocation7 [shape = 'u8[1638400]{0}', space=vmem, size = 0x190000, scoped, tag = 'input window, operand 3, single buffered']
    #allocation8 [shape = 's32[1]{0}', space=sflag, size = 0x4, scoped, tag = 'scoped memory for tpu_custom_call.1']
    #allocation9 [shape = 'u8[2560]{0}', space=vmem, size = 0xc00, scoped, tag = 'input window, operand 4, single buffered']
    #allocation10 [shape = 'u8[32768]{0}', space=vmem, size = 0x8000, scoped, tag = 'input window, operand 6, single buffered']
    #allocation11 [shape = 's32[1]{0}', space=sflag, size = 0x4, scoped, tag = 'scoped memory for tpu_custom_call.1']
    #allocation12 [shape = 'u8[32768]{0}', space=vmem, size = 0x8000, scoped, tag = 'input window, operand 7, single buffered']
    #allocation13 [shape = 'u8[512]{0}', space=vmem, size = 0x400, scoped, tag = 'input window, operand 8, single buffered']
    #allocation14 [shape = 's32[1]{0}', space=sflag, size = 0x4, scoped, tag = 'scoped memory for tpu_custom_call.1']
    #allocation15 [shape = 'u8[512]{0}', space=vmem, size = 0x400, scoped, tag = 'input window, operand 10, single buffered']
    #allocation16 [shape = 'u8[8192]{0}', space=vmem, size = 0x2000, scoped, tag = 'input window, operand 11, single buffered']
    #allocation17 [shape = 's32[1]{0}', space=sflag, size = 0x4, scoped, tag = 'scoped memory for tpu_custom_call.1']
    %18 = vsyncpa [#allocation3], 0
    %19 = vsyncpa [#allocation5], 0
    %20 = vsyncpa [#allocation8], 0
    %21 = vsyncpa [#allocation11], 0
    %22 = vsyncpa [#allocation14], 0
    %23 = vsyncpa [#allocation17], 0
    // Predicated region
    $region2: #{tpu_custom_call.1} parent=1 // pred_check
      _
    $region3: #{tpu_custom_call.1} parent=1 // pred_check_branch
      %25 = sbr.rel (0) target = $region5
    $region4: #{tpu_custom_call.1} parent=1 // pred_region
      %s27 = ssub.s32 2176, 2176
      %28 = vsyncadd [#allocation3], %s27
      %s30 = sshll.u32 [#allocation2], 4
      %s31 = int_to_ptr.vmem [resolvable:$true] %s30
      %33 = dma.hbm_to_vmem [thread:$0]  %s0, 2176, %s31, [#allocation3]
    $region5: #{tpu_custom_call.1} parent=1 // pred_fallthru
      _
    // Predicated region
    $region6: #{tpu_custom_call.1} parent=1 // pred_check
      _
    $region7: #{tpu_custom_call.1} parent=1 // pred_check_branch
      %35 = sbr.rel (0) target = $region9
    $region8: #{tpu_custom_call.1} parent=1 // pred_region
      %s37 = ssub.s32 172800, 172800
      %38 = vsyncadd [#allocation5], %s37
      %s39 = sshll.u32 [#allocation4], 4
      %s40 = int_to_ptr.vmem [resolvable:$true] %s39
      %45 = dma.hbm_to_vmem [thread:$0]  %s1, 172800, %s40, [#allocation5], 640, 640, 40
    $region9: #{tpu_custom_call.1} parent=1 // pred_fallthru
      _
    // Predicated region
    $region10: #{tpu_custom_call.1} parent=1 // pred_check
      _
    $region11: #{tpu_custom_call.1} parent=1 // pred_check_branch
      %47 = sbr.rel (0) target = $region13
    $region12: #{tpu_custom_call.1} parent=1 // pred_region
      %s49 = ssub.s32 160, 160
      %50 = vsyncadd [#allocation5], %s49
      %s52 = sshll.u32 [#allocation6], 4
      %s53 = int_to_ptr.vmem [resolvable:$true] %s52
      %55 = dma.hbm_to_vmem [thread:$0]  %s2, 160, %s53, [#allocation5]
    $region13: #{tpu_custom_call.1} parent=1 // pred_fallthru
      _
    // Predicated region
    $region14: #{tpu_custom_call.1} parent=1 // pred_check
      _
    $region15: #{tpu_custom_call.1} parent=1 // pred_check_branch
      %57 = sbr.rel (0) target = $region17
    $region16: #{tpu_custom_call.1} parent=1 // pred_region
      %s59 = ssub.s32 51200, 51200
      %60 = vsyncadd [#allocation8], %s59
      %s61 = sshll.u32 [#allocation7], 4
      %s62 = int_to_ptr.vmem [resolvable:$true] %s61
      %67 = dma.hbm_to_vmem [thread:$0]  %s3, 51200, %s62, [#allocation8], 320, 320, 20
    $region17: #{tpu_custom_call.1} parent=1 // pred_fallthru
      _
    // Predicated region
    $region18: #{tpu_custom_call.1} parent=1 // pred_check
      _
    $region19: #{tpu_custom_call.1} parent=1 // pred_check_branch
      %69 = sbr.rel (0) target = $region21
    $region20: #{tpu_custom_call.1} parent=1 // pred_region
      %s71 = ssub.s32 80, 80
      %72 = vsyncadd [#allocation8], %s71
      %s74 = sshll.u32 [#allocation9], 4
      %s75 = int_to_ptr.vmem [resolvable:$true] %s74
      %77 = dma.hbm_to_vmem [thread:$0]  %s4, 80, %s75, [#allocation8]
    $region21: #{tpu_custom_call.1} parent=1 // pred_fallthru
      _
    // Predicated region
    $region22: #{tpu_custom_call.1} parent=1 // pred_check
      _
    $region23: #{tpu_custom_call.1} parent=1 // pred_check_branch
      %79 = sbr.rel (0) target = $region25
    $region24: #{tpu_custom_call.1} parent=1 // pred_region
      _
    $region25: #{tpu_custom_call.1} parent=1 // pred_fallthru
      _
    // Predicated region
    $region26: #{tpu_custom_call.1} parent=1 // pred_check
      _
    $region27: #{tpu_custom_call.1} parent=1 // pred_check_branch
      %81 = sbr.rel (0) target = $region29
    $region28: #{tpu_custom_call.1} parent=1 // pred_region
      %s83 = ssub.s32 1024, 1024
      %84 = vsyncadd [#allocation11], %s83
      %s85 = sshll.u32 [#allocation10], 4
      %s86 = int_to_ptr.vmem [resolvable:$true] %s85
      %91 = dma.hbm_to_vmem [thread:$0]  %s6, 1024, %s86, [#allocation11], 128, 128, 8
    $region29: #{tpu_custom_call.1} parent=1 // pred_fallthru
      _
    // Predicated region
    $region30: #{tpu_custom_call.1} parent=1 // pred_check
      _
    $region31: #{tpu_custom_call.1} parent=1 // pred_check_branch
      %93 = sbr.rel (0) target = $region33
    $region32: #{tpu_custom_call.1} parent=1 // pred_region
      %s95 = ssub.s32 1024, 1024
      %96 = vsyncadd [#allocation11], %s95
      %s97 = sshll.u32 [#allocation12], 4
      %s98 = int_to_ptr.vmem [resolvable:$true] %s97
      %103 = dma.hbm_to_vmem [thread:$0]  %s7, 1024, %s98, [#allocation11], 128, 128, 8
    $region33: #{tpu_custom_call.1} parent=1 // pred_fallthru
      _
    // Predicated region
    $region34: #{tpu_custom_call.1} parent=1 // pred_check
      _
    $region35: #{tpu_custom_call.1} parent=1 // pred_check_branch
      %105 = sbr.rel (0) target = $region37
    $region36: #{tpu_custom_call.1} parent=1 // pred_region
      %s107 = ssub.s32 16, 16
      %108 = vsyncadd [#allocation14], %s107
      %s110 = sshll.u32 [#allocation13], 4
      %s111 = int_to_ptr.vmem [resolvable:$true] %s110
      %113 = dma.hbm_to_vmem [thread:$0]  %s8, 16, %s111, [#allocation14]
    $region37: #{tpu_custom_call.1} parent=1 // pred_fallthru
      _
    // Predicated region
    $region38: #{tpu_custom_call.1} parent=1 // pred_check
      _
    $region39: #{tpu_custom_call.1} parent=1 // pred_check_branch
      %115 = sbr.rel (0) target = $region41
    $region40: #{tpu_custom_call.1} parent=1 // pred_region
      _
    $region41: #{tpu_custom_call.1} parent=1 // pred_fallthru
      _
    // Predicated region
    $region42: #{tpu_custom_call.1} parent=1 // pred_check
      _
    $region43: #{tpu_custom_call.1} parent=1 // pred_check_branch
      %117 = sbr.rel (0) target = $region45
    $region44: #{tpu_custom_call.1} parent=1 // pred_region
      %s119 = ssub.s32 16, 16
      %120 = vsyncadd [#allocation14], %s119
      %s122 = sshll.u32 [#allocation15], 4
      %s123 = int_to_ptr.vmem [resolvable:$true] %s122
      %125 = dma.hbm_to_vmem [thread:$0]  %s10, 16, %s123, [#allocation14]
    $region45: #{tpu_custom_call.1} parent=1 // pred_fallthru
      _
    // Predicated region
    $region46: #{tpu_custom_call.1} parent=1 // pred_check
      _
    $region47: #{tpu_custom_call.1} parent=1 // pred_check_branch
      %127 = sbr.rel (0) target = $region49
    $region48: #{tpu_custom_call.1} parent=1 // pred_region
      %s129 = ssub.s32 256, 256
      %130 = vsyncadd [#allocation17], %s129
      %s131 = sshll.u32 [#allocation16], 4
      %s132 = int_to_ptr.vmem [resolvable:$true] %s131
      %137 = dma.hbm_to_vmem [thread:$0]  %s11, 256, %s132, [#allocation17], 128, 128, 8
    $region49: #{tpu_custom_call.1} parent=1 // pred_fallthru
      _
    // Predicated region
    $region50: #{tpu_custom_call.1} parent=1 // pred_check
      _
    $region51: #{tpu_custom_call.1} parent=1 // pred_check_branch
      %139 = sbr.rel (0) target = $region53
    $region52: #{tpu_custom_call.1} parent=1 // pred_region
      _
    $region53: #{tpu_custom_call.1} parent=1 // pred_fallthru
      _
    // Predicated region
    $region54: #{tpu_custom_call.1} parent=1 // pred_check
      _
    $region55: #{tpu_custom_call.1} parent=1 // pred_check_branch
      %141 = sbr.rel (0) target = $region57
    $region56: #{tpu_custom_call.1} parent=1 // pred_region
      %142 = dma.done [#allocation3], 2176
    $region57: #{tpu_custom_call.1} parent=1 // pred_fallthru
      _
    // Predicated region
    $region58: #{tpu_custom_call.1} parent=1 // pred_check
      _
    $region59: #{tpu_custom_call.1} parent=1 // pred_check_branch
      %144 = sbr.rel (0) target = $region61
    $region60: #{tpu_custom_call.1} parent=1 // pred_region
      %145 = dma.done [#allocation5], 172800
    $region61: #{tpu_custom_call.1} parent=1 // pred_fallthru
      _
    // Predicated region
    $region62: #{tpu_custom_call.1} parent=1 // pred_check
      _
    $region63: #{tpu_custom_call.1} parent=1 // pred_check_branch
      %147 = sbr.rel (0) target = $region65
    $region64: #{tpu_custom_call.1} parent=1 // pred_region
      %148 = dma.done [#allocation5], 160
    $region65: #{tpu_custom_call.1} parent=1 // pred_fallthru
      _
    // Predicated region
    $region66: #{tpu_custom_call.1} parent=1 // pred_check
      _
    $region67: #{tpu_custom_call.1} parent=1 // pred_check_branch
      %150 = sbr.rel (0) target = $region69
    $region68: #{tpu_custom_call.1} parent=1 // pred_region
      %151 = dma.done [#allocation8], 51200
    $region69: #{tpu_custom_call.1} parent=1 // pred_fallthru
      _
    // Predicated region
    $region70: #{tpu_custom_call.1} parent=1 // pred_check
      _
    $region71: #{tpu_custom_call.1} parent=1 // pred_check_branch
      %153 = sbr.rel (0) target = $region73
    $region72: #{tpu_custom_call.1} parent=1 // pred_region
      %154 = dma.done [#allocation8], 80
    $region73: #{tpu_custom_call.1} parent=1 // pred_fallthru
      _
    // Predicated region
    $region74: #{tpu_custom_call.1} parent=1 // pred_check
      _
    $region75: #{tpu_custom_call.1} parent=1 // pred_check_branch
      %156 = sbr.rel (0) target = $region77
    $region76: #{tpu_custom_call.1} parent=1 // pred_region
      %157 = dma.done [#allocation11], 1024
    $region77: #{tpu_custom_call.1} parent=1 // pred_fallthru
      _
    // Predicated region
    $region78: #{tpu_custom_call.1} parent=1 // pred_check
      _
    $region79: #{tpu_custom_call.1} parent=1 // pred_check_branch
      %159 = sbr.rel (0) target = $region81
    $region80: #{tpu_custom_call.1} parent=1 // pred_region
      %160 = dma.done [#allocation11], 1024
    $region81: #{tpu_custom_call.1} parent=1 // pred_fallthru
      _
    // Predicated region
    $region82: #{tpu_custom_call.1} parent=1 // pred_check
      _
    $region83: #{tpu_custom_call.1} parent=1 // pred_check_branch
      %162 = sbr.rel (0) target = $region85
    $region84: #{tpu_custom_call.1} parent=1 // pred_region
      %163 = dma.done [#allocation14], 16
    $region85: #{tpu_custom_call.1} parent=1 // pred_fallthru
      _
    // Predicated region
    $region86: #{tpu_custom_call.1} parent=1 // pred_check
      _
    $region87: #{tpu_custom_call.1} parent=1 // pred_check_branch
      %165 = sbr.rel (0) target = $region89
    $region88: #{tpu_custom_call.1} parent=1 // pred_region
      %166 = dma.done [#allocation14], 16
    $region89: #{tpu_custom_call.1} parent=1 // pred_fallthru
      _
    // Predicated region
    $region90: #{tpu_custom_call.1} parent=1 // pred_check
      _
    $region91: #{tpu_custom_call.1} parent=1 // pred_check_branch
      %168 = sbr.rel (0) target = $region93
    $region92: #{tpu_custom_call.1} parent=1 // pred_region
      %169 = dma.done [#allocation17], 256
    $region93: #{tpu_custom_call.1} parent=1 // pred_fallthru
      _
    %v171 = vld [vmem:[#allocation2] sm:$0xff]
    %v172 = vld [vmem:[#allocation2 + $0x8] sm:$0xff]
    %v173 = vld [vmem:[#allocation2 + $0x10] sm:$0xff]
    %v174 = vld [vmem:[#allocation2 + $0x18] sm:$0xff]
    %v175 = vld [vmem:[#allocation2 + $0x20] sm:$0xff]
    %v176 = vld [vmem:[#allocation2 + $0x28] sm:$0xff]
    %v177 = vld [vmem:[#allocation2 + $0x30] sm:$0xff]
    %v178 = vld [vmem:[#allocation2 + $0x38] sm:$0xff]
    %v179 = vld [vmem:[#allocation2 + $0x40] sm:$0xff]
    %v180 = vld [vmem:[#allocation2 + $0x48] sm:$0xff]
    %v181 = vld [vmem:[#allocation2 + $0x50] sm:$0xff]
    %v182 = vld [vmem:[#allocation2 + $0x58] sm:$0xff]
    %v183 = vld [vmem:[#allocation2 + $0x60] sm:$0xff]
    %v184 = vld [vmem:[#allocation2 + $0x68] sm:$0xff]
    %v185 = vld [vmem:[#allocation2 + $0x70] sm:$0xff]
    %v186 = vld [vmem:[#allocation2 + $0x78] sm:$0xff]
    %v187 = vld [vmem:[#allocation2 + $0x80] sm:$0xff]
    %v188 = vpack.c.bf16 %v171, %v171
    %v189 = vpack.c.bf16 %v172, %v172
    %v190 = vpack.c.bf16 %v173, %v173
    %v191 = vpack.c.bf16 %v174, %v174
    %v192 = vpack.c.bf16 %v175, %v175
    %v193 = vpack.c.bf16 %v176, %v176
    %v194 = vpack.c.bf16 %v177, %v177
    %v195 = vpack.c.bf16 %v178, %v178
    %v196 = vpack.c.bf16 %v179, %v179
    %v197 = vpack.c.bf16 %v180, %v180
    %v198 = vpack.c.bf16 %v181, %v181
    %v199 = vpack.c.bf16 %v182, %v182
    %v200 = vpack.c.bf16 %v183, %v183
    %v201 = vpack.c.bf16 %v184, %v184
    %v202 = vpack.c.bf16 %v185, %v185
    %v203 = vpack.c.bf16 %v186, %v186
    %v204 = vpack.c.bf16 %v187, %v187
    %v205 = vld [vmem:[#allocation4] sm:$0xff]
    %v206 = vld [vmem:[#allocation4 + $0x8] sm:$0xff]
    %v207 = vld [vmem:[#allocation4 + $0x10] sm:$0xff]
    %v208 = vld [vmem:[#allocation4 + $0x18] sm:$0xff]
    %v209 = vld [vmem:[#allocation4 + $0x20] sm:$0xff]
    %v210 = vld [vmem:[#allocation4 + $0x28] sm:$0xff]
    %v211 = vld [vmem:[#allocation4 + $0x30] sm:$0xff]
    %v212 = vld [vmem:[#allocation4 + $0x38] sm:$0xff]
    %v213 = vld [vmem:[#allocation4 + $0x40] sm:$0xff]
    %v214 = vld [vmem:[#allocation4 + $0x48] sm:$0xff]
    %v215 = vld [vmem:[#allocation4 + $0x50] sm:$0xff]
    %v216 = vld [vmem:[#allocation4 + $0x58] sm:$0xff]
    %v217 = vld [vmem:[#allocation4 + $0x60] sm:$0xff]
    %v218 = vld [vmem:[#allocation4 + $0x68] sm:$0xff]
    %v219 = vld [vmem:[#allocation4 + $0x70] sm:$0xff]
    %v220 = vld [vmem:[#allocation4 + $0x78] sm:$0xff]
    %v221 = vld [vmem:[#allocation4 + $0x80] sm:$0xff]
    %v222 = vld [vmem:[#allocation4 + $0x88] sm:$0xff]
    %v223 = vld [vmem:[#allocation4 + $0x90] sm:$0xff]
    %v224 = vld [vmem:[#allocation4 + $0x98] sm:$0xff]
    %v225 = vld [vmem:[#allocation4 + $0xa0] sm:$0xff]
    %v226 = vld [vmem:[#allocation4 + $0xa8] sm:$0xff]
    %v227 = vld [vmem:[#allocation4 + $0xb0] sm:$0xff]
    %v228 = vld [vmem:[#allocation4 + $0xb8] sm:$0xff]
    %v229 = vld [vmem:[#allocation4 + $0xc0] sm:$0xff]
    %v230 = vld [vmem:[#allocation4 + $0xc8] sm:$0xff]
    %v231 = vld [vmem:[#allocation4 + $0xd0] sm:$0xff]
    %v232 = vld [vmem:[#allocation4 + $0xd8] sm:$0xff]
    %v233 = vld [vmem:[#allocation4 + $0xe0] sm:$0xff]
    %v234 = vld [vmem:[#allocation4 + $0xe8] sm:$0xff]
    %v235 = vld [vmem:[#allocation4 + $0xf0] sm:$0xff]
    %v236 = vld [vmem:[#allocation4 + $0xf8] sm:$0xff]
    %v237 = vld [vmem:[#allocation4 + $0x100] sm:$0xff]
    %v238 = vld [vmem:[#allocation4 + $0x108] sm:$0xff]
    %v239 = vld [vmem:[#allocation4 + $0x110] sm:$0xff]
    %v240 = vld [vmem:[#allocation4 + $0x118] sm:$0xff]
    %v241 = vld [vmem:[#allocation4 + $0x120] sm:$0xff]
    %v242 = vld [vmem:[#allocation4 + $0x128] sm:$0xff]
    %v243 = vld [vmem:[#allocation4 + $0x130] sm:$0xff]
    %v244 = vld [vmem:[#allocation4 + $0x138] sm:$0xff]
    %v245 = vld [vmem:[#allocation4 + $0x140] sm:$0xff]
    %v246 = vld [vmem:[#allocation4 + $0x148] sm:$0xff]
    %v247 = vld [vmem:[#allocation4 + $0x150] sm:$0xff]
    %v248 = vld [vmem:[#allocation4 + $0x158] sm:$0xff]
    %v249 = vld [vmem:[#allocation4 + $0x160] sm:$0xff]
    %v250 = vld [vmem:[#allocation4 + $0x168] sm:$0xff]
    %v251 = vld [vmem:[#allocation4 + $0x170] sm:$0xff]
    %v252 = vld [vmem:[#allocation4 + $0x178] sm:$0xff]
    %v253 = vld [vmem:[#allocation4 + $0x180] sm:$0xff]
    %v254 = vld [vmem:[#allocation4 + $0x188] sm:$0xff]
    %v255 = vld [vmem:[#allocation4 + $0x190] sm:$0xff]
    %v256 = vld [vmem:[#allocation4 + $0x198] sm:$0xff]
    %v257 = vld [vmem:[#allocation4 + $0x1a0] sm:$0xff]
    %v258 = vld [vmem:[#allocation4 + $0x1a8] sm:$0xff]
    %v259 = vld [vmem:[#allocation4 + $0x1b0] sm:$0xff]
    %v260 = vld [vmem:[#allocation4 + $0x1b8] sm:$0xff]
    %v261 = vld [vmem:[#allocation4 + $0x1c0] sm:$0xff]
    %v262 = vld [vmem:[#allocation4 + $0x1c8] sm:$0xff]
    %v263 = vld [vmem:[#allocation4 + $0x1d0] sm:$0xff]
    %v264 = vld [vmem:[#allocation4 + $0x1d8] sm:$0xff]
    %v265 = vld [vmem:[#allocation4 + $0x1e0] sm:$0xff]
    %v266 = vld [vmem:[#allocation4 + $0x1e8] sm:$0xff]
    %v267 = vld [vmem:[#allocation4 + $0x1f0] sm:$0xff]
    %v268 = vld [vmem:[#allocation4 + $0x1f8] sm:$0xff]
    %v269 = vld [vmem:[#allocation4 + $0x200] sm:$0xff]
    %v270 = vld [vmem:[#allocation4 + $0x208] sm:$0xff]
    %v271 = vld [vmem:[#allocation4 + $0x210] sm:$0xff]
    %v272 = vld [vmem:[#allocation4 + $0x218] sm:$0xff]
    %v273 = vld [vmem:[#allocation4 + $0x220] sm:$0xff]
    %v274 = vld [vmem:[#allocation4 + $0x228] sm:$0xff]
    %v275 = vld [vmem:[#allocation4 + $0x230] sm:$0xff]
    %v276 = vld [vmem:[#allocation4 + $0x238] sm:$0xff]
    %v277 = vld [vmem:[#allocation4 + $0x240] sm:$0xff]
    %v278 = vld [vmem:[#allocation4 + $0x248] sm:$0xff]
    %v279 = vld [vmem:[#allocation4 + $0x250] sm:$0xff]
    %v280 = vld [vmem:[#allocation4 + $0x258] sm:$0xff]
    %v281 = vld [vmem:[#allocation4 + $0x260] sm:$0xff]
    %v282 = vld [vmem:[#allocation4 + $0x268] sm:$0xff]
    %v283 = vld [vmem:[#allocation4 + $0x270] sm:$0xff]
    %v284 = vld [vmem:[#allocation4 + $0x278] sm:$0xff]
    %v285 = vld [vmem:[#allocation4 + $0x280] sm:$0xff]
    %v286 = vld [vmem:[#allocation4 + $0x288] sm:$0xff]
    %v287 = vld [vmem:[#allocation4 + $0x290] sm:$0xff]
    %v288 = vld [vmem:[#allocation4 + $0x298] sm:$0xff]
    %v289 = vld [vmem:[#allocation4 + $0x2a0] sm:$0xff]
    %v290 = vld [vmem:[#allocation4 + $0x2a8] sm:$0xff]
    %v291 = vld [vmem:[#allocation4 + $0x2b0] sm:$0xff]
    %v292 = vld [vmem:[#allocation4 + $0x2b8] sm:$0xff]
    %v293 = vld [vmem:[#allocation4 + $0x2c0] sm:$0xff]
    %v294 = vld [vmem:[#allocation4 + $0x2c8] sm:$0xff]
    %v295 = vld [vmem:[#allocation4 + $0x2d0] sm:$0xff]
    %v296 = vld [vmem:[#allocation4 + $0x2d8] sm:$0xff]
    %v297 = vld [vmem:[#allocation4 + $0x2e0] sm:$0xff]
    %v298 = vld [vmem:[#allocation4 + $0x2e8] sm:$0xff]
    %v299 = vld [vmem:[#allocation4 + $0x2f0] sm:$0xff]
    %v300 = vld [vmem:[#allocation4 + $0x2f8] sm:$0xff]
    %v301 = vld [vmem:[#allocation4 + $0x300] sm:$0xff]
    %v302 = vld [vmem:[#allocation4 + $0x308] sm:$0xff]
    %v303 = vld [vmem:[#allocation4 + $0x310] sm:$0xff]
    %v304 = vld [vmem:[#allocation4 + $0x318] sm:$0xff]
    %v305 = vld [vmem:[#allocation4 + $0x320] sm:$0xff]
    %v306 = vld [vmem:[#allocation4 + $0x328] sm:$0xff]
    %v307 = vld [vmem:[#allocation4 + $0x330] sm:$0xff]
    %v308 = vld [vmem:[#allocation4 + $0x338] sm:$0xff]
    %v309 = vld [vmem:[#allocation4 + $0x340] sm:$0xff]
    %v310 = vld [vmem:[#allocation4 + $0x348] sm:$0xff]
    %v311 = vld [vmem:[#allocation4 + $0x350] sm:$0xff]
    %v312 = vld [vmem:[#allocation4 + $0x358] sm:$0xff]
    %v313 = vld [vmem:[#allocation4 + $0x360] sm:$0xff]
    %v314 = vld [vmem:[#allocation4 + $0x368] sm:$0xff]
    %v315 = vld [vmem:[#allocation4 + $0x370] sm:$0xff]
    %v316 = vld [vmem:[#allocation4 + $0x378] sm:$0xff]
    %v317 = vld [vmem:[#allocation4 + $0x380] sm:$0xff]
    %v318 = vld [vmem:[#allocation4 + $0x388] sm:$0xff]
    %v319 = vld [vmem:[#allocation4 + $0x390] sm:$0xff]
    %v320 = vld [vmem:[#allocation4 + $0x398] sm:$0xff]
    %v321 = vld [vmem:[#allocation4 + $0x3a0] sm:$0xff]
    %v322 = vld [vmem:[#allocation4 + $0x3a8] sm:$0xff]
    %v323 = vld [vmem:[#allocation4 + $0x3b0] sm:$0xff]
    %v324 = vld [vmem:[#allocation4 + $0x3b8] sm:$0xff]
    %v325 = vld [vmem:[#allocation4 + $0x3c0] sm:$0xff]
    %v326 = vld [vmem:[#allocation4 + $0x3c8] sm:$0xff]
    %v327 = vld [vmem:[#allocation4 + $0x3d0] sm:$0xff]
    %v328 = vld [vmem:[#allocation4 + $0x3d8] sm:$0xff]
    %v329 = vld [vmem:[#allocation4 + $0x3e0] sm:$0xff]
    %v330 = vld [vmem:[#allocation4 + $0x3e8] sm:$0xff]
    %v331 = vld [vmem:[#allocation4 + $0x3f0] sm:$0xff]
    %v332 = vld [vmem:[#allocation4 + $0x3f8] sm:$0xff]
    %v333 = vld [vmem:[#allocation4 + $0x400] sm:$0xff]
    %v334 = vld [vmem:[#allocation4 + $0x408] sm:$0xff]
    %v335 = vld [vmem:[#allocation4 + $0x410] sm:$0xff]
    %v336 = vld [vmem:[#allocation4 + $0x418] sm:$0xff]
    %v337 = vld [vmem:[#allocation4 + $0x420] sm:$0xff]
    %v338 = vld [vmem:[#allocation4 + $0x428] sm:$0xff]
    %v339 = vld [vmem:[#allocation4 + $0x430] sm:$0xff]
    %v340 = vld [vmem:[#allocation4 + $0x438] sm:$0xff]
    %v341 = vld [vmem:[#allocation4 + $0x440] sm:$0xff]
    %v342 = vld [vmem:[#allocation4 + $0x448] sm:$0xff]
    %v343 = vld [vmem:[#allocation4 + $0x450] sm:$0xff]
    %v344 = vld [vmem:[#allocation4 + $0x458] sm:$0xff]
    %v345 = vld [vmem:[#allocation4 + $0x460] sm:$0xff]
    %v346 = vld [vmem:[#allocation4 + $0x468] sm:$0xff]
    %v347 = vld [vmem:[#allocation4 + $0x470] sm:$0xff]
    %v348 = vld [vmem:[#allocation4 + $0x478] sm:$0xff]
    %v349 = vld [vmem:[#allocation4 + $0x480] sm:$0xff]
    %v350 = vld [vmem:[#allocation4 + $0x488] sm:$0xff]
    %v351 = vld [vmem:[#allocation4 + $0x490] sm:$0xff]
    %v352 = vld [vmem:[#allocation4 + $0x498] sm:$0xff]
    %v353 = vld [vmem:[#allocation4 + $0x4a0] sm:$0xff]
    %v354 = vld [vmem:[#allocation4 + $0x4a8] sm:$0xff]
    %v355 = vld [vmem:[#allocation4 + $0x4b0] sm:$0xff]
    %v356 = vld [vmem:[#allocation4 + $0x4b8] sm:$0xff]
    %v357 = vld [vmem:[#allocation4 + $0x4c0] sm:$0xff]
    %v358 = vld [vmem:[#allocation4 + $0x4c8] sm:$0xff]
    %v359 = vld [vmem:[#allocation4 + $0x4d0] sm:$0xff]
    %v360 = vld [vmem:[#allocation4 + $0x4d8] sm:$0xff]
    %v361 = vld [vmem:[#allocation4 + $0x4e0] sm:$0xff]
    %v362 = vld [vmem:[#allocation4 + $0x4e8] sm:$0xff]
    %v363 = vld [vmem:[#allocation4 + $0x4f0] sm:$0xff]
    %v364 = vld [vmem:[#allocation4 + $0x4f8] sm:$0xff]
    %v365 = vld [vmem:[#allocation4 + $0x500] sm:$0xff]
    %v366 = vld [vmem:[#allocation4 + $0x508] sm:$0xff]
    %v367 = vld [vmem:[#allocation4 + $0x510] sm:$0xff]
    %v368 = vld [vmem:[#allocation4 + $0x518] sm:$0xff]
    %v369 = vld [vmem:[#allocation4 + $0x520] sm:$0xff]
    %v370 = vld [vmem:[#allocation4 + $0x528] sm:$0xff]
    %v371 = vld [vmem:[#allocation4 + $0x530] sm:$0xff]
    %v372 = vld [vmem:[#allocation4 + $0x538] sm:$0xff]
    %v373 = vld [vmem:[#allocation4 + $0x540] sm:$0xff]
    %v374 = vld [vmem:[#allocation4 + $0x548] sm:$0xff]
    %v375 = vld [vmem:[#allocation4 + $0x550] sm:$0xff]
    %v376 = vld [vmem:[#allocation4 + $0x558] sm:$0xff]
    %v377 = vld [vmem:[#allocation4 + $0x560] sm:$0xff]
    %v378 = vld [vmem:[#allocation4 + $0x568] sm:$0xff]
    %v379 = vld [vmem:[#allocation4 + $0x570] sm:$0xff]
    %v380 = vld [vmem:[#allocation4 + $0x578] sm:$0xff]
    %v381 = vld [vmem:[#allocation4 + $0x580] sm:$0xff]
    %v382 = vld [vmem:[#allocation4 + $0x588] sm:$0xff]
    %v383 = vld [vmem:[#allocation4 + $0x590] sm:$0xff]
    %v384 = vld [vmem:[#allocation4 + $0x598] sm:$0xff]
    %v385 = vld [vmem:[#allocation4 + $0x5a0] sm:$0xff]
    %v386 = vld [vmem:[#allocation4 + $0x5a8] sm:$0xff]
    %v387 = vld [vmem:[#allocation4 + $0x5b0] sm:$0xff]
    %v388 = vld [vmem:[#allocation4 + $0x5b8] sm:$0xff]
    %v389 = vld [vmem:[#allocation4 + $0x5c0] sm:$0xff]
    %v390 = vld [vmem:[#allocation4 + $0x5c8] sm:$0xff]
    %v391 = vld [vmem:[#allocation4 + $0x5d0] sm:$0xff]
    %v392 = vld [vmem:[#allocation4 + $0x5d8] sm:$0xff]
    %v393 = vld [vmem:[#allocation4 + $0x5e0] sm:$0xff]
    %v394 = vld [vmem:[#allocation4 + $0x5e8] sm:$0xff]
    %v395 = vld [vmem:[#allocation4 + $0x5f0] sm:$0xff]
    %v396 = vld [vmem:[#allocation4 + $0x5f8] sm:$0xff]
    %v397 = vld [vmem:[#allocation4 + $0x600] sm:$0xff]
    %v398 = vld [vmem:[#allocation4 + $0x608] sm:$0xff]
    %v399 = vld [vmem:[#allocation4 + $0x610] sm:$0xff]
    %v400 = vld [vmem:[#allocation4 + $0x618] sm:$0xff]
    %v401 = vld [vmem:[#allocation4 + $0x620] sm:$0xff]
    %v402 = vld [vmem:[#allocation4 + $0x628] sm:$0xff]
    %v403 = vld [vmem:[#allocation4 + $0x630] sm:$0xff]
    %v404 = vld [vmem:[#allocation4 + $0x638] sm:$0xff]
    %v405 = vld [vmem:[#allocation4 + $0x640] sm:$0xff]
    %v406 = vld [vmem:[#allocation4 + $0x648] sm:$0xff]
    %v407 = vld [vmem:[#allocation4 + $0x650] sm:$0xff]
    %v408 = vld [vmem:[#allocation4 + $0x658] sm:$0xff]
    %v409 = vld [vmem:[#allocation4 + $0x660] sm:$0xff]
    %v410 = vld [vmem:[#allocation4 + $0x668] sm:$0xff]
    %v411 = vld [vmem:[#allocation4 + $0x670] sm:$0xff]
    %v412 = vld [vmem:[#allocation4 + $0x678] sm:$0xff]
    %v413 = vld [vmem:[#allocation4 + $0x680] sm:$0xff]
    %v414 = vld [vmem:[#allocation4 + $0x688] sm:$0xff]
    %v415 = vld [vmem:[#allocation4 + $0x690] sm:$0xff]
    %v416 = vld [vmem:[#allocation4 + $0x698] sm:$0xff]
    %v417 = vld [vmem:[#allocation4 + $0x6a0] sm:$0xff]
    %v418 = vld [vmem:[#allocation4 + $0x6a8] sm:$0xff]
    %v419 = vld [vmem:[#allocation4 + $0x6b0] sm:$0xff]
    %v420 = vld [vmem:[#allocation4 + $0x6b8] sm:$0xff]
    %v421 = vld [vmem:[#allocation4 + $0x6c0] sm:$0xff]
    %v422 = vld [vmem:[#allocation4 + $0x6c8] sm:$0xff]
    %v423 = vld [vmem:[#allocation4 + $0x6d0] sm:$0xff]
    %v424 = vld [vmem:[#allocation4 + $0x6d8] sm:$0xff]
    %v425 = vld [vmem:[#allocation4 + $0x6e0] sm:$0xff]
    %v426 = vld [vmem:[#allocation4 + $0x6e8] sm:$0xff]
    %v427 = vld [vmem:[#allocation4 + $0x6f0] sm:$0xff]
    %v428 = vld [vmem:[#allocation4 + $0x6f8] sm:$0xff]
    %v429 = vld [vmem:[#allocation4 + $0x700] sm:$0xff]
    %v430 = vld [vmem:[#allocation4 + $0x708] sm:$0xff]
    %v431 = vld [vmem:[#allocation4 + $0x710] sm:$0xff]
    %v432 = vld [vmem:[#allocation4 + $0x718] sm:$0xff]
    %v433 = vld [vmem:[#allocation4 + $0x720] sm:$0xff]
    %v434 = vld [vmem:[#allocation4 + $0x728] sm:$0xff]
    %v435 = vld [vmem:[#allocation4 + $0x730] sm:$0xff]
    %v436 = vld [vmem:[#allocation4 + $0x738] sm:$0xff]
    %v437 = vld [vmem:[#allocation4 + $0x740] sm:$0xff]
    %v438 = vld [vmem:[#allocation4 + $0x748] sm:$0xff]
    %v439 = vld [vmem:[#allocation4 + $0x750] sm:$0xff]
    %v440 = vld [vmem:[#allocation4 + $0x758] sm:$0xff]
    %v441 = vld [vmem:[#allocation4 + $0x760] sm:$0xff]
    %v442 = vld [vmem:[#allocation4 + $0x768] sm:$0xff]
    %v443 = vld [vmem:[#allocation4 + $0x770] sm:$0xff]
    %v444 = vld [vmem:[#allocation4 + $0x778] sm:$0xff]
    %v445 = vld [vmem:[#allocation4 + $0x780] sm:$0xff]
    %v446 = vld [vmem:[#allocation4 + $0x788] sm:$0xff]
    %v447 = vld [vmem:[#allocation4 + $0x790] sm:$0xff]
    %v448 = vld [vmem:[#allocation4 + $0x798] sm:$0xff]
    %v449 = vld [vmem:[#allocation4 + $0x7a0] sm:$0xff]
    %v450 = vld [vmem:[#allocation4 + $0x7a8] sm:$0xff]
    %v451 = vld [vmem:[#allocation4 + $0x7b0] sm:$0xff]
    %v452 = vld [vmem:[#allocation4 + $0x7b8] sm:$0xff]
    %v453 = vld [vmem:[#allocation4 + $0x7c0] sm:$0xff]
    %v454 = vld [vmem:[#allocation4 + $0x7c8] sm:$0xff]
    %v455 = vld [vmem:[#allocation4 + $0x7d0] sm:$0xff]
    %v456 = vld [vmem:[#allocation4 + $0x7d8] sm:$0xff]
    %v457 = vld [vmem:[#allocation4 + $0x7e0] sm:$0xff]
    %v458 = vld [vmem:[#allocation4 + $0x7e8] sm:$0xff]
    %v459 = vld [vmem:[#allocation4 + $0x7f0] sm:$0xff]
    %v460 = vld [vmem:[#allocation4 + $0x7f8] sm:$0xff]
    %v461 = vld [vmem:[#allocation4 + $0x800] sm:$0xff]
    %v462 = vld [vmem:[#allocation4 + $0x808] sm:$0xff]
    %v463 = vld [vmem:[#allocation4 + $0x810] sm:$0xff]
    %v464 = vld [vmem:[#allocation4 + $0x818] sm:$0xff]
    %v465 = vld [vmem:[#allocation4 + $0x820] sm:$0xff]
    %v466 = vld [vmem:[#allocation4 + $0x828] sm:$0xff]
    %v467 = vld [vmem:[#allocation4 + $0x830] sm:$0xff]
    %v468 = vld [vmem:[#allocation4 + $0x838] sm:$0xff]
    %v469 = vld [vmem:[#allocation4 + $0x840] sm:$0xff]
    %v470 = vld [vmem:[#allocation4 + $0x848] sm:$0xff]
    %v471 = vld [vmem:[#allocation4 + $0x850] sm:$0xff]
    %v472 = vld [vmem:[#allocation4 + $0x858] sm:$0xff]
    %v473 = vld [vmem:[#allocation4 + $0x860] sm:$0xff]
    %v474 = vld [vmem:[#allocation4 + $0x868] sm:$0xff]
    %v475 = vld [vmem:[#allocation4 + $0x870] sm:$0xff]
    %v476 = vld [vmem:[#allocation4 + $0x878] sm:$0xff]
    %v477 = vld [vmem:[#allocation4 + $0x880] sm:$0xff]
    %v478 = vld [vmem:[#allocation4 + $0x888] sm:$0xff]
    %v479 = vld [vmem:[#allocation4 + $0x890] sm:$0xff]
    %v480 = vld [vmem:[#allocation4 + $0x898] sm:$0xff]
    %v481 = vld [vmem:[#allocation4 + $0x8a0] sm:$0xff]
    %v482 = vld [vmem:[#allocation4 + $0x8a8] sm:$0xff]
    %v483 = vld [vmem:[#allocation4 + $0x8b0] sm:$0xff]
    %v484 = vld [vmem:[#allocation4 + $0x8b8] sm:$0xff]
    %v485 = vld [vmem:[#allocation4 + $0x8c0] sm:$0xff]
    %v486 = vld [vmem:[#allocation4 + $0x8c8] sm:$0xff]
    %v487 = vld [vmem:[#allocation4 + $0x8d0] sm:$0xff]
    %v488 = vld [vmem:[#allocation4 + $0x8d8] sm:$0xff]
    %v489 = vld [vmem:[#allocation4 + $0x8e0] sm:$0xff]
    %v490 = vld [vmem:[#allocation4 + $0x8e8] sm:$0xff]
    %v491 = vld [vmem:[#allocation4 + $0x8f0] sm:$0xff]
    %v492 = vld [vmem:[#allocation4 + $0x8f8] sm:$0xff]
    %v493 = vld [vmem:[#allocation4 + $0x900] sm:$0xff]
    %v494 = vld [vmem:[#allocation4 + $0x908] sm:$0xff]
    %v495 = vld [vmem:[#allocation4 + $0x910] sm:$0xff]
    %v496 = vld [vmem:[#allocation4 + $0x918] sm:$0xff]
    %v497 = vld [vmem:[#allocation4 + $0x920] sm:$0xff]
    %v498 = vld [vmem:[#allocation4 + $0x928] sm:$0xff]
    %v499 = vld [vmem:[#allocation4 + $0x930] sm:$0xff]
    %v500 = vld [vmem:[#allocation4 + $0x938] sm:$0xff]
    %v501 = vld [vmem:[#allocation4 + $0x940] sm:$0xff]
    %v502 = vld [vmem:[#allocation4 + $0x948] sm:$0xff]
    %v503 = vld [vmem:[#allocation4 + $0x950] sm:$0xff]
    %v504 = vld [vmem:[#allocation4 + $0x958] sm:$0xff]
    %v505 = vld [vmem:[#allocation4 + $0x960] sm:$0xff]
    %v506 = vld [vmem:[#allocation4 + $0x968] sm:$0xff]
    %v507 = vld [vmem:[#allocation4 + $0x970] sm:$0xff]
    %v508 = vld [vmem:[#allocation4 + $0x978] sm:$0xff]
    %v509 = vld [vmem:[#allocation4 + $0x980] sm:$0xff]
    %v510 = vld [vmem:[#allocation4 + $0x988] sm:$0xff]
    %v511 = vld [vmem:[#allocation4 + $0x990] sm:$0xff]
    %v512 = vld [vmem:[#allocation4 + $0x998] sm:$0xff]
    %v513 = vld [vmem:[#allocation4 + $0x9a0] sm:$0xff]
    %v514 = vld [vmem:[#allocation4 + $0x9a8] sm:$0xff]
    %v515 = vld [vmem:[#allocation4 + $0x9b0] sm:$0xff]
    %v516 = vld [vmem:[#allocation4 + $0x9b8] sm:$0xff]
    %v517 = vld [vmem:[#allocation4 + $0x9c0] sm:$0xff]
    %v518 = vld [vmem:[#allocation4 + $0x9c8] sm:$0xff]
    %v519 = vld [vmem:[#allocation4 + $0x9d0] sm:$0xff]
    %v520 = vld [vmem:[#allocation4 + $0x9d8] sm:$0xff]
    %v521 = vld [vmem:[#allocation4 + $0x9e0] sm:$0xff]
    %v522 = vld [vmem:[#allocation4 + $0x9e8] sm:$0xff]
    %v523 = vld [vmem:[#allocation4 + $0x9f0] sm:$0xff]
    %v524 = vld [vmem:[#allocation4 + $0x9f8] sm:$0xff]
    %v525 = vld [vmem:[#allocation4 + $0xa00] sm:$0xff]
    %v526 = vld [vmem:[#allocation4 + $0xa08] sm:$0xff]
    %v527 = vld [vmem:[#allocation4 + $0xa10] sm:$0xff]
    %v528 = vld [vmem:[#allocation4 + $0xa18] sm:$0xff]
    %v529 = vld [vmem:[#allocation4 + $0xa20] sm:$0xff]
    %v530 = vld [vmem:[#allocation4 + $0xa28] sm:$0xff]
    %v531 = vld [vmem:[#allocation4 + $0xa30] sm:$0xff]
    %v532 = vld [vmem:[#allocation4 + $0xa38] sm:$0xff]
    %v533 = vld [vmem:[#allocation4 + $0xa40] sm:$0xff]
    %v534 = vld [vmem:[#allocation4 + $0xa48] sm:$0xff]
    %v535 = vld [vmem:[#allocation4 + $0xa50] sm:$0xff]
    %v536 = vld [vmem:[#allocation4 + $0xa58] sm:$0xff]
    %v537 = vld [vmem:[#allocation4 + $0xa60] sm:$0xff]
    %v538 = vld [vmem:[#allocation4 + $0xa68] sm:$0xff]
    %v539 = vld [vmem:[#allocation4 + $0xa70] sm:$0xff]
    %v540 = vld [vmem:[#allocation4 + $0xa78] sm:$0xff]
    %v541 = vld [vmem:[#allocation4 + $0xa80] sm:$0xff]
    %v542 = vld [vmem:[#allocation4 + $0xa88] sm:$0xff]
    %v543 = vld [vmem:[#allocation4 + $0xa90] sm:$0xff]
    %v544 = vld [vmem:[#allocation4 + $0xa98] sm:$0xff]
    %v545 = vld [vmem:[#allocation4 + $0xaa0] sm:$0xff]
    %v546 = vld [vmem:[#allocation4 + $0xaa8] sm:$0xff]
    %v547 = vld [vmem:[#allocation4 + $0xab0] sm:$0xff]
    %v548 = vld [vmem:[#allocation4 + $0xab8] sm:$0xff]
    %v549 = vld [vmem:[#allocation4 + $0xac0] sm:$0xff]
    %v550 = vld [vmem:[#allocation4 + $0xac8] sm:$0xff]
    %v551 = vld [vmem:[#allocation4 + $0xad0] sm:$0xff]
    %v552 = vld [vmem:[#allocation4 + $0xad8] sm:$0xff]
    %v553 = vld [vmem:[#allocation4 + $0xae0] sm:$0xff]
    %v554 = vld [vmem:[#allocation4 + $0xae8] sm:$0xff]
    %v555 = vld [vmem:[#allocation4 + $0xaf0] sm:$0xff]
    %v556 = vld [vmem:[#allocation4 + $0xaf8] sm:$0xff]
    %v557 = vld [vmem:[#allocation4 + $0xb00] sm:$0xff]
    %v558 = vld [vmem:[#allocation4 + $0xb08] sm:$0xff]
    %v559 = vld [vmem:[#allocation4 + $0xb10] sm:$0xff]
    %v560 = vld [vmem:[#allocation4 + $0xb18] sm:$0xff]
    %v561 = vld [vmem:[#allocation4 + $0xb20] sm:$0xff]
    %v562 = vld [vmem:[#allocation4 + $0xb28] sm:$0xff]
    %v563 = vld [vmem:[#allocation4 + $0xb30] sm:$0xff]
    %v564 = vld [vmem:[#allocation4 + $0xb38] sm:$0xff]
    %v565 = vld [vmem:[#allocation4 + $0xb40] sm:$0xff]
    %v566 = vld [vmem:[#allocation4 + $0xb48] sm:$0xff]
    %v567 = vld [vmem:[#allocation4 + $0xb50] sm:$0xff]
    %v568 = vld [vmem:[#allocation4 + $0xb58] sm:$0xff]
    %v569 = vld [vmem:[#allocation4 + $0xb60] sm:$0xff]
    %v570 = vld [vmem:[#allocation4 + $0xb68] sm:$0xff]
    %v571 = vld [vmem:[#allocation4 + $0xb70] sm:$0xff]
    %v572 = vld [vmem:[#allocation4 + $0xb78] sm:$0xff]
    %v573 = vld [vmem:[#allocation4 + $0xb80] sm:$0xff]
    %v574 = vld [vmem:[#allocation4 + $0xb88] sm:$0xff]
    %v575 = vld [vmem:[#allocation4 + $0xb90] sm:$0xff]
    %v576 = vld [vmem:[#allocation4 + $0xb98] sm:$0xff]
    %v577 = vld [vmem:[#allocation4 + $0xba0] sm:$0xff]
    %v578 = vld [vmem:[#allocation4 + $0xba8] sm:$0xff]
    %v579 = vld [vmem:[#allocation4 + $0xbb0] sm:$0xff]
    %v580 = vld [vmem:[#allocation4 + $0xbb8] sm:$0xff]
    %v581 = vld [vmem:[#allocation4 + $0xbc0] sm:$0xff]
    %v582 = vld [vmem:[#allocation4 + $0xbc8] sm:$0xff]
    %v583 = vld [vmem:[#allocation4 + $0xbd0] sm:$0xff]
    %v584 = vld [vmem:[#allocation4 + $0xbd8] sm:$0xff]
    %v585 = vld [vmem:[#allocation4 + $0xbe0] sm:$0xff]
    %v586 = vld [vmem:[#allocation4 + $0xbe8] sm:$0xff]
    %v587 = vld [vmem:[#allocation4 + $0xbf0] sm:$0xff]
    %v588 = vld [vmem:[#allocation4 + $0xbf8] sm:$0xff]
    %v589 = vld [vmem:[#allocation4 + $0xc00] sm:$0xff]
    %v590 = vld [vmem:[#allocation4 + $0xc08] sm:$0xff]
    %v591 = vld [vmem:[#allocation4 + $0xc10] sm:$0xff]
    %v592 = vld [vmem:[#allocation4 + $0xc18] sm:$0xff]
    %v593 = vld [vmem:[#allocation4 + $0xc20] sm:$0xff]
    %v594 = vld [vmem:[#allocation4 + $0xc28] sm:$0xff]
    %v595 = vld [vmem:[#allocation4 + $0xc30] sm:$0xff]
    %v596 = vld [vmem:[#allocation4 + $0xc38] sm:$0xff]
    %v597 = vld [vmem:[#allocation4 + $0xc40] sm:$0xff]
    %v598 = vld [vmem:[#allocation4 + $0xc48] sm:$0xff]
    %v599 = vld [vmem:[#allocation4 + $0xc50] sm:$0xff]
    %v600 = vld [vmem:[#allocation4 + $0xc58] sm:$0xff]
    %v601 = vld [vmem:[#allocation4 + $0xc60] sm:$0xff]
    %v602 = vld [vmem:[#allocation4 + $0xc68] sm:$0xff]
    %v603 = vld [vmem:[#allocation4 + $0xc70] sm:$0xff]
    %v604 = vld [vmem:[#allocation4 + $0xc78] sm:$0xff]
    %v605 = vld [vmem:[#allocation4 + $0xc80] sm:$0xff]
    %v606 = vld [vmem:[#allocation4 + $0xc88] sm:$0xff]
    %v607 = vld [vmem:[#allocation4 + $0xc90] sm:$0xff]
    %v608 = vld [vmem:[#allocation4 + $0xc98] sm:$0xff]
    %v609 = vld [vmem:[#allocation4 + $0xca0] sm:$0xff]
    %v610 = vld [vmem:[#allocation4 + $0xca8] sm:$0xff]
    %v611 = vld [vmem:[#allocation4 + $0xcb0] sm:$0xff]
    %v612 = vld [vmem:[#allocation4 + $0xcb8] sm:$0xff]
    %v613 = vld [vmem:[#allocation4 + $0xcc0] sm:$0xff]
    %v614 = vld [vmem:[#allocation4 + $0xcc8] sm:$0xff]
    %v615 = vld [vmem:[#allocation4 + $0xcd0] sm:$0xff]
    %v616 = vld [vmem:[#allocation4 + $0xcd8] sm:$0xff]
    %v617 = vld [vmem:[#allocation4 + $0xce0] sm:$0xff]
    %v618 = vld [vmem:[#allocation4 + $0xce8] sm:$0xff]
    %v619 = vld [vmem:[#allocation4 + $0xcf0] sm:$0xff]
    %v620 = vld [vmem:[#allocation4 + $0xcf8] sm:$0xff]
    %v621 = vld [vmem:[#allocation4 + $0xd00] sm:$0xff]
    %v622 = vld [vmem:[#allocation4 + $0xd08] sm:$0xff]
    %v623 = vld [vmem:[#allocation4 + $0xd10] sm:$0xff]
    %v624 = vld [vmem:[#allocation4 + $0xd18] sm:$0xff]
    %v625 = vld [vmem:[#allocation4 + $0xd20] sm:$0xff]
    %v626 = vld [vmem:[#allocation4 + $0xd28] sm:$0xff]
    %v627 = vld [vmem:[#allocation4 + $0xd30] sm:$0xff]
    %v628 = vld [vmem:[#allocation4 + $0xd38] sm:$0xff]
    %v629 = vld [vmem:[#allocation4 + $0xd40] sm:$0xff]
    %v630 = vld [vmem:[#allocation4 + $0xd48] sm:$0xff]
    %v631 = vld [vmem:[#allocation4 + $0xd50] sm:$0xff]
    %v632 = vld [vmem:[#allocation4 + $0xd58] sm:$0xff]
    %v633 = vld [vmem:[#allocation4 + $0xd60] sm:$0xff]
    %v634 = vld [vmem:[#allocation4 + $0xd68] sm:$0xff]
    %v635 = vld [vmem:[#allocation4 + $0xd70] sm:$0xff]
    %v636 = vld [vmem:[#allocation4 + $0xd78] sm:$0xff]
    %v637 = vld [vmem:[#allocation4 + $0xd80] sm:$0xff]
    %v638 = vld [vmem:[#allocation4 + $0xd88] sm:$0xff]
    %v639 = vld [vmem:[#allocation4 + $0xd90] sm:$0xff]
    %v640 = vld [vmem:[#allocation4 + $0xd98] sm:$0xff]
    %v641 = vld [vmem:[#allocation4 + $0xda0] sm:$0xff]
    %v642 = vld [vmem:[#allocation4 + $0xda8] sm:$0xff]
    %v643 = vld [vmem:[#allocation4 + $0xdb0] sm:$0xff]
    %v644 = vld [vmem:[#allocation4 + $0xdb8] sm:$0xff]
    %v645 = vld [vmem:[#allocation4 + $0xdc0] sm:$0xff]
    %v646 = vld [vmem:[#allocation4 + $0xdc8] sm:$0xff]
    %v647 = vld [vmem:[#allocation4 + $0xdd0] sm:$0xff]
    %v648 = vld [vmem:[#allocation4 + $0xdd8] sm:$0xff]
    %v649 = vld [vmem:[#allocation4 + $0xde0] sm:$0xff]
    %v650 = vld [vmem:[#allocation4 + $0xde8] sm:$0xff]
    %v651 = vld [vmem:[#allocation4 + $0xdf0] sm:$0xff]
    %v652 = vld [vmem:[#allocation4 + $0xdf8] sm:$0xff]
    %v653 = vld [vmem:[#allocation4 + $0xe00] sm:$0xff]
    %v654 = vld [vmem:[#allocation4 + $0xe08] sm:$0xff]
    %v655 = vld [vmem:[#allocation4 + $0xe10] sm:$0xff]
    %v656 = vld [vmem:[#allocation4 + $0xe18] sm:$0xff]
    %v657 = vld [vmem:[#allocation4 + $0xe20] sm:$0xff]
    %v658 = vld [vmem:[#allocation4 + $0xe28] sm:$0xff]
    %v659 = vld [vmem:[#allocation4 + $0xe30] sm:$0xff]
    %v660 = vld [vmem:[#allocation4 + $0xe38] sm:$0xff]
    %v661 = vld [vmem:[#allocation4 + $0xe40] sm:$0xff]
    %v662 = vld [vmem:[#allocation4 + $0xe48] sm:$0xff]
    %v663 = vld [vmem:[#allocation4 + $0xe50] sm:$0xff]
    %v664 = vld [vmem:[#allocation4 + $0xe58] sm:$0xff]
    %v665 = vld [vmem:[#allocation4 + $0xe60] sm:$0xff]
    %v666 = vld [vmem:[#allocation4 + $0xe68] sm:$0xff]
    %v667 = vld [vmem:[#allocation4 + $0xe70] sm:$0xff]
    %v668 = vld [vmem:[#allocation4 + $0xe78] sm:$0xff]
    %v669 = vld [vmem:[#allocation4 + $0xe80] sm:$0xff]
    %v670 = vld [vmem:[#allocation4 + $0xe88] sm:$0xff]
    %v671 = vld [vmem:[#allocation4 + $0xe90] sm:$0xff]
    %v672 = vld [vmem:[#allocation4 + $0xe98] sm:$0xff]
    %v673 = vld [vmem:[#allocation4 + $0xea0] sm:$0xff]
    %v674 = vld [vmem:[#allocation4 + $0xea8] sm:$0xff]
    %v675 = vld [vmem:[#allocation4 + $0xeb0] sm:$0xff]
    %v676 = vld [vmem:[#allocation4 + $0xeb8] sm:$0xff]
    %v677 = vld [vmem:[#allocation4 + $0xec0] sm:$0xff]
    %v678 = vld [vmem:[#allocation4 + $0xec8] sm:$0xff]
    %v679 = vld [vmem:[#allocation4 + $0xed0] sm:$0xff]
    %v680 = vld [vmem:[#allocation4 + $0xed8] sm:$0xff]
    %v681 = vld [vmem:[#allocation4 + $0xee0] sm:$0xff]
    %v682 = vld [vmem:[#allocation4 + $0xee8] sm:$0xff]
    %v683 = vld [vmem:[#allocation4 + $0xef0] sm:$0xff]
    %v684 = vld [vmem:[#allocation4 + $0xef8] sm:$0xff]
    %v685 = vld [vmem:[#allocation4 + $0xf00] sm:$0xff]
    %v686 = vld [vmem:[#allocation4 + $0xf08] sm:$0xff]
    %v687 = vld [vmem:[#allocation4 + $0xf10] sm:$0xff]
    %v688 = vld [vmem:[#allocation4 + $0xf18] sm:$0xff]
    %v689 = vld [vmem:[#allocation4 + $0xf20] sm:$0xff]
    %v690 = vld [vmem:[#allocation4 + $0xf28] sm:$0xff]
    %v691 = vld [vmem:[#allocation4 + $0xf30] sm:$0xff]
    %v692 = vld [vmem:[#allocation4 + $0xf38] sm:$0xff]
    %v693 = vld [vmem:[#allocation4 + $0xf40] sm:$0xff]
    %v694 = vld [vmem:[#allocation4 + $0xf48] sm:$0xff]
    %v695 = vld [vmem:[#allocation4 + $0xf50] sm:$0xff]
    %v696 = vld [vmem:[#allocation4 + $0xf58] sm:$0xff]
    %v697 = vld [vmem:[#allocation4 + $0xf60] sm:$0xff]
    %v698 = vld [vmem:[#allocation4 + $0xf68] sm:$0xff]
    %v699 = vld [vmem:[#allocation4 + $0xf70] sm:$0xff]
    %v700 = vld [vmem:[#allocation4 + $0xf78] sm:$0xff]
    %v701 = vld [vmem:[#allocation4 + $0xf80] sm:$0xff]
    %v702 = vld [vmem:[#allocation4 + $0xf88] sm:$0xff]
    %v703 = vld [vmem:[#allocation4 + $0xf90] sm:$0xff]
    %v704 = vld [vmem:[#allocation4 + $0xf98] sm:$0xff]
    %v705 = vld [vmem:[#allocation4 + $0xfa0] sm:$0xff]
    %v706 = vld [vmem:[#allocation4 + $0xfa8] sm:$0xff]
    %v707 = vld [vmem:[#allocation4 + $0xfb0] sm:$0xff]
    %v708 = vld [vmem:[#allocation4 + $0xfb8] sm:$0xff]
    %v709 = vld [vmem:[#allocation4 + $0xfc0] sm:$0xff]
    %v710 = vld [vmem:[#allocation4 + $0xfc8] sm:$0xff]
    %v711 = vld [vmem:[#allocation4 + $0xfd0] sm:$0xff]
    %v712 = vld [vmem:[#allocation4 + $0xfd8] sm:$0xff]
    %v713 = vld [vmem:[#allocation4 + $0xfe0] sm:$0xff]
    %v714 = vld [vmem:[#allocation4 + $0xfe8] sm:$0xff]
    %v715 = vld [vmem:[#allocation4 + $0xff0] sm:$0xff]
    %v716 = vld [vmem:[#allocation4 + $0xff8] sm:$0xff]
    %v717 = vld [vmem:[#allocation4 + $0x1000] sm:$0xff]
    %v718 = vld [vmem:[#allocation4 + $0x1008] sm:$0xff]
    %v719 = vld [vmem:[#allocation4 + $0x1010] sm:$0xff]
    %v720 = vld [vmem:[#allocation4 + $0x1018] sm:$0xff]
    %v721 = vld [vmem:[#allocation4 + $0x1020] sm:$0xff]
    %v722 = vld [vmem:[#allocation4 + $0x1028] sm:$0xff]
    %v723 = vld [vmem:[#allocation4 + $0x1030] sm:$0xff]
    %v724 = vld [vmem:[#allocation4 + $0x1038] sm:$0xff]
    %v725 = vld [vmem:[#allocation4 + $0x1040] sm:$0xff]
    %v726 = vld [vmem:[#allocation4 + $0x1048] sm:$0xff]
    %v727 = vld [vmem:[#allocation4 + $0x1050] sm:$0xff]
    %v728 = vld [vmem:[#allocation4 + $0x1058] sm:$0xff]
    %v729 = vld [vmem:[#allocation4 + $0x1060] sm:$0xff]
    %v730 = vld [vmem:[#allocation4 + $0x1068] sm:$0xff]
    %v731 = vld [vmem:[#allocation4 + $0x1070] sm:$0xff]
    %v732 = vld [vmem:[#allocation4 + $0x1078] sm:$0xff]
    %v733 = vld [vmem:[#allocation4 + $0x1080] sm:$0xff]
    %v734 = vld [vmem:[#allocation4 + $0x1088] sm:$0xff]
    %v735 = vld [vmem:[#allocation4 + $0x1090] sm:$0xff]
    %v736 = vld [vmem:[#allocation4 + $0x1098] sm:$0xff]
    %v737 = vld [vmem:[#allocation4 + $0x10a0] sm:$0xff]
    %v738 = vld [vmem:[#allocation4 + $0x10a8] sm:$0xff]
    %v739 = vld [vmem:[#allocation4 + $0x10b0] sm:$0xff]
    %v740 = vld [vmem:[#allocation4 + $0x10b8] sm:$0xff]
    %v741 = vld [vmem:[#allocation4 + $0x10c0] sm:$0xff]
    %v742 = vld [vmem:[#allocation4 + $0x10c8] sm:$0xff]
    %v743 = vld [vmem:[#allocation4 + $0x10d0] sm:$0xff]
    %v744 = vld [vmem:[#allocation4 + $0x10d8] sm:$0xff]
    %v745 = vld [vmem:[#allocation4 + $0x10e0] sm:$0xff]
    %v746 = vld [vmem:[#allocation4 + $0x10e8] sm:$0xff]
    %v747 = vld [vmem:[#allocation4 + $0x10f0] sm:$0xff]
    %v748 = vld [vmem:[#allocation4 + $0x10f8] sm:$0xff]
    %v749 = vld [vmem:[#allocation4 + $0x1100] sm:$0xff]
    %v750 = vld [vmem:[#allocation4 + $0x1108] sm:$0xff]
    %v751 = vld [vmem:[#allocation4 + $0x1110] sm:$0xff]
    %v752 = vld [vmem:[#allocation4 + $0x1118] sm:$0xff]
    %v753 = vld [vmem:[#allocation4 + $0x1120] sm:$0xff]
    %v754 = vld [vmem:[#allocation4 + $0x1128] sm:$0xff]
    %v755 = vld [vmem:[#allocation4 + $0x1130] sm:$0xff]
    %v756 = vld [vmem:[#allocation4 + $0x1138] sm:$0xff]
    %v757 = vld [vmem:[#allocation4 + $0x1140] sm:$0xff]
    %v758 = vld [vmem:[#allocation4 + $0x1148] sm:$0xff]
    %v759 = vld [vmem:[#allocation4 + $0x1150] sm:$0xff]
    %v760 = vld [vmem:[#allocation4 + $0x1158] sm:$0xff]
    %v761 = vld [vmem:[#allocation4 + $0x1160] sm:$0xff]
    %v762 = vld [vmem:[#allocation4 + $0x1168] sm:$0xff]
    %v763 = vld [vmem:[#allocation4 + $0x1170] sm:$0xff]
    %v764 = vld [vmem:[#allocation4 + $0x1178] sm:$0xff]
    %v765 = vld [vmem:[#allocation4 + $0x1180] sm:$0xff]
    %v766 = vld [vmem:[#allocation4 + $0x1188] sm:$0xff]
    %v767 = vld [vmem:[#allocation4 + $0x1190] sm:$0xff]
    %v768 = vld [vmem:[#allocation4 + $0x1198] sm:$0xff]
    %v769 = vld [vmem:[#allocation4 + $0x11a0] sm:$0xff]
    %v770 = vld [vmem:[#allocation4 + $0x11a8] sm:$0xff]
    %v771 = vld [vmem:[#allocation4 + $0x11b0] sm:$0xff]
    %v772 = vld [vmem:[#allocation4 + $0x11b8] sm:$0xff]
    %v773 = vld [vmem:[#allocation4 + $0x11c0] sm:$0xff]
    %v774 = vld [vmem:[#allocation4 + $0x11c8] sm:$0xff]
    %v775 = vld [vmem:[#allocation4 + $0x11d0] sm:$0xff]
    %v776 = vld [vmem:[#allocation4 + $0x11d8] sm:$0xff]
    %v777 = vld [vmem:[#allocation4 + $0x11e0] sm:$0xff]
    %v778 = vld [vmem:[#allocation4 + $0x11e8] sm:$0xff]
    %v779 = vld [vmem:[#allocation4 + $0x11f0] sm:$0xff]
    %v780 = vld [vmem:[#allocation4 + $0x11f8] sm:$0xff]
    %v781 = vld [vmem:[#allocation4 + $0x1200] sm:$0xff]
    %v782 = vld [vmem:[#allocation4 + $0x1208] sm:$0xff]
    %v783 = vld [vmem:[#allocation4 + $0x1210] sm:$0xff]
    %v784 = vld [vmem:[#allocation4 + $0x1218] sm:$0xff]
    %v785 = vld [vmem:[#allocation4 + $0x1220] sm:$0xff]
    %v786 = vld [vmem:[#allocation4 + $0x1228] sm:$0xff]
    %v787 = vld [vmem:[#allocation4 + $0x1230] sm:$0xff]
    %v788 = vld [vmem:[#allocation4 + $0x1238] sm:$0xff]
    %v789 = vld [vmem:[#allocation4 + $0x1240] sm:$0xff]
    %v790 = vld [vmem:[#allocation4 + $0x1248] sm:$0xff]
    %v791 = vld [vmem:[#allocation4 + $0x1250] sm:$0xff]
    %v792 = vld [vmem:[#allocation4 + $0x1258] sm:$0xff]
    %v793 = vld [vmem:[#allocation4 + $0x1260] sm:$0xff]
    %v794 = vld [vmem:[#allocation4 + $0x1268] sm:$0xff]
    %v795 = vld [vmem:[#allocation4 + $0x1270] sm:$0xff]
    %v796 = vld [vmem:[#allocation4 + $0x1278] sm:$0xff]
    %v797 = vld [vmem:[#allocation4 + $0x1280] sm:$0xff]
    %v798 = vld [vmem:[#allocation4 + $0x1288] sm:$0xff]
    %v799 = vld [vmem:[#allocation4 + $0x1290] sm:$0xff]
    %v800 = vld [vmem:[#allocation4 + $0x1298] sm:$0xff]
    %v801 = vld [vmem:[#allocation4 + $0x12a0] sm:$0xff]
    %v802 = vld [vmem:[#allocation4 + $0x12a8] sm:$0xff]
    %v803 = vld [vmem:[#allocation4 + $0x12b0] sm:$0xff]
    %v804 = vld [vmem:[#allocation4 + $0x12b8] sm:$0xff]
    %v805 = vld [vmem:[#allocation4 + $0x12c0] sm:$0xff]
    %v806 = vld [vmem:[#allocation4 + $0x12c8] sm:$0xff]
    %v807 = vld [vmem:[#allocation4 + $0x12d0] sm:$0xff]
    %v808 = vld [vmem:[#allocation4 + $0x12d8] sm:$0xff]
    %v809 = vld [vmem:[#allocation4 + $0x12e0] sm:$0xff]
    %v810 = vld [vmem:[#allocation4 + $0x12e8] sm:$0xff]
    %v811 = vld [vmem:[#allocation4 + $0x12f0] sm:$0xff]
    %v812 = vld [vmem:[#allocation4 + $0x12f8] sm:$0xff]
    %v813 = vld [vmem:[#allocation4 + $0x1300] sm:$0xff]
    %v814 = vld [vmem:[#allocation4 + $0x1308] sm:$0xff]
    %v815 = vld [vmem:[#allocation4 + $0x1310] sm:$0xff]
    %v816 = vld [vmem:[#allocation4 + $0x1318] sm:$0xff]
    %v817 = vld [vmem:[#allocation4 + $0x1320] sm:$0xff]
    %v818 = vld [vmem:[#allocation4 + $0x1328] sm:$0xff]
    %v819 = vld [vmem:[#allocation4 + $0x1330] sm:$0xff]
    %v820 = vld [vmem:[#allocation4 + $0x1338] sm:$0xff]
    %v821 = vld [vmem:[#allocation4 + $0x1340] sm:$0xff]
    %v822 = vld [vmem:[#allocation4 + $0x1348] sm:$0xff]
    %v823 = vld [vmem:[#allocation4 + $0x1350] sm:$0xff]
    %v824 = vld [vmem:[#allocation4 + $0x1358] sm:$0xff]
    %v825 = vld [vmem:[#allocation4 + $0x1360] sm:$0xff]
    %v826 = vld [vmem:[#allocation4 + $0x1368] sm:$0xff]
    %v827 = vld [vmem:[#allocation4 + $0x1370] sm:$0xff]
    %v828 = vld [vmem:[#allocation4 + $0x1378] sm:$0xff]
    %v829 = vld [vmem:[#allocation4 + $0x1380] sm:$0xff]
    %v830 = vld [vmem:[#allocation4 + $0x1388] sm:$0xff]
    %v831 = vld [vmem:[#allocation4 + $0x1390] sm:$0xff]
    %v832 = vld [vmem:[#allocation4 + $0x1398] sm:$0xff]
    %v833 = vld [vmem:[#allocation4 + $0x13a0] sm:$0xff]
    %v834 = vld [vmem:[#allocation4 + $0x13a8] sm:$0xff]
    %v835 = vld [vmem:[#allocation4 + $0x13b0] sm:$0xff]
    %v836 = vld [vmem:[#allocation4 + $0x13b8] sm:$0xff]
    %v837 = vld [vmem:[#allocation4 + $0x13c0] sm:$0xff]
    %v838 = vld [vmem:[#allocation4 + $0x13c8] sm:$0xff]
    %v839 = vld [vmem:[#allocation4 + $0x13d0] sm:$0xff]
    %v840 = vld [vmem:[#allocation4 + $0x13d8] sm:$0xff]
    %v841 = vld [vmem:[#allocation4 + $0x13e0] sm:$0xff]
    %v842 = vld [vmem:[#allocation4 + $0x13e8] sm:$0xff]
    %v843 = vld [vmem:[#allocation4 + $0x13f0] sm:$0xff]
    %v844 = vld [vmem:[#allocation4 + $0x13f8] sm:$0xff]
    %v845 = vld [vmem:[#allocation4 + $0x1400] sm:$0xff]
    %v846 = vld [vmem:[#allocation4 + $0x1408] sm:$0xff]
    %v847 = vld [vmem:[#allocation4 + $0x1410] sm:$0xff]
    %v848 = vld [vmem:[#allocation4 + $0x1418] sm:$0xff]
    %v849 = vld [vmem:[#allocation4 + $0x1420] sm:$0xff]
    %v850 = vld [vmem:[#allocation4 + $0x1428] sm:$0xff]
    %v851 = vld [vmem:[#allocation4 + $0x1430] sm:$0xff]
    %v852 = vld [vmem:[#allocation4 + $0x1438] sm:$0xff]
    %v853 = vld [vmem:[#allocation4 + $0x1440] sm:$0xff]
    %v854 = vld [vmem:[#allocation4 + $0x1448] sm:$0xff]
    %v855 = vld [vmem:[#allocation4 + $0x1450] sm:$0xff]
    %v856 = vld [vmem:[#allocation4 + $0x1458] sm:$0xff]
    %v857 = vld [vmem:[#allocation4 + $0x1460] sm:$0xff]
    %v858 = vld [vmem:[#allocation4 + $0x1468] sm:$0xff]
    %v859 = vld [vmem:[#allocation4 + $0x1470] sm:$0xff]
    %v860 = vld [vmem:[#allocation4 + $0x1478] sm:$0xff]
    %v861 = vld [vmem:[#allocation4 + $0x1480] sm:$0xff]
    %v862 = vld [vmem:[#allocation4 + $0x1488] sm:$0xff]
    %v863 = vld [vmem:[#allocation4 + $0x1490] sm:$0xff]
    %v864 = vld [vmem:[#allocation4 + $0x1498] sm:$0xff]
    %v865 = vld [vmem:[#allocation4 + $0x14a0] sm:$0xff]
    %v866 = vld [vmem:[#allocation4 + $0x14a8] sm:$0xff]
    %v867 = vld [vmem:[#allocation4 + $0x14b0] sm:$0xff]
    %v868 = vld [vmem:[#allocation4 + $0x14b8] sm:$0xff]
    %v869 = vld [vmem:[#allocation4 + $0x14c0] sm:$0xff]
    %v870 = vld [vmem:[#allocation4 + $0x14c8] sm:$0xff]
    %v871 = vld [vmem:[#allocation4 + $0x14d0] sm:$0xff]
    %v872 = vld [vmem:[#allocation4 + $0x14d8] sm:$0xff]
    %v873 = vld [vmem:[#allocation4 + $0x14e0] sm:$0xff]
    %v874 = vld [vmem:[#allocation4 + $0x14e8] sm:$0xff]
    %v875 = vld [vmem:[#allocation4 + $0x14f0] sm:$0xff]
    %v876 = vld [vmem:[#allocation4 + $0x14f8] sm:$0xff]
    %v877 = vld [vmem:[#allocation4 + $0x1500] sm:$0xff]
    %v878 = vld [vmem:[#allocation4 + $0x1508] sm:$0xff]
    %v879 = vld [vmem:[#allocation4 + $0x1510] sm:$0xff]
    %v880 = vld [vmem:[#allocation4 + $0x1518] sm:$0xff]
    %v881 = vld [vmem:[#allocation4 + $0x1520] sm:$0xff]
    %v882 = vld [vmem:[#allocation4 + $0x1528] sm:$0xff]
    %v883 = vld [vmem:[#allocation4 + $0x1530] sm:$0xff]
    %v884 = vld [vmem:[#allocation4 + $0x1538] sm:$0xff]
    %v885 = vld [vmem:[#allocation4 + $0x1540] sm:$0xff]
    %v886 = vld [vmem:[#allocation4 + $0x1548] sm:$0xff]
    %v887 = vld [vmem:[#allocation4 + $0x1550] sm:$0xff]
    %v888 = vld [vmem:[#allocation4 + $0x1558] sm:$0xff]
    %v889 = vld [vmem:[#allocation4 + $0x1560] sm:$0xff]
    %v890 = vld [vmem:[#allocation4 + $0x1568] sm:$0xff]
    %v891 = vld [vmem:[#allocation4 + $0x1570] sm:$0xff]
    %v892 = vld [vmem:[#allocation4 + $0x1578] sm:$0xff]
    %v893 = vld [vmem:[#allocation4 + $0x1580] sm:$0xff]
    %v894 = vld [vmem:[#allocation4 + $0x1588] sm:$0xff]
    %v895 = vld [vmem:[#allocation4 + $0x1590] sm:$0xff]
    %v896 = vld [vmem:[#allocation4 + $0x1598] sm:$0xff]
    %v897 = vld [vmem:[#allocation4 + $0x15a0] sm:$0xff]
    %v898 = vld [vmem:[#allocation4 + $0x15a8] sm:$0xff]
    %v899 = vld [vmem:[#allocation4 + $0x15b0] sm:$0xff]
    %v900 = vld [vmem:[#allocation4 + $0x15b8] sm:$0xff]
    %v901 = vld [vmem:[#allocation4 + $0x15c0] sm:$0xff]
    %v902 = vld [vmem:[#allocation4 + $0x15c8] sm:$0xff]
    %v903 = vld [vmem:[#allocation4 + $0x15d0] sm:$0xff]
    %v904 = vld [vmem:[#allocation4 + $0x15d8] sm:$0xff]
    %v905 = vld [vmem:[#allocation4 + $0x15e0] sm:$0xff]
    %v906 = vld [vmem:[#allocation4 + $0x15e8] sm:$0xff]
    %v907 = vld [vmem:[#allocation4 + $0x15f0] sm:$0xff]
    %v908 = vld [vmem:[#allocation4 + $0x15f8] sm:$0xff]
    %v909 = vld [vmem:[#allocation4 + $0x1600] sm:$0xff]
    %v910 = vld [vmem:[#allocation4 + $0x1608] sm:$0xff]
    %v911 = vld [vmem:[#allocation4 + $0x1610] sm:$0xff]
    %v912 = vld [vmem:[#allocation4 + $0x1618] sm:$0xff]
    %v913 = vld [vmem:[#allocation4 + $0x1620] sm:$0xff]
    %v914 = vld [vmem:[#allocation4 + $0x1628] sm:$0xff]
    %v915 = vld [vmem:[#allocation4 + $0x1630] sm:$0xff]
    %v916 = vld [vmem:[#allocation4 + $0x1638] sm:$0xff]
    %v917 = vld [vmem:[#allocation4 + $0x1640] sm:$0xff]
    %v918 = vld [vmem:[#allocation4 + $0x1648] sm:$0xff]
    %v919 = vld [vmem:[#allocation4 + $0x1650] sm:$0xff]
    %v920 = vld [vmem:[#allocation4 + $0x1658] sm:$0xff]
    %v921 = vld [vmem:[#allocation4 + $0x1660] sm:$0xff]
    %v922 = vld [vmem:[#allocation4 + $0x1668] sm:$0xff]
    %v923 = vld [vmem:[#allocation4 + $0x1670] sm:$0xff]
    %v924 = vld [vmem:[#allocation4 + $0x1678] sm:$0xff]
    %v925 = vld [vmem:[#allocation4 + $0x1680] sm:$0xff]
    %v926 = vld [vmem:[#allocation4 + $0x1688] sm:$0xff]
    %v927 = vld [vmem:[#allocation4 + $0x1690] sm:$0xff]
    %v928 = vld [vmem:[#allocation4 + $0x1698] sm:$0xff]
    %v929 = vld [vmem:[#allocation4 + $0x16a0] sm:$0xff]
    %v930 = vld [vmem:[#allocation4 + $0x16a8] sm:$0xff]
    %v931 = vld [vmem:[#allocation4 + $0x16b0] sm:$0xff]
    %v932 = vld [vmem:[#allocation4 + $0x16b8] sm:$0xff]
    %v933 = vld [vmem:[#allocation4 + $0x16c0] sm:$0xff]
    %v934 = vld [vmem:[#allocation4 + $0x16c8] sm:$0xff]
    %v935 = vld [vmem:[#allocation4 + $0x16d0] sm:$0xff]
    %v936 = vld [vmem:[#allocation4 + $0x16d8] sm:$0xff]
    %v937 = vld [vmem:[#allocation4 + $0x16e0] sm:$0xff]
    %v938 = vld [vmem:[#allocation4 + $0x16e8] sm:$0xff]
    %v939 = vld [vmem:[#allocation4 + $0x16f0] sm:$0xff]
    %v940 = vld [vmem:[#allocation4 + $0x16f8] sm:$0xff]
    %v941 = vld [vmem:[#allocation4 + $0x1700] sm:$0xff]
    %v942 = vld [vmem:[#allocation4 + $0x1708] sm:$0xff]
    %v943 = vld [vmem:[#allocation4 + $0x1710] sm:$0xff]
    %v944 = vld [vmem:[#allocation4 + $0x1718] sm:$0xff]
    %v945 = vld [vmem:[#allocation4 + $0x1720] sm:$0xff]
    %v946 = vld [vmem:[#allocation4 + $0x1728] sm:$0xff]
    %v947 = vld [vmem:[#allocation4 + $0x1730] sm:$0xff]
    %v948 = vld [vmem:[#allocation4 + $0x1738] sm:$0xff]
    %v949 = vld [vmem:[#allocation4 + $0x1740] sm:$0xff]
    %v950 = vld [vmem:[#allocation4 + $0x1748] sm:$0xff]
    %v951 = vld [vmem:[#allocation4 + $0x1750] sm:$0xff]
    %v952 = vld [vmem:[#allocation4 + $0x1758] sm:$0xff]
    %v953 = vld [vmem:[#allocation4 + $0x1760] sm:$0xff]
    %v954 = vld [vmem:[#allocation4 + $0x1768] sm:$0xff]
    %v955 = vld [vmem:[#allocation4 + $0x1770] sm:$0xff]
    %v956 = vld [vmem:[#allocation4 + $0x1778] sm:$0xff]
    %v957 = vld [vmem:[#allocation4 + $0x1780] sm:$0xff]
    %v958 = vld [vmem:[#allocation4 + $0x1788] sm:$0xff]
    %v959 = vld [vmem:[#allocation4 + $0x1790] sm:$0xff]
    %v960 = vld [vmem:[#allocation4 + $0x1798] sm:$0xff]
    %v961 = vld [vmem:[#allocation4 + $0x17a0] sm:$0xff]
    %v962 = vld [vmem:[#allocation4 + $0x17a8] sm:$0xff]
    %v963 = vld [vmem:[#allocation4 + $0x17b0] sm:$0xff]
    %v964 = vld [vmem:[#allocation4 + $0x17b8] sm:$0xff]
    %v965 = vld [vmem:[#allocation4 + $0x17c0] sm:$0xff]
    %v966 = vld [vmem:[#allocation4 + $0x17c8] sm:$0xff]
    %v967 = vld [vmem:[#allocation4 + $0x17d0] sm:$0xff]
    %v968 = vld [vmem:[#allocation4 + $0x17d8] sm:$0xff]
    %v969 = vld [vmem:[#allocation4 + $0x17e0] sm:$0xff]
    %v970 = vld [vmem:[#allocation4 + $0x17e8] sm:$0xff]
    %v971 = vld [vmem:[#allocation4 + $0x17f0] sm:$0xff]
    %v972 = vld [vmem:[#allocation4 + $0x17f8] sm:$0xff]
    %v973 = vld [vmem:[#allocation4 + $0x1800] sm:$0xff]
    %v974 = vld [vmem:[#allocation4 + $0x1808] sm:$0xff]
    %v975 = vld [vmem:[#allocation4 + $0x1810] sm:$0xff]
    %v976 = vld [vmem:[#allocation4 + $0x1818] sm:$0xff]
    %v977 = vld [vmem:[#allocation4 + $0x1820] sm:$0xff]
    %v978 = vld [vmem:[#allocation4 + $0x1828] sm:$0xff]
    %v979 = vld [vmem:[#allocation4 + $0x1830] sm:$0xff]
    %v980 = vld [vmem:[#allocation4 + $0x1838] sm:$0xff]
    %v981 = vld [vmem:[#allocation4 + $0x1840] sm:$0xff]
    %v982 = vld [vmem:[#allocation4 + $0x1848] sm:$0xff]
    %v983 = vld [vmem:[#allocation4 + $0x1850] sm:$0xff]
    %v984 = vld [vmem:[#allocation4 + $0x1858] sm:$0xff]
    %v985 = vld [vmem:[#allocation4 + $0x1860] sm:$0xff]
    %v986 = vld [vmem:[#allocation4 + $0x1868] sm:$0xff]
    %v987 = vld [vmem:[#allocation4 + $0x1870] sm:$0xff]
    %v988 = vld [vmem:[#allocation4 + $0x1878] sm:$0xff]
    %v989 = vld [vmem:[#allocation4 + $0x1880] sm:$0xff]
    %v990 = vld [vmem:[#allocation4 + $0x1888] sm:$0xff]
    %v991 = vld [vmem:[#allocation4 + $0x1890] sm:$0xff]
    %v992 = vld [vmem:[#allocation4 + $0x1898] sm:$0xff]
    %v993 = vld [vmem:[#allocation4 + $0x18a0] sm:$0xff]
    %v994 = vld [vmem:[#allocation4 + $0x18a8] sm:$0xff]
    %v995 = vld [vmem:[#allocation4 + $0x18b0] sm:$0xff]
    %v996 = vld [vmem:[#allocation4 + $0x18b8] sm:$0xff]
    %v997 = vld [vmem:[#allocation4 + $0x18c0] sm:$0xff]
    %v998 = vld [vmem:[#allocation4 + $0x18c8] sm:$0xff]
    %v999 = vld [vmem:[#allocation4 + $0x18d0] sm:$0xff]
    %v1000 = vld [vmem:[#allocation4 + $0x18d8] sm:$0xff]
    %v1001 = vld [vmem:[#allocation4 + $0x18e0] sm:$0xff]
    %v1002 = vld [vmem:[#allocation4 + $0x18e8] sm:$0xff]
    %v1003 = vld [vmem:[#allocation4 + $0x18f0] sm:$0xff]
    %v1004 = vld [vmem:[#allocation4 + $0x18f8] sm:$0xff]
    %v1005 = vld [vmem:[#allocation4 + $0x1900] sm:$0xff]
    %v1006 = vld [vmem:[#allocation4 + $0x1908] sm:$0xff]
    %v1007 = vld [vmem:[#allocation4 + $0x1910] sm:$0xff]
    %v1008 = vld [vmem:[#allocation4 + $0x1918] sm:$0xff]
    %v1009 = vld [vmem:[#allocation4 + $0x1920] sm:$0xff]
    %v1010 = vld [vmem:[#allocation4 + $0x1928] sm:$0xff]
    %v1011 = vld [vmem:[#allocation4 + $0x1930] sm:$0xff]
    %v1012 = vld [vmem:[#allocation4 + $0x1938] sm:$0xff]
    %v1013 = vld [vmem:[#allocation4 + $0x1940] sm:$0xff]
    %v1014 = vld [vmem:[#allocation4 + $0x1948] sm:$0xff]
    %v1015 = vld [vmem:[#allocation4 + $0x1950] sm:$0xff]
    %v1016 = vld [vmem:[#allocation4 + $0x1958] sm:$0xff]
    %v1017 = vld [vmem:[#allocation4 + $0x1960] sm:$0xff]
    %v1018 = vld [vmem:[#allocation4 + $0x1968] sm:$0xff]
    %v1019 = vld [vmem:[#allocation4 + $0x1970] sm:$0xff]
    %v1020 = vld [vmem:[#allocation4 + $0x1978] sm:$0xff]
    %v1021 = vld [vmem:[#allocation4 + $0x1980] sm:$0xff]
    %v1022 = vld [vmem:[#allocation4 + $0x1988] sm:$0xff]
    %v1023 = vld [vmem:[#allocation4 + $0x1990] sm:$0xff]
    %v1024 = vld [vmem:[#allocation4 + $0x1998] sm:$0xff]
    %v1025 = vld [vmem:[#allocation4 + $0x19a0] sm:$0xff]
    %v1026 = vld [vmem:[#allocation4 + $0x19a8] sm:$0xff]
    %v1027 = vld [vmem:[#allocation4 + $0x19b0] sm:$0xff]
    %v1028 = vld [vmem:[#allocation4 + $0x19b8] sm:$0xff]
    %v1029 = vld [vmem:[#allocation4 + $0x19c0] sm:$0xff]
    %v1030 = vld [vmem:[#allocation4 + $0x19c8] sm:$0xff]
    %v1031 = vld [vmem:[#allocation4 + $0x19d0] sm:$0xff]
    %v1032 = vld [vmem:[#allocation4 + $0x19d8] sm:$0xff]
    %v1033 = vld [vmem:[#allocation4 + $0x19e0] sm:$0xff]
    %v1034 = vld [vmem:[#allocation4 + $0x19e8] sm:$0xff]
    %v1035 = vld [vmem:[#allocation4 + $0x19f0] sm:$0xff]
    %v1036 = vld [vmem:[#allocation4 + $0x19f8] sm:$0xff]
    %v1037 = vld [vmem:[#allocation4 + $0x1a00] sm:$0xff]
    %v1038 = vld [vmem:[#allocation4 + $0x1a08] sm:$0xff]
    %v1039 = vld [vmem:[#allocation4 + $0x1a10] sm:$0xff]
    %v1040 = vld [vmem:[#allocation4 + $0x1a18] sm:$0xff]
    %v1041 = vld [vmem:[#allocation4 + $0x1a20] sm:$0xff]
    %v1042 = vld [vmem:[#allocation4 + $0x1a28] sm:$0xff]
    %v1043 = vld [vmem:[#allocation4 + $0x1a30] sm:$0xff]
    %v1044 = vld [vmem:[#allocation4 + $0x1a38] sm:$0xff]
    %v1045 = vld [vmem:[#allocation4 + $0x1a40] sm:$0xff]
    %v1046 = vld [vmem:[#allocation4 + $0x1a48] sm:$0xff]
    %v1047 = vld [vmem:[#allocation4 + $0x1a50] sm:$0xff]
    %v1048 = vld [vmem:[#allocation4 + $0x1a58] sm:$0xff]
    %v1049 = vld [vmem:[#allocation4 + $0x1a60] sm:$0xff]
    %v1050 = vld [vmem:[#allocation4 + $0x1a68] sm:$0xff]
    %v1051 = vld [vmem:[#allocation4 + $0x1a70] sm:$0xff]
    %v1052 = vld [vmem:[#allocation4 + $0x1a78] sm:$0xff]
    %v1053 = vld [vmem:[#allocation4 + $0x1a80] sm:$0xff]
    %v1054 = vld [vmem:[#allocation4 + $0x1a88] sm:$0xff]
    %v1055 = vld [vmem:[#allocation4 + $0x1a90] sm:$0xff]
    %v1056 = vld [vmem:[#allocation4 + $0x1a98] sm:$0xff]
    %v1057 = vld [vmem:[#allocation4 + $0x1aa0] sm:$0xff]
    %v1058 = vld [vmem:[#allocation4 + $0x1aa8] sm:$0xff]
    %v1059 = vld [vmem:[#allocation4 + $0x1ab0] sm:$0xff]
    %v1060 = vld [vmem:[#allocation4 + $0x1ab8] sm:$0xff]
    %v1061 = vld [vmem:[#allocation4 + $0x1ac0] sm:$0xff]
    %v1062 = vld [vmem:[#allocation4 + $0x1ac8] sm:$0xff]
    %v1063 = vld [vmem:[#allocation4 + $0x1ad0] sm:$0xff]
    %v1064 = vld [vmem:[#allocation4 + $0x1ad8] sm:$0xff]
    %v1065 = vld [vmem:[#allocation4 + $0x1ae0] sm:$0xff]
    %v1066 = vld [vmem:[#allocation4 + $0x1ae8] sm:$0xff]
    %v1067 = vld [vmem:[#allocation4 + $0x1af0] sm:$0xff]
    %v1068 = vld [vmem:[#allocation4 + $0x1af8] sm:$0xff]
    %v1069 = vld [vmem:[#allocation4 + $0x1b00] sm:$0xff]
    %v1070 = vld [vmem:[#allocation4 + $0x1b08] sm:$0xff]
    %v1071 = vld [vmem:[#allocation4 + $0x1b10] sm:$0xff]
    %v1072 = vld [vmem:[#allocation4 + $0x1b18] sm:$0xff]
    %v1073 = vld [vmem:[#allocation4 + $0x1b20] sm:$0xff]
    %v1074 = vld [vmem:[#allocation4 + $0x1b28] sm:$0xff]
    %v1075 = vld [vmem:[#allocation4 + $0x1b30] sm:$0xff]
    %v1076 = vld [vmem:[#allocation4 + $0x1b38] sm:$0xff]
    %v1077 = vld [vmem:[#allocation4 + $0x1b40] sm:$0xff]
    %v1078 = vld [vmem:[#allocation4 + $0x1b48] sm:$0xff]
    %v1079 = vld [vmem:[#allocation4 + $0x1b50] sm:$0xff]
    %v1080 = vld [vmem:[#allocation4 + $0x1b58] sm:$0xff]
    %v1081 = vld [vmem:[#allocation4 + $0x1b60] sm:$0xff]
    %v1082 = vld [vmem:[#allocation4 + $0x1b68] sm:$0xff]
    %v1083 = vld [vmem:[#allocation4 + $0x1b70] sm:$0xff]
    %v1084 = vld [vmem:[#allocation4 + $0x1b78] sm:$0xff]
    %v1085 = vld [vmem:[#allocation4 + $0x1b80] sm:$0xff]
    %v1086 = vld [vmem:[#allocation4 + $0x1b88] sm:$0xff]
    %v1087 = vld [vmem:[#allocation4 + $0x1b90] sm:$0xff]
    %v1088 = vld [vmem:[#allocation4 + $0x1b98] sm:$0xff]
    %v1089 = vld [vmem:[#allocation4 + $0x1ba0] sm:$0xff]
    %v1090 = vld [vmem:[#allocation4 + $0x1ba8] sm:$0xff]
    %v1091 = vld [vmem:[#allocation4 + $0x1bb0] sm:$0xff]
    %v1092 = vld [vmem:[#allocation4 + $0x1bb8] sm:$0xff]
    %v1093 = vld [vmem:[#allocation4 + $0x1bc0] sm:$0xff]
    %v1094 = vld [vmem:[#allocation4 + $0x1bc8] sm:$0xff]
    %v1095 = vld [vmem:[#allocation4 + $0x1bd0] sm:$0xff]
    %v1096 = vld [vmem:[#allocation4 + $0x1bd8] sm:$0xff]
    %v1097 = vld [vmem:[#allocation4 + $0x1be0] sm:$0xff]
    %v1098 = vld [vmem:[#allocation4 + $0x1be8] sm:$0xff]
    %v1099 = vld [vmem:[#allocation4 + $0x1bf0] sm:$0xff]
    %v1100 = vld [vmem:[#allocation4 + $0x1bf8] sm:$0xff]
    %v1101 = vld [vmem:[#allocation4 + $0x1c00] sm:$0xff]
    %v1102 = vld [vmem:[#allocation4 + $0x1c08] sm:$0xff]
    %v1103 = vld [vmem:[#allocation4 + $0x1c10] sm:$0xff]
    %v1104 = vld [vmem:[#allocation4 + $0x1c18] sm:$0xff]
    %v1105 = vld [vmem:[#allocation4 + $0x1c20] sm:$0xff]
    %v1106 = vld [vmem:[#allocation4 + $0x1c28] sm:$0xff]
    %v1107 = vld [vmem:[#allocation4 + $0x1c30] sm:$0xff]
    %v1108 = vld [vmem:[#allocation4 + $0x1c38] sm:$0xff]
    %v1109 = vld [vmem:[#allocation4 + $0x1c40] sm:$0xff]
    %v1110 = vld [vmem:[#allocation4 + $0x1c48] sm:$0xff]
    %v1111 = vld [vmem:[#allocation4 + $0x1c50] sm:$0xff]
    %v1112 = vld [vmem:[#allocation4 + $0x1c58] sm:$0xff]
    %v1113 = vld [vmem:[#allocation4 + $0x1c60] sm:$0xff]
    %v1114 = vld [vmem:[#allocation4 + $0x1c68] sm:$0xff]
    %v1115 = vld [vmem:[#allocation4 + $0x1c70] sm:$0xff]
    %v1116 = vld [vmem:[#allocation4 + $0x1c78] sm:$0xff]
    %v1117 = vld [vmem:[#allocation4 + $0x1c80] sm:$0xff]
    %v1118 = vld [vmem:[#allocation4 + $0x1c88] sm:$0xff]
    %v1119 = vld [vmem:[#allocation4 + $0x1c90] sm:$0xff]
    %v1120 = vld [vmem:[#allocation4 + $0x1c98] sm:$0xff]
    %v1121 = vld [vmem:[#allocation4 + $0x1ca0] sm:$0xff]
    %v1122 = vld [vmem:[#allocation4 + $0x1ca8] sm:$0xff]
    %v1123 = vld [vmem:[#allocation4 + $0x1cb0] sm:$0xff]
    %v1124 = vld [vmem:[#allocation4 + $0x1cb8] sm:$0xff]
    %v1125 = vld [vmem:[#allocation4 + $0x1cc0] sm:$0xff]
    %v1126 = vld [vmem:[#allocation4 + $0x1cc8] sm:$0xff]
    %v1127 = vld [vmem:[#allocation4 + $0x1cd0] sm:$0xff]
    %v1128 = vld [vmem:[#allocation4 + $0x1cd8] sm:$0xff]
    %v1129 = vld [vmem:[#allocation4 + $0x1ce0] sm:$0xff]
    %v1130 = vld [vmem:[#allocation4 + $0x1ce8] sm:$0xff]
    %v1131 = vld [vmem:[#allocation4 + $0x1cf0] sm:$0xff]
    %v1132 = vld [vmem:[#allocation4 + $0x1cf8] sm:$0xff]
    %v1133 = vld [vmem:[#allocation4 + $0x1d00] sm:$0xff]
    %v1134 = vld [vmem:[#allocation4 + $0x1d08] sm:$0xff]
    %v1135 = vld [vmem:[#allocation4 + $0x1d10] sm:$0xff]
    %v1136 = vld [vmem:[#allocation4 + $0x1d18] sm:$0xff]
    %v1137 = vld [vmem:[#allocation4 + $0x1d20] sm:$0xff]
    %v1138 = vld [vmem:[#allocation4 + $0x1d28] sm:$0xff]
    %v1139 = vld [vmem:[#allocation4 + $0x1d30] sm:$0xff]
    %v1140 = vld [vmem:[#allocation4 + $0x1d38] sm:$0xff]
    %v1141 = vld [vmem:[#allocation4 + $0x1d40] sm:$0xff]
    %v1142 = vld [vmem:[#allocation4 + $0x1d48] sm:$0xff]
    %v1143 = vld [vmem:[#allocation4 + $0x1d50] sm:$0xff]
    %v1144 = vld [vmem:[#allocation4 + $0x1d58] sm:$0xff]
    %v1145 = vld [vmem:[#allocation4 + $0x1d60] sm:$0xff]
    %v1146 = vld [vmem:[#allocation4 + $0x1d68] sm:$0xff]
    %v1147 = vld [vmem:[#allocation4 + $0x1d70] sm:$0xff]
    %v1148 = vld [vmem:[#allocation4 + $0x1d78] sm:$0xff]
    %v1149 = vld [vmem:[#allocation4 + $0x1d80] sm:$0xff]
    %v1150 = vld [vmem:[#allocation4 + $0x1d88] sm:$0xff]
    %v1151 = vld [vmem:[#allocation4 + $0x1d90] sm:$0xff]
    %v1152 = vld [vmem:[#allocation4 + $0x1d98] sm:$0xff]
    %v1153 = vld [vmem:[#allocation4 + $0x1da0] sm:$0xff]
    %v1154 = vld [vmem:[#allocation4 + $0x1da8] sm:$0xff]
    %v1155 = vld [vmem:[#allocation4 + $0x1db0] sm:$0xff]
    %v1156 = vld [vmem:[#allocation4 + $0x1db8] sm:$0xff]
    %v1157 = vld [vmem:[#allocation4 + $0x1dc0] sm:$0xff]
    %v1158 = vld [vmem:[#allocation4 + $0x1dc8] sm:$0xff]
    %v1159 = vld [vmem:[#allocation4 + $0x1dd0] sm:$0xff]
    %v1160 = vld [vmem:[#allocation4 + $0x1dd8] sm:$0xff]
    %v1161 = vld [vmem:[#allocation4 + $0x1de0] sm:$0xff]
    %v1162 = vld [vmem:[#allocation4 + $0x1de8] sm:$0xff]
    %v1163 = vld [vmem:[#allocation4 + $0x1df0] sm:$0xff]
    %v1164 = vld [vmem:[#allocation4 + $0x1df8] sm:$0xff]
    %v1165 = vld [vmem:[#allocation4 + $0x1e00] sm:$0xff]
    %v1166 = vld [vmem:[#allocation4 + $0x1e08] sm:$0xff]
    %v1167 = vld [vmem:[#allocation4 + $0x1e10] sm:$0xff]
    %v1168 = vld [vmem:[#allocation4 + $0x1e18] sm:$0xff]
    %v1169 = vld [vmem:[#allocation4 + $0x1e20] sm:$0xff]
    %v1170 = vld [vmem:[#allocation4 + $0x1e28] sm:$0xff]
    %v1171 = vld [vmem:[#allocation4 + $0x1e30] sm:$0xff]
    %v1172 = vld [vmem:[#allocation4 + $0x1e38] sm:$0xff]
    %v1173 = vld [vmem:[#allocation4 + $0x1e40] sm:$0xff]
    %v1174 = vld [vmem:[#allocation4 + $0x1e48] sm:$0xff]
    %v1175 = vld [vmem:[#allocation4 + $0x1e50] sm:$0xff]
    %v1176 = vld [vmem:[#allocation4 + $0x1e58] sm:$0xff]
    %v1177 = vld [vmem:[#allocation4 + $0x1e60] sm:$0xff]
    %v1178 = vld [vmem:[#allocation4 + $0x1e68] sm:$0xff]
    %v1179 = vld [vmem:[#allocation4 + $0x1e70] sm:$0xff]
    %v1180 = vld [vmem:[#allocation4 + $0x1e78] sm:$0xff]
    %v1181 = vld [vmem:[#allocation4 + $0x1e80] sm:$0xff]
    %v1182 = vld [vmem:[#allocation4 + $0x1e88] sm:$0xff]
    %v1183 = vld [vmem:[#allocation4 + $0x1e90] sm:$0xff]
    %v1184 = vld [vmem:[#allocation4 + $0x1e98] sm:$0xff]
    %v1185 = vld [vmem:[#allocation4 + $0x1ea0] sm:$0xff]
    %v1186 = vld [vmem:[#allocation4 + $0x1ea8] sm:$0xff]
    %v1187 = vld [vmem:[#allocation4 + $0x1eb0] sm:$0xff]
    %v1188 = vld [vmem:[#allocation4 + $0x1eb8] sm:$0xff]
    %v1189 = vld [vmem:[#allocation4 + $0x1ec0] sm:$0xff]
    %v1190 = vld [vmem:[#allocation4 + $0x1ec8] sm:$0xff]
    %v1191 = vld [vmem:[#allocation4 + $0x1ed0] sm:$0xff]
    %v1192 = vld [vmem:[#allocation4 + $0x1ed8] sm:$0xff]
    %v1193 = vld [vmem:[#allocation4 + $0x1ee0] sm:$0xff]
    %v1194 = vld [vmem:[#allocation4 + $0x1ee8] sm:$0xff]
    %v1195 = vld [vmem:[#allocation4 + $0x1ef0] sm:$0xff]
    %v1196 = vld [vmem:[#allocation4 + $0x1ef8] sm:$0xff]
    %v1197 = vld [vmem:[#allocation4 + $0x1f00] sm:$0xff]
    %v1198 = vld [vmem:[#allocation4 + $0x1f08] sm:$0xff]
    %v1199 = vld [vmem:[#allocation4 + $0x1f10] sm:$0xff]
    %v1200 = vld [vmem:[#allocation4 + $0x1f18] sm:$0xff]
    %v1201 = vld [vmem:[#allocation4 + $0x1f20] sm:$0xff]
    %v1202 = vld [vmem:[#allocation4 + $0x1f28] sm:$0xff]
    %v1203 = vld [vmem:[#allocation4 + $0x1f30] sm:$0xff]
    %v1204 = vld [vmem:[#allocation4 + $0x1f38] sm:$0xff]
    %v1205 = vld [vmem:[#allocation4 + $0x1f40] sm:$0xff]
    %v1206 = vld [vmem:[#allocation4 + $0x1f48] sm:$0xff]
    %v1207 = vld [vmem:[#allocation4 + $0x1f50] sm:$0xff]
    %v1208 = vld [vmem:[#allocation4 + $0x1f58] sm:$0xff]
    %v1209 = vld [vmem:[#allocation4 + $0x1f60] sm:$0xff]
    %v1210 = vld [vmem:[#allocation4 + $0x1f68] sm:$0xff]
    %v1211 = vld [vmem:[#allocation4 + $0x1f70] sm:$0xff]
    %v1212 = vld [vmem:[#allocation4 + $0x1f78] sm:$0xff]
    %v1213 = vld [vmem:[#allocation4 + $0x1f80] sm:$0xff]
    %v1214 = vld [vmem:[#allocation4 + $0x1f88] sm:$0xff]
    %v1215 = vld [vmem:[#allocation4 + $0x1f90] sm:$0xff]
    %v1216 = vld [vmem:[#allocation4 + $0x1f98] sm:$0xff]
    %v1217 = vld [vmem:[#allocation4 + $0x1fa0] sm:$0xff]
    %v1218 = vld [vmem:[#allocation4 + $0x1fa8] sm:$0xff]
    %v1219 = vld [vmem:[#allocation4 + $0x1fb0] sm:$0xff]
    %v1220 = vld [vmem:[#allocation4 + $0x1fb8] sm:$0xff]
    %v1221 = vld [vmem:[#allocation4 + $0x1fc0] sm:$0xff]
    %v1222 = vld [vmem:[#allocation4 + $0x1fc8] sm:$0xff]
    %v1223 = vld [vmem:[#allocation4 + $0x1fd0] sm:$0xff]
    %v1224 = vld [vmem:[#allocation4 + $0x1fd8] sm:$0xff]
    %v1225 = vld [vmem:[#allocation4 + $0x1fe0] sm:$0xff]
    %v1226 = vld [vmem:[#allocation4 + $0x1fe8] sm:$0xff]
    %v1227 = vld [vmem:[#allocation4 + $0x1ff0] sm:$0xff]
    %v1228 = vld [vmem:[#allocation4 + $0x1ff8] sm:$0xff]
    %v1229 = vld [vmem:[#allocation4 + $0x2000] sm:$0xff]
    %v1230 = vld [vmem:[#allocation4 + $0x2008] sm:$0xff]
    %v1231 = vld [vmem:[#allocation4 + $0x2010] sm:$0xff]
    %v1232 = vld [vmem:[#allocation4 + $0x2018] sm:$0xff]
    %v1233 = vld [vmem:[#allocation4 + $0x2020] sm:$0xff]
    %v1234 = vld [vmem:[#allocation4 + $0x2028] sm:$0xff]
    %v1235 = vld [vmem:[#allocation4 + $0x2030] sm:$0xff]
    %v1236 = vld [vmem:[#allocation4 + $0x2038] sm:$0xff]
    %v1237 = vld [vmem:[#allocation4 + $0x2040] sm:$0xff]
    %v1238 = vld [vmem:[#allocation4 + $0x2048] sm:$0xff]
    %v1239 = vld [vmem:[#allocation4 + $0x2050] sm:$0xff]
    %v1240 = vld [vmem:[#allocation4 + $0x2058] sm:$0xff]
    %v1241 = vld [vmem:[#allocation4 + $0x2060] sm:$0xff]
    %v1242 = vld [vmem:[#allocation4 + $0x2068] sm:$0xff]
    %v1243 = vld [vmem:[#allocation4 + $0x2070] sm:$0xff]
    %v1244 = vld [vmem:[#allocation4 + $0x2078] sm:$0xff]
    %v1245 = vld [vmem:[#allocation4 + $0x2080] sm:$0xff]
    %v1246 = vld [vmem:[#allocation4 + $0x2088] sm:$0xff]
    %v1247 = vld [vmem:[#allocation4 + $0x2090] sm:$0xff]
    %v1248 = vld [vmem:[#allocation4 + $0x2098] sm:$0xff]
    %v1249 = vld [vmem:[#allocation4 + $0x20a0] sm:$0xff]
    %v1250 = vld [vmem:[#allocation4 + $0x20a8] sm:$0xff]
    %v1251 = vld [vmem:[#allocation4 + $0x20b0] sm:$0xff]
    %v1252 = vld [vmem:[#allocation4 + $0x20b8] sm:$0xff]
    %v1253 = vld [vmem:[#allocation4 + $0x20c0] sm:$0xff]
    %v1254 = vld [vmem:[#allocation4 + $0x20c8] sm:$0xff]
    %v1255 = vld [vmem:[#allocation4 + $0x20d0] sm:$0xff]
    %v1256 = vld [vmem:[#allocation4 + $0x20d8] sm:$0xff]
    %v1257 = vld [vmem:[#allocation4 + $0x20e0] sm:$0xff]
    %v1258 = vld [vmem:[#allocation4 + $0x20e8] sm:$0xff]
    %v1259 = vld [vmem:[#allocation4 + $0x20f0] sm:$0xff]
    %v1260 = vld [vmem:[#allocation4 + $0x20f8] sm:$0xff]
    %v1261 = vld [vmem:[#allocation4 + $0x2100] sm:$0xff]
    %v1262 = vld [vmem:[#allocation4 + $0x2108] sm:$0xff]
    %v1263 = vld [vmem:[#allocation4 + $0x2110] sm:$0xff]
    %v1264 = vld [vmem:[#allocation4 + $0x2118] sm:$0xff]
    %v1265 = vld [vmem:[#allocation4 + $0x2120] sm:$0xff]
    %v1266 = vld [vmem:[#allocation4 + $0x2128] sm:$0xff]
    %v1267 = vld [vmem:[#allocation4 + $0x2130] sm:$0xff]
    %v1268 = vld [vmem:[#allocation4 + $0x2138] sm:$0xff]
    %v1269 = vld [vmem:[#allocation4 + $0x2140] sm:$0xff]
    %v1270 = vld [vmem:[#allocation4 + $0x2148] sm:$0xff]
    %v1271 = vld [vmem:[#allocation4 + $0x2150] sm:$0xff]
    %v1272 = vld [vmem:[#allocation4 + $0x2158] sm:$0xff]
    %v1273 = vld [vmem:[#allocation4 + $0x2160] sm:$0xff]
    %v1274 = vld [vmem:[#allocation4 + $0x2168] sm:$0xff]
    %v1275 = vld [vmem:[#allocation4 + $0x2170] sm:$0xff]
    %v1276 = vld [vmem:[#allocation4 + $0x2178] sm:$0xff]
    %v1277 = vld [vmem:[#allocation4 + $0x2180] sm:$0xff]
    %v1278 = vld [vmem:[#allocation4 + $0x2188] sm:$0xff]
    %v1279 = vld [vmem:[#allocation4 + $0x2190] sm:$0xff]
    %v1280 = vld [vmem:[#allocation4 + $0x2198] sm:$0xff]
    %v1281 = vld [vmem:[#allocation4 + $0x21a0] sm:$0xff]
    %v1282 = vld [vmem:[#allocation4 + $0x21a8] sm:$0xff]
    %v1283 = vld [vmem:[#allocation4 + $0x21b0] sm:$0xff]
    %v1284 = vld [vmem:[#allocation4 + $0x21b8] sm:$0xff]
    %v1285 = vld [vmem:[#allocation4 + $0x21c0] sm:$0xff]
    %v1286 = vld [vmem:[#allocation4 + $0x21c8] sm:$0xff]
    %v1287 = vld [vmem:[#allocation4 + $0x21d0] sm:$0xff]
    %v1288 = vld [vmem:[#allocation4 + $0x21d8] sm:$0xff]
    %v1289 = vld [vmem:[#allocation4 + $0x21e0] sm:$0xff]
    %v1290 = vld [vmem:[#allocation4 + $0x21e8] sm:$0xff]
    %v1291 = vld [vmem:[#allocation4 + $0x21f0] sm:$0xff]
    %v1292 = vld [vmem:[#allocation4 + $0x21f8] sm:$0xff]
    %v1293 = vld [vmem:[#allocation4 + $0x2200] sm:$0xff]
    %v1294 = vld [vmem:[#allocation4 + $0x2208] sm:$0xff]
    %v1295 = vld [vmem:[#allocation4 + $0x2210] sm:$0xff]
    %v1296 = vld [vmem:[#allocation4 + $0x2218] sm:$0xff]
    %v1297 = vld [vmem:[#allocation4 + $0x2220] sm:$0xff]
    %v1298 = vld [vmem:[#allocation4 + $0x2228] sm:$0xff]
    %v1299 = vld [vmem:[#allocation4 + $0x2230] sm:$0xff]
    %v1300 = vld [vmem:[#allocation4 + $0x2238] sm:$0xff]
    %v1301 = vld [vmem:[#allocation4 + $0x2240] sm:$0xff]
    %v1302 = vld [vmem:[#allocation4 + $0x2248] sm:$0xff]
    %v1303 = vld [vmem:[#allocation4 + $0x2250] sm:$0xff]
    %v1304 = vld [vmem:[#allocation4 + $0x2258] sm:$0xff]
    %v1305 = vld [vmem:[#allocation4 + $0x2260] sm:$0xff]
    %v1306 = vld [vmem:[#allocation4 + $0x2268] sm:$0xff]
    %v1307 = vld [vmem:[#allocation4 + $0x2270] sm:$0xff]
    %v1308 = vld [vmem:[#allocation4 + $0x2278] sm:$0xff]
    %v1309 = vld [vmem:[#allocation4 + $0x2280] sm:$0xff]
    %v1310 = vld [vmem:[#allocation4 + $0x2288] sm:$0xff]
    %v1311 = vld [vmem:[#allocation4 + $0x2290] sm:$0xff]
    %v1312 = vld [vmem:[#allocation4 + $0x2298] sm:$0xff]
    %v1313 = vld [vmem:[#allocation4 + $0x22a0] sm:$0xff]
    %v1314 = vld [vmem:[#allocation4 + $0x22a8] sm:$0xff]
    %v1315 = vld [vmem:[#allocation4 + $0x22b0] sm:$0xff]
    %v1316 = vld [vmem:[#allocation4 + $0x22b8] sm:$0xff]
    %v1317 = vld [vmem:[#allocation4 + $0x22c0] sm:$0xff]
    %v1318 = vld [vmem:[#allocation4 + $0x22c8] sm:$0xff]
    %v1319 = vld [vmem:[#allocation4 + $0x22d0] sm:$0xff]
    %v1320 = vld [vmem:[#allocation4 + $0x22d8] sm:$0xff]
    %v1321 = vld [vmem:[#allocation4 + $0x22e0] sm:$0xff]
    %v1322 = vld [vmem:[#allocation4 + $0x22e8] sm:$0xff]
    %v1323 = vld [vmem:[#allocation4 + $0x22f0] sm:$0xff]
    %v1324 = vld [vmem:[#allocation4 + $0x22f8] sm:$0xff]
    %v1325 = vld [vmem:[#allocation4 + $0x2300] sm:$0xff]
    %v1326 = vld [vmem:[#allocation4 + $0x2308] sm:$0xff]
    %v1327 = vld [vmem:[#allocation4 + $0x2310] sm:$0xff]
    %v1328 = vld [vmem:[#allocation4 + $0x2318] sm:$0xff]
    %v1329 = vld [vmem:[#allocation4 + $0x2320] sm:$0xff]
    %v1330 = vld [vmem:[#allocation4 + $0x2328] sm:$0xff]
    %v1331 = vld [vmem:[#allocation4 + $0x2330] sm:$0xff]
    %v1332 = vld [vmem:[#allocation4 + $0x2338] sm:$0xff]
    %v1333 = vld [vmem:[#allocation4 + $0x2340] sm:$0xff]
    %v1334 = vld [vmem:[#allocation4 + $0x2348] sm:$0xff]
    %v1335 = vld [vmem:[#allocation4 + $0x2350] sm:$0xff]
    %v1336 = vld [vmem:[#allocation4 + $0x2358] sm:$0xff]
    %v1337 = vld [vmem:[#allocation4 + $0x2360] sm:$0xff]
    %v1338 = vld [vmem:[#allocation4 + $0x2368] sm:$0xff]
    %v1339 = vld [vmem:[#allocation4 + $0x2370] sm:$0xff]
    %v1340 = vld [vmem:[#allocation4 + $0x2378] sm:$0xff]
    %v1341 = vld [vmem:[#allocation4 + $0x2380] sm:$0xff]
    %v1342 = vld [vmem:[#allocation4 + $0x2388] sm:$0xff]
    %v1343 = vld [vmem:[#allocation4 + $0x2390] sm:$0xff]
    %v1344 = vld [vmem:[#allocation4 + $0x2398] sm:$0xff]
    %v1345 = vld [vmem:[#allocation4 + $0x23a0] sm:$0xff]
    %v1346 = vld [vmem:[#allocation4 + $0x23a8] sm:$0xff]
    %v1347 = vld [vmem:[#allocation4 + $0x23b0] sm:$0xff]
    %v1348 = vld [vmem:[#allocation4 + $0x23b8] sm:$0xff]
    %v1349 = vld [vmem:[#allocation4 + $0x23c0] sm:$0xff]
    %v1350 = vld [vmem:[#allocation4 + $0x23c8] sm:$0xff]
    %v1351 = vld [vmem:[#allocation4 + $0x23d0] sm:$0xff]
    %v1352 = vld [vmem:[#allocation4 + $0x23d8] sm:$0xff]
    %v1353 = vld [vmem:[#allocation4 + $0x23e0] sm:$0xff]
    %v1354 = vld [vmem:[#allocation4 + $0x23e8] sm:$0xff]
    %v1355 = vld [vmem:[#allocation4 + $0x23f0] sm:$0xff]
    %v1356 = vld [vmem:[#allocation4 + $0x23f8] sm:$0xff]
    %v1357 = vld [vmem:[#allocation4 + $0x2400] sm:$0xff]
    %v1358 = vld [vmem:[#allocation4 + $0x2408] sm:$0xff]
    %v1359 = vld [vmem:[#allocation4 + $0x2410] sm:$0xff]
    %v1360 = vld [vmem:[#allocation4 + $0x2418] sm:$0xff]
    %v1361 = vld [vmem:[#allocation4 + $0x2420] sm:$0xff]
    %v1362 = vld [vmem:[#allocation4 + $0x2428] sm:$0xff]
    %v1363 = vld [vmem:[#allocation4 + $0x2430] sm:$0xff]
    %v1364 = vld [vmem:[#allocation4 + $0x2438] sm:$0xff]
    %v1365 = vld [vmem:[#allocation4 + $0x2440] sm:$0xff]
    %v1366 = vld [vmem:[#allocation4 + $0x2448] sm:$0xff]
    %v1367 = vld [vmem:[#allocation4 + $0x2450] sm:$0xff]
    %v1368 = vld [vmem:[#allocation4 + $0x2458] sm:$0xff]
    %v1369 = vld [vmem:[#allocation4 + $0x2460] sm:$0xff]
    %v1370 = vld [vmem:[#allocation4 + $0x2468] sm:$0xff]
    %v1371 = vld [vmem:[#allocation4 + $0x2470] sm:$0xff]
    %v1372 = vld [vmem:[#allocation4 + $0x2478] sm:$0xff]
    %v1373 = vld [vmem:[#allocation4 + $0x2480] sm:$0xff]
    %v1374 = vld [vmem:[#allocation4 + $0x2488] sm:$0xff]
    %v1375 = vld [vmem:[#allocation4 + $0x2490] sm:$0xff]
    %v1376 = vld [vmem:[#allocation4 + $0x2498] sm:$0xff]
    %v1377 = vld [vmem:[#allocation4 + $0x24a0] sm:$0xff]
    %v1378 = vld [vmem:[#allocation4 + $0x24a8] sm:$0xff]
    %v1379 = vld [vmem:[#allocation4 + $0x24b0] sm:$0xff]
    %v1380 = vld [vmem:[#allocation4 + $0x24b8] sm:$0xff]
    %v1381 = vld [vmem:[#allocation4 + $0x24c0] sm:$0xff]
    %v1382 = vld [vmem:[#allocation4 + $0x24c8] sm:$0xff]
    %v1383 = vld [vmem:[#allocation4 + $0x24d0] sm:$0xff]
    %v1384 = vld [vmem:[#allocation4 + $0x24d8] sm:$0xff]
    %v1385 = vld [vmem:[#allocation4 + $0x24e0] sm:$0xff]
    %v1386 = vld [vmem:[#allocation4 + $0x24e8] sm:$0xff]
    %v1387 = vld [vmem:[#allocation4 + $0x24f0] sm:$0xff]
    %v1388 = vld [vmem:[#allocation4 + $0x24f8] sm:$0xff]
    %v1389 = vld [vmem:[#allocation4 + $0x2500] sm:$0xff]
    %v1390 = vld [vmem:[#allocation4 + $0x2508] sm:$0xff]
    %v1391 = vld [vmem:[#allocation4 + $0x2510] sm:$0xff]
    %v1392 = vld [vmem:[#allocation4 + $0x2518] sm:$0xff]
    %v1393 = vld [vmem:[#allocation4 + $0x2520] sm:$0xff]
    %v1394 = vld [vmem:[#allocation4 + $0x2528] sm:$0xff]
    %v1395 = vld [vmem:[#allocation4 + $0x2530] sm:$0xff]
    %v1396 = vld [vmem:[#allocation4 + $0x2538] sm:$0xff]
    %v1397 = vld [vmem:[#allocation4 + $0x2540] sm:$0xff]
    %v1398 = vld [vmem:[#allocation4 + $0x2548] sm:$0xff]
    %v1399 = vld [vmem:[#allocation4 + $0x2550] sm:$0xff]
    %v1400 = vld [vmem:[#allocation4 + $0x2558] sm:$0xff]
    %v1401 = vld [vmem:[#allocation4 + $0x2560] sm:$0xff]
    %v1402 = vld [vmem:[#allocation4 + $0x2568] sm:$0xff]
    %v1403 = vld [vmem:[#allocation4 + $0x2570] sm:$0xff]
    %v1404 = vld [vmem:[#allocation4 + $0x2578] sm:$0xff]
    %v1405 = vld [vmem:[#allocation4 + $0x2580] sm:$0xff]
    %v1406 = vld [vmem:[#allocation4 + $0x2588] sm:$0xff]
    %v1407 = vld [vmem:[#allocation4 + $0x2590] sm:$0xff]
    %v1408 = vld [vmem:[#allocation4 + $0x2598] sm:$0xff]
    %v1409 = vld [vmem:[#allocation4 + $0x25a0] sm:$0xff]
    %v1410 = vld [vmem:[#allocation4 + $0x25a8] sm:$0xff]
    %v1411 = vld [vmem:[#allocation4 + $0x25b0] sm:$0xff]
    %v1412 = vld [vmem:[#allocation4 + $0x25b8] sm:$0xff]
    %v1413 = vld [vmem:[#allocation4 + $0x25c0] sm:$0xff]
    %v1414 = vld [vmem:[#allocation4 + $0x25c8] sm:$0xff]
    %v1415 = vld [vmem:[#allocation4 + $0x25d0] sm:$0xff]
    %v1416 = vld [vmem:[#allocation4 + $0x25d8] sm:$0xff]
    %v1417 = vld [vmem:[#allocation4 + $0x25e0] sm:$0xff]
    %v1418 = vld [vmem:[#allocation4 + $0x25e8] sm:$0xff]
    %v1419 = vld [vmem:[#allocation4 + $0x25f0] sm:$0xff]
    %v1420 = vld [vmem:[#allocation4 + $0x25f8] sm:$0xff]
    %v1421 = vld [vmem:[#allocation4 + $0x2600] sm:$0xff]
    %v1422 = vld [vmem:[#allocation4 + $0x2608] sm:$0xff]
    %v1423 = vld [vmem:[#allocation4 + $0x2610] sm:$0xff]
    %v1424 = vld [vmem:[#allocation4 + $0x2618] sm:$0xff]
    %v1425 = vld [vmem:[#allocation4 + $0x2620] sm:$0xff]
    %v1426 = vld [vmem:[#allocation4 + $0x2628] sm:$0xff]
    %v1427 = vld [vmem:[#allocation4 + $0x2630] sm:$0xff]
    %v1428 = vld [vmem:[#allocation4 + $0x2638] sm:$0xff]
    %v1429 = vld [vmem:[#allocation4 + $0x2640] sm:$0xff]
    %v1430 = vld [vmem:[#allocation4 + $0x2648] sm:$0xff]
    %v1431 = vld [vmem:[#allocation4 + $0x2650] sm:$0xff]
    %v1432 = vld [vmem:[#allocation4 + $0x2658] sm:$0xff]
    %v1433 = vld [vmem:[#allocation4 + $0x2660] sm:$0xff]
    %v1434 = vld [vmem:[#allocation4 + $0x2668] sm:$0xff]
    %v1435 = vld [vmem:[#allocation4 + $0x2670] sm:$0xff]
    %v1436 = vld [vmem:[#allocation4 + $0x2678] sm:$0xff]
    %v1437 = vld [vmem:[#allocation4 + $0x2680] sm:$0xff]
    %v1438 = vld [vmem:[#allocation4 + $0x2688] sm:$0xff]
    %v1439 = vld [vmem:[#allocation4 + $0x2690] sm:$0xff]
    %v1440 = vld [vmem:[#allocation4 + $0x2698] sm:$0xff]
    %v1441 = vld [vmem:[#allocation4 + $0x26a0] sm:$0xff]
    %v1442 = vld [vmem:[#allocation4 + $0x26a8] sm:$0xff]
    %v1443 = vld [vmem:[#allocation4 + $0x26b0] sm:$0xff]
    %v1444 = vld [vmem:[#allocation4 + $0x26b8] sm:$0xff]
    %v1445 = vld [vmem:[#allocation4 + $0x26c0] sm:$0xff]
    %v1446 = vld [vmem:[#allocation4 + $0x26c8] sm:$0xff]
    %v1447 = vld [vmem:[#allocation4 + $0x26d0] sm:$0xff]
    %v1448 = vld [vmem:[#allocation4 + $0x26d8] sm:$0xff]
    %v1449 = vld [vmem:[#allocation4 + $0x26e0] sm:$0xff]
    %v1450 = vld [vmem:[#allocation4 + $0x26e8] sm:$0xff]
    %v1451 = vld [vmem:[#allocation4 + $0x26f0] sm:$0xff]
    %v1452 = vld [vmem:[#allocation4 + $0x26f8] sm:$0xff]
    %v1453 = vld [vmem:[#allocation4 + $0x2700] sm:$0xff]
    %v1454 = vld [vmem:[#allocation4 + $0x2708] sm:$0xff]
    %v1455 = vld [vmem:[#allocation4 + $0x2710] sm:$0xff]
    %v1456 = vld [vmem:[#allocation4 + $0x2718] sm:$0xff]
    %v1457 = vld [vmem:[#allocation4 + $0x2720] sm:$0xff]
    %v1458 = vld [vmem:[#allocation4 + $0x2728] sm:$0xff]
    %v1459 = vld [vmem:[#allocation4 + $0x2730] sm:$0xff]
    %v1460 = vld [vmem:[#allocation4 + $0x2738] sm:$0xff]
    %v1461 = vld [vmem:[#allocation4 + $0x2740] sm:$0xff]
    %v1462 = vld [vmem:[#allocation4 + $0x2748] sm:$0xff]
    %v1463 = vld [vmem:[#allocation4 + $0x2750] sm:$0xff]
    %v1464 = vld [vmem:[#allocation4 + $0x2758] sm:$0xff]
    %v1465 = vld [vmem:[#allocation4 + $0x2760] sm:$0xff]
    %v1466 = vld [vmem:[#allocation4 + $0x2768] sm:$0xff]
    %v1467 = vld [vmem:[#allocation4 + $0x2770] sm:$0xff]
    %v1468 = vld [vmem:[#allocation4 + $0x2778] sm:$0xff]
    %v1469 = vld [vmem:[#allocation4 + $0x2780] sm:$0xff]
    %v1470 = vld [vmem:[#allocation4 + $0x2788] sm:$0xff]
    %v1471 = vld [vmem:[#allocation4 + $0x2790] sm:$0xff]
    %v1472 = vld [vmem:[#allocation4 + $0x2798] sm:$0xff]
    %v1473 = vld [vmem:[#allocation4 + $0x27a0] sm:$0xff]
    %v1474 = vld [vmem:[#allocation4 + $0x27a8] sm:$0xff]
    %v1475 = vld [vmem:[#allocation4 + $0x27b0] sm:$0xff]
    %v1476 = vld [vmem:[#allocation4 + $0x27b8] sm:$0xff]
    %v1477 = vld [vmem:[#allocation4 + $0x27c0] sm:$0xff]
    %v1478 = vld [vmem:[#allocation4 + $0x27c8] sm:$0xff]
    %v1479 = vld [vmem:[#allocation4 + $0x27d0] sm:$0xff]
    %v1480 = vld [vmem:[#allocation4 + $0x27d8] sm:$0xff]
    %v1481 = vld [vmem:[#allocation4 + $0x27e0] sm:$0xff]
    %v1482 = vld [vmem:[#allocation4 + $0x27e8] sm:$0xff]
    %v1483 = vld [vmem:[#allocation4 + $0x27f0] sm:$0xff]
    %v1484 = vld [vmem:[#allocation4 + $0x27f8] sm:$0xff]
    %v1485 = vld [vmem:[#allocation4 + $0x2800] sm:$0xff]
    %v1486 = vld [vmem:[#allocation4 + $0x2808] sm:$0xff]
    %v1487 = vld [vmem:[#allocation4 + $0x2810] sm:$0xff]
    %v1488 = vld [vmem:[#allocation4 + $0x2818] sm:$0xff]
    %v1489 = vld [vmem:[#allocation4 + $0x2820] sm:$0xff]
    %v1490 = vld [vmem:[#allocation4 + $0x2828] sm:$0xff]
    %v1491 = vld [vmem:[#allocation4 + $0x2830] sm:$0xff]
    %v1492 = vld [vmem:[#allocation4 + $0x2838] sm:$0xff]
    %v1493 = vld [vmem:[#allocation4 + $0x2840] sm:$0xff]
    %v1494 = vld [vmem:[#allocation4 + $0x2848] sm:$0xff]
    %v1495 = vld [vmem:[#allocation4 + $0x2850] sm:$0xff]
    %v1496 = vld [vmem:[#allocation4 + $0x2858] sm:$0xff]
    %v1497 = vld [vmem:[#allocation4 + $0x2860] sm:$0xff]
    %v1498 = vld [vmem:[#allocation4 + $0x2868] sm:$0xff]
    %v1499 = vld [vmem:[#allocation4 + $0x2870] sm:$0xff]
    %v1500 = vld [vmem:[#allocation4 + $0x2878] sm:$0xff]
    %v1501 = vld [vmem:[#allocation4 + $0x2880] sm:$0xff]
    %v1502 = vld [vmem:[#allocation4 + $0x2888] sm:$0xff]
    %v1503 = vld [vmem:[#allocation4 + $0x2890] sm:$0xff]
    %v1504 = vld [vmem:[#allocation4 + $0x2898] sm:$0xff]
    %v1505 = vld [vmem:[#allocation4 + $0x28a0] sm:$0xff]
    %v1506 = vld [vmem:[#allocation4 + $0x28a8] sm:$0xff]
    %v1507 = vld [vmem:[#allocation4 + $0x28b0] sm:$0xff]
    %v1508 = vld [vmem:[#allocation4 + $0x28b8] sm:$0xff]
    %v1509 = vld [vmem:[#allocation4 + $0x28c0] sm:$0xff]
    %v1510 = vld [vmem:[#allocation4 + $0x28c8] sm:$0xff]
    %v1511 = vld [vmem:[#allocation4 + $0x28d0] sm:$0xff]
    %v1512 = vld [vmem:[#allocation4 + $0x28d8] sm:$0xff]
    %v1513 = vld [vmem:[#allocation4 + $0x28e0] sm:$0xff]
    %v1514 = vld [vmem:[#allocation4 + $0x28e8] sm:$0xff]
    %v1515 = vld [vmem:[#allocation4 + $0x28f0] sm:$0xff]
    %v1516 = vld [vmem:[#allocation4 + $0x28f8] sm:$0xff]
    %v1517 = vld [vmem:[#allocation4 + $0x2900] sm:$0xff]
    %v1518 = vld [vmem:[#allocation4 + $0x2908] sm:$0xff]
    %v1519 = vld [vmem:[#allocation4 + $0x2910] sm:$0xff]
    %v1520 = vld [vmem:[#allocation4 + $0x2918] sm:$0xff]
    %v1521 = vld [vmem:[#allocation4 + $0x2920] sm:$0xff]
    %v1522 = vld [vmem:[#allocation4 + $0x2928] sm:$0xff]
    %v1523 = vld [vmem:[#allocation4 + $0x2930] sm:$0xff]
    %v1524 = vld [vmem:[#allocation4 + $0x2938] sm:$0xff]
    %v1525 = vld [vmem:[#allocation4 + $0x2940] sm:$0xff]
    %v1526 = vld [vmem:[#allocation4 + $0x2948] sm:$0xff]
    %v1527 = vld [vmem:[#allocation4 + $0x2950] sm:$0xff]
    %v1528 = vld [vmem:[#allocation4 + $0x2958] sm:$0xff]
    %v1529 = vld [vmem:[#allocation4 + $0x2960] sm:$0xff]
    %v1530 = vld [vmem:[#allocation4 + $0x2968] sm:$0xff]
    %v1531 = vld [vmem:[#allocation4 + $0x2970] sm:$0xff]
    %v1532 = vld [vmem:[#allocation4 + $0x2978] sm:$0xff]
    %v1533 = vld [vmem:[#allocation4 + $0x2980] sm:$0xff]
    %v1534 = vld [vmem:[#allocation4 + $0x2988] sm:$0xff]
    %v1535 = vld [vmem:[#allocation4 + $0x2990] sm:$0xff]
    %v1536 = vld [vmem:[#allocation4 + $0x2998] sm:$0xff]
    %v1537 = vld [vmem:[#allocation4 + $0x29a0] sm:$0xff]
    %v1538 = vld [vmem:[#allocation4 + $0x29a8] sm:$0xff]
    %v1539 = vld [vmem:[#allocation4 + $0x29b0] sm:$0xff]
    %v1540 = vld [vmem:[#allocation4 + $0x29b8] sm:$0xff]
    %v1541 = vld [vmem:[#allocation4 + $0x29c0] sm:$0xff]
    %v1542 = vld [vmem:[#allocation4 + $0x29c8] sm:$0xff]
    %v1543 = vld [vmem:[#allocation4 + $0x29d0] sm:$0xff]
    %v1544 = vld [vmem:[#allocation4 + $0x29d8] sm:$0xff]
    %v1545 = vld [vmem:[#allocation4 + $0x29e0] sm:$0xff]
    %v1546 = vld [vmem:[#allocation4 + $0x29e8] sm:$0xff]
    %v1547 = vld [vmem:[#allocation4 + $0x29f0] sm:$0xff]
    %v1548 = vld [vmem:[#allocation4 + $0x29f8] sm:$0xff]
    %v1549 = vld [vmem:[#allocation4 + $0x2a00] sm:$0xff]
    %v1550 = vld [vmem:[#allocation4 + $0x2a08] sm:$0xff]
    %v1551 = vld [vmem:[#allocation4 + $0x2a10] sm:$0xff]
    %v1552 = vld [vmem:[#allocation4 + $0x2a18] sm:$0xff]
    %v1553 = vld [vmem:[#allocation4 + $0x2a20] sm:$0xff]
    %v1554 = vld [vmem:[#allocation4 + $0x2a28] sm:$0xff]
    %v1555 = vld [vmem:[#allocation6] sm:$0xff]
    %v1556 = vld [vmem:[#allocation6 + $0x8] sm:$0x3]
    %v1559 = vlaneseq
    %v1560 = vshrl.u32 %v1559, 7
    %v1561 = vsub.s32 0, %v1560
    %v1562 = vrot.slane %v1555, %v1561
    %v1563 = vlaneseq
    %v1564 = vshrl.u32 %v1563, 7
    %v1565 = vsub.s32 1, %v1564
    %v1566 = vrot.slane %v1555, %v1565
    %v1567 = vlaneseq
    %v1568 = vshrl.u32 %v1567, 7
    %v1569 = vsub.s32 2, %v1568
    %v1570 = vrot.slane %v1555, %v1569
    %v1571 = vlaneseq
    %v1572 = vshrl.u32 %v1571, 7
    %v1573 = vsub.s32 3, %v1572
    %v1574 = vrot.slane %v1555, %v1573
    %v1575 = vlaneseq
    %v1576 = vshrl.u32 %v1575, 7
    %v1577 = vsub.s32 4, %v1576
    %v1578 = vrot.slane %v1555, %v1577
    %v1579 = vlaneseq
    %v1580 = vshrl.u32 %v1579, 7
    %v1581 = vsub.s32 5, %v1580
    %v1582 = vrot.slane %v1555, %v1581
    %v1583 = vlaneseq
    %v1584 = vshrl.u32 %v1583, 7
    %v1585 = vsub.s32 6, %v1584
    %v1586 = vrot.slane %v1555, %v1585
    %v1587 = vlaneseq
    %v1588 = vshrl.u32 %v1587, 7
    %v1589 = vsub.s32 7, %v1588
    %v1590 = vrot.slane %v1555, %v1589
    %v1591 = vlaneseq
    %v1592 = vshrl.u32 %v1591, 7
    %v1593 = vsub.s32 0, %v1592
    %v1594 = vrot.slane %v1556, %v1593
    %v1595 = vlaneseq
    %v1596 = vshrl.u32 %v1595, 7
    %v1597 = vsub.s32 1, %v1596
    %v1598 = vrot.slane %v1556, %v1597
    %v2959 = vunpack.c.l.b16 %v205
    %v2960 = vunpack.c.h.b16 %v205
    %v2961 = vunpack.c.l.b16 %v206
    %v2962 = vunpack.c.h.b16 %v206
    %v2963 = vunpack.c.l.b16 %v207
    %v2964 = vunpack.c.h.b16 %v207
    %v2965 = vunpack.c.l.b16 %v208
    %v2966 = vunpack.c.h.b16 %v208
    %v2967 = vunpack.c.l.b16 %v209
    %v2968 = vunpack.c.h.b16 %v209
    %v2969 = vunpack.c.l.b16 %v210
    %v2970 = vunpack.c.h.b16 %v210
    %v2971 = vunpack.c.l.b16 %v211
    %v2972 = vunpack.c.h.b16 %v211
    %v2973 = vunpack.c.l.b16 %v212
    %v2974 = vunpack.c.h.b16 %v212
    %v2975 = vunpack.c.l.b16 %v213
    %v2976 = vunpack.c.h.b16 %v213
    %v2977 = vunpack.c.l.b16 %v214
    %v2978 = vunpack.c.h.b16 %v214
    %v2979 = vunpack.c.l.b16 %v215
    %v2980 = vunpack.c.h.b16 %v215
    %v2981 = vunpack.c.l.b16 %v216
    %v2982 = vunpack.c.h.b16 %v216
    %v2983 = vunpack.c.l.b16 %v217
    %v2984 = vunpack.c.h.b16 %v217
    %v2985 = vunpack.c.l.b16 %v218
    %v2986 = vunpack.c.h.b16 %v218
    %v2987 = vunpack.c.l.b16 %v219
    %v2988 = vunpack.c.h.b16 %v219
    %v2989 = vunpack.c.l.b16 %v220
    %v2990 = vunpack.c.h.b16 %v220
    %v2991 = vunpack.c.l.b16 %v221
    %v2992 = vunpack.c.h.b16 %v221
    %v2993 = vunpack.c.l.b16 %v222
    %v2994 = vunpack.c.h.b16 %v222
    %v2995 = vunpack.c.l.b16 %v223
    %v2996 = vunpack.c.h.b16 %v223
    %v2997 = vunpack.c.l.b16 %v224
    %v2998 = vunpack.c.h.b16 %v224
    %v2999 = vunpack.c.l.b16 %v225
    %v3000 = vunpack.c.h.b16 %v225
    %v3001 = vunpack.c.l.b16 %v226
    %v3002 = vunpack.c.h.b16 %v226
    %v3003 = vunpack.c.l.b16 %v227
    %v3004 = vunpack.c.h.b16 %v227
    %v3005 = vunpack.c.l.b16 %v228
    %v3006 = vunpack.c.h.b16 %v228
    %v3007 = vunpack.c.l.b16 %v229
    %v3008 = vunpack.c.h.b16 %v229
    %v3009 = vunpack.c.l.b16 %v230
    %v3010 = vunpack.c.h.b16 %v230
    %v3011 = vunpack.c.l.b16 %v231
    %v3012 = vunpack.c.h.b16 %v231
    %v3013 = vunpack.c.l.b16 %v232
    %v3014 = vunpack.c.h.b16 %v232
    %v3015 = vunpack.c.l.b16 %v233
    %v3016 = vunpack.c.h.b16 %v233
    %v3017 = vunpack.c.l.b16 %v234
    %v3018 = vunpack.c.h.b16 %v234
    %v3019 = vunpack.c.l.b16 %v235
    %v3020 = vunpack.c.h.b16 %v235
    %v3021 = vunpack.c.l.b16 %v236
    %v3022 = vunpack.c.h.b16 %v236
    %v3023 = vunpack.c.l.b16 %v237
    %v3024 = vunpack.c.h.b16 %v237
    %v3025 = vunpack.c.l.b16 %v238
    %v3026 = vunpack.c.h.b16 %v238
    %v3027 = vunpack.c.l.b16 %v239
    %v3028 = vunpack.c.h.b16 %v239
    %v3029 = vunpack.c.l.b16 %v240
    %v3030 = vunpack.c.h.b16 %v240
    %v3031 = vunpack.c.l.b16 %v241
    %v3032 = vunpack.c.h.b16 %v241
    %v3033 = vunpack.c.l.b16 %v242
    %v3034 = vunpack.c.h.b16 %v242
    %v3035 = vunpack.c.l.b16 %v243
    %v3036 = vunpack.c.h.b16 %v243
    %v3037 = vunpack.c.l.b16 %v244
    %v3038 = vunpack.c.h.b16 %v244
    %v3039 = vunpack.c.l.b16 %v245
    %v3040 = vunpack.c.h.b16 %v245
    %v3041 = vunpack.c.l.b16 %v246
    %v3042 = vunpack.c.h.b16 %v246
    %v3043 = vunpack.c.l.b16 %v247
    %v3044 = vunpack.c.h.b16 %v247
    %v3045 = vunpack.c.l.b16 %v248
    %v3046 = vunpack.c.h.b16 %v248
    %v3047 = vunpack.c.l.b16 %v249
    %v3048 = vunpack.c.h.b16 %v249
    %v3049 = vunpack.c.l.b16 %v250
    %v3050 = vunpack.c.h.b16 %v250
    %v3051 = vunpack.c.l.b16 %v251
    %v3052 = vunpack.c.h.b16 %v251
    %v3053 = vunpack.c.l.b16 %v252
    %v3054 = vunpack.c.h.b16 %v252
    %v3055 = vunpack.c.l.b16 %v253
    %v3056 = vunpack.c.h.b16 %v253
    %v3057 = vunpack.c.l.b16 %v254
    %v3058 = vunpack.c.h.b16 %v254
    %v3059 = vunpack.c.l.b16 %v255
    %v3060 = vunpack.c.h.b16 %v255
    %v3061 = vunpack.c.l.b16 %v256
    %v3062 = vunpack.c.h.b16 %v256
    %v3063 = vunpack.c.l.b16 %v257
    %v3064 = vunpack.c.h.b16 %v257
    %v3065 = vunpack.c.l.b16 %v258
    %v3066 = vunpack.c.h.b16 %v258
    %v3067 = vunpack.c.l.b16 %v259
    %v3068 = vunpack.c.h.b16 %v259
    %v3069 = vunpack.c.l.b16 %v260
    %v3070 = vunpack.c.h.b16 %v260
    %v3071 = vunpack.c.l.b16 %v261
    %v3072 = vunpack.c.h.b16 %v261
    %v3073 = vunpack.c.l.b16 %v262
    %v3074 = vunpack.c.h.b16 %v262
    %v3075 = vunpack.c.l.b16 %v263
    %v3076 = vunpack.c.h.b16 %v263
    %v3077 = vunpack.c.l.b16 %v264
    %v3078 = vunpack.c.h.b16 %v264
    %v3079 = vunpack.c.l.b16 %v265
    %v3080 = vunpack.c.h.b16 %v265
    %v3081 = vunpack.c.l.b16 %v266
    %v3082 = vunpack.c.h.b16 %v266
    %v3083 = vunpack.c.l.b16 %v267
    %v3084 = vunpack.c.h.b16 %v267
    %v3085 = vunpack.c.l.b16 %v268
    %v3086 = vunpack.c.h.b16 %v268
    %v3087 = vunpack.c.l.b16 %v269
    %v3088 = vunpack.c.h.b16 %v269
    %v3089 = vunpack.c.l.b16 %v270
    %v3090 = vunpack.c.h.b16 %v270
    %v3091 = vunpack.c.l.b16 %v271
    %v3092 = vunpack.c.h.b16 %v271
    %v3093 = vunpack.c.l.b16 %v272
    %v3094 = vunpack.c.h.b16 %v272
    %v3095 = vunpack.c.l.b16 %v273
    %v3096 = vunpack.c.h.b16 %v273
    %v3097 = vunpack.c.l.b16 %v274
    %v3098 = vunpack.c.h.b16 %v274
    %v3099 = vunpack.c.l.b16 %v275
    %v3100 = vunpack.c.h.b16 %v275
    %v3101 = vunpack.c.l.b16 %v276
    %v3102 = vunpack.c.h.b16 %v276
    %v3103 = vunpack.c.l.b16 %v277
    %v3104 = vunpack.c.h.b16 %v277
    %v3105 = vunpack.c.l.b16 %v278
    %v3106 = vunpack.c.h.b16 %v278
    %v3107 = vunpack.c.l.b16 %v279
    %v3108 = vunpack.c.h.b16 %v279
    %v3109 = vunpack.c.l.b16 %v280
    %v3110 = vunpack.c.h.b16 %v280
    %v3111 = vunpack.c.l.b16 %v281
    %v3112 = vunpack.c.h.b16 %v281
    %v3113 = vunpack.c.l.b16 %v282
    %v3114 = vunpack.c.h.b16 %v282
    %v3115 = vunpack.c.l.b16 %v283
    %v3116 = vunpack.c.h.b16 %v283
    %v3117 = vunpack.c.l.b16 %v284
    %v3118 = vunpack.c.h.b16 %v284
    %v3119 = vunpack.c.l.b16 %v285
    %v3120 = vunpack.c.h.b16 %v285
    %v3121 = vunpack.c.l.b16 %v286
    %v3122 = vunpack.c.h.b16 %v286
    %v3123 = vunpack.c.l.b16 %v287
    %v3124 = vunpack.c.h.b16 %v287
    %v3125 = vunpack.c.l.b16 %v288
    %v3126 = vunpack.c.h.b16 %v288
    %v3127 = vunpack.c.l.b16 %v289
    %v3128 = vunpack.c.h.b16 %v289
    %v3129 = vunpack.c.l.b16 %v290
    %v3130 = vunpack.c.h.b16 %v290
    %v3131 = vunpack.c.l.b16 %v291
    %v3132 = vunpack.c.h.b16 %v291
    %v3133 = vunpack.c.l.b16 %v292
    %v3134 = vunpack.c.h.b16 %v292
    %v3135 = vunpack.c.l.b16 %v293
    %v3136 = vunpack.c.h.b16 %v293
    %v3137 = vunpack.c.l.b16 %v294
    %v3138 = vunpack.c.h.b16 %v294
    %v3139 = vunpack.c.l.b16 %v295
    %v3140 = vunpack.c.h.b16 %v295
    %v3141 = vunpack.c.l.b16 %v296
    %v3142 = vunpack.c.h.b16 %v296
    %v3143 = vunpack.c.l.b16 %v297
    %v3144 = vunpack.c.h.b16 %v297
    %v3145 = vunpack.c.l.b16 %v298
    %v3146 = vunpack.c.h.b16 %v298
    %v3147 = vunpack.c.l.b16 %v299
    %v3148 = vunpack.c.h.b16 %v299
    %v3149 = vunpack.c.l.b16 %v300
    %v3150 = vunpack.c.h.b16 %v300
    %v3151 = vunpack.c.l.b16 %v301
    %v3152 = vunpack.c.h.b16 %v301
    %v3153 = vunpack.c.l.b16 %v302
    %v3154 = vunpack.c.h.b16 %v302
    %v3155 = vunpack.c.l.b16 %v303
    %v3156 = vunpack.c.h.b16 %v303
    %v3157 = vunpack.c.l.b16 %v304
    %v3158 = vunpack.c.h.b16 %v304
    %v3159 = vunpack.c.l.b16 %v305
    %v3160 = vunpack.c.h.b16 %v305
    %v3161 = vunpack.c.l.b16 %v306
    %v3162 = vunpack.c.h.b16 %v306
    %v3163 = vunpack.c.l.b16 %v307
    %v3164 = vunpack.c.h.b16 %v307
    %v3165 = vunpack.c.l.b16 %v308
    %v3166 = vunpack.c.h.b16 %v308
    %v3167 = vunpack.c.l.b16 %v309
    %v3168 = vunpack.c.h.b16 %v309
    %v3169 = vunpack.c.l.b16 %v310
    %v3170 = vunpack.c.h.b16 %v310
    %v3171 = vunpack.c.l.b16 %v311
    %v3172 = vunpack.c.h.b16 %v311
    %v3173 = vunpack.c.l.b16 %v312
    %v3174 = vunpack.c.h.b16 %v312
    %v3175 = vunpack.c.l.b16 %v313
    %v3176 = vunpack.c.h.b16 %v313
    %v3177 = vunpack.c.l.b16 %v314
    %v3178 = vunpack.c.h.b16 %v314
    %v3179 = vunpack.c.l.b16 %v315
    %v3180 = vunpack.c.h.b16 %v315
    %v3181 = vunpack.c.l.b16 %v316
    %v3182 = vunpack.c.h.b16 %v316
    %v3183 = vunpack.c.l.b16 %v317
    %v3184 = vunpack.c.h.b16 %v317
    %v3185 = vunpack.c.l.b16 %v318
    %v3186 = vunpack.c.h.b16 %v318
    %v3187 = vunpack.c.l.b16 %v319
    %v3188 = vunpack.c.h.b16 %v319
    %v3189 = vunpack.c.l.b16 %v320
    %v3190 = vunpack.c.h.b16 %v320
    %v3191 = vunpack.c.l.b16 %v321
    %v3192 = vunpack.c.h.b16 %v321
    %v3193 = vunpack.c.l.b16 %v322
    %v3194 = vunpack.c.h.b16 %v322
    %v3195 = vunpack.c.l.b16 %v323
    %v3196 = vunpack.c.h.b16 %v323
    %v3197 = vunpack.c.l.b16 %v324
    %v3198 = vunpack.c.h.b16 %v324
    %v3199 = vunpack.c.l.b16 %v325
    %v3200 = vunpack.c.h.b16 %v325
    %v3201 = vunpack.c.l.b16 %v326
    %v3202 = vunpack.c.h.b16 %v326
    %v3203 = vunpack.c.l.b16 %v327
    %v3204 = vunpack.c.h.b16 %v327
    %v3205 = vunpack.c.l.b16 %v328
    %v3206 = vunpack.c.h.b16 %v328
    %v3207 = vunpack.c.l.b16 %v329
    %v3208 = vunpack.c.h.b16 %v329
    %v3209 = vunpack.c.l.b16 %v330
    %v3210 = vunpack.c.h.b16 %v330
    %v3211 = vunpack.c.l.b16 %v331
    %v3212 = vunpack.c.h.b16 %v331
    %v3213 = vunpack.c.l.b16 %v332
    %v3214 = vunpack.c.h.b16 %v332
    %v3215 = vunpack.c.l.b16 %v333
    %v3216 = vunpack.c.h.b16 %v333
    %v3217 = vunpack.c.l.b16 %v334
    %v3218 = vunpack.c.h.b16 %v334
    %v3219 = vunpack.c.l.b16 %v335
    %v3220 = vunpack.c.h.b16 %v335
    %v3221 = vunpack.c.l.b16 %v336
    %v3222 = vunpack.c.h.b16 %v336
    %v3223 = vunpack.c.l.b16 %v337
    %v3224 = vunpack.c.h.b16 %v337
    %v3225 = vunpack.c.l.b16 %v338
    %v3226 = vunpack.c.h.b16 %v338
    %v3227 = vunpack.c.l.b16 %v339
    %v3228 = vunpack.c.h.b16 %v339
    %v3229 = vunpack.c.l.b16 %v340
    %v3230 = vunpack.c.h.b16 %v340
    %v3231 = vunpack.c.l.b16 %v341
    %v3232 = vunpack.c.h.b16 %v341
    %v3233 = vunpack.c.l.b16 %v342
    %v3234 = vunpack.c.h.b16 %v342
    %v3235 = vunpack.c.l.b16 %v343
    %v3236 = vunpack.c.h.b16 %v343
    %v3237 = vunpack.c.l.b16 %v344
    %v3238 = vunpack.c.h.b16 %v344
    %v3239 = vunpack.c.l.b16 %v345
    %v3240 = vunpack.c.h.b16 %v345
    %v3241 = vunpack.c.l.b16 %v346
    %v3242 = vunpack.c.h.b16 %v346
    %v3243 = vunpack.c.l.b16 %v347
    %v3244 = vunpack.c.h.b16 %v347
    %v3245 = vunpack.c.l.b16 %v348
    %v3246 = vunpack.c.h.b16 %v348
    %v3247 = vunpack.c.l.b16 %v349
    %v3248 = vunpack.c.h.b16 %v349
    %v3249 = vunpack.c.l.b16 %v350
    %v3250 = vunpack.c.h.b16 %v350
    %v3251 = vunpack.c.l.b16 %v351
    %v3252 = vunpack.c.h.b16 %v351
    %v3253 = vunpack.c.l.b16 %v352
    %v3254 = vunpack.c.h.b16 %v352
    %v3255 = vunpack.c.l.b16 %v353
    %v3256 = vunpack.c.h.b16 %v353
    %v3257 = vunpack.c.l.b16 %v354
    %v3258 = vunpack.c.h.b16 %v354
    %v3259 = vunpack.c.l.b16 %v355
    %v3260 = vunpack.c.h.b16 %v355
    %v3261 = vunpack.c.l.b16 %v356
    %v3262 = vunpack.c.h.b16 %v356
    %v3263 = vunpack.c.l.b16 %v357
    %v3264 = vunpack.c.h.b16 %v357
    %v3265 = vunpack.c.l.b16 %v358
    %v3266 = vunpack.c.h.b16 %v358
    %v3267 = vunpack.c.l.b16 %v359
    %v3268 = vunpack.c.h.b16 %v359
    %v3269 = vunpack.c.l.b16 %v360
    %v3270 = vunpack.c.h.b16 %v360
    %v3271 = vunpack.c.l.b16 %v361
    %v3272 = vunpack.c.h.b16 %v361
    %v3273 = vunpack.c.l.b16 %v362
    %v3274 = vunpack.c.h.b16 %v362
    %v3275 = vunpack.c.l.b16 %v363
    %v3276 = vunpack.c.h.b16 %v363
    %v3277 = vunpack.c.l.b16 %v364
    %v3278 = vunpack.c.h.b16 %v364
    %v3279 = vunpack.c.l.b16 %v365
    %v3280 = vunpack.c.h.b16 %v365
    %v3281 = vunpack.c.l.b16 %v366
    %v3282 = vunpack.c.h.b16 %v366
    %v3283 = vunpack.c.l.b16 %v367
    %v3284 = vunpack.c.h.b16 %v367
    %v3285 = vunpack.c.l.b16 %v368
    %v3286 = vunpack.c.h.b16 %v368
    %v3287 = vunpack.c.l.b16 %v369
    %v3288 = vunpack.c.h.b16 %v369
    %v3289 = vunpack.c.l.b16 %v370
    %v3290 = vunpack.c.h.b16 %v370
    %v3291 = vunpack.c.l.b16 %v371
    %v3292 = vunpack.c.h.b16 %v371
    %v3293 = vunpack.c.l.b16 %v372
    %v3294 = vunpack.c.h.b16 %v372
    %v3295 = vunpack.c.l.b16 %v373
    %v3296 = vunpack.c.h.b16 %v373
    %v3297 = vunpack.c.l.b16 %v374
    %v3298 = vunpack.c.h.b16 %v374
    %v3299 = vunpack.c.l.b16 %v375
    %v3300 = vunpack.c.h.b16 %v375
    %v3301 = vunpack.c.l.b16 %v376
    %v3302 = vunpack.c.h.b16 %v376
    %v3303 = vunpack.c.l.b16 %v377
    %v3304 = vunpack.c.h.b16 %v377
    %v3305 = vunpack.c.l.b16 %v378
    %v3306 = vunpack.c.h.b16 %v378
    %v3307 = vunpack.c.l.b16 %v379
    %v3308 = vunpack.c.h.b16 %v379
    %v3309 = vunpack.c.l.b16 %v380
    %v3310 = vunpack.c.h.b16 %v380
    %v3311 = vunpack.c.l.b16 %v381
    %v3312 = vunpack.c.h.b16 %v381
    %v3313 = vunpack.c.l.b16 %v382
    %v3314 = vunpack.c.h.b16 %v382
    %v3315 = vunpack.c.l.b16 %v383
    %v3316 = vunpack.c.h.b16 %v383
    %v3317 = vunpack.c.l.b16 %v384
    %v3318 = vunpack.c.h.b16 %v384
    %v3319 = vunpack.c.l.b16 %v385
    %v3320 = vunpack.c.h.b16 %v385
    %v3321 = vunpack.c.l.b16 %v386
    %v3322 = vunpack.c.h.b16 %v386
    %v3323 = vunpack.c.l.b16 %v387
    %v3324 = vunpack.c.h.b16 %v387
    %v3325 = vunpack.c.l.b16 %v388
    %v3326 = vunpack.c.h.b16 %v388
    %v3327 = vunpack.c.l.b16 %v389
    %v3328 = vunpack.c.h.b16 %v389
    %v3329 = vunpack.c.l.b16 %v390
    %v3330 = vunpack.c.h.b16 %v390
    %v3331 = vunpack.c.l.b16 %v391
    %v3332 = vunpack.c.h.b16 %v391
    %v3333 = vunpack.c.l.b16 %v392
    %v3334 = vunpack.c.h.b16 %v392
    %v3335 = vunpack.c.l.b16 %v393
    %v3336 = vunpack.c.h.b16 %v393
    %v3337 = vunpack.c.l.b16 %v394
    %v3338 = vunpack.c.h.b16 %v394
    %v3339 = vunpack.c.l.b16 %v395
    %v3340 = vunpack.c.h.b16 %v395
    %v3341 = vunpack.c.l.b16 %v396
    %v3342 = vunpack.c.h.b16 %v396
    %v3343 = vunpack.c.l.b16 %v397
    %v3344 = vunpack.c.h.b16 %v397
    %v3345 = vunpack.c.l.b16 %v398
    %v3346 = vunpack.c.h.b16 %v398
    %v3347 = vunpack.c.l.b16 %v399
    %v3348 = vunpack.c.h.b16 %v399
    %v3349 = vunpack.c.l.b16 %v400
    %v3350 = vunpack.c.h.b16 %v400
    %v3351 = vunpack.c.l.b16 %v401
    %v3352 = vunpack.c.h.b16 %v401
    %v3353 = vunpack.c.l.b16 %v402
    %v3354 = vunpack.c.h.b16 %v402
    %v3355 = vunpack.c.l.b16 %v403
    %v3356 = vunpack.c.h.b16 %v403
    %v3357 = vunpack.c.l.b16 %v404
    %v3358 = vunpack.c.h.b16 %v404
    %v3359 = vunpack.c.l.b16 %v405
    %v3360 = vunpack.c.h.b16 %v405
    %v3361 = vunpack.c.l.b16 %v406
    %v3362 = vunpack.c.h.b16 %v406
    %v3363 = vunpack.c.l.b16 %v407
    %v3364 = vunpack.c.h.b16 %v407
    %v3365 = vunpack.c.l.b16 %v408
    %v3366 = vunpack.c.h.b16 %v408
    %v3367 = vunpack.c.l.b16 %v409
    %v3368 = vunpack.c.h.b16 %v409
    %v3369 = vunpack.c.l.b16 %v410
    %v3370 = vunpack.c.h.b16 %v410
    %v3371 = vunpack.c.l.b16 %v411
    %v3372 = vunpack.c.h.b16 %v411
    %v3373 = vunpack.c.l.b16 %v412
    %v3374 = vunpack.c.h.b16 %v412
    %v3375 = vunpack.c.l.b16 %v413
    %v3376 = vunpack.c.h.b16 %v413
    %v3377 = vunpack.c.l.b16 %v414
    %v3378 = vunpack.c.h.b16 %v414
    %v3379 = vunpack.c.l.b16 %v415
    %v3380 = vunpack.c.h.b16 %v415
    %v3381 = vunpack.c.l.b16 %v416
    %v3382 = vunpack.c.h.b16 %v416
    %v3383 = vunpack.c.l.b16 %v417
    %v3384 = vunpack.c.h.b16 %v417
    %v3385 = vunpack.c.l.b16 %v418
    %v3386 = vunpack.c.h.b16 %v418
    %v3387 = vunpack.c.l.b16 %v419
    %v3388 = vunpack.c.h.b16 %v419
    %v3389 = vunpack.c.l.b16 %v420
    %v3390 = vunpack.c.h.b16 %v420
    %v3391 = vunpack.c.l.b16 %v421
    %v3392 = vunpack.c.h.b16 %v421
    %v3393 = vunpack.c.l.b16 %v422
    %v3394 = vunpack.c.h.b16 %v422
    %v3395 = vunpack.c.l.b16 %v423
    %v3396 = vunpack.c.h.b16 %v423
    %v3397 = vunpack.c.l.b16 %v424
    %v3398 = vunpack.c.h.b16 %v424
    %v3399 = vunpack.c.l.b16 %v425
    %v3400 = vunpack.c.h.b16 %v425
    %v3401 = vunpack.c.l.b16 %v426
    %v3402 = vunpack.c.h.b16 %v426
    %v3403 = vunpack.c.l.b16 %v427
    %v3404 = vunpack.c.h.b16 %v427
    %v3405 = vunpack.c.l.b16 %v428
    %v3406 = vunpack.c.h.b16 %v428
    %v3407 = vunpack.c.l.b16 %v429
    %v3408 = vunpack.c.h.b16 %v429
    %v3409 = vunpack.c.l.b16 %v430
    %v3410 = vunpack.c.h.b16 %v430
    %v3411 = vunpack.c.l.b16 %v431
    %v3412 = vunpack.c.h.b16 %v431
    %v3413 = vunpack.c.l.b16 %v432
    %v3414 = vunpack.c.h.b16 %v432
    %v3415 = vunpack.c.l.b16 %v433
    %v3416 = vunpack.c.h.b16 %v433
    %v3417 = vunpack.c.l.b16 %v434
    %v3418 = vunpack.c.h.b16 %v434
    %v3419 = vunpack.c.l.b16 %v435
    %v3420 = vunpack.c.h.b16 %v435
    %v3421 = vunpack.c.l.b16 %v436
    %v3422 = vunpack.c.h.b16 %v436
    %v3423 = vunpack.c.l.b16 %v437
    %v3424 = vunpack.c.h.b16 %v437
    %v3425 = vunpack.c.l.b16 %v438
    %v3426 = vunpack.c.h.b16 %v438
    %v3427 = vunpack.c.l.b16 %v439
    %v3428 = vunpack.c.h.b16 %v439
    %v3429 = vunpack.c.l.b16 %v440
    %v3430 = vunpack.c.h.b16 %v440
    %v3431 = vunpack.c.l.b16 %v441
    %v3432 = vunpack.c.h.b16 %v441
    %v3433 = vunpack.c.l.b16 %v442
    %v3434 = vunpack.c.h.b16 %v442
    %v3435 = vunpack.c.l.b16 %v443
    %v3436 = vunpack.c.h.b16 %v443
    %v3437 = vunpack.c.l.b16 %v444
    %v3438 = vunpack.c.h.b16 %v444
    %v3439 = vunpack.c.l.b16 %v445
    %v3440 = vunpack.c.h.b16 %v445
    %v3441 = vunpack.c.l.b16 %v446
    %v3442 = vunpack.c.h.b16 %v446
    %v3443 = vunpack.c.l.b16 %v447
    %v3444 = vunpack.c.h.b16 %v447
    %v3445 = vunpack.c.l.b16 %v448
    %v3446 = vunpack.c.h.b16 %v448
    %v3447 = vunpack.c.l.b16 %v449
    %v3448 = vunpack.c.h.b16 %v449
    %v3449 = vunpack.c.l.b16 %v450
    %v3450 = vunpack.c.h.b16 %v450
    %v3451 = vunpack.c.l.b16 %v451
    %v3452 = vunpack.c.h.b16 %v451
    %v3453 = vunpack.c.l.b16 %v452
    %v3454 = vunpack.c.h.b16 %v452
    %v3455 = vunpack.c.l.b16 %v453
    %v3456 = vunpack.c.h.b16 %v453
    %v3457 = vunpack.c.l.b16 %v454
    %v3458 = vunpack.c.h.b16 %v454
    %v3459 = vunpack.c.l.b16 %v455
    %v3460 = vunpack.c.h.b16 %v455
    %v3461 = vunpack.c.l.b16 %v456
    %v3462 = vunpack.c.h.b16 %v456
    %v3463 = vunpack.c.l.b16 %v457
    %v3464 = vunpack.c.h.b16 %v457
    %v3465 = vunpack.c.l.b16 %v458
    %v3466 = vunpack.c.h.b16 %v458
    %v3467 = vunpack.c.l.b16 %v459
    %v3468 = vunpack.c.h.b16 %v459
    %v3469 = vunpack.c.l.b16 %v460
    %v3470 = vunpack.c.h.b16 %v460
    %v3471 = vunpack.c.l.b16 %v461
    %v3472 = vunpack.c.h.b16 %v461
    %v3473 = vunpack.c.l.b16 %v462
    %v3474 = vunpack.c.h.b16 %v462
    %v3475 = vunpack.c.l.b16 %v463
    %v3476 = vunpack.c.h.b16 %v463
    %v3477 = vunpack.c.l.b16 %v464
    %v3478 = vunpack.c.h.b16 %v464
    %v3479 = vunpack.c.l.b16 %v465
    %v3480 = vunpack.c.h.b16 %v465
    %v3481 = vunpack.c.l.b16 %v466
    %v3482 = vunpack.c.h.b16 %v466
    %v3483 = vunpack.c.l.b16 %v467
    %v3484 = vunpack.c.h.b16 %v467
    %v3485 = vunpack.c.l.b16 %v468
    %v3486 = vunpack.c.h.b16 %v468
    %v3487 = vunpack.c.l.b16 %v469
    %v3488 = vunpack.c.h.b16 %v469
    %v3489 = vunpack.c.l.b16 %v470
    %v3490 = vunpack.c.h.b16 %v470
    %v3491 = vunpack.c.l.b16 %v471
    %v3492 = vunpack.c.h.b16 %v471
    %v3493 = vunpack.c.l.b16 %v472
    %v3494 = vunpack.c.h.b16 %v472
    %v3495 = vunpack.c.l.b16 %v473
    %v3496 = vunpack.c.h.b16 %v473
    %v3497 = vunpack.c.l.b16 %v474
    %v3498 = vunpack.c.h.b16 %v474
    %v3499 = vunpack.c.l.b16 %v475
    %v3500 = vunpack.c.h.b16 %v475
    %v3501 = vunpack.c.l.b16 %v476
    %v3502 = vunpack.c.h.b16 %v476
    %v3503 = vunpack.c.l.b16 %v477
    %v3504 = vunpack.c.h.b16 %v477
    %v3505 = vunpack.c.l.b16 %v478
    %v3506 = vunpack.c.h.b16 %v478
    %v3507 = vunpack.c.l.b16 %v479
    %v3508 = vunpack.c.h.b16 %v479
    %v3509 = vunpack.c.l.b16 %v480
    %v3510 = vunpack.c.h.b16 %v480
    %v3511 = vunpack.c.l.b16 %v481
    %v3512 = vunpack.c.h.b16 %v481
    %v3513 = vunpack.c.l.b16 %v482
    %v3514 = vunpack.c.h.b16 %v482
    %v3515 = vunpack.c.l.b16 %v483
    %v3516 = vunpack.c.h.b16 %v483
    %v3517 = vunpack.c.l.b16 %v484
    %v3518 = vunpack.c.h.b16 %v484
    %v3519 = vunpack.c.l.b16 %v485
    %v3520 = vunpack.c.h.b16 %v485
    %v3521 = vunpack.c.l.b16 %v486
    %v3522 = vunpack.c.h.b16 %v486
    %v3523 = vunpack.c.l.b16 %v487
    %v3524 = vunpack.c.h.b16 %v487
    %v3525 = vunpack.c.l.b16 %v488
    %v3526 = vunpack.c.h.b16 %v488
    %v3527 = vunpack.c.l.b16 %v489
    %v3528 = vunpack.c.h.b16 %v489
    %v3529 = vunpack.c.l.b16 %v490
    %v3530 = vunpack.c.h.b16 %v490
    %v3531 = vunpack.c.l.b16 %v491
    %v3532 = vunpack.c.h.b16 %v491
    %v3533 = vunpack.c.l.b16 %v492
    %v3534 = vunpack.c.h.b16 %v492
    %v3535 = vunpack.c.l.b16 %v493
    %v3536 = vunpack.c.h.b16 %v493
    %v3537 = vunpack.c.l.b16 %v494
    %v3538 = vunpack.c.h.b16 %v494
    %v3539 = vunpack.c.l.b16 %v495
    %v3540 = vunpack.c.h.b16 %v495
    %v3541 = vunpack.c.l.b16 %v496
    %v3542 = vunpack.c.h.b16 %v496
    %v3543 = vunpack.c.l.b16 %v497
    %v3544 = vunpack.c.h.b16 %v497
    %v3545 = vunpack.c.l.b16 %v498
    %v3546 = vunpack.c.h.b16 %v498
    %v3547 = vunpack.c.l.b16 %v499
    %v3548 = vunpack.c.h.b16 %v499
    %v3549 = vunpack.c.l.b16 %v500
    %v3550 = vunpack.c.h.b16 %v500
    %v3551 = vunpack.c.l.b16 %v501
    %v3552 = vunpack.c.h.b16 %v501
    %v3553 = vunpack.c.l.b16 %v502
    %v3554 = vunpack.c.h.b16 %v502
    %v3555 = vunpack.c.l.b16 %v503
    %v3556 = vunpack.c.h.b16 %v503
    %v3557 = vunpack.c.l.b16 %v504
    %v3558 = vunpack.c.h.b16 %v504
    %v3559 = vunpack.c.l.b16 %v505
    %v3560 = vunpack.c.h.b16 %v505
    %v3561 = vunpack.c.l.b16 %v506
    %v3562 = vunpack.c.h.b16 %v506
    %v3563 = vunpack.c.l.b16 %v507
    %v3564 = vunpack.c.h.b16 %v507
    %v3565 = vunpack.c.l.b16 %v508
    %v3566 = vunpack.c.h.b16 %v508
    %v3567 = vunpack.c.l.b16 %v509
    %v3568 = vunpack.c.h.b16 %v509
    %v3569 = vunpack.c.l.b16 %v510
    %v3570 = vunpack.c.h.b16 %v510
    %v3571 = vunpack.c.l.b16 %v511
    %v3572 = vunpack.c.h.b16 %v511
    %v3573 = vunpack.c.l.b16 %v512
    %v3574 = vunpack.c.h.b16 %v512
    %v3575 = vunpack.c.l.b16 %v513
    %v3576 = vunpack.c.h.b16 %v513
    %v3577 = vunpack.c.l.b16 %v514
    %v3578 = vunpack.c.h.b16 %v514
    %v3579 = vunpack.c.l.b16 %v515
    %v3580 = vunpack.c.h.b16 %v515
    %v3581 = vunpack.c.l.b16 %v516
    %v3582 = vunpack.c.h.b16 %v516
    %v3583 = vunpack.c.l.b16 %v517
    %v3584 = vunpack.c.h.b16 %v517
    %v3585 = vunpack.c.l.b16 %v518
    %v3586 = vunpack.c.h.b16 %v518
    %v3587 = vunpack.c.l.b16 %v519
    %v3588 = vunpack.c.h.b16 %v519
    %v3589 = vunpack.c.l.b16 %v520
    %v3590 = vunpack.c.h.b16 %v520
    %v3591 = vunpack.c.l.b16 %v521
    %v3592 = vunpack.c.h.b16 %v521
    %v3593 = vunpack.c.l.b16 %v522
    %v3594 = vunpack.c.h.b16 %v522
    %v3595 = vunpack.c.l.b16 %v523
    %v3596 = vunpack.c.h.b16 %v523
    %v3597 = vunpack.c.l.b16 %v524
    %v3598 = vunpack.c.h.b16 %v524
    %v3599 = vunpack.c.l.b16 %v525
    %v3600 = vunpack.c.h.b16 %v525
    %v3601 = vunpack.c.l.b16 %v526
    %v3602 = vunpack.c.h.b16 %v526
    %v3603 = vunpack.c.l.b16 %v527
    %v3604 = vunpack.c.h.b16 %v527
    %v3605 = vunpack.c.l.b16 %v528
    %v3606 = vunpack.c.h.b16 %v528
    %v3607 = vunpack.c.l.b16 %v529
    %v3608 = vunpack.c.h.b16 %v529
    %v3609 = vunpack.c.l.b16 %v530
    %v3610 = vunpack.c.h.b16 %v530
    %v3611 = vunpack.c.l.b16 %v531
    %v3612 = vunpack.c.h.b16 %v531
    %v3613 = vunpack.c.l.b16 %v532
    %v3614 = vunpack.c.h.b16 %v532
    %v3615 = vunpack.c.l.b16 %v533
    %v3616 = vunpack.c.h.b16 %v533
    %v3617 = vunpack.c.l.b16 %v534
    %v3618 = vunpack.c.h.b16 %v534
    %v3619 = vunpack.c.l.b16 %v535
    %v3620 = vunpack.c.h.b16 %v535
    %v3621 = vunpack.c.l.b16 %v536
    %v3622 = vunpack.c.h.b16 %v536
    %v3623 = vunpack.c.l.b16 %v537
    %v3624 = vunpack.c.h.b16 %v537
    %v3625 = vunpack.c.l.b16 %v538
    %v3626 = vunpack.c.h.b16 %v538
    %v3627 = vunpack.c.l.b16 %v539
    %v3628 = vunpack.c.h.b16 %v539
    %v3629 = vunpack.c.l.b16 %v540
    %v3630 = vunpack.c.h.b16 %v540
    %v3631 = vunpack.c.l.b16 %v541
    %v3632 = vunpack.c.h.b16 %v541
    %v3633 = vunpack.c.l.b16 %v542
    %v3634 = vunpack.c.h.b16 %v542
    %v3635 = vunpack.c.l.b16 %v543
    %v3636 = vunpack.c.h.b16 %v543
    %v3637 = vunpack.c.l.b16 %v544
    %v3638 = vunpack.c.h.b16 %v544
    %v3639 = vunpack.c.l.b16 %v545
    %v3640 = vunpack.c.h.b16 %v545
    %v3641 = vunpack.c.l.b16 %v546
    %v3642 = vunpack.c.h.b16 %v546
    %v3643 = vunpack.c.l.b16 %v547
    %v3644 = vunpack.c.h.b16 %v547
    %v3645 = vunpack.c.l.b16 %v548
    %v3646 = vunpack.c.h.b16 %v548
    %v3647 = vunpack.c.l.b16 %v549
    %v3648 = vunpack.c.h.b16 %v549
    %v3649 = vunpack.c.l.b16 %v550
    %v3650 = vunpack.c.h.b16 %v550
    %v3651 = vunpack.c.l.b16 %v551
    %v3652 = vunpack.c.h.b16 %v551
    %v3653 = vunpack.c.l.b16 %v552
    %v3654 = vunpack.c.h.b16 %v552
    %v3655 = vunpack.c.l.b16 %v553
    %v3656 = vunpack.c.h.b16 %v553
    %v3657 = vunpack.c.l.b16 %v554
    %v3658 = vunpack.c.h.b16 %v554
    %v3659 = vunpack.c.l.b16 %v555
    %v3660 = vunpack.c.h.b16 %v555
    %v3661 = vunpack.c.l.b16 %v556
    %v3662 = vunpack.c.h.b16 %v556
    %v3663 = vunpack.c.l.b16 %v557
    %v3664 = vunpack.c.h.b16 %v557
    %v3665 = vunpack.c.l.b16 %v558
    %v3666 = vunpack.c.h.b16 %v558
    %v3667 = vunpack.c.l.b16 %v559
    %v3668 = vunpack.c.h.b16 %v559
    %v3669 = vunpack.c.l.b16 %v560
    %v3670 = vunpack.c.h.b16 %v560
    %v3671 = vunpack.c.l.b16 %v561
    %v3672 = vunpack.c.h.b16 %v561
    %v3673 = vunpack.c.l.b16 %v562
    %v3674 = vunpack.c.h.b16 %v562
    %v3675 = vunpack.c.l.b16 %v563
    %v3676 = vunpack.c.h.b16 %v563
    %v3677 = vunpack.c.l.b16 %v564
    %v3678 = vunpack.c.h.b16 %v564
    %v3679 = vunpack.c.l.b16 %v565
    %v3680 = vunpack.c.h.b16 %v565
    %v3681 = vunpack.c.l.b16 %v566
    %v3682 = vunpack.c.h.b16 %v566
    %v3683 = vunpack.c.l.b16 %v567
    %v3684 = vunpack.c.h.b16 %v567
    %v3685 = vunpack.c.l.b16 %v568
    %v3686 = vunpack.c.h.b16 %v568
    %v3687 = vunpack.c.l.b16 %v569
    %v3688 = vunpack.c.h.b16 %v569
    %v3689 = vunpack.c.l.b16 %v570
    %v3690 = vunpack.c.h.b16 %v570
    %v3691 = vunpack.c.l.b16 %v571
    %v3692 = vunpack.c.h.b16 %v571
    %v3693 = vunpack.c.l.b16 %v572
    %v3694 = vunpack.c.h.b16 %v572
    %v3695 = vunpack.c.l.b16 %v573
    %v3696 = vunpack.c.h.b16 %v573
    %v3697 = vunpack.c.l.b16 %v574
    %v3698 = vunpack.c.h.b16 %v574
    %v3699 = vunpack.c.l.b16 %v575
    %v3700 = vunpack.c.h.b16 %v575
    %v3701 = vunpack.c.l.b16 %v576
    %v3702 = vunpack.c.h.b16 %v576
    %v3703 = vunpack.c.l.b16 %v577
    %v3704 = vunpack.c.h.b16 %v577
    %v3705 = vunpack.c.l.b16 %v578
    %v3706 = vunpack.c.h.b16 %v578
    %v3707 = vunpack.c.l.b16 %v579
    %v3708 = vunpack.c.h.b16 %v579
    %v3709 = vunpack.c.l.b16 %v580
    %v3710 = vunpack.c.h.b16 %v580
    %v3711 = vunpack.c.l.b16 %v581
    %v3712 = vunpack.c.h.b16 %v581
    %v3713 = vunpack.c.l.b16 %v582
    %v3714 = vunpack.c.h.b16 %v582
    %v3715 = vunpack.c.l.b16 %v583
    %v3716 = vunpack.c.h.b16 %v583
    %v3717 = vunpack.c.l.b16 %v584
    %v3718 = vunpack.c.h.b16 %v584
    %v3719 = vunpack.c.l.b16 %v585
    %v3720 = vunpack.c.h.b16 %v585
    %v3721 = vunpack.c.l.b16 %v586
    %v3722 = vunpack.c.h.b16 %v586
    %v3723 = vunpack.c.l.b16 %v587
    %v3724 = vunpack.c.h.b16 %v587
    %v3725 = vunpack.c.l.b16 %v588
    %v3726 = vunpack.c.h.b16 %v588
    %v3727 = vunpack.c.l.b16 %v589
    %v3728 = vunpack.c.h.b16 %v589
    %v3729 = vunpack.c.l.b16 %v590
    %v3730 = vunpack.c.h.b16 %v590
    %v3731 = vunpack.c.l.b16 %v591
    %v3732 = vunpack.c.h.b16 %v591
    %v3733 = vunpack.c.l.b16 %v592
    %v3734 = vunpack.c.h.b16 %v592
    %v3735 = vunpack.c.l.b16 %v593
    %v3736 = vunpack.c.h.b16 %v593
    %v3737 = vunpack.c.l.b16 %v594
    %v3738 = vunpack.c.h.b16 %v594
    %v3739 = vunpack.c.l.b16 %v595
    %v3740 = vunpack.c.h.b16 %v595
    %v3741 = vunpack.c.l.b16 %v596
    %v3742 = vunpack.c.h.b16 %v596
    %v3743 = vunpack.c.l.b16 %v597
    %v3744 = vunpack.c.h.b16 %v597
    %v3745 = vunpack.c.l.b16 %v598
    %v3746 = vunpack.c.h.b16 %v598
    %v3747 = vunpack.c.l.b16 %v599
    %v3748 = vunpack.c.h.b16 %v599
    %v3749 = vunpack.c.l.b16 %v600
    %v3750 = vunpack.c.h.b16 %v600
    %v3751 = vunpack.c.l.b16 %v601
    %v3752 = vunpack.c.h.b16 %v601
    %v3753 = vunpack.c.l.b16 %v602
    %v3754 = vunpack.c.h.b16 %v602
    %v3755 = vunpack.c.l.b16 %v603
    %v3756 = vunpack.c.h.b16 %v603
    %v3757 = vunpack.c.l.b16 %v604
    %v3758 = vunpack.c.h.b16 %v604
    %v3759 = vunpack.c.l.b16 %v605
    %v3760 = vunpack.c.h.b16 %v605
    %v3761 = vunpack.c.l.b16 %v606
    %v3762 = vunpack.c.h.b16 %v606
    %v3763 = vunpack.c.l.b16 %v607
    %v3764 = vunpack.c.h.b16 %v607
    %v3765 = vunpack.c.l.b16 %v608
    %v3766 = vunpack.c.h.b16 %v608
    %v3767 = vunpack.c.l.b16 %v609
    %v3768 = vunpack.c.h.b16 %v609
    %v3769 = vunpack.c.l.b16 %v610
    %v3770 = vunpack.c.h.b16 %v610
    %v3771 = vunpack.c.l.b16 %v611
    %v3772 = vunpack.c.h.b16 %v611
    %v3773 = vunpack.c.l.b16 %v612
    %v3774 = vunpack.c.h.b16 %v612
    %v3775 = vunpack.c.l.b16 %v613
    %v3776 = vunpack.c.h.b16 %v613
    %v3777 = vunpack.c.l.b16 %v614
    %v3778 = vunpack.c.h.b16 %v614
    %v3779 = vunpack.c.l.b16 %v615
    %v3780 = vunpack.c.h.b16 %v615
    %v3781 = vunpack.c.l.b16 %v616
    %v3782 = vunpack.c.h.b16 %v616
    %v3783 = vunpack.c.l.b16 %v617
    %v3784 = vunpack.c.h.b16 %v617
    %v3785 = vunpack.c.l.b16 %v618
    %v3786 = vunpack.c.h.b16 %v618
    %v3787 = vunpack.c.l.b16 %v619
    %v3788 = vunpack.c.h.b16 %v619
    %v3789 = vunpack.c.l.b16 %v620
    %v3790 = vunpack.c.h.b16 %v620
    %v3791 = vunpack.c.l.b16 %v621
    %v3792 = vunpack.c.h.b16 %v621
    %v3793 = vunpack.c.l.b16 %v622
    %v3794 = vunpack.c.h.b16 %v622
    %v3795 = vunpack.c.l.b16 %v623
    %v3796 = vunpack.c.h.b16 %v623
    %v3797 = vunpack.c.l.b16 %v624
    %v3798 = vunpack.c.h.b16 %v624
    %v3799 = vunpack.c.l.b16 %v625
    %v3800 = vunpack.c.h.b16 %v625
    %v3801 = vunpack.c.l.b16 %v626
    %v3802 = vunpack.c.h.b16 %v626
    %v3803 = vunpack.c.l.b16 %v627
    %v3804 = vunpack.c.h.b16 %v627
    %v3805 = vunpack.c.l.b16 %v628
    %v3806 = vunpack.c.h.b16 %v628
    %v3807 = vunpack.c.l.b16 %v629
    %v3808 = vunpack.c.h.b16 %v629
    %v3809 = vunpack.c.l.b16 %v630
    %v3810 = vunpack.c.h.b16 %v630
    %v3811 = vunpack.c.l.b16 %v631
    %v3812 = vunpack.c.h.b16 %v631
    %v3813 = vunpack.c.l.b16 %v632
    %v3814 = vunpack.c.h.b16 %v632
    %v3815 = vunpack.c.l.b16 %v633
    %v3816 = vunpack.c.h.b16 %v633
    %v3817 = vunpack.c.l.b16 %v634
    %v3818 = vunpack.c.h.b16 %v634
    %v3819 = vunpack.c.l.b16 %v635
    %v3820 = vunpack.c.h.b16 %v635
    %v3821 = vunpack.c.l.b16 %v636
    %v3822 = vunpack.c.h.b16 %v636
    %v3823 = vunpack.c.l.b16 %v637
    %v3824 = vunpack.c.h.b16 %v637
    %v3825 = vunpack.c.l.b16 %v638
    %v3826 = vunpack.c.h.b16 %v638
    %v3827 = vunpack.c.l.b16 %v639
    %v3828 = vunpack.c.h.b16 %v639
    %v3829 = vunpack.c.l.b16 %v640
    %v3830 = vunpack.c.h.b16 %v640
    %v3831 = vunpack.c.l.b16 %v641
    %v3832 = vunpack.c.h.b16 %v641
    %v3833 = vunpack.c.l.b16 %v642
    %v3834 = vunpack.c.h.b16 %v642
    %v3835 = vunpack.c.l.b16 %v643
    %v3836 = vunpack.c.h.b16 %v643
    %v3837 = vunpack.c.l.b16 %v644
    %v3838 = vunpack.c.h.b16 %v644
    %v3839 = vunpack.c.l.b16 %v645
    %v3840 = vunpack.c.h.b16 %v645
    %v3841 = vunpack.c.l.b16 %v646
    %v3842 = vunpack.c.h.b16 %v646
    %v3843 = vunpack.c.l.b16 %v647
    %v3844 = vunpack.c.h.b16 %v647
    %v3845 = vunpack.c.l.b16 %v648
    %v3846 = vunpack.c.h.b16 %v648
    %v3847 = vunpack.c.l.b16 %v649
    %v3848 = vunpack.c.h.b16 %v649
    %v3849 = vunpack.c.l.b16 %v650
    %v3850 = vunpack.c.h.b16 %v650
    %v3851 = vunpack.c.l.b16 %v651
    %v3852 = vunpack.c.h.b16 %v651
    %v3853 = vunpack.c.l.b16 %v652
    %v3854 = vunpack.c.h.b16 %v652
    %v3855 = vunpack.c.l.b16 %v653
    %v3856 = vunpack.c.h.b16 %v653
    %v3857 = vunpack.c.l.b16 %v654
    %v3858 = vunpack.c.h.b16 %v654
    %v3859 = vunpack.c.l.b16 %v655
    %v3860 = vunpack.c.h.b16 %v655
    %v3861 = vunpack.c.l.b16 %v656
    %v3862 = vunpack.c.h.b16 %v656
    %v3863 = vunpack.c.l.b16 %v657
    %v3864 = vunpack.c.h.b16 %v657
    %v3865 = vunpack.c.l.b16 %v658
    %v3866 = vunpack.c.h.b16 %v658
    %v3867 = vunpack.c.l.b16 %v659
    %v3868 = vunpack.c.h.b16 %v659
    %v3869 = vunpack.c.l.b16 %v660
    %v3870 = vunpack.c.h.b16 %v660
    %v3871 = vunpack.c.l.b16 %v661
    %v3872 = vunpack.c.h.b16 %v661
    %v3873 = vunpack.c.l.b16 %v662
    %v3874 = vunpack.c.h.b16 %v662
    %v3875 = vunpack.c.l.b16 %v663
    %v3876 = vunpack.c.h.b16 %v663
    %v3877 = vunpack.c.l.b16 %v664
    %v3878 = vunpack.c.h.b16 %v664
    %v3879 = vunpack.c.l.b16 %v665
    %v3880 = vunpack.c.h.b16 %v665
    %v3881 = vunpack.c.l.b16 %v666
    %v3882 = vunpack.c.h.b16 %v666
    %v3883 = vunpack.c.l.b16 %v667
    %v3884 = vunpack.c.h.b16 %v667
    %v3885 = vunpack.c.l.b16 %v668
    %v3886 = vunpack.c.h.b16 %v668
    %v3887 = vunpack.c.l.b16 %v669
    %v3888 = vunpack.c.h.b16 %v669
    %v3889 = vunpack.c.l.b16 %v670
    %v3890 = vunpack.c.h.b16 %v670
    %v3891 = vunpack.c.l.b16 %v671
    %v3892 = vunpack.c.h.b16 %v671
    %v3893 = vunpack.c.l.b16 %v672
    %v3894 = vunpack.c.h.b16 %v672
    %v3895 = vunpack.c.l.b16 %v673
    %v3896 = vunpack.c.h.b16 %v673
    %v3897 = vunpack.c.l.b16 %v674
    %v3898 = vunpack.c.h.b16 %v674
    %v3899 = vunpack.c.l.b16 %v675
    %v3900 = vunpack.c.h.b16 %v675
    %v3901 = vunpack.c.l.b16 %v676
    %v3902 = vunpack.c.h.b16 %v676
    %v3903 = vunpack.c.l.b16 %v677
    %v3904 = vunpack.c.h.b16 %v677
    %v3905 = vunpack.c.l.b16 %v678
    %v3906 = vunpack.c.h.b16 %v678
    %v3907 = vunpack.c.l.b16 %v679
    %v3908 = vunpack.c.h.b16 %v679
    %v3909 = vunpack.c.l.b16 %v680
    %v3910 = vunpack.c.h.b16 %v680
    %v3911 = vunpack.c.l.b16 %v681
    %v3912 = vunpack.c.h.b16 %v681
    %v3913 = vunpack.c.l.b16 %v682
    %v3914 = vunpack.c.h.b16 %v682
    %v3915 = vunpack.c.l.b16 %v683
    %v3916 = vunpack.c.h.b16 %v683
    %v3917 = vunpack.c.l.b16 %v684
    %v3918 = vunpack.c.h.b16 %v684
    %v3919 = vunpack.c.l.b16 %v685
    %v3920 = vunpack.c.h.b16 %v685
    %v3921 = vunpack.c.l.b16 %v686
    %v3922 = vunpack.c.h.b16 %v686
    %v3923 = vunpack.c.l.b16 %v687
    %v3924 = vunpack.c.h.b16 %v687
    %v3925 = vunpack.c.l.b16 %v688
    %v3926 = vunpack.c.h.b16 %v688
    %v3927 = vunpack.c.l.b16 %v689
    %v3928 = vunpack.c.h.b16 %v689
    %v3929 = vunpack.c.l.b16 %v690
    %v3930 = vunpack.c.h.b16 %v690
    %v3931 = vunpack.c.l.b16 %v691
    %v3932 = vunpack.c.h.b16 %v691
    %v3933 = vunpack.c.l.b16 %v692
    %v3934 = vunpack.c.h.b16 %v692
    %v3935 = vunpack.c.l.b16 %v693
    %v3936 = vunpack.c.h.b16 %v693
    %v3937 = vunpack.c.l.b16 %v694
    %v3938 = vunpack.c.h.b16 %v694
    %v3939 = vunpack.c.l.b16 %v695
    %v3940 = vunpack.c.h.b16 %v695
    %v3941 = vunpack.c.l.b16 %v696
    %v3942 = vunpack.c.h.b16 %v696
    %v3943 = vunpack.c.l.b16 %v697
    %v3944 = vunpack.c.h.b16 %v697
    %v3945 = vunpack.c.l.b16 %v698
    %v3946 = vunpack.c.h.b16 %v698
    %v3947 = vunpack.c.l.b16 %v699
    %v3948 = vunpack.c.h.b16 %v699
    %v3949 = vunpack.c.l.b16 %v700
    %v3950 = vunpack.c.h.b16 %v700
    %v3951 = vunpack.c.l.b16 %v701
    %v3952 = vunpack.c.h.b16 %v701
    %v3953 = vunpack.c.l.b16 %v702
    %v3954 = vunpack.c.h.b16 %v702
    %v3955 = vunpack.c.l.b16 %v703
    %v3956 = vunpack.c.h.b16 %v703
    %v3957 = vunpack.c.l.b16 %v704
    %v3958 = vunpack.c.h.b16 %v704
    %v3959 = vunpack.c.l.b16 %v705
    %v3960 = vunpack.c.h.b16 %v705
    %v3961 = vunpack.c.l.b16 %v706
    %v3962 = vunpack.c.h.b16 %v706
    %v3963 = vunpack.c.l.b16 %v707
    %v3964 = vunpack.c.h.b16 %v707
    %v3965 = vunpack.c.l.b16 %v708
    %v3966 = vunpack.c.h.b16 %v708
    %v3967 = vunpack.c.l.b16 %v709
    %v3968 = vunpack.c.h.b16 %v709
    %v3969 = vunpack.c.l.b16 %v710
    %v3970 = vunpack.c.h.b16 %v710
    %v3971 = vunpack.c.l.b16 %v711
    %v3972 = vunpack.c.h.b16 %v711
    %v3973 = vunpack.c.l.b16 %v712
    %v3974 = vunpack.c.h.b16 %v712
    %v3975 = vunpack.c.l.b16 %v713
    %v3976 = vunpack.c.h.b16 %v713
    %v3977 = vunpack.c.l.b16 %v714
    %v3978 = vunpack.c.h.b16 %v714
    %v3979 = vunpack.c.l.b16 %v715
    %v3980 = vunpack.c.h.b16 %v715
    %v3981 = vunpack.c.l.b16 %v716
    %v3982 = vunpack.c.h.b16 %v716
    %v3983 = vunpack.c.l.b16 %v717
    %v3984 = vunpack.c.h.b16 %v717
    %v3985 = vunpack.c.l.b16 %v718
    %v3986 = vunpack.c.h.b16 %v718
    %v3987 = vunpack.c.l.b16 %v719
    %v3988 = vunpack.c.h.b16 %v719
    %v3989 = vunpack.c.l.b16 %v720
    %v3990 = vunpack.c.h.b16 %v720
    %v3991 = vunpack.c.l.b16 %v721
    %v3992 = vunpack.c.h.b16 %v721
    %v3993 = vunpack.c.l.b16 %v722
    %v3994 = vunpack.c.h.b16 %v722
    %v3995 = vunpack.c.l.b16 %v723
    %v3996 = vunpack.c.h.b16 %v723
    %v3997 = vunpack.c.l.b16 %v724
    %v3998 = vunpack.c.h.b16 %v724
    %v3999 = vunpack.c.l.b16 %v725
    %v4000 = vunpack.c.h.b16 %v725
    %v4001 = vunpack.c.l.b16 %v726
    %v4002 = vunpack.c.h.b16 %v726
    %v4003 = vunpack.c.l.b16 %v727
    %v4004 = vunpack.c.h.b16 %v727
    %v4005 = vunpack.c.l.b16 %v728
    %v4006 = vunpack.c.h.b16 %v728
    %v4007 = vunpack.c.l.b16 %v729
    %v4008 = vunpack.c.h.b16 %v729
    %v4009 = vunpack.c.l.b16 %v730
    %v4010 = vunpack.c.h.b16 %v730
    %v4011 = vunpack.c.l.b16 %v731
    %v4012 = vunpack.c.h.b16 %v731
    %v4013 = vunpack.c.l.b16 %v732
    %v4014 = vunpack.c.h.b16 %v732
    %v4015 = vunpack.c.l.b16 %v733
    %v4016 = vunpack.c.h.b16 %v733
    %v4017 = vunpack.c.l.b16 %v734
    %v4018 = vunpack.c.h.b16 %v734
    %v4019 = vunpack.c.l.b16 %v735
    %v4020 = vunpack.c.h.b16 %v735
    %v4021 = vunpack.c.l.b16 %v736
    %v4022 = vunpack.c.h.b16 %v736
    %v4023 = vunpack.c.l.b16 %v737
    %v4024 = vunpack.c.h.b16 %v737
    %v4025 = vunpack.c.l.b16 %v738
    %v4026 = vunpack.c.h.b16 %v738
    %v4027 = vunpack.c.l.b16 %v739
    %v4028 = vunpack.c.h.b16 %v739
    %v4029 = vunpack.c.l.b16 %v740
    %v4030 = vunpack.c.h.b16 %v740
    %v4031 = vunpack.c.l.b16 %v741
    %v4032 = vunpack.c.h.b16 %v741
    %v4033 = vunpack.c.l.b16 %v742
    %v4034 = vunpack.c.h.b16 %v742
    %v4035 = vunpack.c.l.b16 %v743
    %v4036 = vunpack.c.h.b16 %v743
    %v4037 = vunpack.c.l.b16 %v744
    %v4038 = vunpack.c.h.b16 %v744
    %v4039 = vunpack.c.l.b16 %v745
    %v4040 = vunpack.c.h.b16 %v745
    %v4041 = vunpack.c.l.b16 %v746
    %v4042 = vunpack.c.h.b16 %v746
    %v4043 = vunpack.c.l.b16 %v747
    %v4044 = vunpack.c.h.b16 %v747
    %v4045 = vunpack.c.l.b16 %v748
    %v4046 = vunpack.c.h.b16 %v748
    %v4047 = vunpack.c.l.b16 %v749
    %v4048 = vunpack.c.h.b16 %v749
    %v4049 = vunpack.c.l.b16 %v750
    %v4050 = vunpack.c.h.b16 %v750
    %v4051 = vunpack.c.l.b16 %v751
    %v4052 = vunpack.c.h.b16 %v751
    %v4053 = vunpack.c.l.b16 %v752
    %v4054 = vunpack.c.h.b16 %v752
    %v4055 = vunpack.c.l.b16 %v753
    %v4056 = vunpack.c.h.b16 %v753
    %v4057 = vunpack.c.l.b16 %v754
    %v4058 = vunpack.c.h.b16 %v754
    %v4059 = vunpack.c.l.b16 %v755
    %v4060 = vunpack.c.h.b16 %v755
    %v4061 = vunpack.c.l.b16 %v756
    %v4062 = vunpack.c.h.b16 %v756
    %v4063 = vunpack.c.l.b16 %v757
    %v4064 = vunpack.c.h.b16 %v757
    %v4065 = vunpack.c.l.b16 %v758
    %v4066 = vunpack.c.h.b16 %v758
    %v4067 = vunpack.c.l.b16 %v759
    %v4068 = vunpack.c.h.b16 %v759
    %v4069 = vunpack.c.l.b16 %v760
    %v4070 = vunpack.c.h.b16 %v760
    %v4071 = vunpack.c.l.b16 %v761
    %v4072 = vunpack.c.h.b16 %v761
    %v4073 = vunpack.c.l.b16 %v762
    %v4074 = vunpack.c.h.b16 %v762
    %v4075 = vunpack.c.l.b16 %v763
    %v4076 = vunpack.c.h.b16 %v763
    %v4077 = vunpack.c.l.b16 %v764
    %v4078 = vunpack.c.h.b16 %v764
    %v4079 = vunpack.c.l.b16 %v765
    %v4080 = vunpack.c.h.b16 %v765
    %v4081 = vunpack.c.l.b16 %v766
    %v4082 = vunpack.c.h.b16 %v766
    %v4083 = vunpack.c.l.b16 %v767
    %v4084 = vunpack.c.h.b16 %v767
    %v4085 = vunpack.c.l.b16 %v768
    %v4086 = vunpack.c.h.b16 %v768
    %v4087 = vunpack.c.l.b16 %v769
    %v4088 = vunpack.c.h.b16 %v769
    %v4089 = vunpack.c.l.b16 %v770
    %v4090 = vunpack.c.h.b16 %v770
    %v4091 = vunpack.c.l.b16 %v771
    %v4092 = vunpack.c.h.b16 %v771
    %v4093 = vunpack.c.l.b16 %v772
    %v4094 = vunpack.c.h.b16 %v772
    %v4095 = vunpack.c.l.b16 %v773
    %v4096 = vunpack.c.h.b16 %v773
    %v4097 = vunpack.c.l.b16 %v774
    %v4098 = vunpack.c.h.b16 %v774
    %v4099 = vunpack.c.l.b16 %v775
    %v4100 = vunpack.c.h.b16 %v775
    %v4101 = vunpack.c.l.b16 %v776
    %v4102 = vunpack.c.h.b16 %v776
    %v4103 = vunpack.c.l.b16 %v777
    %v4104 = vunpack.c.h.b16 %v777
    %v4105 = vunpack.c.l.b16 %v778
    %v4106 = vunpack.c.h.b16 %v778
    %v4107 = vunpack.c.l.b16 %v779
    %v4108 = vunpack.c.h.b16 %v779
    %v4109 = vunpack.c.l.b16 %v780
    %v4110 = vunpack.c.h.b16 %v780
    %v4111 = vunpack.c.l.b16 %v781
    %v4112 = vunpack.c.h.b16 %v781
    %v4113 = vunpack.c.l.b16 %v782
    %v4114 = vunpack.c.h.b16 %v782
    %v4115 = vunpack.c.l.b16 %v783
    %v4116 = vunpack.c.h.b16 %v783
    %v4117 = vunpack.c.l.b16 %v784
    %v4118 = vunpack.c.h.b16 %v784
    %v4119 = vunpack.c.l.b16 %v785
    %v4120 = vunpack.c.h.b16 %v785
    %v4121 = vunpack.c.l.b16 %v786
    %v4122 = vunpack.c.h.b16 %v786
    %v4123 = vunpack.c.l.b16 %v787
    %v4124 = vunpack.c.h.b16 %v787
    %v4125 = vunpack.c.l.b16 %v788
    %v4126 = vunpack.c.h.b16 %v788
    %v4127 = vunpack.c.l.b16 %v789
    %v4128 = vunpack.c.h.b16 %v789
    %v4129 = vunpack.c.l.b16 %v790
    %v4130 = vunpack.c.h.b16 %v790
    %v4131 = vunpack.c.l.b16 %v791
    %v4132 = vunpack.c.h.b16 %v791
    %v4133 = vunpack.c.l.b16 %v792
    %v4134 = vunpack.c.h.b16 %v792
    %v4135 = vunpack.c.l.b16 %v793
    %v4136 = vunpack.c.h.b16 %v793
    %v4137 = vunpack.c.l.b16 %v794
    %v4138 = vunpack.c.h.b16 %v794
    %v4139 = vunpack.c.l.b16 %v795
    %v4140 = vunpack.c.h.b16 %v795
    %v4141 = vunpack.c.l.b16 %v796
    %v4142 = vunpack.c.h.b16 %v796
    %v4143 = vunpack.c.l.b16 %v797
    %v4144 = vunpack.c.h.b16 %v797
    %v4145 = vunpack.c.l.b16 %v798
    %v4146 = vunpack.c.h.b16 %v798
    %v4147 = vunpack.c.l.b16 %v799
    %v4148 = vunpack.c.h.b16 %v799
    %v4149 = vunpack.c.l.b16 %v800
    %v4150 = vunpack.c.h.b16 %v800
    %v4151 = vunpack.c.l.b16 %v801
    %v4152 = vunpack.c.h.b16 %v801
    %v4153 = vunpack.c.l.b16 %v802
    %v4154 = vunpack.c.h.b16 %v802
    %v4155 = vunpack.c.l.b16 %v803
    %v4156 = vunpack.c.h.b16 %v803
    %v4157 = vunpack.c.l.b16 %v804
    %v4158 = vunpack.c.h.b16 %v804
    %v4159 = vunpack.c.l.b16 %v805
    %v4160 = vunpack.c.h.b16 %v805
    %v4161 = vunpack.c.l.b16 %v806
    %v4162 = vunpack.c.h.b16 %v806
    %v4163 = vunpack.c.l.b16 %v807
    %v4164 = vunpack.c.h.b16 %v807
    %v4165 = vunpack.c.l.b16 %v808
    %v4166 = vunpack.c.h.b16 %v808
    %v4167 = vunpack.c.l.b16 %v809
    %v4168 = vunpack.c.h.b16 %v809
    %v4169 = vunpack.c.l.b16 %v810
    %v4170 = vunpack.c.h.b16 %v810
    %v4171 = vunpack.c.l.b16 %v811
    %v4172 = vunpack.c.h.b16 %v811
    %v4173 = vunpack.c.l.b16 %v812
    %v4174 = vunpack.c.h.b16 %v812
    %v4175 = vunpack.c.l.b16 %v813
    %v4176 = vunpack.c.h.b16 %v813
    %v4177 = vunpack.c.l.b16 %v814
    %v4178 = vunpack.c.h.b16 %v814
    %v4179 = vunpack.c.l.b16 %v815
    %v4180 = vunpack.c.h.b16 %v815
    %v4181 = vunpack.c.l.b16 %v816
    %v4182 = vunpack.c.h.b16 %v816
    %v4183 = vunpack.c.l.b16 %v817
    %v4184 = vunpack.c.h.b16 %v817
    %v4185 = vunpack.c.l.b16 %v818
    %v4186 = vunpack.c.h.b16 %v818
    %v4187 = vunpack.c.l.b16 %v819
    %v4188 = vunpack.c.h.b16 %v819
    %v4189 = vunpack.c.l.b16 %v820
    %v4190 = vunpack.c.h.b16 %v820
    %v4191 = vunpack.c.l.b16 %v821
    %v4192 = vunpack.c.h.b16 %v821
    %v4193 = vunpack.c.l.b16 %v822
    %v4194 = vunpack.c.h.b16 %v822
    %v4195 = vunpack.c.l.b16 %v823
    %v4196 = vunpack.c.h.b16 %v823
    %v4197 = vunpack.c.l.b16 %v824
    %v4198 = vunpack.c.h.b16 %v824
    %v4199 = vunpack.c.l.b16 %v825
    %v4200 = vunpack.c.h.b16 %v825
    %v4201 = vunpack.c.l.b16 %v826
    %v4202 = vunpack.c.h.b16 %v826
    %v4203 = vunpack.c.l.b16 %v827
    %v4204 = vunpack.c.h.b16 %v827
    %v4205 = vunpack.c.l.b16 %v828
    %v4206 = vunpack.c.h.b16 %v828
    %v4207 = vunpack.c.l.b16 %v829
    %v4208 = vunpack.c.h.b16 %v829
    %v4209 = vunpack.c.l.b16 %v830
    %v4210 = vunpack.c.h.b16 %v830
    %v4211 = vunpack.c.l.b16 %v831
    %v4212 = vunpack.c.h.b16 %v831
    %v4213 = vunpack.c.l.b16 %v832
    %v4214 = vunpack.c.h.b16 %v832
    %v4215 = vunpack.c.l.b16 %v833
    %v4216 = vunpack.c.h.b16 %v833
    %v4217 = vunpack.c.l.b16 %v834
    %v4218 = vunpack.c.h.b16 %v834
    %v4219 = vunpack.c.l.b16 %v835
    %v4220 = vunpack.c.h.b16 %v835
    %v4221 = vunpack.c.l.b16 %v836
    %v4222 = vunpack.c.h.b16 %v836
    %v4223 = vunpack.c.l.b16 %v837
    %v4224 = vunpack.c.h.b16 %v837
    %v4225 = vunpack.c.l.b16 %v838
    %v4226 = vunpack.c.h.b16 %v838
    %v4227 = vunpack.c.l.b16 %v839
    %v4228 = vunpack.c.h.b16 %v839
    %v4229 = vunpack.c.l.b16 %v840
    %v4230 = vunpack.c.h.b16 %v840
    %v4231 = vunpack.c.l.b16 %v841
    %v4232 = vunpack.c.h.b16 %v841
    %v4233 = vunpack.c.l.b16 %v842
    %v4234 = vunpack.c.h.b16 %v842
    %v4235 = vunpack.c.l.b16 %v843
    %v4236 = vunpack.c.h.b16 %v843
    %v4237 = vunpack.c.l.b16 %v844
    %v4238 = vunpack.c.h.b16 %v844
    %v4239 = vunpack.c.l.b16 %v845
    %v4240 = vunpack.c.h.b16 %v845
    %v4241 = vunpack.c.l.b16 %v846
    %v4242 = vunpack.c.h.b16 %v846
    %v4243 = vunpack.c.l.b16 %v847
    %v4244 = vunpack.c.h.b16 %v847
    %v4245 = vunpack.c.l.b16 %v848
    %v4246 = vunpack.c.h.b16 %v848
    %v4247 = vunpack.c.l.b16 %v849
    %v4248 = vunpack.c.h.b16 %v849
    %v4249 = vunpack.c.l.b16 %v850
    %v4250 = vunpack.c.h.b16 %v850
    %v4251 = vunpack.c.l.b16 %v851
    %v4252 = vunpack.c.h.b16 %v851
    %v4253 = vunpack.c.l.b16 %v852
    %v4254 = vunpack.c.h.b16 %v852
    %v4255 = vunpack.c.l.b16 %v853
    %v4256 = vunpack.c.h.b16 %v853
    %v4257 = vunpack.c.l.b16 %v854
    %v4258 = vunpack.c.h.b16 %v854
    %v4259 = vunpack.c.l.b16 %v855
    %v4260 = vunpack.c.h.b16 %v855
    %v4261 = vunpack.c.l.b16 %v856
    %v4262 = vunpack.c.h.b16 %v856
    %v4263 = vunpack.c.l.b16 %v857
    %v4264 = vunpack.c.h.b16 %v857
    %v4265 = vunpack.c.l.b16 %v858
    %v4266 = vunpack.c.h.b16 %v858
    %v4267 = vunpack.c.l.b16 %v859
    %v4268 = vunpack.c.h.b16 %v859
    %v4269 = vunpack.c.l.b16 %v860
    %v4270 = vunpack.c.h.b16 %v860
    %v4271 = vunpack.c.l.b16 %v861
    %v4272 = vunpack.c.h.b16 %v861
    %v4273 = vunpack.c.l.b16 %v862
    %v4274 = vunpack.c.h.b16 %v862
    %v4275 = vunpack.c.l.b16 %v863
    %v4276 = vunpack.c.h.b16 %v863
    %v4277 = vunpack.c.l.b16 %v864
    %v4278 = vunpack.c.h.b16 %v864
    %v4279 = vunpack.c.l.b16 %v865
    %v4280 = vunpack.c.h.b16 %v865
    %v4281 = vunpack.c.l.b16 %v866
    %v4282 = vunpack.c.h.b16 %v866
    %v4283 = vunpack.c.l.b16 %v867
    %v4284 = vunpack.c.h.b16 %v867
    %v4285 = vunpack.c.l.b16 %v868
    %v4286 = vunpack.c.h.b16 %v868
    %v4287 = vunpack.c.l.b16 %v869
    %v4288 = vunpack.c.h.b16 %v869
    %v4289 = vunpack.c.l.b16 %v870
    %v4290 = vunpack.c.h.b16 %v870
    %v4291 = vunpack.c.l.b16 %v871
    %v4292 = vunpack.c.h.b16 %v871
    %v4293 = vunpack.c.l.b16 %v872
    %v4294 = vunpack.c.h.b16 %v872
    %v4295 = vunpack.c.l.b16 %v873
    %v4296 = vunpack.c.h.b16 %v873
    %v4297 = vunpack.c.l.b16 %v874
    %v4298 = vunpack.c.h.b16 %v874
    %v4299 = vunpack.c.l.b16 %v875
    %v4300 = vunpack.c.h.b16 %v875
    %v4301 = vunpack.c.l.b16 %v876
    %v4302 = vunpack.c.h.b16 %v876
    %v4303 = vunpack.c.l.b16 %v877
    %v4304 = vunpack.c.h.b16 %v877
    %v4305 = vunpack.c.l.b16 %v878
    %v4306 = vunpack.c.h.b16 %v878
    %v4307 = vunpack.c.l.b16 %v879
    %v4308 = vunpack.c.h.b16 %v879
    %v4309 = vunpack.c.l.b16 %v880
    %v4310 = vunpack.c.h.b16 %v880
    %v4311 = vunpack.c.l.b16 %v881
    %v4312 = vunpack.c.h.b16 %v881
    %v4313 = vunpack.c.l.b16 %v882
    %v4314 = vunpack.c.h.b16 %v882
    %v4315 = vunpack.c.l.b16 %v883
    %v4316 = vunpack.c.h.b16 %v883
    %v4317 = vunpack.c.l.b16 %v884
    %v4318 = vunpack.c.h.b16 %v884
    %v4319 = vunpack.c.l.b16 %v885
    %v4320 = vunpack.c.h.b16 %v885
    %v4321 = vunpack.c.l.b16 %v886
    %v4322 = vunpack.c.h.b16 %v886
    %v4323 = vunpack.c.l.b16 %v887
    %v4324 = vunpack.c.h.b16 %v887
    %v4325 = vunpack.c.l.b16 %v888
    %v4326 = vunpack.c.h.b16 %v888
    %v4327 = vunpack.c.l.b16 %v889
    %v4328 = vunpack.c.h.b16 %v889
    %v4329 = vunpack.c.l.b16 %v890
    %v4330 = vunpack.c.h.b16 %v890
    %v4331 = vunpack.c.l.b16 %v891
    %v4332 = vunpack.c.h.b16 %v891
    %v4333 = vunpack.c.l.b16 %v892
    %v4334 = vunpack.c.h.b16 %v892
    %v4335 = vunpack.c.l.b16 %v893
    %v4336 = vunpack.c.h.b16 %v893
    %v4337 = vunpack.c.l.b16 %v894
    %v4338 = vunpack.c.h.b16 %v894
    %v4339 = vunpack.c.l.b16 %v895
    %v4340 = vunpack.c.h.b16 %v895
    %v4341 = vunpack.c.l.b16 %v896
    %v4342 = vunpack.c.h.b16 %v896
    %v4343 = vunpack.c.l.b16 %v897
    %v4344 = vunpack.c.h.b16 %v897
    %v4345 = vunpack.c.l.b16 %v898
    %v4346 = vunpack.c.h.b16 %v898
    %v4347 = vunpack.c.l.b16 %v899
    %v4348 = vunpack.c.h.b16 %v899
    %v4349 = vunpack.c.l.b16 %v900
    %v4350 = vunpack.c.h.b16 %v900
    %v4351 = vunpack.c.l.b16 %v901
    %v4352 = vunpack.c.h.b16 %v901
    %v4353 = vunpack.c.l.b16 %v902
    %v4354 = vunpack.c.h.b16 %v902
    %v4355 = vunpack.c.l.b16 %v903
    %v4356 = vunpack.c.h.b16 %v903
    %v4357 = vunpack.c.l.b16 %v904
    %v4358 = vunpack.c.h.b16 %v904
    %v4359 = vunpack.c.l.b16 %v905
    %v4360 = vunpack.c.h.b16 %v905
    %v4361 = vunpack.c.l.b16 %v906
    %v4362 = vunpack.c.h.b16 %v906
    %v4363 = vunpack.c.l.b16 %v907
    %v4364 = vunpack.c.h.b16 %v907
    %v4365 = vunpack.c.l.b16 %v908
    %v4366 = vunpack.c.h.b16 %v908
    %v4367 = vunpack.c.l.b16 %v909
    %v4368 = vunpack.c.h.b16 %v909
    %v4369 = vunpack.c.l.b16 %v910
    %v4370 = vunpack.c.h.b16 %v910
    %v4371 = vunpack.c.l.b16 %v911
    %v4372 = vunpack.c.h.b16 %v911
    %v4373 = vunpack.c.l.b16 %v912
    %v4374 = vunpack.c.h.b16 %v912
    %v4375 = vunpack.c.l.b16 %v913
    %v4376 = vunpack.c.h.b16 %v913
    %v4377 = vunpack.c.l.b16 %v914
    %v4378 = vunpack.c.h.b16 %v914
    %v4379 = vunpack.c.l.b16 %v915
    %v4380 = vunpack.c.h.b16 %v915
    %v4381 = vunpack.c.l.b16 %v916
    %v4382 = vunpack.c.h.b16 %v916
    %v4383 = vunpack.c.l.b16 %v917
    %v4384 = vunpack.c.h.b16 %v917
    %v4385 = vunpack.c.l.b16 %v918
    %v4386 = vunpack.c.h.b16 %v918
    %v4387 = vunpack.c.l.b16 %v919
    %v4388 = vunpack.c.h.b16 %v919
    %v4389 = vunpack.c.l.b16 %v920
    %v4390 = vunpack.c.h.b16 %v920
    %v4391 = vunpack.c.l.b16 %v921
    %v4392 = vunpack.c.h.b16 %v921
    %v4393 = vunpack.c.l.b16 %v922
    %v4394 = vunpack.c.h.b16 %v922
    %v4395 = vunpack.c.l.b16 %v923
    %v4396 = vunpack.c.h.b16 %v923
    %v4397 = vunpack.c.l.b16 %v924
    %v4398 = vunpack.c.h.b16 %v924
    %v4399 = vunpack.c.l.b16 %v925
    %v4400 = vunpack.c.h.b16 %v925
    %v4401 = vunpack.c.l.b16 %v926
    %v4402 = vunpack.c.h.b16 %v926
    %v4403 = vunpack.c.l.b16 %v927
    %v4404 = vunpack.c.h.b16 %v927
    %v4405 = vunpack.c.l.b16 %v928
    %v4406 = vunpack.c.h.b16 %v928
    %v4407 = vunpack.c.l.b16 %v929
    %v4408 = vunpack.c.h.b16 %v929
    %v4409 = vunpack.c.l.b16 %v930
    %v4410 = vunpack.c.h.b16 %v930
    %v4411 = vunpack.c.l.b16 %v931
    %v4412 = vunpack.c.h.b16 %v931
    %v4413 = vunpack.c.l.b16 %v932
    %v4414 = vunpack.c.h.b16 %v932
    %v4415 = vunpack.c.l.b16 %v933
    %v4416 = vunpack.c.h.b16 %v933
    %v4417 = vunpack.c.l.b16 %v934
    %v4418 = vunpack.c.h.b16 %v934
    %v4419 = vunpack.c.l.b16 %v935
    %v4420 = vunpack.c.h.b16 %v935
    %v4421 = vunpack.c.l.b16 %v936
    %v4422 = vunpack.c.h.b16 %v936
    %v4423 = vunpack.c.l.b16 %v937
    %v4424 = vunpack.c.h.b16 %v937
    %v4425 = vunpack.c.l.b16 %v938
    %v4426 = vunpack.c.h.b16 %v938
    %v4427 = vunpack.c.l.b16 %v939
    %v4428 = vunpack.c.h.b16 %v939
    %v4429 = vunpack.c.l.b16 %v940
    %v4430 = vunpack.c.h.b16 %v940
    %v4431 = vunpack.c.l.b16 %v941
    %v4432 = vunpack.c.h.b16 %v941
    %v4433 = vunpack.c.l.b16 %v942
    %v4434 = vunpack.c.h.b16 %v942
    %v4435 = vunpack.c.l.b16 %v943
    %v4436 = vunpack.c.h.b16 %v943
    %v4437 = vunpack.c.l.b16 %v944
    %v4438 = vunpack.c.h.b16 %v944
    %v4439 = vunpack.c.l.b16 %v945
    %v4440 = vunpack.c.h.b16 %v945
    %v4441 = vunpack.c.l.b16 %v946
    %v4442 = vunpack.c.h.b16 %v946
    %v4443 = vunpack.c.l.b16 %v947
    %v4444 = vunpack.c.h.b16 %v947
    %v4445 = vunpack.c.l.b16 %v948
    %v4446 = vunpack.c.h.b16 %v948
    %v4447 = vunpack.c.l.b16 %v949
    %v4448 = vunpack.c.h.b16 %v949
    %v4449 = vunpack.c.l.b16 %v950
    %v4450 = vunpack.c.h.b16 %v950
    %v4451 = vunpack.c.l.b16 %v951
    %v4452 = vunpack.c.h.b16 %v951
    %v4453 = vunpack.c.l.b16 %v952
    %v4454 = vunpack.c.h.b16 %v952
    %v4455 = vunpack.c.l.b16 %v953
    %v4456 = vunpack.c.h.b16 %v953
    %v4457 = vunpack.c.l.b16 %v954
    %v4458 = vunpack.c.h.b16 %v954
    %v4459 = vunpack.c.l.b16 %v955
    %v4460 = vunpack.c.h.b16 %v955
    %v4461 = vunpack.c.l.b16 %v956
    %v4462 = vunpack.c.h.b16 %v956
    %v4463 = vunpack.c.l.b16 %v957
    %v4464 = vunpack.c.h.b16 %v957
    %v4465 = vunpack.c.l.b16 %v958
    %v4466 = vunpack.c.h.b16 %v958
    %v4467 = vunpack.c.l.b16 %v959
    %v4468 = vunpack.c.h.b16 %v959
    %v4469 = vunpack.c.l.b16 %v960
    %v4470 = vunpack.c.h.b16 %v960
    %v4471 = vunpack.c.l.b16 %v961
    %v4472 = vunpack.c.h.b16 %v961
    %v4473 = vunpack.c.l.b16 %v962
    %v4474 = vunpack.c.h.b16 %v962
    %v4475 = vunpack.c.l.b16 %v963
    %v4476 = vunpack.c.h.b16 %v963
    %v4477 = vunpack.c.l.b16 %v964
    %v4478 = vunpack.c.h.b16 %v964
    %v4479 = vunpack.c.l.b16 %v965
    %v4480 = vunpack.c.h.b16 %v965
    %v4481 = vunpack.c.l.b16 %v966
    %v4482 = vunpack.c.h.b16 %v966
    %v4483 = vunpack.c.l.b16 %v967
    %v4484 = vunpack.c.h.b16 %v967
    %v4485 = vunpack.c.l.b16 %v968
    %v4486 = vunpack.c.h.b16 %v968
    %v4487 = vunpack.c.l.b16 %v969
    %v4488 = vunpack.c.h.b16 %v969
    %v4489 = vunpack.c.l.b16 %v970
    %v4490 = vunpack.c.h.b16 %v970
    %v4491 = vunpack.c.l.b16 %v971
    %v4492 = vunpack.c.h.b16 %v971
    %v4493 = vunpack.c.l.b16 %v972
    %v4494 = vunpack.c.h.b16 %v972
    %v4495 = vunpack.c.l.b16 %v973
    %v4496 = vunpack.c.h.b16 %v973
    %v4497 = vunpack.c.l.b16 %v974
    %v4498 = vunpack.c.h.b16 %v974
    %v4499 = vunpack.c.l.b16 %v975
    %v4500 = vunpack.c.h.b16 %v975
    %v4501 = vunpack.c.l.b16 %v976
    %v4502 = vunpack.c.h.b16 %v976
    %v4503 = vunpack.c.l.b16 %v977
    %v4504 = vunpack.c.h.b16 %v977
    %v4505 = vunpack.c.l.b16 %v978
    %v4506 = vunpack.c.h.b16 %v978
    %v4507 = vunpack.c.l.b16 %v979
    %v4508 = vunpack.c.h.b16 %v979
    %v4509 = vunpack.c.l.b16 %v980
    %v4510 = vunpack.c.h.b16 %v980
    %v4511 = vunpack.c.l.b16 %v981
    %v4512 = vunpack.c.h.b16 %v981
    %v4513 = vunpack.c.l.b16 %v982
    %v4514 = vunpack.c.h.b16 %v982
    %v4515 = vunpack.c.l.b16 %v983
    %v4516 = vunpack.c.h.b16 %v983
    %v4517 = vunpack.c.l.b16 %v984
    %v4518 = vunpack.c.h.b16 %v984
    %v4519 = vunpack.c.l.b16 %v985
    %v4520 = vunpack.c.h.b16 %v985
    %v4521 = vunpack.c.l.b16 %v986
    %v4522 = vunpack.c.h.b16 %v986
    %v4523 = vunpack.c.l.b16 %v987
    %v4524 = vunpack.c.h.b16 %v987
    %v4525 = vunpack.c.l.b16 %v988
    %v4526 = vunpack.c.h.b16 %v988
    %v4527 = vunpack.c.l.b16 %v989
    %v4528 = vunpack.c.h.b16 %v989
    %v4529 = vunpack.c.l.b16 %v990
    %v4530 = vunpack.c.h.b16 %v990
    %v4531 = vunpack.c.l.b16 %v991
    %v4532 = vunpack.c.h.b16 %v991
    %v4533 = vunpack.c.l.b16 %v992
    %v4534 = vunpack.c.h.b16 %v992
    %v4535 = vunpack.c.l.b16 %v993
    %v4536 = vunpack.c.h.b16 %v993
    %v4537 = vunpack.c.l.b16 %v994
    %v4538 = vunpack.c.h.b16 %v994
    %v4539 = vunpack.c.l.b16 %v995
    %v4540 = vunpack.c.h.b16 %v995
    %v4541 = vunpack.c.l.b16 %v996
    %v4542 = vunpack.c.h.b16 %v996
    %v4543 = vunpack.c.l.b16 %v997
    %v4544 = vunpack.c.h.b16 %v997
    %v4545 = vunpack.c.l.b16 %v998
    %v4546 = vunpack.c.h.b16 %v998
    %v4547 = vunpack.c.l.b16 %v999
    %v4548 = vunpack.c.h.b16 %v999
    %v4549 = vunpack.c.l.b16 %v1000
    %v4550 = vunpack.c.h.b16 %v1000
    %v4551 = vunpack.c.l.b16 %v1001
    %v4552 = vunpack.c.h.b16 %v1001
    %v4553 = vunpack.c.l.b16 %v1002
    %v4554 = vunpack.c.h.b16 %v1002
    %v4555 = vunpack.c.l.b16 %v1003
    %v4556 = vunpack.c.h.b16 %v1003
    %v4557 = vunpack.c.l.b16 %v1004
    %v4558 = vunpack.c.h.b16 %v1004
    %v4559 = vunpack.c.l.b16 %v1005
    %v4560 = vunpack.c.h.b16 %v1005
    %v4561 = vunpack.c.l.b16 %v1006
    %v4562 = vunpack.c.h.b16 %v1006
    %v4563 = vunpack.c.l.b16 %v1007
    %v4564 = vunpack.c.h.b16 %v1007
    %v4565 = vunpack.c.l.b16 %v1008
    %v4566 = vunpack.c.h.b16 %v1008
    %v4567 = vunpack.c.l.b16 %v1009
    %v4568 = vunpack.c.h.b16 %v1009
    %v4569 = vunpack.c.l.b16 %v1010
    %v4570 = vunpack.c.h.b16 %v1010
    %v4571 = vunpack.c.l.b16 %v1011
    %v4572 = vunpack.c.h.b16 %v1011
    %v4573 = vunpack.c.l.b16 %v1012
    %v4574 = vunpack.c.h.b16 %v1012
    %v4575 = vunpack.c.l.b16 %v1013
    %v4576 = vunpack.c.h.b16 %v1013
    %v4577 = vunpack.c.l.b16 %v1014
    %v4578 = vunpack.c.h.b16 %v1014
    %v4579 = vunpack.c.l.b16 %v1015
    %v4580 = vunpack.c.h.b16 %v1015
    %v4581 = vunpack.c.l.b16 %v1016
    %v4582 = vunpack.c.h.b16 %v1016
    %v4583 = vunpack.c.l.b16 %v1017
    %v4584 = vunpack.c.h.b16 %v1017
    %v4585 = vunpack.c.l.b16 %v1018
    %v4586 = vunpack.c.h.b16 %v1018
    %v4587 = vunpack.c.l.b16 %v1019
    %v4588 = vunpack.c.h.b16 %v1019
    %v4589 = vunpack.c.l.b16 %v1020
    %v4590 = vunpack.c.h.b16 %v1020
    %v4591 = vunpack.c.l.b16 %v1021
    %v4592 = vunpack.c.h.b16 %v1021
    %v4593 = vunpack.c.l.b16 %v1022
    %v4594 = vunpack.c.h.b16 %v1022
    %v4595 = vunpack.c.l.b16 %v1023
    %v4596 = vunpack.c.h.b16 %v1023
    %v4597 = vunpack.c.l.b16 %v1024
    %v4598 = vunpack.c.h.b16 %v1024
    %v4599 = vunpack.c.l.b16 %v1025
    %v4600 = vunpack.c.h.b16 %v1025
    %v4601 = vunpack.c.l.b16 %v1026
    %v4602 = vunpack.c.h.b16 %v1026
    %v4603 = vunpack.c.l.b16 %v1027
    %v4604 = vunpack.c.h.b16 %v1027
    %v4605 = vunpack.c.l.b16 %v1028
    %v4606 = vunpack.c.h.b16 %v1028
    %v4607 = vunpack.c.l.b16 %v1029
    %v4608 = vunpack.c.h.b16 %v1029
    %v4609 = vunpack.c.l.b16 %v1030
    %v4610 = vunpack.c.h.b16 %v1030
    %v4611 = vunpack.c.l.b16 %v1031
    %v4612 = vunpack.c.h.b16 %v1031
    %v4613 = vunpack.c.l.b16 %v1032
    %v4614 = vunpack.c.h.b16 %v1032
    %v4615 = vunpack.c.l.b16 %v1033
    %v4616 = vunpack.c.h.b16 %v1033
    %v4617 = vunpack.c.l.b16 %v1034
    %v4618 = vunpack.c.h.b16 %v1034
    %v4619 = vunpack.c.l.b16 %v1035
    %v4620 = vunpack.c.h.b16 %v1035
    %v4621 = vunpack.c.l.b16 %v1036
    %v4622 = vunpack.c.h.b16 %v1036
    %v4623 = vunpack.c.l.b16 %v1037
    %v4624 = vunpack.c.h.b16 %v1037
    %v4625 = vunpack.c.l.b16 %v1038
    %v4626 = vunpack.c.h.b16 %v1038
    %v4627 = vunpack.c.l.b16 %v1039
    %v4628 = vunpack.c.h.b16 %v1039
    %v4629 = vunpack.c.l.b16 %v1040
    %v4630 = vunpack.c.h.b16 %v1040
    %v4631 = vunpack.c.l.b16 %v1041
    %v4632 = vunpack.c.h.b16 %v1041
    %v4633 = vunpack.c.l.b16 %v1042
    %v4634 = vunpack.c.h.b16 %v1042
    %v4635 = vunpack.c.l.b16 %v1043
    %v4636 = vunpack.c.h.b16 %v1043
    %v4637 = vunpack.c.l.b16 %v1044
    %v4638 = vunpack.c.h.b16 %v1044
    %v4639 = vunpack.c.l.b16 %v1045
    %v4640 = vunpack.c.h.b16 %v1045
    %v4641 = vunpack.c.l.b16 %v1046
    %v4642 = vunpack.c.h.b16 %v1046
    %v4643 = vunpack.c.l.b16 %v1047
    %v4644 = vunpack.c.h.b16 %v1047
    %v4645 = vunpack.c.l.b16 %v1048
    %v4646 = vunpack.c.h.b16 %v1048
    %v4647 = vunpack.c.l.b16 %v1049
    %v4648 = vunpack.c.h.b16 %v1049
    %v4649 = vunpack.c.l.b16 %v1050
    %v4650 = vunpack.c.h.b16 %v1050
    %v4651 = vunpack.c.l.b16 %v1051
    %v4652 = vunpack.c.h.b16 %v1051
    %v4653 = vunpack.c.l.b16 %v1052
    %v4654 = vunpack.c.h.b16 %v1052
    %v4655 = vunpack.c.l.b16 %v1053
    %v4656 = vunpack.c.h.b16 %v1053
    %v4657 = vunpack.c.l.b16 %v1054
    %v4658 = vunpack.c.h.b16 %v1054
    %v4659 = vunpack.c.l.b16 %v1055
    %v4660 = vunpack.c.h.b16 %v1055
    %v4661 = vunpack.c.l.b16 %v1056
    %v4662 = vunpack.c.h.b16 %v1056
    %v4663 = vunpack.c.l.b16 %v1057
    %v4664 = vunpack.c.h.b16 %v1057
    %v4665 = vunpack.c.l.b16 %v1058
    %v4666 = vunpack.c.h.b16 %v1058
    %v4667 = vunpack.c.l.b16 %v1059
    %v4668 = vunpack.c.h.b16 %v1059
    %v4669 = vunpack.c.l.b16 %v1060
    %v4670 = vunpack.c.h.b16 %v1060
    %v4671 = vunpack.c.l.b16 %v1061
    %v4672 = vunpack.c.h.b16 %v1061
    %v4673 = vunpack.c.l.b16 %v1062
    %v4674 = vunpack.c.h.b16 %v1062
    %v4675 = vunpack.c.l.b16 %v1063
    %v4676 = vunpack.c.h.b16 %v1063
    %v4677 = vunpack.c.l.b16 %v1064
    %v4678 = vunpack.c.h.b16 %v1064
    %v4679 = vunpack.c.l.b16 %v1065
    %v4680 = vunpack.c.h.b16 %v1065
    %v4681 = vunpack.c.l.b16 %v1066
    %v4682 = vunpack.c.h.b16 %v1066
    %v4683 = vunpack.c.l.b16 %v1067
    %v4684 = vunpack.c.h.b16 %v1067
    %v4685 = vunpack.c.l.b16 %v1068
    %v4686 = vunpack.c.h.b16 %v1068
    %v4687 = vunpack.c.l.b16 %v1069
    %v4688 = vunpack.c.h.b16 %v1069
    %v4689 = vunpack.c.l.b16 %v1070
    %v4690 = vunpack.c.h.b16 %v1070
    %v4691 = vunpack.c.l.b16 %v1071
    %v4692 = vunpack.c.h.b16 %v1071
    %v4693 = vunpack.c.l.b16 %v1072
    %v4694 = vunpack.c.h.b16 %v1072
    %v4695 = vunpack.c.l.b16 %v1073
    %v4696 = vunpack.c.h.b16 %v1073
    %v4697 = vunpack.c.l.b16 %v1074
    %v4698 = vunpack.c.h.b16 %v1074
    %v4699 = vunpack.c.l.b16 %v1075
    %v4700 = vunpack.c.h.b16 %v1075
    %v4701 = vunpack.c.l.b16 %v1076
    %v4702 = vunpack.c.h.b16 %v1076
    %v4703 = vunpack.c.l.b16 %v1077
    %v4704 = vunpack.c.h.b16 %v1077
    %v4705 = vunpack.c.l.b16 %v1078
    %v4706 = vunpack.c.h.b16 %v1078
    %v4707 = vunpack.c.l.b16 %v1079
    %v4708 = vunpack.c.h.b16 %v1079
    %v4709 = vunpack.c.l.b16 %v1080
    %v4710 = vunpack.c.h.b16 %v1080
    %v4711 = vunpack.c.l.b16 %v1081
    %v4712 = vunpack.c.h.b16 %v1081
    %v4713 = vunpack.c.l.b16 %v1082
    %v4714 = vunpack.c.h.b16 %v1082
    %v4715 = vunpack.c.l.b16 %v1083
    %v4716 = vunpack.c.h.b16 %v1083
    %v4717 = vunpack.c.l.b16 %v1084
    %v4718 = vunpack.c.h.b16 %v1084
    %v4719 = vunpack.c.l.b16 %v1085
    %v4720 = vunpack.c.h.b16 %v1085
    %v4721 = vunpack.c.l.b16 %v1086
    %v4722 = vunpack.c.h.b16 %v1086
    %v4723 = vunpack.c.l.b16 %v1087
    %v4724 = vunpack.c.h.b16 %v1087
    %v4725 = vunpack.c.l.b16 %v1088
    %v4726 = vunpack.c.h.b16 %v1088
    %v4727 = vunpack.c.l.b16 %v1089
    %v4728 = vunpack.c.h.b16 %v1089
    %v4729 = vunpack.c.l.b16 %v1090
    %v4730 = vunpack.c.h.b16 %v1090
    %v4731 = vunpack.c.l.b16 %v1091
    %v4732 = vunpack.c.h.b16 %v1091
    %v4733 = vunpack.c.l.b16 %v1092
    %v4734 = vunpack.c.h.b16 %v1092
    %v4735 = vunpack.c.l.b16 %v1093
    %v4736 = vunpack.c.h.b16 %v1093
    %v4737 = vunpack.c.l.b16 %v1094
    %v4738 = vunpack.c.h.b16 %v1094
    %v4739 = vunpack.c.l.b16 %v1095
    %v4740 = vunpack.c.h.b16 %v1095
    %v4741 = vunpack.c.l.b16 %v1096
    %v4742 = vunpack.c.h.b16 %v1096
    %v4743 = vunpack.c.l.b16 %v1097
    %v4744 = vunpack.c.h.b16 %v1097
    %v4745 = vunpack.c.l.b16 %v1098
    %v4746 = vunpack.c.h.b16 %v1098
    %v4747 = vunpack.c.l.b16 %v1099
    %v4748 = vunpack.c.h.b16 %v1099
    %v4749 = vunpack.c.l.b16 %v1100
    %v4750 = vunpack.c.h.b16 %v1100
    %v4751 = vunpack.c.l.b16 %v1101
    %v4752 = vunpack.c.h.b16 %v1101
    %v4753 = vunpack.c.l.b16 %v1102
    %v4754 = vunpack.c.h.b16 %v1102
    %v4755 = vunpack.c.l.b16 %v1103
    %v4756 = vunpack.c.h.b16 %v1103
    %v4757 = vunpack.c.l.b16 %v1104
    %v4758 = vunpack.c.h.b16 %v1104
    %v4759 = vunpack.c.l.b16 %v1105
    %v4760 = vunpack.c.h.b16 %v1105
    %v4761 = vunpack.c.l.b16 %v1106
    %v4762 = vunpack.c.h.b16 %v1106
    %v4763 = vunpack.c.l.b16 %v1107
    %v4764 = vunpack.c.h.b16 %v1107
    %v4765 = vunpack.c.l.b16 %v1108
    %v4766 = vunpack.c.h.b16 %v1108
    %v4767 = vunpack.c.l.b16 %v1109
    %v4768 = vunpack.c.h.b16 %v1109
    %v4769 = vunpack.c.l.b16 %v1110
    %v4770 = vunpack.c.h.b16 %v1110
    %v4771 = vunpack.c.l.b16 %v1111
    %v4772 = vunpack.c.h.b16 %v1111
    %v4773 = vunpack.c.l.b16 %v1112
    %v4774 = vunpack.c.h.b16 %v1112
    %v4775 = vunpack.c.l.b16 %v1113
    %v4776 = vunpack.c.h.b16 %v1113
    %v4777 = vunpack.c.l.b16 %v1114
    %v4778 = vunpack.c.h.b16 %v1114
    %v4779 = vunpack.c.l.b16 %v1115
    %v4780 = vunpack.c.h.b16 %v1115
    %v4781 = vunpack.c.l.b16 %v1116
    %v4782 = vunpack.c.h.b16 %v1116
    %v4783 = vunpack.c.l.b16 %v1117
    %v4784 = vunpack.c.h.b16 %v1117
    %v4785 = vunpack.c.l.b16 %v1118
    %v4786 = vunpack.c.h.b16 %v1118
    %v4787 = vunpack.c.l.b16 %v1119
    %v4788 = vunpack.c.h.b16 %v1119
    %v4789 = vunpack.c.l.b16 %v1120
    %v4790 = vunpack.c.h.b16 %v1120
    %v4791 = vunpack.c.l.b16 %v1121
    %v4792 = vunpack.c.h.b16 %v1121
    %v4793 = vunpack.c.l.b16 %v1122
    %v4794 = vunpack.c.h.b16 %v1122
    %v4795 = vunpack.c.l.b16 %v1123
    %v4796 = vunpack.c.h.b16 %v1123
    %v4797 = vunpack.c.l.b16 %v1124
    %v4798 = vunpack.c.h.b16 %v1124
    %v4799 = vunpack.c.l.b16 %v1125
    %v4800 = vunpack.c.h.b16 %v1125
    %v4801 = vunpack.c.l.b16 %v1126
    %v4802 = vunpack.c.h.b16 %v1126
    %v4803 = vunpack.c.l.b16 %v1127
    %v4804 = vunpack.c.h.b16 %v1127
    %v4805 = vunpack.c.l.b16 %v1128
    %v4806 = vunpack.c.h.b16 %v1128
    %v4807 = vunpack.c.l.b16 %v1129
    %v4808 = vunpack.c.h.b16 %v1129
    %v4809 = vunpack.c.l.b16 %v1130
    %v4810 = vunpack.c.h.b16 %v1130
    %v4811 = vunpack.c.l.b16 %v1131
    %v4812 = vunpack.c.h.b16 %v1131
    %v4813 = vunpack.c.l.b16 %v1132
    %v4814 = vunpack.c.h.b16 %v1132
    %v4815 = vunpack.c.l.b16 %v1133
    %v4816 = vunpack.c.h.b16 %v1133
    %v4817 = vunpack.c.l.b16 %v1134
    %v4818 = vunpack.c.h.b16 %v1134
    %v4819 = vunpack.c.l.b16 %v1135
    %v4820 = vunpack.c.h.b16 %v1135
    %v4821 = vunpack.c.l.b16 %v1136
    %v4822 = vunpack.c.h.b16 %v1136
    %v4823 = vunpack.c.l.b16 %v1137
    %v4824 = vunpack.c.h.b16 %v1137
    %v4825 = vunpack.c.l.b16 %v1138
    %v4826 = vunpack.c.h.b16 %v1138
    %v4827 = vunpack.c.l.b16 %v1139
    %v4828 = vunpack.c.h.b16 %v1139
    %v4829 = vunpack.c.l.b16 %v1140
    %v4830 = vunpack.c.h.b16 %v1140
    %v4831 = vunpack.c.l.b16 %v1141
    %v4832 = vunpack.c.h.b16 %v1141
    %v4833 = vunpack.c.l.b16 %v1142
    %v4834 = vunpack.c.h.b16 %v1142
    %v4835 = vunpack.c.l.b16 %v1143
    %v4836 = vunpack.c.h.b16 %v1143
    %v4837 = vunpack.c.l.b16 %v1144
    %v4838 = vunpack.c.h.b16 %v1144
    %v4839 = vunpack.c.l.b16 %v1145
    %v4840 = vunpack.c.h.b16 %v1145
    %v4841 = vunpack.c.l.b16 %v1146
    %v4842 = vunpack.c.h.b16 %v1146
    %v4843 = vunpack.c.l.b16 %v1147
    %v4844 = vunpack.c.h.b16 %v1147
    %v4845 = vunpack.c.l.b16 %v1148
    %v4846 = vunpack.c.h.b16 %v1148
    %v4847 = vunpack.c.l.b16 %v1149
    %v4848 = vunpack.c.h.b16 %v1149
    %v4849 = vunpack.c.l.b16 %v1150
    %v4850 = vunpack.c.h.b16 %v1150
    %v4851 = vunpack.c.l.b16 %v1151
    %v4852 = vunpack.c.h.b16 %v1151
    %v4853 = vunpack.c.l.b16 %v1152
    %v4854 = vunpack.c.h.b16 %v1152
    %v4855 = vunpack.c.l.b16 %v1153
    %v4856 = vunpack.c.h.b16 %v1153
    %v4857 = vunpack.c.l.b16 %v1154
    %v4858 = vunpack.c.h.b16 %v1154
    %v4859 = vunpack.c.l.b16 %v1155
    %v4860 = vunpack.c.h.b16 %v1155
    %v4861 = vunpack.c.l.b16 %v1156
    %v4862 = vunpack.c.h.b16 %v1156
    %v4863 = vunpack.c.l.b16 %v1157
    %v4864 = vunpack.c.h.b16 %v1157
    %v4865 = vunpack.c.l.b16 %v1158
    %v4866 = vunpack.c.h.b16 %v1158
    %v4867 = vunpack.c.l.b16 %v1159
    %v4868 = vunpack.c.h.b16 %v1159
    %v4869 = vunpack.c.l.b16 %v1160
    %v4870 = vunpack.c.h.b16 %v1160
    %v4871 = vunpack.c.l.b16 %v1161
    %v4872 = vunpack.c.h.b16 %v1161
    %v4873 = vunpack.c.l.b16 %v1162
    %v4874 = vunpack.c.h.b16 %v1162
    %v4875 = vunpack.c.l.b16 %v1163
    %v4876 = vunpack.c.h.b16 %v1163
    %v4877 = vunpack.c.l.b16 %v1164
    %v4878 = vunpack.c.h.b16 %v1164
    %v4879 = vunpack.c.l.b16 %v1165
    %v4880 = vunpack.c.h.b16 %v1165
    %v4881 = vunpack.c.l.b16 %v1166
    %v4882 = vunpack.c.h.b16 %v1166
    %v4883 = vunpack.c.l.b16 %v1167
    %v4884 = vunpack.c.h.b16 %v1167
    %v4885 = vunpack.c.l.b16 %v1168
    %v4886 = vunpack.c.h.b16 %v1168
    %v4887 = vunpack.c.l.b16 %v1169
    %v4888 = vunpack.c.h.b16 %v1169
    %v4889 = vunpack.c.l.b16 %v1170
    %v4890 = vunpack.c.h.b16 %v1170
    %v4891 = vunpack.c.l.b16 %v1171
    %v4892 = vunpack.c.h.b16 %v1171
    %v4893 = vunpack.c.l.b16 %v1172
    %v4894 = vunpack.c.h.b16 %v1172
    %v4895 = vunpack.c.l.b16 %v1173
    %v4896 = vunpack.c.h.b16 %v1173
    %v4897 = vunpack.c.l.b16 %v1174
    %v4898 = vunpack.c.h.b16 %v1174
    %v4899 = vunpack.c.l.b16 %v1175
    %v4900 = vunpack.c.h.b16 %v1175
    %v4901 = vunpack.c.l.b16 %v1176
    %v4902 = vunpack.c.h.b16 %v1176
    %v4903 = vunpack.c.l.b16 %v1177
    %v4904 = vunpack.c.h.b16 %v1177
    %v4905 = vunpack.c.l.b16 %v1178
    %v4906 = vunpack.c.h.b16 %v1178
    %v4907 = vunpack.c.l.b16 %v1179
    %v4908 = vunpack.c.h.b16 %v1179
    %v4909 = vunpack.c.l.b16 %v1180
    %v4910 = vunpack.c.h.b16 %v1180
    %v4911 = vunpack.c.l.b16 %v1181
    %v4912 = vunpack.c.h.b16 %v1181
    %v4913 = vunpack.c.l.b16 %v1182
    %v4914 = vunpack.c.h.b16 %v1182
    %v4915 = vunpack.c.l.b16 %v1183
    %v4916 = vunpack.c.h.b16 %v1183
    %v4917 = vunpack.c.l.b16 %v1184
    %v4918 = vunpack.c.h.b16 %v1184
    %v4919 = vunpack.c.l.b16 %v1185
    %v4920 = vunpack.c.h.b16 %v1185
    %v4921 = vunpack.c.l.b16 %v1186
    %v4922 = vunpack.c.h.b16 %v1186
    %v4923 = vunpack.c.l.b16 %v1187
    %v4924 = vunpack.c.h.b16 %v1187
    %v4925 = vunpack.c.l.b16 %v1188
    %v4926 = vunpack.c.h.b16 %v1188
    %v4927 = vunpack.c.l.b16 %v1189
    %v4928 = vunpack.c.h.b16 %v1189
    %v4929 = vunpack.c.l.b16 %v1190
    %v4930 = vunpack.c.h.b16 %v1190
    %v4931 = vunpack.c.l.b16 %v1191
    %v4932 = vunpack.c.h.b16 %v1191
    %v4933 = vunpack.c.l.b16 %v1192
    %v4934 = vunpack.c.h.b16 %v1192
    %v4935 = vunpack.c.l.b16 %v1193
    %v4936 = vunpack.c.h.b16 %v1193
    %v4937 = vunpack.c.l.b16 %v1194
    %v4938 = vunpack.c.h.b16 %v1194
    %v4939 = vunpack.c.l.b16 %v1195
    %v4940 = vunpack.c.h.b16 %v1195
    %v4941 = vunpack.c.l.b16 %v1196
    %v4942 = vunpack.c.h.b16 %v1196
    %v4943 = vunpack.c.l.b16 %v1197
    %v4944 = vunpack.c.h.b16 %v1197
    %v4945 = vunpack.c.l.b16 %v1198
    %v4946 = vunpack.c.h.b16 %v1198
    %v4947 = vunpack.c.l.b16 %v1199
    %v4948 = vunpack.c.h.b16 %v1199
    %v4949 = vunpack.c.l.b16 %v1200
    %v4950 = vunpack.c.h.b16 %v1200
    %v4951 = vunpack.c.l.b16 %v1201
    %v4952 = vunpack.c.h.b16 %v1201
    %v4953 = vunpack.c.l.b16 %v1202
    %v4954 = vunpack.c.h.b16 %v1202
    %v4955 = vunpack.c.l.b16 %v1203
    %v4956 = vunpack.c.h.b16 %v1203
    %v4957 = vunpack.c.l.b16 %v1204
    %v4958 = vunpack.c.h.b16 %v1204
    %v4959 = vunpack.c.l.b16 %v1205
    %v4960 = vunpack.c.h.b16 %v1205
    %v4961 = vunpack.c.l.b16 %v1206
    %v4962 = vunpack.c.h.b16 %v1206
    %v4963 = vunpack.c.l.b16 %v1207
    %v4964 = vunpack.c.h.b16 %v1207
    %v4965 = vunpack.c.l.b16 %v1208
    %v4966 = vunpack.c.h.b16 %v1208
    %v4967 = vunpack.c.l.b16 %v1209
    %v4968 = vunpack.c.h.b16 %v1209
    %v4969 = vunpack.c.l.b16 %v1210
    %v4970 = vunpack.c.h.b16 %v1210
    %v4971 = vunpack.c.l.b16 %v1211
    %v4972 = vunpack.c.h.b16 %v1211
    %v4973 = vunpack.c.l.b16 %v1212
    %v4974 = vunpack.c.h.b16 %v1212
    %v4975 = vunpack.c.l.b16 %v1213
    %v4976 = vunpack.c.h.b16 %v1213
    %v4977 = vunpack.c.l.b16 %v1214
    %v4978 = vunpack.c.h.b16 %v1214
    %v4979 = vunpack.c.l.b16 %v1215
    %v4980 = vunpack.c.h.b16 %v1215
    %v4981 = vunpack.c.l.b16 %v1216
    %v4982 = vunpack.c.h.b16 %v1216
    %v4983 = vunpack.c.l.b16 %v1217
    %v4984 = vunpack.c.h.b16 %v1217
    %v4985 = vunpack.c.l.b16 %v1218
    %v4986 = vunpack.c.h.b16 %v1218
    %v4987 = vunpack.c.l.b16 %v1219
    %v4988 = vunpack.c.h.b16 %v1219
    %v4989 = vunpack.c.l.b16 %v1220
    %v4990 = vunpack.c.h.b16 %v1220
    %v4991 = vunpack.c.l.b16 %v1221
    %v4992 = vunpack.c.h.b16 %v1221
    %v4993 = vunpack.c.l.b16 %v1222
    %v4994 = vunpack.c.h.b16 %v1222
    %v4995 = vunpack.c.l.b16 %v1223
    %v4996 = vunpack.c.h.b16 %v1223
    %v4997 = vunpack.c.l.b16 %v1224
    %v4998 = vunpack.c.h.b16 %v1224
    %v4999 = vunpack.c.l.b16 %v1225
    %v5000 = vunpack.c.h.b16 %v1225
    %v5001 = vunpack.c.l.b16 %v1226
    %v5002 = vunpack.c.h.b16 %v1226
    %v5003 = vunpack.c.l.b16 %v1227
    %v5004 = vunpack.c.h.b16 %v1227
    %v5005 = vunpack.c.l.b16 %v1228
    %v5006 = vunpack.c.h.b16 %v1228
    %v5007 = vunpack.c.l.b16 %v1229
    %v5008 = vunpack.c.h.b16 %v1229
    %v5009 = vunpack.c.l.b16 %v1230
    %v5010 = vunpack.c.h.b16 %v1230
    %v5011 = vunpack.c.l.b16 %v1231
    %v5012 = vunpack.c.h.b16 %v1231
    %v5013 = vunpack.c.l.b16 %v1232
    %v5014 = vunpack.c.h.b16 %v1232
    %v5015 = vunpack.c.l.b16 %v1233
    %v5016 = vunpack.c.h.b16 %v1233
    %v5017 = vunpack.c.l.b16 %v1234
    %v5018 = vunpack.c.h.b16 %v1234
    %v5019 = vunpack.c.l.b16 %v1235
    %v5020 = vunpack.c.h.b16 %v1235
    %v5021 = vunpack.c.l.b16 %v1236
    %v5022 = vunpack.c.h.b16 %v1236
    %v5023 = vunpack.c.l.b16 %v1237
    %v5024 = vunpack.c.h.b16 %v1237
    %v5025 = vunpack.c.l.b16 %v1238
    %v5026 = vunpack.c.h.b16 %v1238
    %v5027 = vunpack.c.l.b16 %v1239
    %v5028 = vunpack.c.h.b16 %v1239
    %v5029 = vunpack.c.l.b16 %v1240
    %v5030 = vunpack.c.h.b16 %v1240
    %v5031 = vunpack.c.l.b16 %v1241
    %v5032 = vunpack.c.h.b16 %v1241
    %v5033 = vunpack.c.l.b16 %v1242
    %v5034 = vunpack.c.h.b16 %v1242
    %v5035 = vunpack.c.l.b16 %v1243
    %v5036 = vunpack.c.h.b16 %v1243
    %v5037 = vunpack.c.l.b16 %v1244
    %v5038 = vunpack.c.h.b16 %v1244
    %v5039 = vunpack.c.l.b16 %v1245
    %v5040 = vunpack.c.h.b16 %v1245
    %v5041 = vunpack.c.l.b16 %v1246
    %v5042 = vunpack.c.h.b16 %v1246
    %v5043 = vunpack.c.l.b16 %v1247
    %v5044 = vunpack.c.h.b16 %v1247
    %v5045 = vunpack.c.l.b16 %v1248
    %v5046 = vunpack.c.h.b16 %v1248
    %v5047 = vunpack.c.l.b16 %v1249
    %v5048 = vunpack.c.h.b16 %v1249
    %v5049 = vunpack.c.l.b16 %v1250
    %v5050 = vunpack.c.h.b16 %v1250
    %v5051 = vunpack.c.l.b16 %v1251
    %v5052 = vunpack.c.h.b16 %v1251
    %v5053 = vunpack.c.l.b16 %v1252
    %v5054 = vunpack.c.h.b16 %v1252
    %v5055 = vunpack.c.l.b16 %v1253
    %v5056 = vunpack.c.h.b16 %v1253
    %v5057 = vunpack.c.l.b16 %v1254
    %v5058 = vunpack.c.h.b16 %v1254
    %v5059 = vunpack.c.l.b16 %v1255
    %v5060 = vunpack.c.h.b16 %v1255
    %v5061 = vunpack.c.l.b16 %v1256
    %v5062 = vunpack.c.h.b16 %v1256
    %v5063 = vunpack.c.l.b16 %v1257
    %v5064 = vunpack.c.h.b16 %v1257
    %v5065 = vunpack.c.l.b16 %v1258
    %v5066 = vunpack.c.h.b16 %v1258
    %v5067 = vunpack.c.l.b16 %v1259
    %v5068 = vunpack.c.h.b16 %v1259
    %v5069 = vunpack.c.l.b16 %v1260
    %v5070 = vunpack.c.h.b16 %v1260
    %v5071 = vunpack.c.l.b16 %v1261
    %v5072 = vunpack.c.h.b16 %v1261
    %v5073 = vunpack.c.l.b16 %v1262
    %v5074 = vunpack.c.h.b16 %v1262
    %v5075 = vunpack.c.l.b16 %v1263
    %v5076 = vunpack.c.h.b16 %v1263
    %v5077 = vunpack.c.l.b16 %v1264
    %v5078 = vunpack.c.h.b16 %v1264
    %v5079 = vunpack.c.l.b16 %v1265
    %v5080 = vunpack.c.h.b16 %v1265
    %v5081 = vunpack.c.l.b16 %v1266
    %v5082 = vunpack.c.h.b16 %v1266
    %v5083 = vunpack.c.l.b16 %v1267
    %v5084 = vunpack.c.h.b16 %v1267
    %v5085 = vunpack.c.l.b16 %v1268
    %v5086 = vunpack.c.h.b16 %v1268
    %v5087 = vunpack.c.l.b16 %v1269
    %v5088 = vunpack.c.h.b16 %v1269
    %v5089 = vunpack.c.l.b16 %v1270
    %v5090 = vunpack.c.h.b16 %v1270
    %v5091 = vunpack.c.l.b16 %v1271
    %v5092 = vunpack.c.h.b16 %v1271
    %v5093 = vunpack.c.l.b16 %v1272
    %v5094 = vunpack.c.h.b16 %v1272
    %v5095 = vunpack.c.l.b16 %v1273
    %v5096 = vunpack.c.h.b16 %v1273
    %v5097 = vunpack.c.l.b16 %v1274
    %v5098 = vunpack.c.h.b16 %v1274
    %v5099 = vunpack.c.l.b16 %v1275
    %v5100 = vunpack.c.h.b16 %v1275
    %v5101 = vunpack.c.l.b16 %v1276
    %v5102 = vunpack.c.h.b16 %v1276
    %v5103 = vunpack.c.l.b16 %v1277
    %v5104 = vunpack.c.h.b16 %v1277
    %v5105 = vunpack.c.l.b16 %v1278
    %v5106 = vunpack.c.h.b16 %v1278
    %v5107 = vunpack.c.l.b16 %v1279
    %v5108 = vunpack.c.h.b16 %v1279
    %v5109 = vunpack.c.l.b16 %v1280
    %v5110 = vunpack.c.h.b16 %v1280
    %v5111 = vunpack.c.l.b16 %v1281
    %v5112 = vunpack.c.h.b16 %v1281
    %v5113 = vunpack.c.l.b16 %v1282
    %v5114 = vunpack.c.h.b16 %v1282
    %v5115 = vunpack.c.l.b16 %v1283
    %v5116 = vunpack.c.h.b16 %v1283
    %v5117 = vunpack.c.l.b16 %v1284
    %v5118 = vunpack.c.h.b16 %v1284
    %v5119 = vunpack.c.l.b16 %v1285
    %v5120 = vunpack.c.h.b16 %v1285
    %v5121 = vunpack.c.l.b16 %v1286
    %v5122 = vunpack.c.h.b16 %v1286
    %v5123 = vunpack.c.l.b16 %v1287
    %v5124 = vunpack.c.h.b16 %v1287
    %v5125 = vunpack.c.l.b16 %v1288
    %v5126 = vunpack.c.h.b16 %v1288
    %v5127 = vunpack.c.l.b16 %v1289
    %v5128 = vunpack.c.h.b16 %v1289
    %v5129 = vunpack.c.l.b16 %v1290
    %v5130 = vunpack.c.h.b16 %v1290
    %v5131 = vunpack.c.l.b16 %v1291
    %v5132 = vunpack.c.h.b16 %v1291
    %v5133 = vunpack.c.l.b16 %v1292
    %v5134 = vunpack.c.h.b16 %v1292
    %v5135 = vunpack.c.l.b16 %v1293
    %v5136 = vunpack.c.h.b16 %v1293
    %v5137 = vunpack.c.l.b16 %v1294
    %v5138 = vunpack.c.h.b16 %v1294
    %v5139 = vunpack.c.l.b16 %v1295
    %v5140 = vunpack.c.h.b16 %v1295
    %v5141 = vunpack.c.l.b16 %v1296
    %v5142 = vunpack.c.h.b16 %v1296
    %v5143 = vunpack.c.l.b16 %v1297
    %v5144 = vunpack.c.h.b16 %v1297
    %v5145 = vunpack.c.l.b16 %v1298
    %v5146 = vunpack.c.h.b16 %v1298
    %v5147 = vunpack.c.l.b16 %v1299
    %v5148 = vunpack.c.h.b16 %v1299
    %v5149 = vunpack.c.l.b16 %v1300
    %v5150 = vunpack.c.h.b16 %v1300
    %v5151 = vunpack.c.l.b16 %v1301
    %v5152 = vunpack.c.h.b16 %v1301
    %v5153 = vunpack.c.l.b16 %v1302
    %v5154 = vunpack.c.h.b16 %v1302
    %v5155 = vunpack.c.l.b16 %v1303
    %v5156 = vunpack.c.h.b16 %v1303
    %v5157 = vunpack.c.l.b16 %v1304
    %v5158 = vunpack.c.h.b16 %v1304
    %v5159 = vunpack.c.l.b16 %v1305
    %v5160 = vunpack.c.h.b16 %v1305
    %v5161 = vunpack.c.l.b16 %v1306
    %v5162 = vunpack.c.h.b16 %v1306
    %v5163 = vunpack.c.l.b16 %v1307
    %v5164 = vunpack.c.h.b16 %v1307
    %v5165 = vunpack.c.l.b16 %v1308
    %v5166 = vunpack.c.h.b16 %v1308
    %v5167 = vunpack.c.l.b16 %v1309
    %v5168 = vunpack.c.h.b16 %v1309
    %v5169 = vunpack.c.l.b16 %v1310
    %v5170 = vunpack.c.h.b16 %v1310
    %v5171 = vunpack.c.l.b16 %v1311
    %v5172 = vunpack.c.h.b16 %v1311
    %v5173 = vunpack.c.l.b16 %v1312
    %v5174 = vunpack.c.h.b16 %v1312
    %v5175 = vunpack.c.l.b16 %v1313
    %v5176 = vunpack.c.h.b16 %v1313
    %v5177 = vunpack.c.l.b16 %v1314
    %v5178 = vunpack.c.h.b16 %v1314
    %v5179 = vunpack.c.l.b16 %v1315
    %v5180 = vunpack.c.h.b16 %v1315
    %v5181 = vunpack.c.l.b16 %v1316
    %v5182 = vunpack.c.h.b16 %v1316
    %v5183 = vunpack.c.l.b16 %v1317
    %v5184 = vunpack.c.h.b16 %v1317
    %v5185 = vunpack.c.l.b16 %v1318
    %v5186 = vunpack.c.h.b16 %v1318
    %v5187 = vunpack.c.l.b16 %v1319
    %v5188 = vunpack.c.h.b16 %v1319
    %v5189 = vunpack.c.l.b16 %v1320
    %v5190 = vunpack.c.h.b16 %v1320
    %v5191 = vunpack.c.l.b16 %v1321
    %v5192 = vunpack.c.h.b16 %v1321
    %v5193 = vunpack.c.l.b16 %v1322
    %v5194 = vunpack.c.h.b16 %v1322
    %v5195 = vunpack.c.l.b16 %v1323
    %v5196 = vunpack.c.h.b16 %v1323
    %v5197 = vunpack.c.l.b16 %v1324
    %v5198 = vunpack.c.h.b16 %v1324
    %v5199 = vunpack.c.l.b16 %v1325
    %v5200 = vunpack.c.h.b16 %v1325
    %v5201 = vunpack.c.l.b16 %v1326
    %v5202 = vunpack.c.h.b16 %v1326
    %v5203 = vunpack.c.l.b16 %v1327
    %v5204 = vunpack.c.h.b16 %v1327
    %v5205 = vunpack.c.l.b16 %v1328
    %v5206 = vunpack.c.h.b16 %v1328
    %v5207 = vunpack.c.l.b16 %v1329
    %v5208 = vunpack.c.h.b16 %v1329
    %v5209 = vunpack.c.l.b16 %v1330
    %v5210 = vunpack.c.h.b16 %v1330
    %v5211 = vunpack.c.l.b16 %v1331
    %v5212 = vunpack.c.h.b16 %v1331
    %v5213 = vunpack.c.l.b16 %v1332
    %v5214 = vunpack.c.h.b16 %v1332
    %v5215 = vunpack.c.l.b16 %v1333
    %v5216 = vunpack.c.h.b16 %v1333
    %v5217 = vunpack.c.l.b16 %v1334
    %v5218 = vunpack.c.h.b16 %v1334
    %v5219 = vunpack.c.l.b16 %v1335
    %v5220 = vunpack.c.h.b16 %v1335
    %v5221 = vunpack.c.l.b16 %v1336
    %v5222 = vunpack.c.h.b16 %v1336
    %v5223 = vunpack.c.l.b16 %v1337
    %v5224 = vunpack.c.h.b16 %v1337
    %v5225 = vunpack.c.l.b16 %v1338
    %v5226 = vunpack.c.h.b16 %v1338
    %v5227 = vunpack.c.l.b16 %v1339
    %v5228 = vunpack.c.h.b16 %v1339
    %v5229 = vunpack.c.l.b16 %v1340
    %v5230 = vunpack.c.h.b16 %v1340
    %v5231 = vunpack.c.l.b16 %v1341
    %v5232 = vunpack.c.h.b16 %v1341
    %v5233 = vunpack.c.l.b16 %v1342
    %v5234 = vunpack.c.h.b16 %v1342
    %v5235 = vunpack.c.l.b16 %v1343
    %v5236 = vunpack.c.h.b16 %v1343
    %v5237 = vunpack.c.l.b16 %v1344
    %v5238 = vunpack.c.h.b16 %v1344
    %v5239 = vunpack.c.l.b16 %v1345
    %v5240 = vunpack.c.h.b16 %v1345
    %v5241 = vunpack.c.l.b16 %v1346
    %v5242 = vunpack.c.h.b16 %v1346
    %v5243 = vunpack.c.l.b16 %v1347
    %v5244 = vunpack.c.h.b16 %v1347
    %v5245 = vunpack.c.l.b16 %v1348
    %v5246 = vunpack.c.h.b16 %v1348
    %v5247 = vunpack.c.l.b16 %v1349
    %v5248 = vunpack.c.h.b16 %v1349
    %v5249 = vunpack.c.l.b16 %v1350
    %v5250 = vunpack.c.h.b16 %v1350
    %v5251 = vunpack.c.l.b16 %v1351
    %v5252 = vunpack.c.h.b16 %v1351
    %v5253 = vunpack.c.l.b16 %v1352
    %v5254 = vunpack.c.h.b16 %v1352
    %v5255 = vunpack.c.l.b16 %v1353
    %v5256 = vunpack.c.h.b16 %v1353
    %v5257 = vunpack.c.l.b16 %v1354
    %v5258 = vunpack.c.h.b16 %v1354
    %v5259 = vunpack.c.l.b16 %v1355
    %v5260 = vunpack.c.h.b16 %v1355
    %v5261 = vunpack.c.l.b16 %v1356
    %v5262 = vunpack.c.h.b16 %v1356
    %v5263 = vunpack.c.l.b16 %v1357
    %v5264 = vunpack.c.h.b16 %v1357
    %v5265 = vunpack.c.l.b16 %v1358
    %v5266 = vunpack.c.h.b16 %v1358
    %v5267 = vunpack.c.l.b16 %v1359
    %v5268 = vunpack.c.h.b16 %v1359
    %v5269 = vunpack.c.l.b16 %v1360
    %v5270 = vunpack.c.h.b16 %v1360
    %v5271 = vunpack.c.l.b16 %v1361
    %v5272 = vunpack.c.h.b16 %v1361
    %v5273 = vunpack.c.l.b16 %v1362
    %v5274 = vunpack.c.h.b16 %v1362
    %v5275 = vunpack.c.l.b16 %v1363
    %v5276 = vunpack.c.h.b16 %v1363
    %v5277 = vunpack.c.l.b16 %v1364
    %v5278 = vunpack.c.h.b16 %v1364
    %v5279 = vunpack.c.l.b16 %v1365
    %v5280 = vunpack.c.h.b16 %v1365
    %v5281 = vunpack.c.l.b16 %v1366
    %v5282 = vunpack.c.h.b16 %v1366
    %v5283 = vunpack.c.l.b16 %v1367
    %v5284 = vunpack.c.h.b16 %v1367
    %v5285 = vunpack.c.l.b16 %v1368
    %v5286 = vunpack.c.h.b16 %v1368
    %v5287 = vunpack.c.l.b16 %v1369
    %v5288 = vunpack.c.h.b16 %v1369
    %v5289 = vunpack.c.l.b16 %v1370
    %v5290 = vunpack.c.h.b16 %v1370
    %v5291 = vunpack.c.l.b16 %v1371
    %v5292 = vunpack.c.h.b16 %v1371
    %v5293 = vunpack.c.l.b16 %v1372
    %v5294 = vunpack.c.h.b16 %v1372
    %v5295 = vunpack.c.l.b16 %v1373
    %v5296 = vunpack.c.h.b16 %v1373
    %v5297 = vunpack.c.l.b16 %v1374
    %v5298 = vunpack.c.h.b16 %v1374
    %v5299 = vunpack.c.l.b16 %v1375
    %v5300 = vunpack.c.h.b16 %v1375
    %v5301 = vunpack.c.l.b16 %v1376
    %v5302 = vunpack.c.h.b16 %v1376
    %v5303 = vunpack.c.l.b16 %v1377
    %v5304 = vunpack.c.h.b16 %v1377
    %v5305 = vunpack.c.l.b16 %v1378
    %v5306 = vunpack.c.h.b16 %v1378
    %v5307 = vunpack.c.l.b16 %v1379
    %v5308 = vunpack.c.h.b16 %v1379
    %v5309 = vunpack.c.l.b16 %v1380
    %v5310 = vunpack.c.h.b16 %v1380
    %v5311 = vunpack.c.l.b16 %v1381
    %v5312 = vunpack.c.h.b16 %v1381
    %v5313 = vunpack.c.l.b16 %v1382
    %v5314 = vunpack.c.h.b16 %v1382
    %v5315 = vunpack.c.l.b16 %v1383
    %v5316 = vunpack.c.h.b16 %v1383
    %v5317 = vunpack.c.l.b16 %v1384
    %v5318 = vunpack.c.h.b16 %v1384
    %v5319 = vunpack.c.l.b16 %v1385
    %v5320 = vunpack.c.h.b16 %v1385
    %v5321 = vunpack.c.l.b16 %v1386
    %v5322 = vunpack.c.h.b16 %v1386
    %v5323 = vunpack.c.l.b16 %v1387
    %v5324 = vunpack.c.h.b16 %v1387
    %v5325 = vunpack.c.l.b16 %v1388
    %v5326 = vunpack.c.h.b16 %v1388
    %v5327 = vunpack.c.l.b16 %v1389
    %v5328 = vunpack.c.h.b16 %v1389
    %v5329 = vunpack.c.l.b16 %v1390
    %v5330 = vunpack.c.h.b16 %v1390
    %v5331 = vunpack.c.l.b16 %v1391
    %v5332 = vunpack.c.h.b16 %v1391
    %v5333 = vunpack.c.l.b16 %v1392
    %v5334 = vunpack.c.h.b16 %v1392
    %v5335 = vunpack.c.l.b16 %v1393
    %v5336 = vunpack.c.h.b16 %v1393
    %v5337 = vunpack.c.l.b16 %v1394
    %v5338 = vunpack.c.h.b16 %v1394
    %v5339 = vunpack.c.l.b16 %v1395
    %v5340 = vunpack.c.h.b16 %v1395
    %v5341 = vunpack.c.l.b16 %v1396
    %v5342 = vunpack.c.h.b16 %v1396
    %v5343 = vunpack.c.l.b16 %v1397
    %v5344 = vunpack.c.h.b16 %v1397
    %v5345 = vunpack.c.l.b16 %v1398
    %v5346 = vunpack.c.h.b16 %v1398
    %v5347 = vunpack.c.l.b16 %v1399
    %v5348 = vunpack.c.h.b16 %v1399
    %v5349 = vunpack.c.l.b16 %v1400
    %v5350 = vunpack.c.h.b16 %v1400
    %v5351 = vunpack.c.l.b16 %v1401
    %v5352 = vunpack.c.h.b16 %v1401
    %v5353 = vunpack.c.l.b16 %v1402
    %v5354 = vunpack.c.h.b16 %v1402
    %v5355 = vunpack.c.l.b16 %v1403
    %v5356 = vunpack.c.h.b16 %v1403
    %v5357 = vunpack.c.l.b16 %v1404
    %v5358 = vunpack.c.h.b16 %v1404
    %v5359 = vunpack.c.l.b16 %v1405
    %v5360 = vunpack.c.h.b16 %v1405
    %v5361 = vunpack.c.l.b16 %v1406
    %v5362 = vunpack.c.h.b16 %v1406
    %v5363 = vunpack.c.l.b16 %v1407
    %v5364 = vunpack.c.h.b16 %v1407
    %v5365 = vunpack.c.l.b16 %v1408
    %v5366 = vunpack.c.h.b16 %v1408
    %v5367 = vunpack.c.l.b16 %v1409
    %v5368 = vunpack.c.h.b16 %v1409
    %v5369 = vunpack.c.l.b16 %v1410
    %v5370 = vunpack.c.h.b16 %v1410
    %v5371 = vunpack.c.l.b16 %v1411
    %v5372 = vunpack.c.h.b16 %v1411
    %v5373 = vunpack.c.l.b16 %v1412
    %v5374 = vunpack.c.h.b16 %v1412
    %v5375 = vunpack.c.l.b16 %v1413
    %v5376 = vunpack.c.h.b16 %v1413
    %v5377 = vunpack.c.l.b16 %v1414
    %v5378 = vunpack.c.h.b16 %v1414
    %v5379 = vunpack.c.l.b16 %v1415
    %v5380 = vunpack.c.h.b16 %v1415
    %v5381 = vunpack.c.l.b16 %v1416
    %v5382 = vunpack.c.h.b16 %v1416
    %v5383 = vunpack.c.l.b16 %v1417
    %v5384 = vunpack.c.h.b16 %v1417
    %v5385 = vunpack.c.l.b16 %v1418
    %v5386 = vunpack.c.h.b16 %v1418
    %v5387 = vunpack.c.l.b16 %v1419
    %v5388 = vunpack.c.h.b16 %v1419
    %v5389 = vunpack.c.l.b16 %v1420
    %v5390 = vunpack.c.h.b16 %v1420
    %v5391 = vunpack.c.l.b16 %v1421
    %v5392 = vunpack.c.h.b16 %v1421
    %v5393 = vunpack.c.l.b16 %v1422
    %v5394 = vunpack.c.h.b16 %v1422
    %v5395 = vunpack.c.l.b16 %v1423
    %v5396 = vunpack.c.h.b16 %v1423
    %v5397 = vunpack.c.l.b16 %v1424
    %v5398 = vunpack.c.h.b16 %v1424
    %v5399 = vunpack.c.l.b16 %v1425
    %v5400 = vunpack.c.h.b16 %v1425
    %v5401 = vunpack.c.l.b16 %v1426
    %v5402 = vunpack.c.h.b16 %v1426
    %v5403 = vunpack.c.l.b16 %v1427
    %v5404 = vunpack.c.h.b16 %v1427
    %v5405 = vunpack.c.l.b16 %v1428
    %v5406 = vunpack.c.h.b16 %v1428
    %v5407 = vunpack.c.l.b16 %v1429
    %v5408 = vunpack.c.h.b16 %v1429
    %v5409 = vunpack.c.l.b16 %v1430
    %v5410 = vunpack.c.h.b16 %v1430
    %v5411 = vunpack.c.l.b16 %v1431
    %v5412 = vunpack.c.h.b16 %v1431
    %v5413 = vunpack.c.l.b16 %v1432
    %v5414 = vunpack.c.h.b16 %v1432
    %v5415 = vunpack.c.l.b16 %v1433
    %v5416 = vunpack.c.h.b16 %v1433
    %v5417 = vunpack.c.l.b16 %v1434
    %v5418 = vunpack.c.h.b16 %v1434
    %v5419 = vunpack.c.l.b16 %v1435
    %v5420 = vunpack.c.h.b16 %v1435
    %v5421 = vunpack.c.l.b16 %v1436
    %v5422 = vunpack.c.h.b16 %v1436
    %v5423 = vunpack.c.l.b16 %v1437
    %v5424 = vunpack.c.h.b16 %v1437
    %v5425 = vunpack.c.l.b16 %v1438
    %v5426 = vunpack.c.h.b16 %v1438
    %v5427 = vunpack.c.l.b16 %v1439
    %v5428 = vunpack.c.h.b16 %v1439
    %v5429 = vunpack.c.l.b16 %v1440
    %v5430 = vunpack.c.h.b16 %v1440
    %v5431 = vunpack.c.l.b16 %v1441
    %v5432 = vunpack.c.h.b16 %v1441
    %v5433 = vunpack.c.l.b16 %v1442
    %v5434 = vunpack.c.h.b16 %v1442
    %v5435 = vunpack.c.l.b16 %v1443
    %v5436 = vunpack.c.h.b16 %v1443
    %v5437 = vunpack.c.l.b16 %v1444
    %v5438 = vunpack.c.h.b16 %v1444
    %v5439 = vunpack.c.l.b16 %v1445
    %v5440 = vunpack.c.h.b16 %v1445
    %v5441 = vunpack.c.l.b16 %v1446
    %v5442 = vunpack.c.h.b16 %v1446
    %v5443 = vunpack.c.l.b16 %v1447
    %v5444 = vunpack.c.h.b16 %v1447
    %v5445 = vunpack.c.l.b16 %v1448
    %v5446 = vunpack.c.h.b16 %v1448
    %v5447 = vunpack.c.l.b16 %v1449
    %v5448 = vunpack.c.h.b16 %v1449
    %v5449 = vunpack.c.l.b16 %v1450
    %v5450 = vunpack.c.h.b16 %v1450
    %v5451 = vunpack.c.l.b16 %v1451
    %v5452 = vunpack.c.h.b16 %v1451
    %v5453 = vunpack.c.l.b16 %v1452
    %v5454 = vunpack.c.h.b16 %v1452
    %v5455 = vunpack.c.l.b16 %v1453
    %v5456 = vunpack.c.h.b16 %v1453
    %v5457 = vunpack.c.l.b16 %v1454
    %v5458 = vunpack.c.h.b16 %v1454
    %v5459 = vunpack.c.l.b16 %v1455
    %v5460 = vunpack.c.h.b16 %v1455
    %v5461 = vunpack.c.l.b16 %v1456
    %v5462 = vunpack.c.h.b16 %v1456
    %v5463 = vunpack.c.l.b16 %v1457
    %v5464 = vunpack.c.h.b16 %v1457
    %v5465 = vunpack.c.l.b16 %v1458
    %v5466 = vunpack.c.h.b16 %v1458
    %v5467 = vunpack.c.l.b16 %v1459
    %v5468 = vunpack.c.h.b16 %v1459
    %v5469 = vunpack.c.l.b16 %v1460
    %v5470 = vunpack.c.h.b16 %v1460
    %v5471 = vunpack.c.l.b16 %v1461
    %v5472 = vunpack.c.h.b16 %v1461
    %v5473 = vunpack.c.l.b16 %v1462
    %v5474 = vunpack.c.h.b16 %v1462
    %v5475 = vunpack.c.l.b16 %v1463
    %v5476 = vunpack.c.h.b16 %v1463
    %v5477 = vunpack.c.l.b16 %v1464
    %v5478 = vunpack.c.h.b16 %v1464
    %v5479 = vunpack.c.l.b16 %v1465
    %v5480 = vunpack.c.h.b16 %v1465
    %v5481 = vunpack.c.l.b16 %v1466
    %v5482 = vunpack.c.h.b16 %v1466
    %v5483 = vunpack.c.l.b16 %v1467
    %v5484 = vunpack.c.h.b16 %v1467
    %v5485 = vunpack.c.l.b16 %v1468
    %v5486 = vunpack.c.h.b16 %v1468
    %v5487 = vunpack.c.l.b16 %v1469
    %v5488 = vunpack.c.h.b16 %v1469
    %v5489 = vunpack.c.l.b16 %v1470
    %v5490 = vunpack.c.h.b16 %v1470
    %v5491 = vunpack.c.l.b16 %v1471
    %v5492 = vunpack.c.h.b16 %v1471
    %v5493 = vunpack.c.l.b16 %v1472
    %v5494 = vunpack.c.h.b16 %v1472
    %v5495 = vunpack.c.l.b16 %v1473
    %v5496 = vunpack.c.h.b16 %v1473
    %v5497 = vunpack.c.l.b16 %v1474
    %v5498 = vunpack.c.h.b16 %v1474
    %v5499 = vunpack.c.l.b16 %v1475
    %v5500 = vunpack.c.h.b16 %v1475
    %v5501 = vunpack.c.l.b16 %v1476
    %v5502 = vunpack.c.h.b16 %v1476
    %v5503 = vunpack.c.l.b16 %v1477
    %v5504 = vunpack.c.h.b16 %v1477
    %v5505 = vunpack.c.l.b16 %v1478
    %v5506 = vunpack.c.h.b16 %v1478
    %v5507 = vunpack.c.l.b16 %v1479
    %v5508 = vunpack.c.h.b16 %v1479
    %v5509 = vunpack.c.l.b16 %v1480
    %v5510 = vunpack.c.h.b16 %v1480
    %v5511 = vunpack.c.l.b16 %v1481
    %v5512 = vunpack.c.h.b16 %v1481
    %v5513 = vunpack.c.l.b16 %v1482
    %v5514 = vunpack.c.h.b16 %v1482
    %v5515 = vunpack.c.l.b16 %v1483
    %v5516 = vunpack.c.h.b16 %v1483
    %v5517 = vunpack.c.l.b16 %v1484
    %v5518 = vunpack.c.h.b16 %v1484
    %v5519 = vunpack.c.l.b16 %v1485
    %v5520 = vunpack.c.h.b16 %v1485
    %v5521 = vunpack.c.l.b16 %v1486
    %v5522 = vunpack.c.h.b16 %v1486
    %v5523 = vunpack.c.l.b16 %v1487
    %v5524 = vunpack.c.h.b16 %v1487
    %v5525 = vunpack.c.l.b16 %v1488
    %v5526 = vunpack.c.h.b16 %v1488
    %v5527 = vunpack.c.l.b16 %v1489
    %v5528 = vunpack.c.h.b16 %v1489
    %v5529 = vunpack.c.l.b16 %v1490
    %v5530 = vunpack.c.h.b16 %v1490
    %v5531 = vunpack.c.l.b16 %v1491
    %v5532 = vunpack.c.h.b16 %v1491
    %v5533 = vunpack.c.l.b16 %v1492
    %v5534 = vunpack.c.h.b16 %v1492
    %v5535 = vunpack.c.l.b16 %v1493
    %v5536 = vunpack.c.h.b16 %v1493
    %v5537 = vunpack.c.l.b16 %v1494
    %v5538 = vunpack.c.h.b16 %v1494
    %v5539 = vunpack.c.l.b16 %v1495
    %v5540 = vunpack.c.h.b16 %v1495
    %v5541 = vunpack.c.l.b16 %v1496
    %v5542 = vunpack.c.h.b16 %v1496
    %v5543 = vunpack.c.l.b16 %v1497
    %v5544 = vunpack.c.h.b16 %v1497
    %v5545 = vunpack.c.l.b16 %v1498
    %v5546 = vunpack.c.h.b16 %v1498
    %v5547 = vunpack.c.l.b16 %v1499
    %v5548 = vunpack.c.h.b16 %v1499
    %v5549 = vunpack.c.l.b16 %v1500
    %v5550 = vunpack.c.h.b16 %v1500
    %v5551 = vunpack.c.l.b16 %v1501
    %v5552 = vunpack.c.h.b16 %v1501
    %v5553 = vunpack.c.l.b16 %v1502
    %v5554 = vunpack.c.h.b16 %v1502
    %v5555 = vunpack.c.l.b16 %v1503
    %v5556 = vunpack.c.h.b16 %v1503
    %v5557 = vunpack.c.l.b16 %v1504
    %v5558 = vunpack.c.h.b16 %v1504
    %v5559 = vunpack.c.l.b16 %v1505
    %v5560 = vunpack.c.h.b16 %v1505
    %v5561 = vunpack.c.l.b16 %v1506
    %v5562 = vunpack.c.h.b16 %v1506
    %v5563 = vunpack.c.l.b16 %v1507
    %v5564 = vunpack.c.h.b16 %v1507
    %v5565 = vunpack.c.l.b16 %v1508
    %v5566 = vunpack.c.h.b16 %v1508
    %v5567 = vunpack.c.l.b16 %v1509
    %v5568 = vunpack.c.h.b16 %v1509
    %v5569 = vunpack.c.l.b16 %v1510
    %v5570 = vunpack.c.h.b16 %v1510
    %v5571 = vunpack.c.l.b16 %v1511
    %v5572 = vunpack.c.h.b16 %v1511
    %v5573 = vunpack.c.l.b16 %v1512
    %v5574 = vunpack.c.h.b16 %v1512
    %v5575 = vunpack.c.l.b16 %v1513
    %v5576 = vunpack.c.h.b16 %v1513
    %v5577 = vunpack.c.l.b16 %v1514
    %v5578 = vunpack.c.h.b16 %v1514
    %v5579 = vunpack.c.l.b16 %v1515
    %v5580 = vunpack.c.h.b16 %v1515
    %v5581 = vunpack.c.l.b16 %v1516
    %v5582 = vunpack.c.h.b16 %v1516
    %v5583 = vunpack.c.l.b16 %v1517
    %v5584 = vunpack.c.h.b16 %v1517
    %v5585 = vunpack.c.l.b16 %v1518
    %v5586 = vunpack.c.h.b16 %v1518
    %v5587 = vunpack.c.l.b16 %v1519
    %v5588 = vunpack.c.h.b16 %v1519
    %v5589 = vunpack.c.l.b16 %v1520
    %v5590 = vunpack.c.h.b16 %v1520
    %v5591 = vunpack.c.l.b16 %v1521
    %v5592 = vunpack.c.h.b16 %v1521
    %v5593 = vunpack.c.l.b16 %v1522
    %v5594 = vunpack.c.h.b16 %v1522
    %v5595 = vunpack.c.l.b16 %v1523
    %v5596 = vunpack.c.h.b16 %v1523
    %v5597 = vunpack.c.l.b16 %v1524
    %v5598 = vunpack.c.h.b16 %v1524
    %v5599 = vunpack.c.l.b16 %v1525
    %v5600 = vunpack.c.h.b16 %v1525
    %v5601 = vunpack.c.l.b16 %v1526
    %v5602 = vunpack.c.h.b16 %v1526
    %v5603 = vunpack.c.l.b16 %v1527
    %v5604 = vunpack.c.h.b16 %v1527
    %v5605 = vunpack.c.l.b16 %v1528
    %v5606 = vunpack.c.h.b16 %v1528
    %v5607 = vunpack.c.l.b16 %v1529
    %v5608 = vunpack.c.h.b16 %v1529
    %v5609 = vunpack.c.l.b16 %v1530
    %v5610 = vunpack.c.h.b16 %v1530
    %v5611 = vunpack.c.l.b16 %v1531
    %v5612 = vunpack.c.h.b16 %v1531
    %v5613 = vunpack.c.l.b16 %v1532
    %v5614 = vunpack.c.h.b16 %v1532
    %v5615 = vunpack.c.l.b16 %v1533
    %v5616 = vunpack.c.h.b16 %v1533
    %v5617 = vunpack.c.l.b16 %v1534
    %v5618 = vunpack.c.h.b16 %v1534
    %v5619 = vunpack.c.l.b16 %v1535
    %v5620 = vunpack.c.h.b16 %v1535
    %v5621 = vunpack.c.l.b16 %v1536
    %v5622 = vunpack.c.h.b16 %v1536
    %v5623 = vunpack.c.l.b16 %v1537
    %v5624 = vunpack.c.h.b16 %v1537
    %v5625 = vunpack.c.l.b16 %v1538
    %v5626 = vunpack.c.h.b16 %v1538
    %v5627 = vunpack.c.l.b16 %v1539
    %v5628 = vunpack.c.h.b16 %v1539
    %v5629 = vunpack.c.l.b16 %v1540
    %v5630 = vunpack.c.h.b16 %v1540
    %v5631 = vunpack.c.l.b16 %v1541
    %v5632 = vunpack.c.h.b16 %v1541
    %v5633 = vunpack.c.l.b16 %v1542
    %v5634 = vunpack.c.h.b16 %v1542
    %v5635 = vunpack.c.l.b16 %v1543
    %v5636 = vunpack.c.h.b16 %v1543
    %v5637 = vunpack.c.l.b16 %v1544
    %v5638 = vunpack.c.h.b16 %v1544
    %v5639 = vunpack.c.l.b16 %v1545
    %v5640 = vunpack.c.h.b16 %v1545
    %v5641 = vunpack.c.l.b16 %v1546
    %v5642 = vunpack.c.h.b16 %v1546
    %v5643 = vunpack.c.l.b16 %v1547
    %v5644 = vunpack.c.h.b16 %v1547
    %v5645 = vunpack.c.l.b16 %v1548
    %v5646 = vunpack.c.h.b16 %v1548
    %v5647 = vunpack.c.l.b16 %v1549
    %v5648 = vunpack.c.h.b16 %v1549
    %v5649 = vunpack.c.l.b16 %v1550
    %v5650 = vunpack.c.h.b16 %v1550
    %v5651 = vunpack.c.l.b16 %v1551
    %v5652 = vunpack.c.h.b16 %v1551
    %v5653 = vunpack.c.l.b16 %v1552
    %v5654 = vunpack.c.h.b16 %v1552
    %v5655 = vunpack.c.l.b16 %v1553
    %v5656 = vunpack.c.h.b16 %v1553
    %v5657 = vunpack.c.l.b16 %v1554
    %v5658 = vunpack.c.h.b16 %v1554
    %v5659 = vpack.c.b16 %v2969, %v2959
    %v5660 = vpack.c.b16 %v2970, %v2960
    %v5661 = vpack.c.b16 %v2971, %v2961
    %v5662 = vpack.c.b16 %v2972, %v2962
    %v5663 = vpack.c.b16 %v2973, %v2963
    %v5664 = vpack.c.b16 %v2974, %v2964
    %v5665 = vpack.c.b16 %v2975, %v2965
    %v5666 = vpack.c.b16 %v2976, %v2966
    %v5667 = vpack.c.b16 %v2977, %v2967
    %v5668 = vpack.c.b16 %v2978, %v2968
    %v5669 = vpack.c.b16 %v2989, %v2979
    %v5670 = vpack.c.b16 %v2990, %v2980
    %v5671 = vpack.c.b16 %v2991, %v2981
    %v5672 = vpack.c.b16 %v2992, %v2982
    %v5673 = vpack.c.b16 %v2993, %v2983
    %v5674 = vpack.c.b16 %v2994, %v2984
    %v5675 = vpack.c.b16 %v2995, %v2985
    %v5676 = vpack.c.b16 %v2996, %v2986
    %v5677 = vpack.c.b16 %v2997, %v2987
    %v5678 = vpack.c.b16 %v2998, %v2988
    %v5679 = vpack.c.b16 %v3009, %v2999
    %v5680 = vpack.c.b16 %v3010, %v3000
    %v5681 = vpack.c.b16 %v3011, %v3001
    %v5682 = vpack.c.b16 %v3012, %v3002
    %v5683 = vpack.c.b16 %v3013, %v3003
    %v5684 = vpack.c.b16 %v3014, %v3004
    %v5685 = vpack.c.b16 %v3015, %v3005
    %v5686 = vpack.c.b16 %v3016, %v3006
    %v5687 = vpack.c.b16 %v3017, %v3007
    %v5688 = vpack.c.b16 %v3018, %v3008
    %v5689 = vpack.c.b16 %v3029, %v3019
    %v5690 = vpack.c.b16 %v3030, %v3020
    %v5691 = vpack.c.b16 %v3031, %v3021
    %v5692 = vpack.c.b16 %v3032, %v3022
    %v5693 = vpack.c.b16 %v3033, %v3023
    %v5694 = vpack.c.b16 %v3034, %v3024
    %v5695 = vpack.c.b16 %v3035, %v3025
    %v5696 = vpack.c.b16 %v3036, %v3026
    %v5697 = vpack.c.b16 %v3037, %v3027
    %v5698 = vpack.c.b16 %v3038, %v3028
    %v5699 = vpack.c.b16 %v3049, %v3039
    %v5700 = vpack.c.b16 %v3050, %v3040
    %v5701 = vpack.c.b16 %v3051, %v3041
    %v5702 = vpack.c.b16 %v3052, %v3042
    %v5703 = vpack.c.b16 %v3053, %v3043
    %v5704 = vpack.c.b16 %v3054, %v3044
    %v5705 = vpack.c.b16 %v3055, %v3045
    %v5706 = vpack.c.b16 %v3056, %v3046
    %v5707 = vpack.c.b16 %v3057, %v3047
    %v5708 = vpack.c.b16 %v3058, %v3048
    %v5709 = vpack.c.b16 %v3069, %v3059
    %v5710 = vpack.c.b16 %v3070, %v3060
    %v5711 = vpack.c.b16 %v3071, %v3061
    %v5712 = vpack.c.b16 %v3072, %v3062
    %v5713 = vpack.c.b16 %v3073, %v3063
    %v5714 = vpack.c.b16 %v3074, %v3064
    %v5715 = vpack.c.b16 %v3075, %v3065
    %v5716 = vpack.c.b16 %v3076, %v3066
    %v5717 = vpack.c.b16 %v3077, %v3067
    %v5718 = vpack.c.b16 %v3078, %v3068
    %v5719 = vpack.c.b16 %v3089, %v3079
    %v5720 = vpack.c.b16 %v3090, %v3080
    %v5721 = vpack.c.b16 %v3091, %v3081
    %v5722 = vpack.c.b16 %v3092, %v3082
    %v5723 = vpack.c.b16 %v3093, %v3083
    %v5724 = vpack.c.b16 %v3094, %v3084
    %v5725 = vpack.c.b16 %v3095, %v3085
    %v5726 = vpack.c.b16 %v3096, %v3086
    %v5727 = vpack.c.b16 %v3097, %v3087
    %v5728 = vpack.c.b16 %v3098, %v3088
    %v5729 = vpack.c.b16 %v3109, %v3099
    %v5730 = vpack.c.b16 %v3110, %v3100
    %v5731 = vpack.c.b16 %v3111, %v3101
    %v5732 = vpack.c.b16 %v3112, %v3102
    %v5733 = vpack.c.b16 %v3113, %v3103
    %v5734 = vpack.c.b16 %v3114, %v3104
    %v5735 = vpack.c.b16 %v3115, %v3105
    %v5736 = vpack.c.b16 %v3116, %v3106
    %v5737 = vpack.c.b16 %v3117, %v3107
    %v5738 = vpack.c.b16 %v3118, %v3108
    %v5739 = vpack.c.b16 %v3129, %v3119
    %v5740 = vpack.c.b16 %v3130, %v3120
    %v5741 = vpack.c.b16 %v3131, %v3121
    %v5742 = vpack.c.b16 %v3132, %v3122
    %v5743 = vpack.c.b16 %v3133, %v3123
    %v5744 = vpack.c.b16 %v3134, %v3124
    %v5745 = vpack.c.b16 %v3135, %v3125
    %v5746 = vpack.c.b16 %v3136, %v3126
    %v5747 = vpack.c.b16 %v3137, %v3127
    %v5748 = vpack.c.b16 %v3138, %v3128
    %v5749 = vpack.c.b16 %v3149, %v3139
    %v5750 = vpack.c.b16 %v3150, %v3140
    %v5751 = vpack.c.b16 %v3151, %v3141
    %v5752 = vpack.c.b16 %v3152, %v3142
    %v5753 = vpack.c.b16 %v3153, %v3143
    %v5754 = vpack.c.b16 %v3154, %v3144
    %v5755 = vpack.c.b16 %v3155, %v3145
    %v5756 = vpack.c.b16 %v3156, %v3146
    %v5757 = vpack.c.b16 %v3157, %v3147
    %v5758 = vpack.c.b16 %v3158, %v3148
    %v5759 = vpack.c.b16 %v3169, %v3159
    %v5760 = vpack.c.b16 %v3170, %v3160
    %v5761 = vpack.c.b16 %v3171, %v3161
    %v5762 = vpack.c.b16 %v3172, %v3162
    %v5763 = vpack.c.b16 %v3173, %v3163
    %v5764 = vpack.c.b16 %v3174, %v3164
    %v5765 = vpack.c.b16 %v3175, %v3165
    %v5766 = vpack.c.b16 %v3176, %v3166
    %v5767 = vpack.c.b16 %v3177, %v3167
    %v5768 = vpack.c.b16 %v3178, %v3168
    %v5769 = vpack.c.b16 %v3189, %v3179
    %v5770 = vpack.c.b16 %v3190, %v3180
    %v5771 = vpack.c.b16 %v3191, %v3181
    %v5772 = vpack.c.b16 %v3192, %v3182
    %v5773 = vpack.c.b16 %v3193, %v3183
    %v5774 = vpack.c.b16 %v3194, %v3184
    %v5775 = vpack.c.b16 %v3195, %v3185
    %v5776 = vpack.c.b16 %v3196, %v3186
    %v5777 = vpack.c.b16 %v3197, %v3187
    %v5778 = vpack.c.b16 %v3198, %v3188
    %v5779 = vpack.c.b16 %v3209, %v3199
    %v5780 = vpack.c.b16 %v3210, %v3200
    %v5781 = vpack.c.b16 %v3211, %v3201
    %v5782 = vpack.c.b16 %v3212, %v3202
    %v5783 = vpack.c.b16 %v3213, %v3203
    %v5784 = vpack.c.b16 %v3214, %v3204
    %v5785 = vpack.c.b16 %v3215, %v3205
    %v5786 = vpack.c.b16 %v3216, %v3206
    %v5787 = vpack.c.b16 %v3217, %v3207
    %v5788 = vpack.c.b16 %v3218, %v3208
    %v5789 = vpack.c.b16 %v3229, %v3219
    %v5790 = vpack.c.b16 %v3230, %v3220
    %v5791 = vpack.c.b16 %v3231, %v3221
    %v5792 = vpack.c.b16 %v3232, %v3222
    %v5793 = vpack.c.b16 %v3233, %v3223
    %v5794 = vpack.c.b16 %v3234, %v3224
    %v5795 = vpack.c.b16 %v3235, %v3225
    %v5796 = vpack.c.b16 %v3236, %v3226
    %v5797 = vpack.c.b16 %v3237, %v3227
    %v5798 = vpack.c.b16 %v3238, %v3228
    %v5799 = vpack.c.b16 %v3249, %v3239
    %v5800 = vpack.c.b16 %v3250, %v3240
    %v5801 = vpack.c.b16 %v3251, %v3241
    %v5802 = vpack.c.b16 %v3252, %v3242
    %v5803 = vpack.c.b16 %v3253, %v3243
    %v5804 = vpack.c.b16 %v3254, %v3244
    %v5805 = vpack.c.b16 %v3255, %v3245
    %v5806 = vpack.c.b16 %v3256, %v3246
    %v5807 = vpack.c.b16 %v3257, %v3247
    %v5808 = vpack.c.b16 %v3258, %v3248
    %v5809 = vpack.c.b16 %v3269, %v3259
    %v5810 = vpack.c.b16 %v3270, %v3260
    %v5811 = vpack.c.b16 %v3271, %v3261
    %v5812 = vpack.c.b16 %v3272, %v3262
    %v5813 = vpack.c.b16 %v3273, %v3263
    %v5814 = vpack.c.b16 %v3274, %v3264
    %v5815 = vpack.c.b16 %v3275, %v3265
    %v5816 = vpack.c.b16 %v3276, %v3266
    %v5817 = vpack.c.b16 %v3277, %v3267
    %v5818 = vpack.c.b16 %v3278, %v3268
    %v5819 = vpack.c.b16 %v3289, %v3279
    %v5820 = vpack.c.b16 %v3290, %v3280
    %v5821 = vpack.c.b16 %v3291, %v3281
    %v5822 = vpack.c.b16 %v3292, %v3282
    %v5823 = vpack.c.b16 %v3293, %v3283
    %v5824 = vpack.c.b16 %v3294, %v3284
    %v5825 = vpack.c.b16 %v3295, %v3285
    %v5826 = vpack.c.b16 %v3296, %v3286
    %v5827 = vpack.c.b16 %v3297, %v3287
    %v5828 = vpack.c.b16 %v3298, %v3288
    %v5829 = vpack.c.b16 %v3309, %v3299
    %v5830 = vpack.c.b16 %v3310, %v3300
    %v5831 = vpack.c.b16 %v3311, %v3301
    %v5832 = vpack.c.b16 %v3312, %v3302
    %v5833 = vpack.c.b16 %v3313, %v3303
    %v5834 = vpack.c.b16 %v3314, %v3304
    %v5835 = vpack.c.b16 %v3315, %v3305
    %v5836 = vpack.c.b16 %v3316, %v3306
    %v5837 = vpack.c.b16 %v3317, %v3307
    %v5838 = vpack.c.b16 %v3318, %v3308
    %v5839 = vpack.c.b16 %v3329, %v3319
    %v5840 = vpack.c.b16 %v3330, %v3320
    %v5841 = vpack.c.b16 %v3331, %v3321
    %v5842 = vpack.c.b16 %v3332, %v3322
    %v5843 = vpack.c.b16 %v3333, %v3323
    %v5844 = vpack.c.b16 %v3334, %v3324
    %v5845 = vpack.c.b16 %v3335, %v3325
    %v5846 = vpack.c.b16 %v3336, %v3326
    %v5847 = vpack.c.b16 %v3337, %v3327
    %v5848 = vpack.c.b16 %v3338, %v3328
    %v5849 = vpack.c.b16 %v3349, %v3339
    %v5850 = vpack.c.b16 %v3350, %v3340
    %v5851 = vpack.c.b16 %v3351, %v3341
    %v5852 = vpack.c.b16 %v3352, %v3342
    %v5853 = vpack.c.b16 %v3353, %v3343
    %v5854 = vpack.c.b16 %v3354, %v3344
    %v5855 = vpack.c.b16 %v3355, %v3345
    %v5856 = vpack.c.b16 %v3356, %v3346
    %v5857 = vpack.c.b16 %v3357, %v3347
    %v5858 = vpack.c.b16 %v3358, %v3348
    %v5859 = vpack.c.b16 %v3369, %v3359
    %v5860 = vpack.c.b16 %v3370, %v3360
    %v5861 = vpack.c.b16 %v3371, %v3361
    %v5862 = vpack.c.b16 %v3372, %v3362
    %v5863 = vpack.c.b16 %v3373, %v3363
    %v5864 = vpack.c.b16 %v3374, %v3364
    %v5865 = vpack.c.b16 %v3375, %v3365
    %v5866 = vpack.c.b16 %v3376, %v3366
    %v5867 = vpack.c.b16 %v3377, %v3367
    %v5868 = vpack.c.b16 %v3378, %v3368
    %v5869 = vpack.c.b16 %v3389, %v3379
    %v5870 = vpack.c.b16 %v3390, %v3380
    %v5871 = vpack.c.b16 %v3391, %v3381
    %v5872 = vpack.c.b16 %v3392, %v3382
    %v5873 = vpack.c.b16 %v3393, %v3383
    %v5874 = vpack.c.b16 %v3394, %v3384
    %v5875 = vpack.c.b16 %v3395, %v3385
    %v5876 = vpack.c.b16 %v3396, %v3386
    %v5877 = vpack.c.b16 %v3397, %v3387
    %v5878 = vpack.c.b16 %v3398, %v3388
    %v5879 = vpack.c.b16 %v3409, %v3399
    %v5880 = vpack.c.b16 %v3410, %v3400
    %v5881 = vpack.c.b16 %v3411, %v3401
    %v5882 = vpack.c.b16 %v3412, %v3402
    %v5883 = vpack.c.b16 %v3413, %v3403
    %v5884 = vpack.c.b16 %v3414, %v3404
    %v5885 = vpack.c.b16 %v3415, %v3405
    %v5886 = vpack.c.b16 %v3416, %v3406
    %v5887 = vpack.c.b16 %v3417, %v3407
    %v5888 = vpack.c.b16 %v3418, %v3408
    %v5889 = vpack.c.b16 %v3429, %v3419
    %v5890 = vpack.c.b16 %v3430, %v3420
    %v5891 = vpack.c.b16 %v3431, %v3421
    %v5892 = vpack.c.b16 %v3432, %v3422
    %v5893 = vpack.c.b16 %v3433, %v3423
    %v5894 = vpack.c.b16 %v3434, %v3424
    %v5895 = vpack.c.b16 %v3435, %v3425
    %v5896 = vpack.c.b16 %v3436, %v3426
    %v5897 = vpack.c.b16 %v3437, %v3427
    %v5898 = vpack.c.b16 %v3438, %v3428
    %v5899 = vpack.c.b16 %v3449, %v3439
    %v5900 = vpack.c.b16 %v3450, %v3440
    %v5901 = vpack.c.b16 %v3451, %v3441
    %v5902 = vpack.c.b16 %v3452, %v3442
    %v5903 = vpack.c.b16 %v3453, %v3443
    %v5904 = vpack.c.b16 %v3454, %v3444
    %v5905 = vpack.c.b16 %v3455, %v3445
    %v5906 = vpack.c.b16 %v3456, %v3446
    %v5907 = vpack.c.b16 %v3457, %v3447
    %v5908 = vpack.c.b16 %v3458, %v3448
    %v5909 = vpack.c.b16 %v3469, %v3459
    %v5910 = vpack.c.b16 %v3470, %v3460
    %v5911 = vpack.c.b16 %v3471, %v3461
    %v5912 = vpack.c.b16 %v3472, %v3462
    %v5913 = vpack.c.b16 %v3473, %v3463
    %v5914 = vpack.c.b16 %v3474, %v3464
    %v5915 = vpack.c.b16 %v3475, %v3465
    %v5916 = vpack.c.b16 %v3476, %v3466
    %v5917 = vpack.c.b16 %v3477, %v3467
    %v5918 = vpack.c.b16 %v3478, %v3468
    %v5919 = vpack.c.b16 %v3489, %v3479
    %v5920 = vpack.c.b16 %v3490, %v3480
    %v5921 = vpack.c.b16 %v3491, %v3481
    %v5922 = vpack.c.b16 %v3492, %v3482
    %v5923 = vpack.c.b16 %v3493, %v3483
    %v5924 = vpack.c.b16 %v3494, %v3484
    %v5925 = vpack.c.b16 %v3495, %v3485
    %v5926 = vpack.c.b16 %v3496, %v3486
    %v5927 = vpack.c.b16 %v3497, %v3487
    %v5928 = vpack.c.b16 %v3498, %v3488
    %v5929 = vpack.c.b16 %v3509, %v3499
    %v5930 = vpack.c.b16 %v3510, %v3500
    %v5931 = vpack.c.b16 %v3511, %v3501
    %v5932 = vpack.c.b16 %v3512, %v3502
    %v5933 = vpack.c.b16 %v3513, %v3503
    %v5934 = vpack.c.b16 %v3514, %v3504
    %v5935 = vpack.c.b16 %v3515, %v3505
    %v5936 = vpack.c.b16 %v3516, %v3506
    %v5937 = vpack.c.b16 %v3517, %v3507
    %v5938 = vpack.c.b16 %v3518, %v3508
    %v5939 = vpack.c.b16 %v3529, %v3519
    %v5940 = vpack.c.b16 %v3530, %v3520
    %v5941 = vpack.c.b16 %v3531, %v3521
    %v5942 = vpack.c.b16 %v3532, %v3522
    %v5943 = vpack.c.b16 %v3533, %v3523
    %v5944 = vpack.c.b16 %v3534, %v3524
    %v5945 = vpack.c.b16 %v3535, %v3525
    %v5946 = vpack.c.b16 %v3536, %v3526
    %v5947 = vpack.c.b16 %v3537, %v3527
    %v5948 = vpack.c.b16 %v3538, %v3528
    %v5949 = vpack.c.b16 %v3549, %v3539
    %v5950 = vpack.c.b16 %v3550, %v3540
    %v5951 = vpack.c.b16 %v3551, %v3541
    %v5952 = vpack.c.b16 %v3552, %v3542
    %v5953 = vpack.c.b16 %v3553, %v3543
    %v5954 = vpack.c.b16 %v3554, %v3544
    %v5955 = vpack.c.b16 %v3555, %v3545
    %v5956 = vpack.c.b16 %v3556, %v3546
    %v5957 = vpack.c.b16 %v3557, %v3547
    %v5958 = vpack.c.b16 %v3558, %v3548
    %v5959 = vpack.c.b16 %v3569, %v3559
    %v5960 = vpack.c.b16 %v3570, %v3560
    %v5961 = vpack.c.b16 %v3571, %v3561
    %v5962 = vpack.c.b16 %v3572, %v3562
    %v5963 = vpack.c.b16 %v3573, %v3563
    %v5964 = vpack.c.b16 %v3574, %v3564
    %v5965 = vpack.c.b16 %v3575, %v3565
    %v5966 = vpack.c.b16 %v3576, %v3566
    %v5967 = vpack.c.b16 %v3577, %v3567
    %v5968 = vpack.c.b16 %v3578, %v3568
    %v5969 = vpack.c.b16 %v3589, %v3579
    %v5970 = vpack.c.b16 %v3590, %v3580
    %v5971 = vpack.c.b16 %v3591, %v3581
    %v5972 = vpack.c.b16 %v3592, %v3582
    %v5973 = vpack.c.b16 %v3593, %v3583
    %v5974 = vpack.c.b16 %v3594, %v3584
    %v5975 = vpack.c.b16 %v3595, %v3585
    %v5976 = vpack.c.b16 %v3596, %v3586
    %v5977 = vpack.c.b16 %v3597, %v3587
    %v5978 = vpack.c.b16 %v3598, %v3588
    %v5979 = vpack.c.b16 %v3609, %v3599
    %v5980 = vpack.c.b16 %v3610, %v3600
    %v5981 = vpack.c.b16 %v3611, %v3601
    %v5982 = vpack.c.b16 %v3612, %v3602
    %v5983 = vpack.c.b16 %v3613, %v3603
    %v5984 = vpack.c.b16 %v3614, %v3604
    %v5985 = vpack.c.b16 %v3615, %v3605
    %v5986 = vpack.c.b16 %v3616, %v3606
    %v5987 = vpack.c.b16 %v3617, %v3607
    %v5988 = vpack.c.b16 %v3618, %v3608
    %v5989 = vpack.c.b16 %v3629, %v3619
    %v5990 = vpack.c.b16 %v3630, %v3620
    %v5991 = vpack.c.b16 %v3631, %v3621
    %v5992 = vpack.c.b16 %v3632, %v3622
    %v5993 = vpack.c.b16 %v3633, %v3623
    %v5994 = vpack.c.b16 %v3634, %v3624
    %v5995 = vpack.c.b16 %v3635, %v3625
    %v5996 = vpack.c.b16 %v3636, %v3626
    %v5997 = vpack.c.b16 %v3637, %v3627
    %v5998 = vpack.c.b16 %v3638, %v3628
    %v5999 = vpack.c.b16 %v3649, %v3639
    %v6000 = vpack.c.b16 %v3650, %v3640
    %v6001 = vpack.c.b16 %v3651, %v3641
    %v6002 = vpack.c.b16 %v3652, %v3642
    %v6003 = vpack.c.b16 %v3653, %v3643
    %v6004 = vpack.c.b16 %v3654, %v3644
    %v6005 = vpack.c.b16 %v3655, %v3645
    %v6006 = vpack.c.b16 %v3656, %v3646
    %v6007 = vpack.c.b16 %v3657, %v3647
    %v6008 = vpack.c.b16 %v3658, %v3648
    %v6009 = vpack.c.b16 %v3669, %v3659
    %v6010 = vpack.c.b16 %v3670, %v3660
    %v6011 = vpack.c.b16 %v3671, %v3661
    %v6012 = vpack.c.b16 %v3672, %v3662
    %v6013 = vpack.c.b16 %v3673, %v3663
    %v6014 = vpack.c.b16 %v3674, %v3664
    %v6015 = vpack.c.b16 %v3675, %v3665
    %v6016 = vpack.c.b16 %v3676, %v3666
    %v6017 = vpack.c.b16 %v3677, %v3667
    %v6018 = vpack.c.b16 %v3678, %v3668
    %v6019 = vpack.c.b16 %v3689, %v3679
    %v6020 = vpack.c.b16 %v3690, %v3680
    %v6021 = vpack.c.b16 %v3691, %v3681
    %v6022 = vpack.c.b16 %v3692, %v3682
    %v6023 = vpack.c.b16 %v3693, %v3683
    %v6024 = vpack.c.b16 %v3694, %v3684
    %v6025 = vpack.c.b16 %v3695, %v3685
    %v6026 = vpack.c.b16 %v3696, %v3686
    %v6027 = vpack.c.b16 %v3697, %v3687
    %v6028 = vpack.c.b16 %v3698, %v3688
    %v6029 = vpack.c.b16 %v3709, %v3699
    %v6030 = vpack.c.b16 %v3710, %v3700
    %v6031 = vpack.c.b16 %v3711, %v3701
    %v6032 = vpack.c.b16 %v3712, %v3702
    %v6033 = vpack.c.b16 %v3713, %v3703
    %v6034 = vpack.c.b16 %v3714, %v3704
    %v6035 = vpack.c.b16 %v3715, %v3705
    %v6036 = vpack.c.b16 %v3716, %v3706
    %v6037 = vpack.c.b16 %v3717, %v3707
    %v6038 = vpack.c.b16 %v3718, %v3708
    %v6039 = vpack.c.b16 %v3729, %v3719
    %v6040 = vpack.c.b16 %v3730, %v3720
    %v6041 = vpack.c.b16 %v3731, %v3721
    %v6042 = vpack.c.b16 %v3732, %v3722
    %v6043 = vpack.c.b16 %v3733, %v3723
    %v6044 = vpack.c.b16 %v3734, %v3724
    %v6045 = vpack.c.b16 %v3735, %v3725
    %v6046 = vpack.c.b16 %v3736, %v3726
    %v6047 = vpack.c.b16 %v3737, %v3727
    %v6048 = vpack.c.b16 %v3738, %v3728
    %v6049 = vpack.c.b16 %v3749, %v3739
    %v6050 = vpack.c.b16 %v3750, %v3740
    %v6051 = vpack.c.b16 %v3751, %v3741
    %v6052 = vpack.c.b16 %v3752, %v3742
    %v6053 = vpack.c.b16 %v3753, %v3743
    %v6054 = vpack.c.b16 %v3754, %v3744
    %v6055 = vpack.c.b16 %v3755, %v3745
    %v6056 = vpack.c.b16 %v3756, %v3746
    %v6057 = vpack.c.b16 %v3757, %v3747
    %v6058 = vpack.c.b16 %v3758, %v3748
    %v6059 = vpack.c.b16 %v3769, %v3759
    %v6060 = vpack.c.b16 %v3770, %v3760
    %v6061 = vpack.c.b16 %v3771, %v3761
    %v6062 = vpack.c.b16 %v3772, %v3762
    %v6063 = vpack.c.b16 %v3773, %v3763
    %v6064 = vpack.c.b16 %v3774, %v3764
    %v6065 = vpack.c.b16 %v3775, %v3765
    %v6066 = vpack.c.b16 %v3776, %v3766
    %v6067 = vpack.c.b16 %v3777, %v3767
    %v6068 = vpack.c.b16 %v3778, %v3768
    %v6069 = vpack.c.b16 %v3789, %v3779
    %v6070 = vpack.c.b16 %v3790, %v3780
    %v6071 = vpack.c.b16 %v3791, %v3781
    %v6072 = vpack.c.b16 %v3792, %v3782
    %v6073 = vpack.c.b16 %v3793, %v3783
    %v6074 = vpack.c.b16 %v3794, %v3784
    %v6075 = vpack.c.b16 %v3795, %v3785
    %v6076 = vpack.c.b16 %v3796, %v3786
    %v6077 = vpack.c.b16 %v3797, %v3787
    %v6078 = vpack.c.b16 %v3798, %v3788
    %v6079 = vpack.c.b16 %v3809, %v3799
    %v6080 = vpack.c.b16 %v3810, %v3800
    %v6081 = vpack.c.b16 %v3811, %v3801
    %v6082 = vpack.c.b16 %v3812, %v3802
    %v6083 = vpack.c.b16 %v3813, %v3803
    %v6084 = vpack.c.b16 %v3814, %v3804
    %v6085 = vpack.c.b16 %v3815, %v3805
    %v6086 = vpack.c.b16 %v3816, %v3806
    %v6087 = vpack.c.b16 %v3817, %v3807
    %v6088 = vpack.c.b16 %v3818, %v3808
    %v6089 = vpack.c.b16 %v3829, %v3819
    %v6090 = vpack.c.b16 %v3830, %v3820
    %v6091 = vpack.c.b16 %v3831, %v3821
    %v6092 = vpack.c.b16 %v3832, %v3822
    %v6093 = vpack.c.b16 %v3833, %v3823
    %v6094 = vpack.c.b16 %v3834, %v3824
    %v6095 = vpack.c.b16 %v3835, %v3825
    %v6096 = vpack.c.b16 %v3836, %v3826
    %v6097 = vpack.c.b16 %v3837, %v3827
    %v6098 = vpack.c.b16 %v3838, %v3828
    %v6099 = vpack.c.b16 %v3849, %v3839
    %v6100 = vpack.c.b16 %v3850, %v3840
    %v6101 = vpack.c.b16 %v3851, %v3841
    %v6102 = vpack.c.b16 %v3852, %v3842
    %v6103 = vpack.c.b16 %v3853, %v3843
    %v6104 = vpack.c.b16 %v3854, %v3844
    %v6105 = vpack.c.b16 %v3855, %v3845
    %v6106 = vpack.c.b16 %v3856, %v3846
    %v6107 = vpack.c.b16 %v3857, %v3847
    %v6108 = vpack.c.b16 %v3858, %v3848
    %v6109 = vpack.c.b16 %v3869, %v3859
    %v6110 = vpack.c.b16 %v3870, %v3860
    %v6111 = vpack.c.b16 %v3871, %v3861
    %v6112 = vpack.c.b16 %v3872, %v3862
    %v6113 = vpack.c.b16 %v3873, %v3863
    %v6114 = vpack.c.b16 %v3874, %v3864
    %v6115 = vpack.c.b16 %v3875, %v3865
    %v6116 = vpack.c.b16 %v3876, %v3866
    %v6117 = vpack.c.b16 %v3877, %v3867
    %v6118 = vpack.c.b16 %v3878, %v3868
    %v6119 = vpack.c.b16 %v3889, %v3879
    %v6120 = vpack.c.b16 %v3890, %v3880
    %v6121 = vpack.c.b16 %v3891, %v3881
    %v6122 = vpack.c.b16 %v3892, %v3882
    %v6123 = vpack.c.b16 %v3893, %v3883
    %v6124 = vpack.c.b16 %v3894, %v3884
    %v6125 = vpack.c.b16 %v3895, %v3885
    %v6126 = vpack.c.b16 %v3896, %v3886
    %v6127 = vpack.c.b16 %v3897, %v3887
    %v6128 = vpack.c.b16 %v3898, %v3888
    %v6129 = vpack.c.b16 %v3909, %v3899
    %v6130 = vpack.c.b16 %v3910, %v3900
    %v6131 = vpack.c.b16 %v3911, %v3901
    %v6132 = vpack.c.b16 %v3912, %v3902
    %v6133 = vpack.c.b16 %v3913, %v3903
    %v6134 = vpack.c.b16 %v3914, %v3904
    %v6135 = vpack.c.b16 %v3915, %v3905
    %v6136 = vpack.c.b16 %v3916, %v3906
    %v6137 = vpack.c.b16 %v3917, %v3907
    %v6138 = vpack.c.b16 %v3918, %v3908
    %v6139 = vpack.c.b16 %v3929, %v3919
    %v6140 = vpack.c.b16 %v3930, %v3920
    %v6141 = vpack.c.b16 %v3931, %v3921
    %v6142 = vpack.c.b16 %v3932, %v3922
    %v6143 = vpack.c.b16 %v3933, %v3923
    %v6144 = vpack.c.b16 %v3934, %v3924
    %v6145 = vpack.c.b16 %v3935, %v3925
    %v6146 = vpack.c.b16 %v3936, %v3926
    %v6147 = vpack.c.b16 %v3937, %v3927
    %v6148 = vpack.c.b16 %v3938, %v3928
    %v6149 = vpack.c.b16 %v3949, %v3939
    %v6150 = vpack.c.b16 %v3950, %v3940
    %v6151 = vpack.c.b16 %v3951, %v3941
    %v6152 = vpack.c.b16 %v3952, %v3942
    %v6153 = vpack.c.b16 %v3953, %v3943
    %v6154 = vpack.c.b16 %v3954, %v3944
    %v6155 = vpack.c.b16 %v3955, %v3945
    %v6156 = vpack.c.b16 %v3956, %v3946
    %v6157 = vpack.c.b16 %v3957, %v3947
    %v6158 = vpack.c.b16 %v3958, %v3948
    %v6159 = vpack.c.b16 %v3969, %v3959
    %v6160 = vpack.c.b16 %v3970, %v3960
    %v6161 = vpack.c.b16 %v3971, %v3961
    %v6162 = vpack.c.b16 %v3972, %v3962
    %v6163 = vpack.c.b16 %v3973, %v3963
    %v6164 = vpack.c.b16 %v3974, %v3964
    %v6165 = vpack.c.b16 %v3975, %v3965
    %v6166 = vpack.c.b16 %v3976, %v3966
    %v6167 = vpack.c.b16 %v3977, %v3967
    %v6168 = vpack.c.b16 %v3978, %v3968
    %v6169 = vpack.c.b16 %v3989, %v3979
    %v6170 = vpack.c.b16 %v3990, %v3980
    %v6171 = vpack.c.b16 %v3991, %v3981
    %v6172 = vpack.c.b16 %v3992, %v3982
    %v6173 = vpack.c.b16 %v3993, %v3983
    %v6174 = vpack.c.b16 %v3994, %v3984
    %v6175 = vpack.c.b16 %v3995, %v3985
    %v6176 = vpack.c.b16 %v3996, %v3986
    %v6177 = vpack.c.b16 %v3997, %v3987
    %v6178 = vpack.c.b16 %v3998, %v3988
    %v6179 = vpack.c.b16 %v4009, %v3999
    %v6180 = vpack.c.b16 %v4010, %v4000
    %v6181 = vpack.c.b16 %v4011, %v4001
    %v6182 = vpack.c.b16 %v4012, %v4002
    %v6183 = vpack.c.b16 %v4013, %v4003
    %v6184 = vpack.c.b16 %v4014, %v4004
    %v6185 = vpack.c.b16 %v4015, %v4005
    %v6186 = vpack.c.b16 %v4016, %v4006
    %v6187 = vpack.c.b16 %v4017, %v4007
    %v6188 = vpack.c.b16 %v4018, %v4008
    %v6189 = vpack.c.b16 %v4029, %v4019
    %v6190 = vpack.c.b16 %v4030, %v4020
    %v6191 = vpack.c.b16 %v4031, %v4021
    %v6192 = vpack.c.b16 %v4032, %v4022
    %v6193 = vpack.c.b16 %v4033, %v4023
    %v6194 = vpack.c.b16 %v4034, %v4024
    %v6195 = vpack.c.b16 %v4035, %v4025
    %v6196 = vpack.c.b16 %v4036, %v4026
    %v6197 = vpack.c.b16 %v4037, %v4027
    %v6198 = vpack.c.b16 %v4038, %v4028
    %v6199 = vpack.c.b16 %v4049, %v4039
    %v6200 = vpack.c.b16 %v4050, %v4040
    %v6201 = vpack.c.b16 %v4051, %v4041
    %v6202 = vpack.c.b16 %v4052, %v4042
    %v6203 = vpack.c.b16 %v4053, %v4043
    %v6204 = vpack.c.b16 %v4054, %v4044
    %v6205 = vpack.c.b16 %v4055, %v4045
    %v6206 = vpack.c.b16 %v4056, %v4046
    %v6207 = vpack.c.b16 %v4057, %v4047
    %v6208 = vpack.c.b16 %v4058, %v4048
    %v6209 = vpack.c.b16 %v4069, %v4059
    %v6210 = vpack.c.b16 %v4070, %v4060
    %v6211 = vpack.c.b16 %v4071, %v4061
    %v6212 = vpack.c.b16 %v4072, %v4062
    %v6213 = vpack.c.b16 %v4073, %v4063
    %v6214 = vpack.c.b16 %v4074, %v4064
    %v6215 = vpack.c.b16 %v4075, %v4065
    %v6216 = vpack.c.b16 %v4076, %v4066
    %v6217 = vpack.c.b16 %v4077, %v4067
    %v6218 = vpack.c.b16 %v4078, %v4068
    %v6219 = vpack.c.b16 %v4089, %v4079
    %v6220 = vpack.c.b16 %v4090, %v4080
    %v6221 = vpack.c.b16 %v4091, %v4081
    %v6222 = vpack.c.b16 %v4092, %v4082
    %v6223 = vpack.c.b16 %v4093, %v4083
    %v6224 = vpack.c.b16 %v4094, %v4084
    %v6225 = vpack.c.b16 %v4095, %v4085
    %v6226 = vpack.c.b16 %v4096, %v4086
    %v6227 = vpack.c.b16 %v4097, %v4087
    %v6228 = vpack.c.b16 %v4098, %v4088
    %v6229 = vpack.c.b16 %v4109, %v4099
    %v6230 = vpack.c.b16 %v4110, %v4100
    %v6231 = vpack.c.b16 %v4111, %v4101
    %v6232 = vpack.c.b16 %v4112, %v4102
    %v6233 = vpack.c.b16 %v4113, %v4103
    %v6234 = vpack.c.b16 %v4114, %v4104
    %v6235 = vpack.c.b16 %v4115, %v4105
    %v6236 = vpack.c.b16 %v4116, %v4106
    %v6237 = vpack.c.b16 %v4117, %v4107
    %v6238 = vpack.c.b16 %v4118, %v4108
    %v6239 = vpack.c.b16 %v4129, %v4119
    %v6240 = vpack.c.b16 %v4130, %v4120
    %v6241 = vpack.c.b16 %v4131, %v4121
    %v6242 = vpack.c.b16 %v4132, %v4122
    %v6243 = vpack.c.b16 %v4133, %v4123
    %v6244 = vpack.c.b16 %v4134, %v4124
    %v6245 = vpack.c.b16 %v4135, %v4125
    %v6246 = vpack.c.b16 %v4136, %v4126
    %v6247 = vpack.c.b16 %v4137, %v4127
    %v6248 = vpack.c.b16 %v4138, %v4128
    %v6249 = vpack.c.b16 %v4149, %v4139
    %v6250 = vpack.c.b16 %v4150, %v4140
    %v6251 = vpack.c.b16 %v4151, %v4141
    %v6252 = vpack.c.b16 %v4152, %v4142
    %v6253 = vpack.c.b16 %v4153, %v4143
    %v6254 = vpack.c.b16 %v4154, %v4144
    %v6255 = vpack.c.b16 %v4155, %v4145
    %v6256 = vpack.c.b16 %v4156, %v4146
    %v6257 = vpack.c.b16 %v4157, %v4147
    %v6258 = vpack.c.b16 %v4158, %v4148
    %v6259 = vpack.c.b16 %v4169, %v4159
    %v6260 = vpack.c.b16 %v4170, %v4160
    %v6261 = vpack.c.b16 %v4171, %v4161
    %v6262 = vpack.c.b16 %v4172, %v4162
    %v6263 = vpack.c.b16 %v4173, %v4163
    %v6264 = vpack.c.b16 %v4174, %v4164
    %v6265 = vpack.c.b16 %v4175, %v4165
    %v6266 = vpack.c.b16 %v4176, %v4166
    %v6267 = vpack.c.b16 %v4177, %v4167
    %v6268 = vpack.c.b16 %v4178, %v4168
    %v6269 = vpack.c.b16 %v4189, %v4179
    %v6270 = vpack.c.b16 %v4190, %v4180
    %v6271 = vpack.c.b16 %v4191, %v4181
    %v6272 = vpack.c.b16 %v4192, %v4182
    %v6273 = vpack.c.b16 %v4193, %v4183
    %v6274 = vpack.c.b16 %v4194, %v4184
    %v6275 = vpack.c.b16 %v4195, %v4185
    %v6276 = vpack.c.b16 %v4196, %v4186
    %v6277 = vpack.c.b16 %v4197, %v4187
    %v6278 = vpack.c.b16 %v4198, %v4188
    %v6279 = vpack.c.b16 %v4209, %v4199
    %v6280 = vpack.c.b16 %v4210, %v4200
    %v6281 = vpack.c.b16 %v4211, %v4201
    %v6282 = vpack.c.b16 %v4212, %v4202
    %v6283 = vpack.c.b16 %v4213, %v4203
    %v6284 = vpack.c.b16 %v4214, %v4204
    %v6285 = vpack.c.b16 %v4215, %v4205
    %v6286 = vpack.c.b16 %v4216, %v4206
    %v6287 = vpack.c.b16 %v4217, %v4207
    %v6288 = vpack.c.b16 %v4218, %v4208
    %v6289 = vpack.c.b16 %v4229, %v4219
    %v6290 = vpack.c.b16 %v4230, %v4220
    %v6291 = vpack.c.b16 %v4231, %v4221
    %v6292 = vpack.c.b16 %v4232, %v4222
    %v6293 = vpack.c.b16 %v4233, %v4223
    %v6294 = vpack.c.b16 %v4234, %v4224
    %v6295 = vpack.c.b16 %v4235, %v4225
    %v6296 = vpack.c.b16 %v4236, %v4226
    %v6297 = vpack.c.b16 %v4237, %v4227
    %v6298 = vpack.c.b16 %v4238, %v4228
    %v6299 = vpack.c.b16 %v4249, %v4239
    %v6300 = vpack.c.b16 %v4250, %v4240
    %v6301 = vpack.c.b16 %v4251, %v4241
    %v6302 = vpack.c.b16 %v4252, %v4242
    %v6303 = vpack.c.b16 %v4253, %v4243
    %v6304 = vpack.c.b16 %v4254, %v4244
    %v6305 = vpack.c.b16 %v4255, %v4245
    %v6306 = vpack.c.b16 %v4256, %v4246
    %v6307 = vpack.c.b16 %v4257, %v4247
    %v6308 = vpack.c.b16 %v4258, %v4248
    %v6309 = vpack.c.b16 %v4269, %v4259
    %v6310 = vpack.c.b16 %v4270, %v4260
    %v6311 = vpack.c.b16 %v4271, %v4261
    %v6312 = vpack.c.b16 %v4272, %v4262
    %v6313 = vpack.c.b16 %v4273, %v4263
    %v6314 = vpack.c.b16 %v4274, %v4264
    %v6315 = vpack.c.b16 %v4275, %v4265
    %v6316 = vpack.c.b16 %v4276, %v4266
    %v6317 = vpack.c.b16 %v4277, %v4267
    %v6318 = vpack.c.b16 %v4278, %v4268
    %v6319 = vpack.c.b16 %v4289, %v4279
    %v6320 = vpack.c.b16 %v4290, %v4280
    %v6321 = vpack.c.b16 %v4291, %v4281
    %v6322 = vpack.c.b16 %v4292, %v4282
    %v6323 = vpack.c.b16 %v4293, %v4283
    %v6324 = vpack.c.b16 %v4294, %v4284
    %v6325 = vpack.c.b16 %v4295, %v4285
    %v6326 = vpack.c.b16 %v4296, %v4286
    %v6327 = vpack.c.b16 %v4297, %v4287
    %v6328 = vpack.c.b16 %v4298, %v4288
    %v6329 = vpack.c.b16 %v4309, %v4299
    %v6330 = vpack.c.b16 %v4310, %v4300
    %v6331 = vpack.c.b16 %v4311, %v4301
    %v6332 = vpack.c.b16 %v4312, %v4302
    %v6333 = vpack.c.b16 %v4313, %v4303
    %v6334 = vpack.c.b16 %v4314, %v4304
    %v6335 = vpack.c.b16 %v4315, %v4305
    %v6336 = vpack.c.b16 %v4316, %v4306
    %v6337 = vpack.c.b16 %v4317, %v4307
    %v6338 = vpack.c.b16 %v4318, %v4308
    %v6339 = vpack.c.b16 %v4329, %v4319
    %v6340 = vpack.c.b16 %v4330, %v4320
    %v6341 = vpack.c.b16 %v4331, %v4321
    %v6342 = vpack.c.b16 %v4332, %v4322
    %v6343 = vpack.c.b16 %v4333, %v4323
    %v6344 = vpack.c.b16 %v4334, %v4324
    %v6345 = vpack.c.b16 %v4335, %v4325
    %v6346 = vpack.c.b16 %v4336, %v4326
    %v6347 = vpack.c.b16 %v4337, %v4327
    %v6348 = vpack.c.b16 %v4338, %v4328
    %v6349 = vpack.c.b16 %v4349, %v4339
    %v6350 = vpack.c.b16 %v4350, %v4340
    %v6351 = vpack.c.b16 %v4351, %v4341
    %v6352 = vpack.c.b16 %v4352, %v4342
    %v6353 = vpack.c.b16 %v4353, %v4343
    %v6354 = vpack.c.b16 %v4354, %v4344
    %v6355 = vpack.c.b16 %v4355, %v4345
    %v6356 = vpack.c.b16 %v4356, %v4346
    %v6357 = vpack.c.b16 %v4357, %v4347
    %v6358 = vpack.c.b16 %v4358, %v4348
    %v6359 = vpack.c.b16 %v4369, %v4359
    %v6360 = vpack.c.b16 %v4370, %v4360
    %v6361 = vpack.c.b16 %v4371, %v4361
    %v6362 = vpack.c.b16 %v4372, %v4362
    %v6363 = vpack.c.b16 %v4373, %v4363
    %v6364 = vpack.c.b16 %v4374, %v4364
    %v6365 = vpack.c.b16 %v4375, %v4365
    %v6366 = vpack.c.b16 %v4376, %v4366
    %v6367 = vpack.c.b16 %v4377, %v4367
    %v6368 = vpack.c.b16 %v4378, %v4368
    %v6369 = vpack.c.b16 %v4389, %v4379
    %v6370 = vpack.c.b16 %v4390, %v4380
    %v6371 = vpack.c.b16 %v4391, %v4381
    %v6372 = vpack.c.b16 %v4392, %v4382
    %v6373 = vpack.c.b16 %v4393, %v4383
    %v6374 = vpack.c.b16 %v4394, %v4384
    %v6375 = vpack.c.b16 %v4395, %v4385
    %v6376 = vpack.c.b16 %v4396, %v4386
    %v6377 = vpack.c.b16 %v4397, %v4387
    %v6378 = vpack.c.b16 %v4398, %v4388
    %v6379 = vpack.c.b16 %v4409, %v4399
    %v6380 = vpack.c.b16 %v4410, %v4400
    %v6381 = vpack.c.b16 %v4411, %v4401
    %v6382 = vpack.c.b16 %v4412, %v4402
    %v6383 = vpack.c.b16 %v4413, %v4403
    %v6384 = vpack.c.b16 %v4414, %v4404
    %v6385 = vpack.c.b16 %v4415, %v4405
    %v6386 = vpack.c.b16 %v4416, %v4406
    %v6387 = vpack.c.b16 %v4417, %v4407
    %v6388 = vpack.c.b16 %v4418, %v4408
    %v6389 = vpack.c.b16 %v4429, %v4419
    %v6390 = vpack.c.b16 %v4430, %v4420
    %v6391 = vpack.c.b16 %v4431, %v4421
    %v6392 = vpack.c.b16 %v4432, %v4422
    %v6393 = vpack.c.b16 %v4433, %v4423
    %v6394 = vpack.c.b16 %v4434, %v4424
    %v6395 = vpack.c.b16 %v4435, %v4425
    %v6396 = vpack.c.b16 %v4436, %v4426
    %v6397 = vpack.c.b16 %v4437, %v4427
    %v6398 = vpack.c.b16 %v4438, %v4428
    %v6399 = vpack.c.b16 %v4449, %v4439
    %v6400 = vpack.c.b16 %v4450, %v4440
    %v6401 = vpack.c.b16 %v4451, %v4441
    %v6402 = vpack.c.b16 %v4452, %v4442
    %v6403 = vpack.c.b16 %v4453, %v4443
    %v6404 = vpack.c.b16 %v4454, %v4444
    %v6405 = vpack.c.b16 %v4455, %v4445
    %v6406 = vpack.c.b16 %v4456, %v4446
    %v6407 = vpack.c.b16 %v4457, %v4447
    %v6408 = vpack.c.b16 %v4458, %v4448
    %v6409 = vpack.c.b16 %v4469, %v4459
    %v6410 = vpack.c.b16 %v4470, %v4460
    %v6411 = vpack.c.b16 %v4471, %v4461
    %v6412 = vpack.c.b16 %v4472, %v4462
    %v6413 = vpack.c.b16 %v4473, %v4463
    %v6414 = vpack.c.b16 %v4474, %v4464
    %v6415 = vpack.c.b16 %v4475, %v4465
    %v6416 = vpack.c.b16 %v4476, %v4466
    %v6417 = vpack.c.b16 %v4477, %v4467
    %v6418 = vpack.c.b16 %v4478, %v4468
    %v6419 = vpack.c.b16 %v4489, %v4479
    %v6420 = vpack.c.b16 %v4490, %v4480
    %v6421 = vpack.c.b16 %v4491, %v4481
    %v6422 = vpack.c.b16 %v4492, %v4482
    %v6423 = vpack.c.b16 %v4493, %v4483
    %v6424 = vpack.c.b16 %v4494, %v4484
    %v6425 = vpack.c.b16 %v4495, %v4485
    %v6426 = vpack.c.b16 %v4496, %v4486
    %v6427 = vpack.c.b16 %v4497, %v4487
    %v6428 = vpack.c.b16 %v4498, %v4488
    %v6429 = vpack.c.b16 %v4509, %v4499
    %v6430 = vpack.c.b16 %v4510, %v4500
    %v6431 = vpack.c.b16 %v4511, %v4501
    %v6432 = vpack.c.b16 %v4512, %v4502
    %v6433 = vpack.c.b16 %v4513, %v4503
    %v6434 = vpack.c.b16 %v4514, %v4504
    %v6435 = vpack.c.b16 %v4515, %v4505
    %v6436 = vpack.c.b16 %v4516, %v4506
    %v6437 = vpack.c.b16 %v4517, %v4507
    %v6438 = vpack.c.b16 %v4518, %v4508
    %v6439 = vpack.c.b16 %v4529, %v4519
    %v6440 = vpack.c.b16 %v4530, %v4520
    %v6441 = vpack.c.b16 %v4531, %v4521
    %v6442 = vpack.c.b16 %v4532, %v4522
    %v6443 = vpack.c.b16 %v4533, %v4523
    %v6444 = vpack.c.b16 %v4534, %v4524
    %v6445 = vpack.c.b16 %v4535, %v4525
    %v6446 = vpack.c.b16 %v4536, %v4526
    %v6447 = vpack.c.b16 %v4537, %v4527
    %v6448 = vpack.c.b16 %v4538, %v4528
    %v6449 = vpack.c.b16 %v4549, %v4539
    %v6450 = vpack.c.b16 %v4550, %v4540
    %v6451 = vpack.c.b16 %v4551, %v4541
    %v6452 = vpack.c.b16 %v4552, %v4542
    %v6453 = vpack.c.b16 %v4553, %v4543
    %v6454 = vpack.c.b16 %v4554, %v4544
    %v6455 = vpack.c.b16 %v4555, %v4545
    %v6456 = vpack.c.b16 %v4556, %v4546
    %v6457 = vpack.c.b16 %v4557, %v4547
    %v6458 = vpack.c.b16 %v4558, %v4548
    %v6459 = vpack.c.b16 %v4569, %v4559
    %v6460 = vpack.c.b16 %v4570, %v4560
    %v6461 = vpack.c.b16 %v4571, %v4561
    %v6462 = vpack.c.b16 %v4572, %v4562
    %v6463 = vpack.c.b16 %v4573, %v4563
    %v6464 = vpack.c.b16 %v4574, %v4564
    %v6465 = vpack.c.b16 %v4575, %v4565
    %v6466 = vpack.c.b16 %v4576, %v4566
    %v6467 = vpack.c.b16 %v4577, %v4567
    %v6468 = vpack.c.b16 %v4578, %v4568
    %v6469 = vpack.c.b16 %v4589, %v4579
    %v6470 = vpack.c.b16 %v4590, %v4580
    %v6471 = vpack.c.b16 %v4591, %v4581
    %v6472 = vpack.c.b16 %v4592, %v4582
    %v6473 = vpack.c.b16 %v4593, %v4583
    %v6474 = vpack.c.b16 %v4594, %v4584
    %v6475 = vpack.c.b16 %v4595, %v4585
    %v6476 = vpack.c.b16 %v4596, %v4586
    %v6477 = vpack.c.b16 %v4597, %v4587
    %v6478 = vpack.c.b16 %v4598, %v4588
    %v6479 = vpack.c.b16 %v4609, %v4599
    %v6480 = vpack.c.b16 %v4610, %v4600
    %v6481 = vpack.c.b16 %v4611, %v4601
    %v6482 = vpack.c.b16 %v4612, %v4602
    %v6483 = vpack.c.b16 %v4613, %v4603
    %v6484 = vpack.c.b16 %v4614, %v4604
    %v6485 = vpack.c.b16 %v4615, %v4605
    %v6486 = vpack.c.b16 %v4616, %v4606
    %v6487 = vpack.c.b16 %v4617, %v4607
    %v6488 = vpack.c.b16 %v4618, %v4608
    %v6489 = vpack.c.b16 %v4629, %v4619
    %v6490 = vpack.c.b16 %v4630, %v4620
    %v6491 = vpack.c.b16 %v4631, %v4621
    %v6492 = vpack.c.b16 %v4632, %v4622
    %v6493 = vpack.c.b16 %v4633, %v4623
    %v6494 = vpack.c.b16 %v4634, %v4624
    %v6495 = vpack.c.b16 %v4635, %v4625
    %v6496 = vpack.c.b16 %v4636, %v4626
    %v6497 = vpack.c.b16 %v4637, %v4627
    %v6498 = vpack.c.b16 %v4638, %v4628
    %v6499 = vpack.c.b16 %v4649, %v4639
    %v6500 = vpack.c.b16 %v4650, %v4640
    %v6501 = vpack.c.b16 %v4651, %v4641
    %v6502 = vpack.c.b16 %v4652, %v4642
    %v6503 = vpack.c.b16 %v4653, %v4643
    %v6504 = vpack.c.b16 %v4654, %v4644
    %v6505 = vpack.c.b16 %v4655, %v4645
    %v6506 = vpack.c.b16 %v4656, %v4646
    %v6507 = vpack.c.b16 %v4657, %v4647
    %v6508 = vpack.c.b16 %v4658, %v4648
    %v6509 = vpack.c.b16 %v4669, %v4659
    %v6510 = vpack.c.b16 %v4670, %v4660
    %v6511 = vpack.c.b16 %v4671, %v4661
    %v6512 = vpack.c.b16 %v4672, %v4662
    %v6513 = vpack.c.b16 %v4673, %v4663
    %v6514 = vpack.c.b16 %v4674, %v4664
    %v6515 = vpack.c.b16 %v4675, %v4665
    %v6516 = vpack.c.b16 %v4676, %v4666
    %v6517 = vpack.c.b16 %v4677, %v4667
    %v6518 = vpack.c.b16 %v4678, %v4668
    %v6519 = vpack.c.b16 %v4689, %v4679
    %v6520 = vpack.c.b16 %v4690, %v4680
    %v6521 = vpack.c.b16 %v4691, %v4681
    %v6522 = vpack.c.b16 %v4692, %v4682
    %v6523 = vpack.c.b16 %v4693, %v4683
    %v6524 = vpack.c.b16 %v4694, %v4684
    %v6525 = vpack.c.b16 %v4695, %v4685
    %v6526 = vpack.c.b16 %v4696, %v4686
    %v6527 = vpack.c.b16 %v4697, %v4687
    %v6528 = vpack.c.b16 %v4698, %v4688
    %v6529 = vpack.c.b16 %v4709, %v4699
    %v6530 = vpack.c.b16 %v4710, %v4700
    %v6531 = vpack.c.b16 %v4711, %v4701
    %v6532 = vpack.c.b16 %v4712, %v4702
    %v6533 = vpack.c.b16 %v4713, %v4703
    %v6534 = vpack.c.b16 %v4714, %v4704
    %v6535 = vpack.c.b16 %v4715, %v4705
    %v6536 = vpack.c.b16 %v4716, %v4706
    %v6537 = vpack.c.b16 %v4717, %v4707
    %v6538 = vpack.c.b16 %v4718, %v4708
    %v6539 = vpack.c.b16 %v4729, %v4719
    %v6540 = vpack.c.b16 %v4730, %v4720
    %v6541 = vpack.c.b16 %v4731, %v4721
    %v6542 = vpack.c.b16 %v4732, %v4722
    %v6543 = vpack.c.b16 %v4733, %v4723
    %v6544 = vpack.c.b16 %v4734, %v4724
    %v6545 = vpack.c.b16 %v4735, %v4725
    %v6546 = vpack.c.b16 %v4736, %v4726
    %v6547 = vpack.c.b16 %v4737, %v4727
    %v6548 = vpack.c.b16 %v4738, %v4728
    %v6549 = vpack.c.b16 %v4749, %v4739
    %v6550 = vpack.c.b16 %v4750, %v4740
    %v6551 = vpack.c.b16 %v4751, %v4741
    %v6552 = vpack.c.b16 %v4752, %v4742
    %v6553 = vpack.c.b16 %v4753, %v4743
    %v6554 = vpack.c.b16 %v4754, %v4744
    %v6555 = vpack.c.b16 %v4755, %v4745
    %v6556 = vpack.c.b16 %v4756, %v4746
    %v6557 = vpack.c.b16 %v4757, %v4747
    %v6558 = vpack.c.b16 %v4758, %v4748
    %v6559 = vpack.c.b16 %v4769, %v4759
    %v6560 = vpack.c.b16 %v4770, %v4760
    %v6561 = vpack.c.b16 %v4771, %v4761
    %v6562 = vpack.c.b16 %v4772, %v4762
    %v6563 = vpack.c.b16 %v4773, %v4763
    %v6564 = vpack.c.b16 %v4774, %v4764
    %v6565 = vpack.c.b16 %v4775, %v4765
    %v6566 = vpack.c.b16 %v4776, %v4766
    %v6567 = vpack.c.b16 %v4777, %v4767
    %v6568 = vpack.c.b16 %v4778, %v4768
    %v6569 = vpack.c.b16 %v4789, %v4779
    %v6570 = vpack.c.b16 %v4790, %v4780
    %v6571 = vpack.c.b16 %v4791, %v4781
    %v6572 = vpack.c.b16 %v4792, %v4782
    %v6573 = vpack.c.b16 %v4793, %v4783
    %v6574 = vpack.c.b16 %v4794, %v4784
    %v6575 = vpack.c.b16 %v4795, %v4785
    %v6576 = vpack.c.b16 %v4796, %v4786
    %v6577 = vpack.c.b16 %v4797, %v4787
    %v6578 = vpack.c.b16 %v4798, %v4788
    %v6579 = vpack.c.b16 %v4809, %v4799
    %v6580 = vpack.c.b16 %v4810, %v4800
    %v6581 = vpack.c.b16 %v4811, %v4801
    %v6582 = vpack.c.b16 %v4812, %v4802
    %v6583 = vpack.c.b16 %v4813, %v4803
    %v6584 = vpack.c.b16 %v4814, %v4804
    %v6585 = vpack.c.b16 %v4815, %v4805
    %v6586 = vpack.c.b16 %v4816, %v4806
    %v6587 = vpack.c.b16 %v4817, %v4807
    %v6588 = vpack.c.b16 %v4818, %v4808
    %v6589 = vpack.c.b16 %v4829, %v4819
    %v6590 = vpack.c.b16 %v4830, %v4820
    %v6591 = vpack.c.b16 %v4831, %v4821
    %v6592 = vpack.c.b16 %v4832, %v4822
    %v6593 = vpack.c.b16 %v4833, %v4823
    %v6594 = vpack.c.b16 %v4834, %v4824
    %v6595 = vpack.c.b16 %v4835, %v4825
    %v6596 = vpack.c.b16 %v4836, %v4826
    %v6597 = vpack.c.b16 %v4837, %v4827
    %v6598 = vpack.c.b16 %v4838, %v4828
    %v6599 = vpack.c.b16 %v4849, %v4839
    %v6600 = vpack.c.b16 %v4850, %v4840
    %v6601 = vpack.c.b16 %v4851, %v4841
    %v6602 = vpack.c.b16 %v4852, %v4842
    %v6603 = vpack.c.b16 %v4853, %v4843
    %v6604 = vpack.c.b16 %v4854, %v4844
    %v6605 = vpack.c.b16 %v4855, %v4845
    %v6606 = vpack.c.b16 %v4856, %v4846
    %v6607 = vpack.c.b16 %v4857, %v4847
    %v6608 = vpack.c.b16 %v4858, %v4848
    %v6609 = vpack.c.b16 %v4869, %v4859
    %v6610 = vpack.c.b16 %v4870, %v4860
    %v6611 = vpack.c.b16 %v4871, %v4861
    %v6612 = vpack.c.b16 %v4872, %v4862
    %v6613 = vpack.c.b16 %v4873, %v4863
    %v6614 = vpack.c.b16 %v4874, %v4864
    %v6615 = vpack.c.b16 %v4875, %v4865
    %v6616 = vpack.c.b16 %v4876, %v4866
    %v6617 = vpack.c.b16 %v4877, %v4867
    %v6618 = vpack.c.b16 %v4878, %v4868
    %v6619 = vpack.c.b16 %v4889, %v4879
    %v6620 = vpack.c.b16 %v4890, %v4880
    %v6621 = vpack.c.b16 %v4891, %v4881
    %v6622 = vpack.c.b16 %v4892, %v4882
    %v6623 = vpack.c.b16 %v4893, %v4883
    %v6624 = vpack.c.b16 %v4894, %v4884
    %v6625 = vpack.c.b16 %v4895, %v4885
    %v6626 = vpack.c.b16 %v4896, %v4886
    %v6627 = vpack.c.b16 %v4897, %v4887
    %v6628 = vpack.c.b16 %v4898, %v4888
    %v6629 = vpack.c.b16 %v4909, %v4899
    %v6630 = vpack.c.b16 %v4910, %v4900
    %v6631 = vpack.c.b16 %v4911, %v4901
    %v6632 = vpack.c.b16 %v4912, %v4902
    %v6633 = vpack.c.b16 %v4913, %v4903
    %v6634 = vpack.c.b16 %v4914, %v4904
    %v6635 = vpack.c.b16 %v4915, %v4905
    %v6636 = vpack.c.b16 %v4916, %v4906
    %v6637 = vpack.c.b16 %v4917, %v4907
    %v6638 = vpack.c.b16 %v4918, %v4908
    %v6639 = vpack.c.b16 %v4929, %v4919
    %v6640 = vpack.c.b16 %v4930, %v4920
    %v6641 = vpack.c.b16 %v4931, %v4921
    %v6642 = vpack.c.b16 %v4932, %v4922
    %v6643 = vpack.c.b16 %v4933, %v4923
    %v6644 = vpack.c.b16 %v4934, %v4924
    %v6645 = vpack.c.b16 %v4935, %v4925
    %v6646 = vpack.c.b16 %v4936, %v4926
    %v6647 = vpack.c.b16 %v4937, %v4927
    %v6648 = vpack.c.b16 %v4938, %v4928
    %v6649 = vpack.c.b16 %v4949, %v4939
    %v6650 = vpack.c.b16 %v4950, %v4940
    %v6651 = vpack.c.b16 %v4951, %v4941
    %v6652 = vpack.c.b16 %v4952, %v4942
    %v6653 = vpack.c.b16 %v4953, %v4943
    %v6654 = vpack.c.b16 %v4954, %v4944
    %v6655 = vpack.c.b16 %v4955, %v4945
    %v6656 = vpack.c.b16 %v4956, %v4946
    %v6657 = vpack.c.b16 %v4957, %v4947
    %v6658 = vpack.c.b16 %v4958, %v4948
    %v6659 = vpack.c.b16 %v4969, %v4959
    %v6660 = vpack.c.b16 %v4970, %v4960
    %v6661 = vpack.c.b16 %v4971, %v4961
    %v6662 = vpack.c.b16 %v4972, %v4962
    %v6663 = vpack.c.b16 %v4973, %v4963
    %v6664 = vpack.c.b16 %v4974, %v4964
    %v6665 = vpack.c.b16 %v4975, %v4965
    %v6666 = vpack.c.b16 %v4976, %v4966
    %v6667 = vpack.c.b16 %v4977, %v4967
    %v6668 = vpack.c.b16 %v4978, %v4968
    %v6669 = vpack.c.b16 %v4989, %v4979
    %v6670 = vpack.c.b16 %v4990, %v4980
    %v6671 = vpack.c.b16 %v4991, %v4981
    %v6672 = vpack.c.b16 %v4992, %v4982
    %v6673 = vpack.c.b16 %v4993, %v4983
    %v6674 = vpack.c.b16 %v4994, %v4984
    %v6675 = vpack.c.b16 %v4995, %v4985
    %v6676 = vpack.c.b16 %v4996, %v4986
    %v6677 = vpack.c.b16 %v4997, %v4987
    %v6678 = vpack.c.b16 %v4998, %v4988
    %v6679 = vpack.c.b16 %v5009, %v4999
    %v6680 = vpack.c.b16 %v5010, %v5000
    %v6681 = vpack.c.b16 %v5011, %v5001
    %v6682 = vpack.c.b16 %v5012, %v5002
    %v6683 = vpack.c.b16 %v5013, %v5003
    %v6684 = vpack.c.b16 %v5014, %v5004
    %v6685 = vpack.c.b16 %v5015, %v5005
    %v6686 = vpack.c.b16 %v5016, %v5006
    %v6687 = vpack.c.b16 %v5017, %v5007
    %v6688 = vpack.c.b16 %v5018, %v5008
    %v6689 = vpack.c.b16 %v5029, %v5019
    %v6690 = vpack.c.b16 %v5030, %v5020
    %v6691 = vpack.c.b16 %v5031, %v5021
    %v6692 = vpack.c.b16 %v5032, %v5022
    %v6693 = vpack.c.b16 %v5033, %v5023
    %v6694 = vpack.c.b16 %v5034, %v5024
    %v6695 = vpack.c.b16 %v5035, %v5025
    %v6696 = vpack.c.b16 %v5036, %v5026
    %v6697 = vpack.c.b16 %v5037, %v5027
    %v6698 = vpack.c.b16 %v5038, %v5028
    %v6699 = vpack.c.b16 %v5049, %v5039
    %v6700 = vpack.c.b16 %v5050, %v5040
    %v6701 = vpack.c.b16 %v5051, %v5041
    %v6702 = vpack.c.b16 %v5052, %v5042
    %v6703 = vpack.c.b16 %v5053, %v5043
    %v6704 = vpack.c.b16 %v5054, %v5044
    %v6705 = vpack.c.b16 %v5055, %v5045
    %v6706 = vpack.c.b16 %v5056, %v5046
    %v6707 = vpack.c.b16 %v5057, %v5047
    %v6708 = vpack.c.b16 %v5058, %v5048
    %v6709 = vpack.c.b16 %v5069, %v5059
    %v6710 = vpack.c.b16 %v5070, %v5060
    %v6711 = vpack.c.b16 %v5071, %v5061
    %v6712 = vpack.c.b16 %v5072, %v5062
    %v6713 = vpack.c.b16 %v5073, %v5063
    %v6714 = vpack.c.b16 %v5074, %v5064
    %v6715 = vpack.c.b16 %v5075, %v5065
    %v6716 = vpack.c.b16 %v5076, %v5066
    %v6717 = vpack.c.b16 %v5077, %v5067
    %v6718 = vpack.c.b16 %v5078, %v5068
    %v6719 = vpack.c.b16 %v5089, %v5079
    %v6720 = vpack.c.b16 %v5090, %v5080
    %v6721 = vpack.c.b16 %v5091, %v5081
    %v6722 = vpack.c.b16 %v5092, %v5082
    %v6723 = vpack.c.b16 %v5093, %v5083
    %v6724 = vpack.c.b16 %v5094, %v5084
    %v6725 = vpack.c.b16 %v5095, %v5085
    %v6726 = vpack.c.b16 %v5096, %v5086
    %v6727 = vpack.c.b16 %v5097, %v5087
    %v6728 = vpack.c.b16 %v5098, %v5088
    %v6729 = vpack.c.b16 %v5109, %v5099
    %v6730 = vpack.c.b16 %v5110, %v5100
    %v6731 = vpack.c.b16 %v5111, %v5101
    %v6732 = vpack.c.b16 %v5112, %v5102
    %v6733 = vpack.c.b16 %v5113, %v5103
    %v6734 = vpack.c.b16 %v5114, %v5104
    %v6735 = vpack.c.b16 %v5115, %v5105
    %v6736 = vpack.c.b16 %v5116, %v5106
    %v6737 = vpack.c.b16 %v5117, %v5107
    %v6738 = vpack.c.b16 %v5118, %v5108
    %v6739 = vpack.c.b16 %v5129, %v5119
    %v6740 = vpack.c.b16 %v5130, %v5120
    %v6741 = vpack.c.b16 %v5131, %v5121
    %v6742 = vpack.c.b16 %v5132, %v5122
    %v6743 = vpack.c.b16 %v5133, %v5123
    %v6744 = vpack.c.b16 %v5134, %v5124
    %v6745 = vpack.c.b16 %v5135, %v5125
    %v6746 = vpack.c.b16 %v5136, %v5126
    %v6747 = vpack.c.b16 %v5137, %v5127
    %v6748 = vpack.c.b16 %v5138, %v5128
    %v6749 = vpack.c.b16 %v5149, %v5139
    %v6750 = vpack.c.b16 %v5150, %v5140
    %v6751 = vpack.c.b16 %v5151, %v5141
    %v6752 = vpack.c.b16 %v5152, %v5142
    %v6753 = vpack.c.b16 %v5153, %v5143
    %v6754 = vpack.c.b16 %v5154, %v5144
    %v6755 = vpack.c.b16 %v5155, %v5145
    %v6756 = vpack.c.b16 %v5156, %v5146
    %v6757 = vpack.c.b16 %v5157, %v5147
    %v6758 = vpack.c.b16 %v5158, %v5148
    %v6759 = vpack.c.b16 %v5169, %v5159
    %v6760 = vpack.c.b16 %v5170, %v5160
    %v6761 = vpack.c.b16 %v5171, %v5161
    %v6762 = vpack.c.b16 %v5172, %v5162
    %v6763 = vpack.c.b16 %v5173, %v5163
    %v6764 = vpack.c.b16 %v5174, %v5164
    %v6765 = vpack.c.b16 %v5175, %v5165
    %v6766 = vpack.c.b16 %v5176, %v5166
    %v6767 = vpack.c.b16 %v5177, %v5167
    %v6768 = vpack.c.b16 %v5178, %v5168
    %v6769 = vpack.c.b16 %v5189, %v5179
    %v6770 = vpack.c.b16 %v5190, %v5180
    %v6771 = vpack.c.b16 %v5191, %v5181
    %v6772 = vpack.c.b16 %v5192, %v5182
    %v6773 = vpack.c.b16 %v5193, %v5183
    %v6774 = vpack.c.b16 %v5194, %v5184
    %v6775 = vpack.c.b16 %v5195, %v5185
    %v6776 = vpack.c.b16 %v5196, %v5186
    %v6777 = vpack.c.b16 %v5197, %v5187
    %v6778 = vpack.c.b16 %v5198, %v5188
    %v6779 = vpack.c.b16 %v5209, %v5199
    %v6780 = vpack.c.b16 %v5210, %v5200
    %v6781 = vpack.c.b16 %v5211, %v5201
    %v6782 = vpack.c.b16 %v5212, %v5202
    %v6783 = vpack.c.b16 %v5213, %v5203
    %v6784 = vpack.c.b16 %v5214, %v5204
    %v6785 = vpack.c.b16 %v5215, %v5205
    %v6786 = vpack.c.b16 %v5216, %v5206
    %v6787 = vpack.c.b16 %v5217, %v5207
    %v6788 = vpack.c.b16 %v5218, %v5208
    %v6789 = vpack.c.b16 %v5229, %v5219
    %v6790 = vpack.c.b16 %v5230, %v5220
    %v6791 = vpack.c.b16 %v5231, %v5221
    %v6792 = vpack.c.b16 %v5232, %v5222
    %v6793 = vpack.c.b16 %v5233, %v5223
    %v6794 = vpack.c.b16 %v5234, %v5224
    %v6795 = vpack.c.b16 %v5235, %v5225
    %v6796 = vpack.c.b16 %v5236, %v5226
    %v6797 = vpack.c.b16 %v5237, %v5227
    %v6798 = vpack.c.b16 %v5238, %v5228
    %v6799 = vpack.c.b16 %v5249, %v5239
    %v6800 = vpack.c.b16 %v5250, %v5240
    %v6801 = vpack.c.b16 %v5251, %v5241
    %v6802 = vpack.c.b16 %v5252, %v5242
    %v6803 = vpack.c.b16 %v5253, %v5243
    %v6804 = vpack.c.b16 %v5254, %v5244
    %v6805 = vpack.c.b16 %v5255, %v5245
    %v6806 = vpack.c.b16 %v5256, %v5246
    %v6807 = vpack.c.b16 %v5257, %v5247
    %v6808 = vpack.c.b16 %v5258, %v5248
    %v6809 = vpack.c.b16 %v5269, %v5259
    %v6810 = vpack.c.b16 %v5270, %v5260
    %v6811 = vpack.c.b16 %v5271, %v5261
    %v6812 = vpack.c.b16 %v5272, %v5262
    %v6813 = vpack.c.b16 %v5273, %v5263
    %v6814 = vpack.c.b16 %v5274, %v5264
    %v6815 = vpack.c.b16 %v5275, %v5265
    %v6816 = vpack.c.b16 %v5276, %v5266
    %v6817 = vpack.c.b16 %v5277, %v5267
    %v6818 = vpack.c.b16 %v5278, %v5268
    %v6819 = vpack.c.b16 %v5289, %v5279
    %v6820 = vpack.c.b16 %v5290, %v5280
    %v6821 = vpack.c.b16 %v5291, %v5281
    %v6822 = vpack.c.b16 %v5292, %v5282
    %v6823 = vpack.c.b16 %v5293, %v5283
    %v6824 = vpack.c.b16 %v5294, %v5284
    %v6825 = vpack.c.b16 %v5295, %v5285
    %v6826 = vpack.c.b16 %v5296, %v5286
    %v6827 = vpack.c.b16 %v5297, %v5287
    %v6828 = vpack.c.b16 %v5298, %v5288
    %v6829 = vpack.c.b16 %v5309, %v5299
    %v6830 = vpack.c.b16 %v5310, %v5300
    %v6831 = vpack.c.b16 %v5311, %v5301
    %v6832 = vpack.c.b16 %v5312, %v5302
    %v6833 = vpack.c.b16 %v5313, %v5303
    %v6834 = vpack.c.b16 %v5314, %v5304
    %v6835 = vpack.c.b16 %v5315, %v5305
    %v6836 = vpack.c.b16 %v5316, %v5306
    %v6837 = vpack.c.b16 %v5317, %v5307
    %v6838 = vpack.c.b16 %v5318, %v5308
    %v6839 = vpack.c.b16 %v5329, %v5319
    %v6840 = vpack.c.b16 %v5330, %v5320
    %v6841 = vpack.c.b16 %v5331, %v5321
    %v6842 = vpack.c.b16 %v5332, %v5322
    %v6843 = vpack.c.b16 %v5333, %v5323
    %v6844 = vpack.c.b16 %v5334, %v5324
    %v6845 = vpack.c.b16 %v5335, %v5325
    %v6846 = vpack.c.b16 %v5336, %v5326
    %v6847 = vpack.c.b16 %v5337, %v5327
    %v6848 = vpack.c.b16 %v5338, %v5328
    %v6849 = vpack.c.b16 %v5349, %v5339
    %v6850 = vpack.c.b16 %v5350, %v5340
    %v6851 = vpack.c.b16 %v5351, %v5341
    %v6852 = vpack.c.b16 %v5352, %v5342
    %v6853 = vpack.c.b16 %v5353, %v5343
    %v6854 = vpack.c.b16 %v5354, %v5344
    %v6855 = vpack.c.b16 %v5355, %v5345
    %v6856 = vpack.c.b16 %v5356, %v5346
    %v6857 = vpack.c.b16 %v5357, %v5347
    %v6858 = vpack.c.b16 %v5358, %v5348
    %v6859 = vpack.c.b16 %v5369, %v5359
    %v6860 = vpack.c.b16 %v5370, %v5360
    %v6861 = vpack.c.b16 %v5371, %v5361
    %v6862 = vpack.c.b16 %v5372, %v5362
    %v6863 = vpack.c.b16 %v5373, %v5363
    %v6864 = vpack.c.b16 %v5374, %v5364
    %v6865 = vpack.c.b16 %v5375, %v5365
    %v6866 = vpack.c.b16 %v5376, %v5366
    %v6867 = vpack.c.b16 %v5377, %v5367
    %v6868 = vpack.c.b16 %v5378, %v5368
    %v6869 = vpack.c.b16 %v5389, %v5379
    %v6870 = vpack.c.b16 %v5390, %v5380
    %v6871 = vpack.c.b16 %v5391, %v5381
    %v6872 = vpack.c.b16 %v5392, %v5382
    %v6873 = vpack.c.b16 %v5393, %v5383
    %v6874 = vpack.c.b16 %v5394, %v5384
    %v6875 = vpack.c.b16 %v5395, %v5385
    %v6876 = vpack.c.b16 %v5396, %v5386
    %v6877 = vpack.c.b16 %v5397, %v5387
    %v6878 = vpack.c.b16 %v5398, %v5388
    %v6879 = vpack.c.b16 %v5409, %v5399
    %v6880 = vpack.c.b16 %v5410, %v5400
    %v6881 = vpack.c.b16 %v5411, %v5401
    %v6882 = vpack.c.b16 %v5412, %v5402
    %v6883 = vpack.c.b16 %v5413, %v5403
    %v6884 = vpack.c.b16 %v5414, %v5404
    %v6885 = vpack.c.b16 %v5415, %v5405
    %v6886 = vpack.c.b16 %v5416, %v5406
    %v6887 = vpack.c.b16 %v5417, %v5407
    %v6888 = vpack.c.b16 %v5418, %v5408
    %v6889 = vpack.c.b16 %v5429, %v5419
    %v6890 = vpack.c.b16 %v5430, %v5420
    %v6891 = vpack.c.b16 %v5431, %v5421
    %v6892 = vpack.c.b16 %v5432, %v5422
    %v6893 = vpack.c.b16 %v5433, %v5423
    %v6894 = vpack.c.b16 %v5434, %v5424
    %v6895 = vpack.c.b16 %v5435, %v5425
    %v6896 = vpack.c.b16 %v5436, %v5426
    %v6897 = vpack.c.b16 %v5437, %v5427
    %v6898 = vpack.c.b16 %v5438, %v5428
    %v6899 = vpack.c.b16 %v5449, %v5439
    %v6900 = vpack.c.b16 %v5450, %v5440
    %v6901 = vpack.c.b16 %v5451, %v5441
    %v6902 = vpack.c.b16 %v5452, %v5442
    %v6903 = vpack.c.b16 %v5453, %v5443
    %v6904 = vpack.c.b16 %v5454, %v5444
    %v6905 = vpack.c.b16 %v5455, %v5445
    %v6906 = vpack.c.b16 %v5456, %v5446
    %v6907 = vpack.c.b16 %v5457, %v5447
    %v6908 = vpack.c.b16 %v5458, %v5448
    %v6909 = vpack.c.b16 %v5469, %v5459
    %v6910 = vpack.c.b16 %v5470, %v5460
    %v6911 = vpack.c.b16 %v5471, %v5461
    %v6912 = vpack.c.b16 %v5472, %v5462
    %v6913 = vpack.c.b16 %v5473, %v5463
    %v6914 = vpack.c.b16 %v5474, %v5464
    %v6915 = vpack.c.b16 %v5475, %v5465
    %v6916 = vpack.c.b16 %v5476, %v5466
    %v6917 = vpack.c.b16 %v5477, %v5467
    %v6918 = vpack.c.b16 %v5478, %v5468
    %v6919 = vpack.c.b16 %v5489, %v5479
    %v6920 = vpack.c.b16 %v5490, %v5480
    %v6921 = vpack.c.b16 %v5491, %v5481
    %v6922 = vpack.c.b16 %v5492, %v5482
    %v6923 = vpack.c.b16 %v5493, %v5483
    %v6924 = vpack.c.b16 %v5494, %v5484
    %v6925 = vpack.c.b16 %v5495, %v5485
    %v6926 = vpack.c.b16 %v5496, %v5486
    %v6927 = vpack.c.b16 %v5497, %v5487
    %v6928 = vpack.c.b16 %v5498, %v5488
    %v6929 = vpack.c.b16 %v5509, %v5499
    %v6930 = vpack.c.b16 %v5510, %v5500
    %v6931 = vpack.c.b16 %v5511, %v5501
    %v6932 = vpack.c.b16 %v5512, %v5502
    %v6933 = vpack.c.b16 %v5513, %v5503
    %v6934 = vpack.c.b16 %v5514, %v5504
    %v6935 = vpack.c.b16 %v5515, %v5505
    %v6936 = vpack.c.b16 %v5516, %v5506
    %v6937 = vpack.c.b16 %v5517, %v5507
    %v6938 = vpack.c.b16 %v5518, %v5508
    %v6939 = vpack.c.b16 %v5529, %v5519
    %v6940 = vpack.c.b16 %v5530, %v5520
    %v6941 = vpack.c.b16 %v5531, %v5521
    %v6942 = vpack.c.b16 %v5532, %v5522
    %v6943 = vpack.c.b16 %v5533, %v5523
    %v6944 = vpack.c.b16 %v5534, %v5524
    %v6945 = vpack.c.b16 %v5535, %v5525
    %v6946 = vpack.c.b16 %v5536, %v5526
    %v6947 = vpack.c.b16 %v5537, %v5527
    %v6948 = vpack.c.b16 %v5538, %v5528
    %v6949 = vpack.c.b16 %v5549, %v5539
    %v6950 = vpack.c.b16 %v5550, %v5540
    %v6951 = vpack.c.b16 %v5551, %v5541
    %v6952 = vpack.c.b16 %v5552, %v5542
    %v6953 = vpack.c.b16 %v5553, %v5543
    %v6954 = vpack.c.b16 %v5554, %v5544
    %v6955 = vpack.c.b16 %v5555, %v5545
    %v6956 = vpack.c.b16 %v5556, %v5546
    %v6957 = vpack.c.b16 %v5557, %v5547
    %v6958 = vpack.c.b16 %v5558, %v5548
    %v6959 = vpack.c.b16 %v5569, %v5559
    %v6960 = vpack.c.b16 %v5570, %v5560
    %v6961 = vpack.c.b16 %v5571, %v5561
    %v6962 = vpack.c.b16 %v5572, %v5562
    %v6963 = vpack.c.b16 %v5573, %v5563
    %v6964 = vpack.c.b16 %v5574, %v5564
    %v6965 = vpack.c.b16 %v5575, %v5565
    %v6966 = vpack.c.b16 %v5576, %v5566
    %v6967 = vpack.c.b16 %v5577, %v5567
    %v6968 = vpack.c.b16 %v5578, %v5568
    %v6969 = vpack.c.b16 %v5589, %v5579
    %v6970 = vpack.c.b16 %v5590, %v5580
    %v6971 = vpack.c.b16 %v5591, %v5581
    %v6972 = vpack.c.b16 %v5592, %v5582
    %v6973 = vpack.c.b16 %v5593, %v5583
    %v6974 = vpack.c.b16 %v5594, %v5584
    %v6975 = vpack.c.b16 %v5595, %v5585
    %v6976 = vpack.c.b16 %v5596, %v5586
    %v6977 = vpack.c.b16 %v5597, %v5587
    %v6978 = vpack.c.b16 %v5598, %v5588
    %v6979 = vpack.c.b16 %v5609, %v5599
    %v6980 = vpack.c.b16 %v5610, %v5600
    %v6981 = vpack.c.b16 %v5611, %v5601
    %v6982 = vpack.c.b16 %v5612, %v5602
    %v6983 = vpack.c.b16 %v5613, %v5603
    %v6984 = vpack.c.b16 %v5614, %v5604
    %v6985 = vpack.c.b16 %v5615, %v5605
    %v6986 = vpack.c.b16 %v5616, %v5606
    %v6987 = vpack.c.b16 %v5617, %v5607
    %v6988 = vpack.c.b16 %v5618, %v5608
    %v6989 = vpack.c.b16 %v5629, %v5619
    %v6990 = vpack.c.b16 %v5630, %v5620
    %v6991 = vpack.c.b16 %v5631, %v5621
    %v6992 = vpack.c.b16 %v5632, %v5622
    %v6993 = vpack.c.b16 %v5633, %v5623
    %v6994 = vpack.c.b16 %v5634, %v5624
    %v6995 = vpack.c.b16 %v5635, %v5625
    %v6996 = vpack.c.b16 %v5636, %v5626
    %v6997 = vpack.c.b16 %v5637, %v5627
    %v6998 = vpack.c.b16 %v5638, %v5628
    %v6999 = vpack.c.b16 %v5649, %v5639
    %v7000 = vpack.c.b16 %v5650, %v5640
    %v7001 = vpack.c.b16 %v5651, %v5641
    %v7002 = vpack.c.b16 %v5652, %v5642
    %v7003 = vpack.c.b16 %v5653, %v5643
    %v7004 = vpack.c.b16 %v5654, %v5644
    %v7005 = vpack.c.b16 %v5655, %v5645
    %v7006 = vpack.c.b16 %v5656, %v5646
    %v7007 = vpack.c.b16 %v5657, %v5647
    %v7008 = vpack.c.b16 %v5658, %v5648
    %vm8359 = vcmask 916480
    %v8361 = vsel %vm8359, %v204, 0
    %8363 = vmatprep.subr.bf16.mxu0 %v5660
    %8364 = vmatpush1.bf16.msra.mxu0 %v5659
    %8365 = vmatprep.subr.bf16.mxu0 %v5670
    %8366 = vmatpush1.bf16.msra.mxu0 %v5669
    %8367 = vmatprep.subr.bf16.mxu0 %v5680
    %8368 = vmatpush1.bf16.msra.mxu0 %v5679
    %8369 = vmatprep.subr.bf16.mxu0 %v5690
    %8370 = vmatpush1.bf16.msra.mxu0 %v5689
    %8371 = vmatprep.subr.bf16.mxu0 %v5700
    %8372 = vmatpush1.bf16.msra.mxu0 %v5699
    %8373 = vmatprep.subr.bf16.mxu0 %v5710
    %8374 = vmatpush1.bf16.msra.mxu0 %v5709
    %8375 = vmatprep.subr.bf16.mxu0 %v5720
    %8376 = vmatpush1.bf16.msra.mxu0 %v5719
    %8377 = vmatprep.subr.bf16.mxu0 %v5730
    %8378 = vmatpush1.bf16.msra.mxu0 %v5729
    %8379 = vmatprep.subr.bf16.mxu0 %v5740
    %8380 = vmatpush1.bf16.msra.mxu0 %v5739
    %8381 = vmatprep.subr.bf16.mxu0 %v5750
    %8382 = vmatpush1.bf16.msra.mxu0 %v5749
    %8383 = vmatprep.subr.bf16.mxu0 %v5760
    %8384 = vmatpush1.bf16.msra.mxu0 %v5759
    %8385 = vmatprep.subr.bf16.mxu0 %v5770
    %8386 = vmatpush1.bf16.msra.mxu0 %v5769
    %8387 = vmatprep.subr.bf16.mxu0 %v5780
    %8388 = vmatpush1.bf16.msra.mxu0 %v5779
    %8389 = vmatprep.subr.bf16.mxu0 %v5790
    %8390 = vmatpush1.bf16.msra.mxu0 %v5789
    %8391 = vmatprep.subr.bf16.mxu0 %v5800
    %8392 = vmatpush1.bf16.msra.mxu0 %v5799
    %8393 = vmatprep.subr.bf16.mxu0 %v5810
    %8394 = vmatpush1.bf16.msra.mxu0 %v5809
    %8395 = vmatprep.mubr.bf16.mxu0 %v189
    %8396 = vmatmul.mubr.bf16.gmra.mrb[0].mxu0 %v188
    %v8397 = vpop.f32.mrb[0].mxu0
    %v8398 = vadd.f32 %v1562, %v8397
    %v8399 = vpop.f32.mrb[0].mxu0
    %v8400 = vadd.f32 %v1566, %v8399
    %v8401 = vpop.f32.mrb[0].mxu0
    %v8402 = vpop.f32.mrb[0].mxu0
    %8403 = vdwg.mxu0
    %8404 = vmatprep.subr.bf16.mxu0 %v5820
    %8405 = vmatpush1.bf16.msra.mxu0 %v5819
    %8406 = vmatprep.subr.bf16.mxu0 %v5830
    %8407 = vmatpush1.bf16.msra.mxu0 %v5829
    %8408 = vmatprep.subr.bf16.mxu0 %v5840
    %8409 = vmatpush1.bf16.msra.mxu0 %v5839
    %8410 = vmatprep.subr.bf16.mxu0 %v5850
    %8411 = vmatpush1.bf16.msra.mxu0 %v5849
    %8412 = vmatprep.subr.bf16.mxu0 %v5860
    %8413 = vmatpush1.bf16.msra.mxu0 %v5859
    %8414 = vmatprep.subr.bf16.mxu0 %v5870
    %8415 = vmatpush1.bf16.msra.mxu0 %v5869
    %8416 = vmatprep.subr.bf16.mxu0 %v5880
    %8417 = vmatpush1.bf16.msra.mxu0 %v5879
    %8418 = vmatprep.subr.bf16.mxu0 %v5890
    %8419 = vmatpush1.bf16.msra.mxu0 %v5889
    %8420 = vmatprep.subr.bf16.mxu0 %v5900
    %8421 = vmatpush1.bf16.msra.mxu0 %v5899
    %8422 = vmatprep.subr.bf16.mxu0 %v5910
    %8423 = vmatpush1.bf16.msra.mxu0 %v5909
    %8424 = vmatprep.subr.bf16.mxu0 %v5920
    %8425 = vmatpush1.bf16.msra.mxu0 %v5919
    %8426 = vmatprep.subr.bf16.mxu0 %v5930
    %8427 = vmatpush1.bf16.msra.mxu0 %v5929
    %8428 = vmatprep.subr.bf16.mxu0 %v5940
    %8429 = vmatpush1.bf16.msra.mxu0 %v5939
    %8430 = vmatprep.subr.bf16.mxu0 %v5950
    %8431 = vmatpush1.bf16.msra.mxu0 %v5949
    %8432 = vmatprep.subr.bf16.mxu0 %v5960
    %8433 = vmatpush1.bf16.msra.mxu0 %v5959
    %8434 = vmatprep.subr.bf16.mxu0 %v5970
    %8435 = vmatpush1.bf16.msra.mxu0 %v5969
    %8436 = vmatprep.mubr.bf16.mxu0 %v191
    %8437 = vmatmul.mubr.bf16.gmra.mrb[0].mxu0 %v190
    %v8438 = vpop.f32.mrb[0].mxu0
    %v8439 = vadd.f32 %v8398, %v8438
    %v8440 = vpop.f32.mrb[0].mxu0
    %v8441 = vadd.f32 %v8400, %v8440
    %v8442 = vpop.f32.mrb[0].mxu0
    %v8443 = vpop.f32.mrb[0].mxu0
    %8444 = vdwg.mxu0
    %8445 = vmatprep.subr.bf16.mxu0 %v5980
    %8446 = vmatpush1.bf16.msra.mxu0 %v5979
    %8447 = vmatprep.subr.bf16.mxu0 %v5990
    %8448 = vmatpush1.bf16.msra.mxu0 %v5989
    %8449 = vmatprep.subr.bf16.mxu0 %v6000
    %8450 = vmatpush1.bf16.msra.mxu0 %v5999
    %8451 = vmatprep.subr.bf16.mxu0 %v6010
    %8452 = vmatpush1.bf16.msra.mxu0 %v6009
    %8453 = vmatprep.subr.bf16.mxu0 %v6020
    %8454 = vmatpush1.bf16.msra.mxu0 %v6019
    %8455 = vmatprep.subr.bf16.mxu0 %v6030
    %8456 = vmatpush1.bf16.msra.mxu0 %v6029
    %8457 = vmatprep.subr.bf16.mxu0 %v6040
    %8458 = vmatpush1.bf16.msra.mxu0 %v6039
    %8459 = vmatprep.subr.bf16.mxu0 %v6050
    %8460 = vmatpush1.bf16.msra.mxu0 %v6049
    %8461 = vmatprep.subr.bf16.mxu0 %v6060
    %8462 = vmatpush1.bf16.msra.mxu0 %v6059
    %8463 = vmatprep.subr.bf16.mxu0 %v6070
    %8464 = vmatpush1.bf16.msra.mxu0 %v6069
    %8465 = vmatprep.subr.bf16.mxu0 %v6080
    %8466 = vmatpush1.bf16.msra.mxu0 %v6079
    %8467 = vmatprep.subr.bf16.mxu0 %v6090
    %8468 = vmatpush1.bf16.msra.mxu0 %v6089
    %8469 = vmatprep.subr.bf16.mxu0 %v6100
    %8470 = vmatpush1.bf16.msra.mxu0 %v6099
    %8471 = vmatprep.subr.bf16.mxu0 %v6110
    %8472 = vmatpush1.bf16.msra.mxu0 %v6109
    %8473 = vmatprep.subr.bf16.mxu0 %v6120
    %8474 = vmatpush1.bf16.msra.mxu0 %v6119
    %8475 = vmatprep.subr.bf16.mxu0 %v6130
    %8476 = vmatpush1.bf16.msra.mxu0 %v6129
    %8477 = vmatprep.mubr.bf16.mxu0 %v193
    %8478 = vmatmul.mubr.bf16.gmra.mrb[0].mxu0 %v192
    %v8479 = vpop.f32.mrb[0].mxu0
    %v8480 = vadd.f32 %v8439, %v8479
    %v8481 = vpop.f32.mrb[0].mxu0
    %v8482 = vadd.f32 %v8441, %v8481
    %v8483 = vpop.f32.mrb[0].mxu0
    %v8484 = vpop.f32.mrb[0].mxu0
    %8485 = vdwg.mxu0
    %8486 = vmatprep.subr.bf16.mxu0 %v6140
    %8487 = vmatpush1.bf16.msra.mxu0 %v6139
    %8488 = vmatprep.subr.bf16.mxu0 %v6150
    %8489 = vmatpush1.bf16.msra.mxu0 %v6149
    %8490 = vmatprep.subr.bf16.mxu0 %v6160
    %8491 = vmatpush1.bf16.msra.mxu0 %v6159
    %8492 = vmatprep.subr.bf16.mxu0 %v6170
    %8493 = vmatpush1.bf16.msra.mxu0 %v6169
    %8494 = vmatprep.subr.bf16.mxu0 %v6180
    %8495 = vmatpush1.bf16.msra.mxu0 %v6179
    %8496 = vmatprep.subr.bf16.mxu0 %v6190
    %8497 = vmatpush1.bf16.msra.mxu0 %v6189
    %8498 = vmatprep.subr.bf16.mxu0 %v6200
    %8499 = vmatpush1.bf16.msra.mxu0 %v6199
    %8500 = vmatprep.subr.bf16.mxu0 %v6210
    %8501 = vmatpush1.bf16.msra.mxu0 %v6209
    %8502 = vmatprep.subr.bf16.mxu0 %v6220
    %8503 = vmatpush1.bf16.msra.mxu0 %v6219
    %8504 = vmatprep.subr.bf16.mxu0 %v6230
    %8505 = vmatpush1.bf16.msra.mxu0 %v6229
    %8506 = vmatprep.subr.bf16.mxu0 %v6240
    %8507 = vmatpush1.bf16.msra.mxu0 %v6239
    %8508 = vmatprep.subr.bf16.mxu0 %v6250
    %8509 = vmatpush1.bf16.msra.mxu0 %v6249
    %8510 = vmatprep.subr.bf16.mxu0 %v6260
    %8511 = vmatpush1.bf16.msra.mxu0 %v6259
    %8512 = vmatprep.subr.bf16.mxu0 %v6270
    %8513 = vmatpush1.bf16.msra.mxu0 %v6269
    %8514 = vmatprep.subr.bf16.mxu0 %v6280
    %8515 = vmatpush1.bf16.msra.mxu0 %v6279
    %8516 = vmatprep.subr.bf16.mxu0 %v6290
    %8517 = vmatpush1.bf16.msra.mxu0 %v6289
    %8518 = vmatprep.mubr.bf16.mxu0 %v195
    %8519 = vmatmul.mubr.bf16.gmra.mrb[0].mxu0 %v194
    %v8520 = vpop.f32.mrb[0].mxu0
    %v8521 = vadd.f32 %v8480, %v8520
    %v8522 = vpop.f32.mrb[0].mxu0
    %v8523 = vadd.f32 %v8482, %v8522
    %v8524 = vpop.f32.mrb[0].mxu0
    %v8525 = vpop.f32.mrb[0].mxu0
    %8526 = vdwg.mxu0
    %8527 = vmatprep.subr.bf16.mxu0 %v6300
    %8528 = vmatpush1.bf16.msra.mxu0 %v6299
    %8529 = vmatprep.subr.bf16.mxu0 %v6310
    %8530 = vmatpush1.bf16.msra.mxu0 %v6309
    %8531 = vmatprep.subr.bf16.mxu0 %v6320
    %8532 = vmatpush1.bf16.msra.mxu0 %v6319
    %8533 = vmatprep.subr.bf16.mxu0 %v6330
    %8534 = vmatpush1.bf16.msra.mxu0 %v6329
    %8535 = vmatprep.subr.bf16.mxu0 %v6340
    %8536 = vmatpush1.bf16.msra.mxu0 %v6339
    %8537 = vmatprep.subr.bf16.mxu0 %v6350
    %8538 = vmatpush1.bf16.msra.mxu0 %v6349
    %8539 = vmatprep.subr.bf16.mxu0 %v6360
    %8540 = vmatpush1.bf16.msra.mxu0 %v6359
    %8541 = vmatprep.subr.bf16.mxu0 %v6370
    %8542 = vmatpush1.bf16.msra.mxu0 %v6369
    %8543 = vmatprep.subr.bf16.mxu0 %v6380
    %8544 = vmatpush1.bf16.msra.mxu0 %v6379
    %8545 = vmatprep.subr.bf16.mxu0 %v6390
    %8546 = vmatpush1.bf16.msra.mxu0 %v6389
    %8547 = vmatprep.subr.bf16.mxu0 %v6400
    %8548 = vmatpush1.bf16.msra.mxu0 %v6399
    %8549 = vmatprep.subr.bf16.mxu0 %v6410
    %8550 = vmatpush1.bf16.msra.mxu0 %v6409
    %8551 = vmatprep.subr.bf16.mxu0 %v6420
    %8552 = vmatpush1.bf16.msra.mxu0 %v6419
    %8553 = vmatprep.subr.bf16.mxu0 %v6430
    %8554 = vmatpush1.bf16.msra.mxu0 %v6429
    %8555 = vmatprep.subr.bf16.mxu0 %v6440
    %8556 = vmatpush1.bf16.msra.mxu0 %v6439
    %8557 = vmatprep.subr.bf16.mxu0 %v6450
    %8558 = vmatpush1.bf16.msra.mxu0 %v6449
    %8559 = vmatprep.mubr.bf16.mxu0 %v197
    %8560 = vmatmul.mubr.bf16.gmra.mrb[0].mxu0 %v196
    %v8561 = vpop.f32.mrb[0].mxu0
    %v8562 = vadd.f32 %v8521, %v8561
    %v8563 = vpop.f32.mrb[0].mxu0
    %v8564 = vadd.f32 %v8523, %v8563
    %v8565 = vpop.f32.mrb[0].mxu0
    %v8566 = vpop.f32.mrb[0].mxu0
    %8567 = vdwg.mxu0
    %8568 = vmatprep.subr.bf16.mxu0 %v6460
    %8569 = vmatpush1.bf16.msra.mxu0 %v6459
    %8570 = vmatprep.subr.bf16.mxu0 %v6470
    %8571 = vmatpush1.bf16.msra.mxu0 %v6469
    %8572 = vmatprep.subr.bf16.mxu0 %v6480
    %8573 = vmatpush1.bf16.msra.mxu0 %v6479
    %8574 = vmatprep.subr.bf16.mxu0 %v6490
    %8575 = vmatpush1.bf16.msra.mxu0 %v6489
    %8576 = vmatprep.subr.bf16.mxu0 %v6500
    %8577 = vmatpush1.bf16.msra.mxu0 %v6499
    %8578 = vmatprep.subr.bf16.mxu0 %v6510
    %8579 = vmatpush1.bf16.msra.mxu0 %v6509
    %8580 = vmatprep.subr.bf16.mxu0 %v6520
    %8581 = vmatpush1.bf16.msra.mxu0 %v6519
    %8582 = vmatprep.subr.bf16.mxu0 %v6530
    %8583 = vmatpush1.bf16.msra.mxu0 %v6529
    %8584 = vmatprep.subr.bf16.mxu0 %v6540
    %8585 = vmatpush1.bf16.msra.mxu0 %v6539
    %8586 = vmatprep.subr.bf16.mxu0 %v6550
    %8587 = vmatpush1.bf16.msra.mxu0 %v6549
    %8588 = vmatprep.subr.bf16.mxu0 %v6560
    %8589 = vmatpush1.bf16.msra.mxu0 %v6559
    %8590 = vmatprep.subr.bf16.mxu0 %v6570
    %8591 = vmatpush1.bf16.msra.mxu0 %v6569
    %8592 = vmatprep.subr.bf16.mxu0 %v6580
    %8593 = vmatpush1.bf16.msra.mxu0 %v6579
    %8594 = vmatprep.subr.bf16.mxu0 %v6590
    %8595 = vmatpush1.bf16.msra.mxu0 %v6589
    %8596 = vmatprep.subr.bf16.mxu0 %v6600
    %8597 = vmatpush1.bf16.msra.mxu0 %v6599
    %8598 = vmatprep.subr.bf16.mxu0 %v6610
    %8599 = vmatpush1.bf16.msra.mxu0 %v6609
    %8600 = vmatprep.mubr.bf16.mxu0 %v199
    %8601 = vmatmul.mubr.bf16.gmra.mrb[0].mxu0 %v198
    %v8602 = vpop.f32.mrb[0].mxu0
    %v8603 = vadd.f32 %v8562, %v8602
    %v8604 = vpop.f32.mrb[0].mxu0
    %v8605 = vadd.f32 %v8564, %v8604
    %v8606 = vpop.f32.mrb[0].mxu0
    %v8607 = vpop.f32.mrb[0].mxu0
    %8608 = vdwg.mxu0
    %8609 = vmatprep.subr.bf16.mxu0 %v6620
    %8610 = vmatpush1.bf16.msra.mxu0 %v6619
    %8611 = vmatprep.subr.bf16.mxu0 %v6630
    %8612 = vmatpush1.bf16.msra.mxu0 %v6629
    %8613 = vmatprep.subr.bf16.mxu0 %v6640
    %8614 = vmatpush1.bf16.msra.mxu0 %v6639
    %8615 = vmatprep.subr.bf16.mxu0 %v6650
    %8616 = vmatpush1.bf16.msra.mxu0 %v6649
    %8617 = vmatprep.subr.bf16.mxu0 %v6660
    %8618 = vmatpush1.bf16.msra.mxu0 %v6659
    %8619 = vmatprep.subr.bf16.mxu0 %v6670
    %8620 = vmatpush1.bf16.msra.mxu0 %v6669
    %8621 = vmatprep.subr.bf16.mxu0 %v6680
    %8622 = vmatpush1.bf16.msra.mxu0 %v6679
    %8623 = vmatprep.subr.bf16.mxu0 %v6690
    %8624 = vmatpush1.bf16.msra.mxu0 %v6689
    %8625 = vmatprep.subr.bf16.mxu0 %v6700
    %8626 = vmatpush1.bf16.msra.mxu0 %v6699
    %8627 = vmatprep.subr.bf16.mxu0 %v6710
    %8628 = vmatpush1.bf16.msra.mxu0 %v6709
    %8629 = vmatprep.subr.bf16.mxu0 %v6720
    %8630 = vmatpush1.bf16.msra.mxu0 %v6719
    %8631 = vmatprep.subr.bf16.mxu0 %v6730
    %8632 = vmatpush1.bf16.msra.mxu0 %v6729
    %8633 = vmatprep.subr.bf16.mxu0 %v6740
    %8634 = vmatpush1.bf16.msra.mxu0 %v6739
    %8635 = vmatprep.subr.bf16.mxu0 %v6750
    %8636 = vmatpush1.bf16.msra.mxu0 %v6749
    %8637 = vmatprep.subr.bf16.mxu0 %v6760
    %8638 = vmatpush1.bf16.msra.mxu0 %v6759
    %8639 = vmatprep.subr.bf16.mxu0 %v6770
    %8640 = vmatpush1.bf16.msra.mxu0 %v6769
    %8641 = vmatprep.mubr.bf16.mxu0 %v201
    %8642 = vmatmul.mubr.bf16.gmra.mrb[0].mxu0 %v200
    %v8643 = vpop.f32.mrb[0].mxu0
    %v8644 = vadd.f32 %v8603, %v8643
    %v8645 = vpop.f32.mrb[0].mxu0
    %v8646 = vadd.f32 %v8605, %v8645
    %v8647 = vpop.f32.mrb[0].mxu0
    %v8648 = vpop.f32.mrb[0].mxu0
    %8649 = vdwg.mxu0
    %8650 = vmatprep.subr.bf16.mxu0 %v6780
    %8651 = vmatpush1.bf16.msra.mxu0 %v6779
    %8652 = vmatprep.subr.bf16.mxu0 %v6790
    %8653 = vmatpush1.bf16.msra.mxu0 %v6789
    %8654 = vmatprep.subr.bf16.mxu0 %v6800
    %8655 = vmatpush1.bf16.msra.mxu0 %v6799
    %8656 = vmatprep.subr.bf16.mxu0 %v6810
    %8657 = vmatpush1.bf16.msra.mxu0 %v6809
    %8658 = vmatprep.subr.bf16.mxu0 %v6820
    %8659 = vmatpush1.bf16.msra.mxu0 %v6819
    %8660 = vmatprep.subr.bf16.mxu0 %v6830
    %8661 = vmatpush1.bf16.msra.mxu0 %v6829
    %8662 = vmatprep.subr.bf16.mxu0 %v6840
    %8663 = vmatpush1.bf16.msra.mxu0 %v6839
    %8664 = vmatprep.subr.bf16.mxu0 %v6850
    %8665 = vmatpush1.bf16.msra.mxu0 %v6849
    %8666 = vmatprep.subr.bf16.mxu0 %v6860
    %8667 = vmatpush1.bf16.msra.mxu0 %v6859
    %8668 = vmatprep.subr.bf16.mxu0 %v6870
    %8669 = vmatpush1.bf16.msra.mxu0 %v6869
    %8670 = vmatprep.subr.bf16.mxu0 %v6880
    %8671 = vmatpush1.bf16.msra.mxu0 %v6879
    %8672 = vmatprep.subr.bf16.mxu0 %v6890
    %8673 = vmatpush1.bf16.msra.mxu0 %v6889
    %8674 = vmatprep.subr.bf16.mxu0 %v6900
    %8675 = vmatpush1.bf16.msra.mxu0 %v6899
    %8676 = vmatprep.subr.bf16.mxu0 %v6910
    %8677 = vmatpush1.bf16.msra.mxu0 %v6909
    %8678 = vmatprep.subr.bf16.mxu0 %v6920
    %8679 = vmatpush1.bf16.msra.mxu0 %v6919
    %8680 = vmatprep.subr.bf16.mxu0 %v6930
    %8681 = vmatpush1.bf16.msra.mxu0 %v6929
    %8682 = vmatprep.mubr.bf16.mxu0 %v203
    %8683 = vmatmul.mubr.bf16.gmra.mrb[0].mxu0 %v202
    %v8684 = vpop.f32.mrb[0].mxu0
    %v8685 = vadd.f32 %v8644, %v8684
    %v8686 = vpop.f32.mrb[0].mxu0
    %v8687 = vadd.f32 %v8646, %v8686
    %v8688 = vpop.f32.mrb[0].mxu0
    %v8689 = vpop.f32.mrb[0].mxu0
    %8690 = vdwg.mxu0
    %8691 = vmatprep.subr.bf16.mxu0 %v6940
    %8692 = vmatpush1.bf16.msra.mxu0 %v6939
    %8693 = vmatprep.subr.bf16.mxu0 %v6950
    %8694 = vmatpush1.bf16.msra.mxu0 %v6949
    %8695 = vmatprep.subr.bf16.mxu0 %v6960
    %8696 = vmatpush1.bf16.msra.mxu0 %v6959
    %8697 = vmatprep.subr.bf16.mxu0 %v6970
    %8698 = vmatpush1.bf16.msra.mxu0 %v6969
    %8699 = vmatprep.subr.bf16.mxu0 %v6980
    %8700 = vmatpush1.bf16.msra.mxu0 %v6979
    %8701 = vmatprep.subr.bf16.mxu0 %v6990
    %8702 = vmatpush1.bf16.msra.mxu0 %v6989
    %8703 = vmatprep.subr.bf16.mxu0 %v7000
    %8704 = vmatpush1.bf16.msra.mxu0 %v6999
    %8705 = vmatprep.subr.bf16.mxu0 0
    %8706 = vmatpush1.bf16.msra.mxu0 0
    %8707 = vmatprep.subr.bf16.mxu0 0
    %8708 = vmatpush1.bf16.msra.mxu0 0
    %8709 = vmatprep.subr.bf16.mxu0 0
    %8710 = vmatpush1.bf16.msra.mxu0 0
    %8711 = vmatprep.subr.bf16.mxu0 0
    %8712 = vmatpush1.bf16.msra.mxu0 0
    %8713 = vmatprep.subr.bf16.mxu0 0
    %8714 = vmatpush1.bf16.msra.mxu0 0
    %8715 = vmatprep.subr.bf16.mxu0 0
    %8716 = vmatpush1.bf16.msra.mxu0 0
    %8717 = vmatprep.subr.bf16.mxu0 0
    %8718 = vmatpush1.bf16.msra.mxu0 0
    %8719 = vmatprep.subr.bf16.mxu0 0
    %8720 = vmatpush1.bf16.msra.mxu0 0
    %8721 = vmatprep.subr.bf16.mxu0 0
    %8722 = vmatpush1.bf16.msra.mxu0 0
    %8723 = vmatprep.mubr.bf16.mxu0 0
    %8724 = vmatmul.mubr.bf16.gmra.mrb[0].mxu0 %v8361
    %v8725 = vpop.f32.mrb[0].mxu0
    %v8726 = vadd.f32 %v8685, %v8725
    %v8727 = vpop.f32.mrb[0].mxu0
    %v8728 = vadd.f32 %v8687, %v8727
    %v8729 = vpop.f32.mrb[0].mxu0
    %v8730 = vpop.f32.mrb[0].mxu0
    %8731 = vdwg.mxu0
    %8732 = vmatprep.subr.bf16.mxu0 %v5662
    %8733 = vmatpush1.bf16.msra.mxu0 %v5661
    %8734 = vmatprep.subr.bf16.mxu0 %v5672
    %8735 = vmatpush1.bf16.msra.mxu0 %v5671
    %8736 = vmatprep.subr.bf16.mxu0 %v5682
    %8737 = vmatpush1.bf16.msra.mxu0 %v5681
    %8738 = vmatprep.subr.bf16.mxu0 %v5692
    %8739 = vmatpush1.bf16.msra.mxu0 %v5691
    %8740 = vmatprep.subr.bf16.mxu0 %v5702
    %8741 = vmatpush1.bf16.msra.mxu0 %v5701
    %8742 = vmatprep.subr.bf16.mxu0 %v5712
    %8743 = vmatpush1.bf16.msra.mxu0 %v5711
    %8744 = vmatprep.subr.bf16.mxu0 %v5722
    %8745 = vmatpush1.bf16.msra.mxu0 %v5721
    %8746 = vmatprep.subr.bf16.mxu0 %v5732
    %8747 = vmatpush1.bf16.msra.mxu0 %v5731
    %8748 = vmatprep.subr.bf16.mxu0 %v5742
    %8749 = vmatpush1.bf16.msra.mxu0 %v5741
    %8750 = vmatprep.subr.bf16.mxu0 %v5752
    %8751 = vmatpush1.bf16.msra.mxu0 %v5751
    %8752 = vmatprep.subr.bf16.mxu0 %v5762
    %8753 = vmatpush1.bf16.msra.mxu0 %v5761
    %8754 = vmatprep.subr.bf16.mxu0 %v5772
    %8755 = vmatpush1.bf16.msra.mxu0 %v5771
    %8756 = vmatprep.subr.bf16.mxu0 %v5782
    %8757 = vmatpush1.bf16.msra.mxu0 %v5781
    %8758 = vmatprep.subr.bf16.mxu0 %v5792
    %8759 = vmatpush1.bf16.msra.mxu0 %v5791
    %8760 = vmatprep.subr.bf16.mxu0 %v5802
    %8761 = vmatpush1.bf16.msra.mxu0 %v5801
    %8762 = vmatprep.subr.bf16.mxu0 %v5812
    %8763 = vmatpush1.bf16.msra.mxu0 %v5811
    %8764 = vmatprep.mubr.bf16.mxu0 %v189
    %8765 = vmatmul.mubr.bf16.gmra.mrb[0].mxu0 %v188
    %v8766 = vpop.f32.mrb[0].mxu0
    %v8767 = vadd.f32 %v1570, %v8766
    %v8768 = vpop.f32.mrb[0].mxu0
    %v8769 = vadd.f32 %v1574, %v8768
    %v8770 = vpop.f32.mrb[0].mxu0
    %v8771 = vpop.f32.mrb[0].mxu0
    %8772 = vdwg.mxu0
    %8773 = vmatprep.subr.bf16.mxu0 %v5822
    %8774 = vmatpush1.bf16.msra.mxu0 %v5821
    %8775 = vmatprep.subr.bf16.mxu0 %v5832
    %8776 = vmatpush1.bf16.msra.mxu0 %v5831
    %8777 = vmatprep.subr.bf16.mxu0 %v5842
    %8778 = vmatpush1.bf16.msra.mxu0 %v5841
    %8779 = vmatprep.subr.bf16.mxu0 %v5852
    %8780 = vmatpush1.bf16.msra.mxu0 %v5851
    %8781 = vmatprep.subr.bf16.mxu0 %v5862
    %8782 = vmatpush1.bf16.msra.mxu0 %v5861
    %8783 = vmatprep.subr.bf16.mxu0 %v5872
    %8784 = vmatpush1.bf16.msra.mxu0 %v5871
    %8785 = vmatprep.subr.bf16.mxu0 %v5882
    %8786 = vmatpush1.bf16.msra.mxu0 %v5881
    %8787 = vmatprep.subr.bf16.mxu0 %v5892
    %8788 = vmatpush1.bf16.msra.mxu0 %v5891
    %8789 = vmatprep.subr.bf16.mxu0 %v5902
    %8790 = vmatpush1.bf16.msra.mxu0 %v5901
    %8791 = vmatprep.subr.bf16.mxu0 %v5912
    %8792 = vmatpush1.bf16.msra.mxu0 %v5911
    %8793 = vmatprep.subr.bf16.mxu0 %v5922
    %8794 = vmatpush1.bf16.msra.mxu0 %v5921
    %8795 = vmatprep.subr.bf16.mxu0 %v5932
    %8796 = vmatpush1.bf16.msra.mxu0 %v5931
    %8797 = vmatprep.subr.bf16.mxu0 %v5942
    %8798 = vmatpush1.bf16.msra.mxu0 %v5941
    %8799 = vmatprep.subr.bf16.mxu0 %v5952
    %8800 = vmatpush1.bf16.msra.mxu0 %v5951
    %8801 = vmatprep.subr.bf16.mxu0 %v5962
    %8802 = vmatpush1.bf16.msra.mxu0 %v5961
    %8803 = vmatprep.subr.bf16.mxu0 %v5972
    %8804 = vmatpush1.bf16.msra.mxu0 %v5971
    %8805 = vmatprep.mubr.bf16.mxu0 %v191
    %8806 = vmatmul.mubr.bf16.gmra.mrb[0].mxu0 %v190
    %v8807 = vpop.f32.mrb[0].mxu0
    %v8808 = vadd.f32 %v8767, %v8807
    %v8809 = vpop.f32.mrb[0].mxu0
    %v8810 = vadd.f32 %v8769, %v8809
    %v8811 = vpop.f32.mrb[0].mxu0
    %v8812 = vpop.f32.mrb[0].mxu0
    %8813 = vdwg.mxu0
    %8814 = vmatprep.subr.bf16.mxu0 %v5982
    %8815 = vmatpush1.bf16.msra.mxu0 %v5981
    %8816 = vmatprep.subr.bf16.mxu0 %v5992
    %8817 = vmatpush1.bf16.msra.mxu0 %v5991
    %8818 = vmatprep.subr.bf16.mxu0 %v6002
    %8819 = vmatpush1.bf16.msra.mxu0 %v6001
    %8820 = vmatprep.subr.bf16.mxu0 %v6012
    %8821 = vmatpush1.bf16.msra.mxu0 %v6011
    %8822 = vmatprep.subr.bf16.mxu0 %v6022
    %8823 = vmatpush1.bf16.msra.mxu0 %v6021
    %8824 = vmatprep.subr.bf16.mxu0 %v6032
    %8825 = vmatpush1.bf16.msra.mxu0 %v6031
    %8826 = vmatprep.subr.bf16.mxu0 %v6042
    %8827 = vmatpush1.bf16.msra.mxu0 %v6041
    %8828 = vmatprep.subr.bf16.mxu0 %v6052
    %8829 = vmatpush1.bf16.msra.mxu0 %v6051
    %8830 = vmatprep.subr.bf16.mxu0 %v6062
    %8831 = vmatpush1.bf16.msra.mxu0 %v6061
    %8832 = vmatprep.subr.bf16.mxu0 %v6072
    %8833 = vmatpush1.bf16.msra.mxu0 %v6071
    %8834 = vmatprep.subr.bf16.mxu0 %v6082
    %8835 = vmatpush1.bf16.msra.mxu0 %v6081
    %8836 = vmatprep.subr.bf16.mxu0 %v6092
    %8837 = vmatpush1.bf16.msra.mxu0 %v6091
    %8838 = vmatprep.subr.bf16.mxu0 %v6102
    %8839 = vmatpush1.bf16.msra.mxu0 %v6101
    %8840 = vmatprep.subr.bf16.mxu0 %v6112
    %8841 = vmatpush1.bf16.msra.mxu0 %v6111
    %8842 = vmatprep.subr.bf16.mxu0 %v6122
    %8843 = vmatpush1.bf16.msra.mxu0 %v6121
    %8844 = vmatprep.subr.bf16.mxu0 %v6132
    %8845 = vmatpush1.bf16.msra.mxu0 %v6131
    %8846 = vmatprep.mubr.bf16.mxu0 %v193
    %8847 = vmatmul.mubr.bf16.gmra.mrb[0].mxu0 %v192
    %v8848 = vpop.f32.mrb[0].mxu0
    %v8849 = vadd.f32 %v8808, %v8848
    %v8850 = vpop.f32.mrb[0].mxu0
    %v8851 = vadd.f32 %v8810, %v8850
    %v8852 = vpop.f32.mrb[0].mxu0
    %v8853 = vpop.f32.mrb[0].mxu0
    %8854 = vdwg.mxu0
    %8855 = vmatprep.subr.bf16.mxu0 %v6142
    %8856 = vmatpush1.bf16.msra.mxu0 %v6141
    %8857 = vmatprep.subr.bf16.mxu0 %v6152
    %8858 = vmatpush1.bf16.msra.mxu0 %v6151
    %8859 = vmatprep.subr.bf16.mxu0 %v6162
    %8860 = vmatpush1.bf16.msra.mxu0 %v6161
    %8861 = vmatprep.subr.bf16.mxu0 %v6172
    %8862 = vmatpush1.bf16.msra.mxu0 %v6171
    %8863 = vmatprep.subr.bf16.mxu0 %v6182
    %8864 = vmatpush1.bf16.msra.mxu0 %v6181
    %8865 = vmatprep.subr.bf16.mxu0 %v6192
    %8866 = vmatpush1.bf16.msra.mxu0 %v6191
    %8867 = vmatprep.subr.bf16.mxu0 %v6202
    %8868 = vmatpush1.bf16.msra.mxu0 %v6201
    %8869 = vmatprep.subr.bf16.mxu0 %v6212
    %8870 = vmatpush1.bf16.msra.mxu0 %v6211
    %8871 = vmatprep.subr.bf16.mxu0 %v6222
    %8872 = vmatpush1.bf16.msra.mxu0 %v6221
    %8873 = vmatprep.subr.bf16.mxu0 %v6232
    %8874 = vmatpush1.bf16.msra.mxu0 %v6231
    %8875 = vmatprep.subr.bf16.mxu0 %v6242
    %8876 = vmatpush1.bf16.msra.mxu0 %v6241
    %8877 = vmatprep.subr.bf16.mxu0 %v6252
    %8878 = vmatpush1.bf16.msra.mxu0 %v6251
    %8879 = vmatprep.subr.bf16.mxu0 %v6262
    %8880 = vmatpush1.bf16.msra.mxu0 %v6261
    %8881 = vmatprep.subr.bf16.mxu0 %v6272
    %8882 = vmatpush1.bf16.msra.mxu0 %v6271
    %8883 = vmatprep.subr.bf16.mxu0 %v6282
    %8884 = vmatpush1.bf16.msra.mxu0 %v6281
    %8885 = vmatprep.subr.bf16.mxu0 %v6292
    %8886 = vmatpush1.bf16.msra.mxu0 %v6291
    %8887 = vmatprep.mubr.bf16.mxu0 %v195
    %8888 = vmatmul.mubr.bf16.gmra.mrb[0].mxu0 %v194
    %v8889 = vpop.f32.mrb[0].mxu0
    %v8890 = vadd.f32 %v8849, %v8889
    %v8891 = vpop.f32.mrb[0].mxu0
    %v8892 = vadd.f32 %v8851, %v8891
    %v8893 = vpop.f32.mrb[0].mxu0
    %v8894 = vpop.f32.mrb[0].mxu0
    %8895 = vdwg.mxu0
    %8896 = vmatprep.subr.bf16.mxu0 %v6302
    %8897 = vmatpush1.bf16.msra.mxu0 %v6301
    %8898 = vmatprep.subr.bf16.mxu0 %v6312
    %8899 = vmatpush1.bf16.msra.mxu0 %v6311
    %8900 = vmatprep.subr.bf16.mxu0 %v6322
    %8901 = vmatpush1.bf16.msra.mxu0 %v6321
    %8902 = vmatprep.subr.bf16.mxu0 %v6332
    %8903 = vmatpush1.bf16.msra.mxu0 %v6331
    %8904 = vmatprep.subr.bf16.mxu0 %v6342
    %8905 = vmatpush1.bf16.msra.mxu0 %v6341
    %8906 = vmatprep.subr.bf16.mxu0 %v6352
    %8907 = vmatpush1.bf16.msra.mxu0 %v6351
    %8908 = vmatprep.subr.bf16.mxu0 %v6362
    %8909 = vmatpush1.bf16.msra.mxu0 %v6361
    %8910 = vmatprep.subr.bf16.mxu0 %v6372
    %8911 = vmatpush1.bf16.msra.mxu0 %v6371
    %8912 = vmatprep.subr.bf16.mxu0 %v6382
    %8913 = vmatpush1.bf16.msra.mxu0 %v6381
    %8914 = vmatprep.subr.bf16.mxu0 %v6392
    %8915 = vmatpush1.bf16.msra.mxu0 %v6391
    %8916 = vmatprep.subr.bf16.mxu0 %v6402
    %8917 = vmatpush1.bf16.msra.mxu0 %v6401
    %8918 = vmatprep.subr.bf16.mxu0 %v6412
    %8919 = vmatpush1.bf16.msra.mxu0 %v6411
    %8920 = vmatprep.subr.bf16.mxu0 %v6422
    %8921 = vmatpush1.bf16.msra.mxu0 %v6421
    %8922 = vmatprep.subr.bf16.mxu0 %v6432
    %8923 = vmatpush1.bf16.msra.mxu0 %v6431
    %8924 = vmatprep.subr.bf16.mxu0 %v6442
    %8925 = vmatpush1.bf16.msra.mxu0 %v6441
    %8926 = vmatprep.subr.bf16.mxu0 %v6452
    %8927 = vmatpush1.bf16.msra.mxu0 %v6451
    %8928 = vmatprep.mubr.bf16.mxu0 %v197
    %8929 = vmatmul.mubr.bf16.gmra.mrb[0].mxu0 %v196
    %v8930 = vpop.f32.mrb[0].mxu0
    %v8931 = vadd.f32 %v8890, %v8930
    %v8932 = vpop.f32.mrb[0].mxu0
    %v8933 = vadd.f32 %v8892, %v8932
    %v8934 = vpop.f32.mrb[0].mxu0
    %v8935 = vpop.f32.mrb[0].mxu0
    %8936 = vdwg.mxu0
    %8937 = vmatprep.subr.bf16.mxu0 %v6462
    %8938 = vmatpush1.bf16.msra.mxu0 %v6461
    %8939 = vmatprep.subr.bf16.mxu0 %v6472
    %8940 = vmatpush1.bf16.msra.mxu0 %v6471
    %8941 = vmatprep.subr.bf16.mxu0 %v6482
    %8942 = vmatpush1.bf16.msra.mxu0 %v6481
    %8943 = vmatprep.subr.bf16.mxu0 %v6492
    %8944 = vmatpush1.bf16.msra.mxu0 %v6491
    %8945 = vmatprep.subr.bf16.mxu0 %v6502
    %8946 = vmatpush1.bf16.msra.mxu0 %v6501
    %8947 = vmatprep.subr.bf16.mxu0 %v6512
    %8948 = vmatpush1.bf16.msra.mxu0 %v6511
    %8949 = vmatprep.subr.bf16.mxu0 %v6522
    %8950 = vmatpush1.bf16.msra.mxu0 %v6521
    %8951 = vmatprep.subr.bf16.mxu0 %v6532
    %8952 = vmatpush1.bf16.msra.mxu0 %v6531
    %8953 = vmatprep.subr.bf16.mxu0 %v6542
    %8954 = vmatpush1.bf16.msra.mxu0 %v6541
    %8955 = vmatprep.subr.bf16.mxu0 %v6552
    %8956 = vmatpush1.bf16.msra.mxu0 %v6551
    %8957 = vmatprep.subr.bf16.mxu0 %v6562
    %8958 = vmatpush1.bf16.msra.mxu0 %v6561
    %8959 = vmatprep.subr.bf16.mxu0 %v6572
    %8960 = vmatpush1.bf16.msra.mxu0 %v6571
    %8961 = vmatprep.subr.bf16.mxu0 %v6582
    %8962 = vmatpush1.bf16.msra.mxu0 %v6581
    %8963 = vmatprep.subr.bf16.mxu0 %v6592
    %8964 = vmatpush1.bf16.msra.mxu0 %v6591
    %8965 = vmatprep.subr.bf16.mxu0 %v6602
    %8966 = vmatpush1.bf16.msra.mxu0 %v6601
    %8967 = vmatprep.subr.bf16.mxu0 %v6612
    %8968 = vmatpush1.bf16.msra.mxu0 %v6611
    %8969 = vmatprep.mubr.bf16.mxu0 %v199
    %8970 = vmatmul.mubr.bf16.gmra.mrb[0].mxu0 %v198
    %v8971 = vpop.f32.mrb[0].mxu0
    %v8972 = vadd.f32 %v8931, %v8971
    %v8973 = vpop.f32.mrb[0].mxu0
    %v8974 = vadd.f32 %v8933, %v8973
    %v8975 = vpop.f32.mrb[0].mxu0
    %v8976 = vpop.f32.mrb[0].mxu0
    %8977 = vdwg.mxu0
    %8978 = vmatprep.subr.bf16.mxu0 %v6622
    %8979 = vmatpush1.bf16.msra.mxu0 %v6621
    %8980 = vmatprep.subr.bf16.mxu0 %v6632
    %8981 = vmatpush1.bf16.msra.mxu0 %v6631
    %8982 = vmatprep.subr.bf16.mxu0 %v6642
    %8983 = vmatpush1.bf16.msra.mxu0 %v6641
    %8984 = vmatprep.subr.bf16.mxu0 %v6652
    %8985 = vmatpush1.bf16.msra.mxu0 %v6651
    %8986 = vmatprep.subr.bf16.mxu0 %v6662
    %8987 = vmatpush1.bf16.msra.mxu0 %v6661
    %8988 = vmatprep.subr.bf16.mxu0 %v6672
    %8989 = vmatpush1.bf16.msra.mxu0 %v6671
    %8990 = vmatprep.subr.bf16.mxu0 %v6682
    %8991 = vmatpush1.bf16.msra.mxu0 %v6681
    %8992 = vmatprep.subr.bf16.mxu0 %v6692
    %8993 = vmatpush1.bf16.msra.mxu0 %v6691
    %8994 = vmatprep.subr.bf16.mxu0 %v6702
    %8995 = vmatpush1.bf16.msra.mxu0 %v6701
    %8996 = vmatprep.subr.bf16.mxu0 %v6712
    %8997 = vmatpush1.bf16.msra.mxu0 %v6711
    %8998 = vmatprep.subr.bf16.mxu0 %v6722
    %8999 = vmatpush1.bf16.msra.mxu0 %v6721
    %9000 = vmatprep.subr.bf16.mxu0 %v6732
    %9001 = vmatpush1.bf16.msra.mxu0 %v6731
    %9002 = vmatprep.subr.bf16.mxu0 %v6742
    %9003 = vmatpush1.bf16.msra.mxu0 %v6741
    %9004 = vmatprep.subr.bf16.mxu0 %v6752
    %9005 = vmatpush1.bf16.msra.mxu0 %v6751
    %9006 = vmatprep.subr.bf16.mxu0 %v6762
    %9007 = vmatpush1.bf16.msra.mxu0 %v6761
    %9008 = vmatprep.subr.bf16.mxu0 %v6772
    %9009 = vmatpush1.bf16.msra.mxu0 %v6771
    %9010 = vmatprep.mubr.bf16.mxu0 %v201
    %9011 = vmatmul.mubr.bf16.gmra.mrb[0].mxu0 %v200
    %v9012 = vpop.f32.mrb[0].mxu0
    %v9013 = vadd.f32 %v8972, %v9012
    %v9014 = vpop.f32.mrb[0].mxu0
    %v9015 = vadd.f32 %v8974, %v9014
    %v9016 = vpop.f32.mrb[0].mxu0
    %v9017 = vpop.f32.mrb[0].mxu0
    %9018 = vdwg.mxu0
    %9019 = vmatprep.subr.bf16.mxu0 %v6782
    %9020 = vmatpush1.bf16.msra.mxu0 %v6781
    %9021 = vmatprep.subr.bf16.mxu0 %v6792
    %9022 = vmatpush1.bf16.msra.mxu0 %v6791
    %9023 = vmatprep.subr.bf16.mxu0 %v6802
    %9024 = vmatpush1.bf16.msra.mxu0 %v6801
    %9025 = vmatprep.subr.bf16.mxu0 %v6812
    %9026 = vmatpush1.bf16.msra.mxu0 %v6811
    %9027 = vmatprep.subr.bf16.mxu0 %v6822
    %9028 = vmatpush1.bf16.msra.mxu0 %v6821
    %9029 = vmatprep.subr.bf16.mxu0 %v6832
    %9030 = vmatpush1.bf16.msra.mxu0 %v6831
    %9031 = vmatprep.subr.bf16.mxu0 %v6842
    %9032 = vmatpush1.bf16.msra.mxu0 %v6841
    %9033 = vmatprep.subr.bf16.mxu0 %v6852
    %9034 = vmatpush1.bf16.msra.mxu0 %v6851
    %9035 = vmatprep.subr.bf16.mxu0 %v6862
    %9036 = vmatpush1.bf16.msra.mxu0 %v6861
    %9037 = vmatprep.subr.bf16.mxu0 %v6872
    %9038 = vmatpush1.bf16.msra.mxu0 %v6871
    %9039 = vmatprep.subr.bf16.mxu0 %v6882
    %9040 = vmatpush1.bf16.msra.mxu0 %v6881
    %9041 = vmatprep.subr.bf16.mxu0 %v6892
    %9042 = vmatpush1.bf16.msra.mxu0 %v6891
    %9043 = vmatprep.subr.bf16.mxu0 %v6902
    %9044 = vmatpush1.bf16.msra.mxu0 %v6901
    %9045 = vmatprep.subr.bf16.mxu0 %v6912
    %9046 = vmatpush1.bf16.msra.mxu0 %v6911
    %9047 = vmatprep.subr.bf16.mxu0 %v6922
    %9048 = vmatpush1.bf16.msra.mxu0 %v6921
    %9049 = vmatprep.subr.bf16.mxu0 %v6932
    %9050 = vmatpush1.bf16.msra.mxu0 %v6931
    %9051 = vmatprep.mubr.bf16.mxu0 %v203
    %9052 = vmatmul.mubr.bf16.gmra.mrb[0].mxu0 %v202
    %v9053 = vpop.f32.mrb[0].mxu0
    %v9054 = vadd.f32 %v9013, %v9053
    %v9055 = vpop.f32.mrb[0].mxu0
    %v9056 = vadd.f32 %v9015, %v9055
    %v9057 = vpop.f32.mrb[0].mxu0
    %v9058 = vpop.f32.mrb[0].mxu0
    %9059 = vdwg.mxu0
    %9060 = vmatprep.subr.bf16.mxu0 %v6942
    %9061 = vmatpush1.bf16.msra.mxu0 %v6941
    %9062 = vmatprep.subr.bf16.mxu0 %v6952
    %9063 = vmatpush1.bf16.msra.mxu0 %v6951
    %9064 = vmatprep.subr.bf16.mxu0 %v6962
    %9065 = vmatpush1.bf16.msra.mxu0 %v6961
    %9066 = vmatprep.subr.bf16.mxu0 %v6972
    %9067 = vmatpush1.bf16.msra.mxu0 %v6971
    %9068 = vmatprep.subr.bf16.mxu0 %v6982
    %9069 = vmatpush1.bf16.msra.mxu0 %v6981
    %9070 = vmatprep.subr.bf16.mxu0 %v6992
    %9071 = vmatpush1.bf16.msra.mxu0 %v6991
    %9072 = vmatprep.subr.bf16.mxu0 %v7002
    %9073 = vmatpush1.bf16.msra.mxu0 %v7001
    %9074 = vmatprep.subr.bf16.mxu0 0
    %9075 = vmatpush1.bf16.msra.mxu0 0
    %9076 = vmatprep.subr.bf16.mxu0 0
    %9077 = vmatpush1.bf16.msra.mxu0 0
    %9078 = vmatprep.subr.bf16.mxu0 0
    %9079 = vmatpush1.bf16.msra.mxu0 0
    %9080 = vmatprep.subr.bf16.mxu0 0
    %9081 = vmatpush1.bf16.msra.mxu0 0
    %9082 = vmatprep.subr.bf16.mxu0 0
    %9083 = vmatpush1.bf16.msra.mxu0 0
    %9084 = vmatprep.subr.bf16.mxu0 0
    %9085 = vmatpush1.bf16.msra.mxu0 0
    %9086 = vmatprep.subr.bf16.mxu0 0
    %9087 = vmatpush1.bf16.msra.mxu0 0
    %9088 = vmatprep.subr.bf16.mxu0 0
    %9089 = vmatpush1.bf16.msra.mxu0 0
    %9090 = vmatprep.subr.bf16.mxu0 0
    %9091 = vmatpush1.bf16.msra.mxu0 0
    %9092 = vmatprep.mubr.bf16.mxu0 0
    %9093 = vmatmul.mubr.bf16.gmra.mrb[0].mxu0 %v8361
    %v9094 = vpop.f32.mrb[0].mxu0
    %v9095 = vadd.f32 %v9054, %v9094
    %v9096 = vpop.f32.mrb[0].mxu0
    %v9097 = vadd.f32 %v9056, %v9096
    %v9098 = vpop.f32.mrb[0].mxu0
    %v9099 = vpop.f32.mrb[0].mxu0
    %9100 = vdwg.mxu0
    %9101 = vmatprep.subr.bf16.mxu0 %v5664
    %9102 = vmatpush1.bf16.msra.mxu0 %v5663
    %9103 = vmatprep.subr.bf16.mxu0 %v5674
    %9104 = vmatpush1.bf16.msra.mxu0 %v5673
    %9105 = vmatprep.subr.bf16.mxu0 %v5684
    %9106 = vmatpush1.bf16.msra.mxu0 %v5683
    %9107 = vmatprep.subr.bf16.mxu0 %v5694
    %9108 = vmatpush1.bf16.msra.mxu0 %v5693
    %9109 = vmatprep.subr.bf16.mxu0 %v5704
    %9110 = vmatpush1.bf16.msra.mxu0 %v5703
    %9111 = vmatprep.subr.bf16.mxu0 %v5714
    %9112 = vmatpush1.bf16.msra.mxu0 %v5713
    %9113 = vmatprep.subr.bf16.mxu0 %v5724
    %9114 = vmatpush1.bf16.msra.mxu0 %v5723
    %9115 = vmatprep.subr.bf16.mxu0 %v5734
    %9116 = vmatpush1.bf16.msra.mxu0 %v5733
    %9117 = vmatprep.subr.bf16.mxu0 %v5744
    %9118 = vmatpush1.bf16.msra.mxu0 %v5743
    %9119 = vmatprep.subr.bf16.mxu0 %v5754
    %9120 = vmatpush1.bf16.msra.mxu0 %v5753
    %9121 = vmatprep.subr.bf16.mxu0 %v5764
    %9122 = vmatpush1.bf16.msra.mxu0 %v5763
    %9123 = vmatprep.subr.bf16.mxu0 %v5774
    %9124 = vmatpush1.bf16.msra.mxu0 %v5773
    %9125 = vmatprep.subr.bf16.mxu0 %v5784
    %9126 = vmatpush1.bf16.msra.mxu0 %v5783
    %9127 = vmatprep.subr.bf16.mxu0 %v5794
    %9128 = vmatpush1.bf16.msra.mxu0 %v5793
    %9129 = vmatprep.subr.bf16.mxu0 %v5804
    %9130 = vmatpush1.bf16.msra.mxu0 %v5803
    %9131 = vmatprep.subr.bf16.mxu0 %v5814
    %9132 = vmatpush1.bf16.msra.mxu0 %v5813
    %9133 = vmatprep.mubr.bf16.mxu0 %v189
    %9134 = vmatmul.mubr.bf16.gmra.mrb[0].mxu0 %v188
    %v9135 = vpop.f32.mrb[0].mxu0
    %v9136 = vadd.f32 %v1578, %v9135
    %v9137 = vpop.f32.mrb[0].mxu0
    %v9138 = vadd.f32 %v1582, %v9137
    %v9139 = vpop.f32.mrb[0].mxu0
    %v9140 = vpop.f32.mrb[0].mxu0
    %9141 = vdwg.mxu0
    %9142 = vmatprep.subr.bf16.mxu0 %v5824
    %9143 = vmatpush1.bf16.msra.mxu0 %v5823
    %9144 = vmatprep.subr.bf16.mxu0 %v5834
    %9145 = vmatpush1.bf16.msra.mxu0 %v5833
    %9146 = vmatprep.subr.bf16.mxu0 %v5844
    %9147 = vmatpush1.bf16.msra.mxu0 %v5843
    %9148 = vmatprep.subr.bf16.mxu0 %v5854
    %9149 = vmatpush1.bf16.msra.mxu0 %v5853
    %9150 = vmatprep.subr.bf16.mxu0 %v5864
    %9151 = vmatpush1.bf16.msra.mxu0 %v5863
    %9152 = vmatprep.subr.bf16.mxu0 %v5874
    %9153 = vmatpush1.bf16.msra.mxu0 %v5873
    %9154 = vmatprep.subr.bf16.mxu0 %v5884
    %9155 = vmatpush1.bf16.msra.mxu0 %v5883
    %9156 = vmatprep.subr.bf16.mxu0 %v5894
    %9157 = vmatpush1.bf16.msra.mxu0 %v5893
    %9158 = vmatprep.subr.bf16.mxu0 %v5904
    %9159 = vmatpush1.bf16.msra.mxu0 %v5903
    %9160 = vmatprep.subr.bf16.mxu0 %v5914
    %9161 = vmatpush1.bf16.msra.mxu0 %v5913
    %9162 = vmatprep.subr.bf16.mxu0 %v5924
    %9163 = vmatpush1.bf16.msra.mxu0 %v5923
    %9164 = vmatprep.subr.bf16.mxu0 %v5934
    %9165 = vmatpush1.bf16.msra.mxu0 %v5933
    %9166 = vmatprep.subr.bf16.mxu0 %v5944
    %9167 = vmatpush1.bf16.msra.mxu0 %v5943
    %9168 = vmatprep.subr.bf16.mxu0 %v5954
    %9169 = vmatpush1.bf16.msra.mxu0 %v5953
    %9170 = vmatprep.subr.bf16.mxu0 %v5964
    %9171 = vmatpush1.bf16.msra.mxu0 %v5963
    %9172 = vmatprep.subr.bf16.mxu0 %v5974
    %9173 = vmatpush1.bf16.msra.mxu0 %v5973
    %9174 = vmatprep.mubr.bf16.mxu0 %v191
    %9175 = vmatmul.mubr.bf16.gmra.mrb[0].mxu0 %v190
    %v9176 = vpop.f32.mrb[0].mxu0
    %v9177 = vadd.f32 %v9136, %v9176
    %v9178 = vpop.f32.mrb[0].mxu0
    %v9179 = vadd.f32 %v9138, %v9178
    %v9180 = vpop.f32.mrb[0].mxu0
    %v9181 = vpop.f32.mrb[0].mxu0
    %9182 = vdwg.mxu0
    %9183 = vmatprep.subr.bf16.mxu0 %v5984
    %9184 = vmatpush1.bf16.msra.mxu0 %v5983
    %9185 = vmatprep.subr.bf16.mxu0 %v5994
    %9186 = vmatpush1.bf16.msra.mxu0 %v5993
    %9187 = vmatprep.subr.bf16.mxu0 %v6004
    %9188 = vmatpush1.bf16.msra.mxu0 %v6003
    %9189 = vmatprep.subr.bf16.mxu0 %v6014
    %9190 = vmatpush1.bf16.msra.mxu0 %v6013
    %9191 = vmatprep.subr.bf16.mxu0 %v6024
    %9192 = vmatpush1.bf16.msra.mxu0 %v6023
    %9193 = vmatprep.subr.bf16.mxu0 %v6034
    %9194 = vmatpush1.bf16.msra.mxu0 %v6033
    %9195 = vmatprep.subr.bf16.mxu0 %v6044
    %9196 = vmatpush1.bf16.msra.mxu0 %v6043
    %9197 = vmatprep.subr.bf16.mxu0 %v6054
    %9198 = vmatpush1.bf16.msra.mxu0 %v6053
    %9199 = vmatprep.subr.bf16.mxu0 %v6064
    %9200 = vmatpush1.bf16.msra.mxu0 %v6063
    %9201 = vmatprep.subr.bf16.mxu0 %v6074
    %9202 = vmatpush1.bf16.msra.mxu0 %v6073
    %9203 = vmatprep.subr.bf16.mxu0 %v6084
    %9204 = vmatpush1.bf16.msra.mxu0 %v6083
    %9205 = vmatprep.subr.bf16.mxu0 %v6094
    %9206 = vmatpush1.bf16.msra.mxu0 %v6093
    %9207 = vmatprep.subr.bf16.mxu0 %v6104
    %9208 = vmatpush1.bf16.msra.mxu0 %v6103
    %9209 = vmatprep.subr.bf16.mxu0 %v6114
    %9210 = vmatpush1.bf16.msra.mxu0 %v6113
    %9211 = vmatprep.subr.bf16.mxu0 %v6124
    %9212 = vmatpush1.bf16.msra.mxu0 %v6123
    %9213 = vmatprep.subr.bf16.mxu0 %v6134
    %9214 = vmatpush1.bf16.msra.mxu0 %v6133
    %9215 = vmatprep.mubr.bf16.mxu0 %v193
    %9216 = vmatmul.mubr.bf16.gmra.mrb[0].mxu0 %v192
    %v9217 = vpop.f32.mrb[0].mxu0
    %v9218 = vadd.f32 %v9177, %v9217
    %v9219 = vpop.f32.mrb[0].mxu0
    %v9220 = vadd.f32 %v9179, %v9219
    %v9221 = vpop.f32.mrb[0].mxu0
    %v9222 = vpop.f32.mrb[0].mxu0
    %9223 = vdwg.mxu0
    %9224 = vmatprep.subr.bf16.mxu0 %v6144
    %9225 = vmatpush1.bf16.msra.mxu0 %v6143
    %9226 = vmatprep.subr.bf16.mxu0 %v6154
    %9227 = vmatpush1.bf16.msra.mxu0 %v6153
    %9228 = vmatprep.subr.bf16.mxu0 %v6164
    %9229 = vmatpush1.bf16.msra.mxu0 %v6163
    %9230 = vmatprep.subr.bf16.mxu0 %v6174
    %9231 = vmatpush1.bf16.msra.mxu0 %v6173
    %9232 = vmatprep.subr.bf16.mxu0 %v6184
    %9233 = vmatpush1.bf16.msra.mxu0 %v6183
    %9234 = vmatprep.subr.bf16.mxu0 %v6194
    %9235 = vmatpush1.bf16.msra.mxu0 %v6193
    %9236 = vmatprep.subr.bf16.mxu0 %v6204
    %9237 = vmatpush1.bf16.msra.mxu0 %v6203
    %9238 = vmatprep.subr.bf16.mxu0 %v6214
    %9239 = vmatpush1.bf16.msra.mxu0 %v6213
    %9240 = vmatprep.subr.bf16.mxu0 %v6224
    %9241 = vmatpush1.bf16.msra.mxu0 %v6223
    %9242 = vmatprep.subr.bf16.mxu0 %v6234
    %9243 = vmatpush1.bf16.msra.mxu0 %v6233
    %9244 = vmatprep.subr.bf16.mxu0 %v6244
    %9245 = vmatpush1.bf16.msra.mxu0 %v6243
    %9246 = vmatprep.subr.bf16.mxu0 %v6254
    %9247 = vmatpush1.bf16.msra.mxu0 %v6253
    %9248 = vmatprep.subr.bf16.mxu0 %v6264
    %9249 = vmatpush1.bf16.msra.mxu0 %v6263
    %9250 = vmatprep.subr.bf16.mxu0 %v6274
    %9251 = vmatpush1.bf16.msra.mxu0 %v6273
    %9252 = vmatprep.subr.bf16.mxu0 %v6284
    %9253 = vmatpush1.bf16.msra.mxu0 %v6283
    %9254 = vmatprep.subr.bf16.mxu0 %v6294
    %9255 = vmatpush1.bf16.msra.mxu0 %v6293
    %9256 = vmatprep.mubr.bf16.mxu0 %v195
    %9257 = vmatmul.mubr.bf16.gmra.mrb[0].mxu0 %v194
    %v9258 = vpop.f32.mrb[0].mxu0
    %v9259 = vadd.f32 %v9218, %v9258
    %v9260 = vpop.f32.mrb[0].mxu0
    %v9261 = vadd.f32 %v9220, %v9260
    %v9262 = vpop.f32.mrb[0].mxu0
    %v9263 = vpop.f32.mrb[0].mxu0
    %9264 = vdwg.mxu0
    %9265 = vmatprep.subr.bf16.mxu0 %v6304
    %9266 = vmatpush1.bf16.msra.mxu0 %v6303
    %9267 = vmatprep.subr.bf16.mxu0 %v6314
    %9268 = vmatpush1.bf16.msra.mxu0 %v6313
    %9269 = vmatprep.subr.bf16.mxu0 %v6324
    %9270 = vmatpush1.bf16.msra.mxu0 %v6323
    %9271 = vmatprep.subr.bf16.mxu0 %v6334
    %9272 = vmatpush1.bf16.msra.mxu0 %v6333
    %9273 = vmatprep.subr.bf16.mxu0 %v6344
    %9274 = vmatpush1.bf16.msra.mxu0 %v6343
    %9275 = vmatprep.subr.bf16.mxu0 %v6354
    %9276 = vmatpush1.bf16.msra.mxu0 %v6353
    %9277 = vmatprep.subr.bf16.mxu0 %v6364
    %9278 = vmatpush1.bf16.msra.mxu0 %v6363
    %9279 = vmatprep.subr.bf16.mxu0 %v6374
    %9280 = vmatpush1.bf16.msra.mxu0 %v6373
    %9281 = vmatprep.subr.bf16.mxu0 %v6384
    %9282 = vmatpush1.bf16.msra.mxu0 %v6383
    %9283 = vmatprep.subr.bf16.mxu0 %v6394
    %9284 = vmatpush1.bf16.msra.mxu0 %v6393
    %9285 = vmatprep.subr.bf16.mxu0 %v6404
    %9286 = vmatpush1.bf16.msra.mxu0 %v6403
    %9287 = vmatprep.subr.bf16.mxu0 %v6414
    %9288 = vmatpush1.bf16.msra.mxu0 %v6413
    %9289 = vmatprep.subr.bf16.mxu0 %v6424
    %9290 = vmatpush1.bf16.msra.mxu0 %v6423
    %9291 = vmatprep.subr.bf16.mxu0 %v6434
    %9292 = vmatpush1.bf16.msra.mxu0 %v6433
    %9293 = vmatprep.subr.bf16.mxu0 %v6444
    %9294 = vmatpush1.bf16.msra.mxu0 %v6443
    %9295 = vmatprep.subr.bf16.mxu0 %v6454
    %9296 = vmatpush1.bf16.msra.mxu0 %v6453
    %9297 = vmatprep.mubr.bf16.mxu0 %v197
    %9298 = vmatmul.mubr.bf16.gmra.mrb[0].mxu0 %v196
    %v9299 = vpop.f32.mrb[0].mxu0
    %v9300 = vadd.f32 %v9259, %v9299
    %v9301 = vpop.f32.mrb[0].mxu0
    %v9302 = vadd.f32 %v9261, %v9301
    %v9303 = vpop.f32.mrb[0].mxu0
    %v9304 = vpop.f32.mrb[0].mxu0
    %9305 = vdwg.mxu0
    %9306 = vmatprep.subr.bf16.mxu0 %v6464
    %9307 = vmatpush1.bf16.msra.mxu0 %v6463
    %9308 = vmatprep.subr.bf16.mxu0 %v6474
    %9309 = vmatpush1.bf16.msra.mxu0 %v6473
    %9310 = vmatprep.subr.bf16.mxu0 %v6484
    %9311 = vmatpush1.bf16.msra.mxu0 %v6483
    %9312 = vmatprep.subr.bf16.mxu0 %v6494
    %9313 = vmatpush1.bf16.msra.mxu0 %v6493
    %9314 = vmatprep.subr.bf16.mxu0 %v6504
    %9315 = vmatpush1.bf16.msra.mxu0 %v6503
    %9316 = vmatprep.subr.bf16.mxu0 %v6514
    %9317 = vmatpush1.bf16.msra.mxu0 %v6513
    %9318 = vmatprep.subr.bf16.mxu0 %v6524
    %9319 = vmatpush1.bf16.msra.mxu0 %v6523
    %9320 = vmatprep.subr.bf16.mxu0 %v6534
    %9321 = vmatpush1.bf16.msra.mxu0 %v6533
    %9322 = vmatprep.subr.bf16.mxu0 %v6544
    %9323 = vmatpush1.bf16.msra.mxu0 %v6543
    %9324 = vmatprep.subr.bf16.mxu0 %v6554
    %9325 = vmatpush1.bf16.msra.mxu0 %v6553
    %9326 = vmatprep.subr.bf16.mxu0 %v6564
    %9327 = vmatpush1.bf16.msra.mxu0 %v6563
    %9328 = vmatprep.subr.bf16.mxu0 %v6574
    %9329 = vmatpush1.bf16.msra.mxu0 %v6573
    %9330 = vmatprep.subr.bf16.mxu0 %v6584
    %9331 = vmatpush1.bf16.msra.mxu0 %v6583
    %9332 = vmatprep.subr.bf16.mxu0 %v6594
    %9333 = vmatpush1.bf16.msra.mxu0 %v6593
    %9334 = vmatprep.subr.bf16.mxu0 %v6604
    %9335 = vmatpush1.bf16.msra.mxu0 %v6603
    %9336 = vmatprep.subr.bf16.mxu0 %v6614
    %9337 = vmatpush1.bf16.msra.mxu0 %v6613
    %9338 = vmatprep.mubr.bf16.mxu0 %v199
    %9339 = vmatmul.mubr.bf16.gmra.mrb[0].mxu0 %v198
    %v9340 = vpop.f32.mrb[0].mxu0
    %v9341 = vadd.f32 %v9300, %v9340
    %v9342 = vpop.f32.mrb[0].mxu0
    %v9343 = vadd.f32 %v9302, %v9342
    %v9344 = vpop.f32.mrb[0].mxu0
    %v9345 = vpop.f32.mrb[0].mxu0
    %9346 = vdwg.mxu0
    %9347 = vmatprep.subr.bf16.mxu0 %v6624
    %9348 = vmatpush1.bf16.msra.mxu0 %v6623
    %9349 = vmatprep.subr.bf16.mxu0 %v6634
    %9350 = vmatpush1.bf16.msra.mxu0 %v6633
    %9351 = vmatprep.subr.bf16.mxu0 %v6644
    %9352 = vmatpush1.bf16.msra.mxu0 %v6643
    %9353 = vmatprep.subr.bf16.mxu0 %v6654
    %9354 = vmatpush1.bf16.msra.mxu0 %v6653
    %9355 = vmatprep.subr.bf16.mxu0 %v6664
    %9356 = vmatpush1.bf16.msra.mxu0 %v6663
    %9357 = vmatprep.subr.bf16.mxu0 %v6674
    %9358 = vmatpush1.bf16.msra.mxu0 %v6673
    %9359 = vmatprep.subr.bf16.mxu0 %v6684
    %9360 = vmatpush1.bf16.msra.mxu0 %v6683
    %9361 = vmatprep.subr.bf16.mxu0 %v6694
    %9362 = vmatpush1.bf16.msra.mxu0 %v6693
    %9363 = vmatprep.subr.bf16.mxu0 %v6704
    %9364 = vmatpush1.bf16.msra.mxu0 %v6703
    %9365 = vmatprep.subr.bf16.mxu0 %v6714
    %9366 = vmatpush1.bf16.msra.mxu0 %v6713
    %9367 = vmatprep.subr.bf16.mxu0 %v6724
    %9368 = vmatpush1.bf16.msra.mxu0 %v6723
    %9369 = vmatprep.subr.bf16.mxu0 %v6734
    %9370 = vmatpush1.bf16.msra.mxu0 %v6733
    %9371 = vmatprep.subr.bf16.mxu0 %v6744
    %9372 = vmatpush1.bf16.msra.mxu0 %v6743
    %9373 = vmatprep.subr.bf16.mxu0 %v6754
    %9374 = vmatpush1.bf16.msra.mxu0 %v6753
    %9375 = vmatprep.subr.bf16.mxu0 %v6764
    %9376 = vmatpush1.bf16.msra.mxu0 %v6763
    %9377 = vmatprep.subr.bf16.mxu0 %v6774
    %9378 = vmatpush1.bf16.msra.mxu0 %v6773
    %9379 = vmatprep.mubr.bf16.mxu0 %v201
    %9380 = vmatmul.mubr.bf16.gmra.mrb[0].mxu0 %v200
    %v9381 = vpop.f32.mrb[0].mxu0
    %v9382 = vadd.f32 %v9341, %v9381
    %v9383 = vpop.f32.mrb[0].mxu0
    %v9384 = vadd.f32 %v9343, %v9383
    %v9385 = vpop.f32.mrb[0].mxu0
    %v9386 = vpop.f32.mrb[0].mxu0
    %9387 = vdwg.mxu0
    %9388 = vmatprep.subr.bf16.mxu0 %v6784
    %9389 = vmatpush1.bf16.msra.mxu0 %v6783
    %9390 = vmatprep.subr.bf16.mxu0 %v6794
    %9391 = vmatpush1.bf16.msra.mxu0 %v6793
    %9392 = vmatprep.subr.bf16.mxu0 %v6804
    %9393 = vmatpush1.bf16.msra.mxu0 %v6803
    %9394 = vmatprep.subr.bf16.mxu0 %v6814
    %9395 = vmatpush1.bf16.msra.mxu0 %v6813
    %9396 = vmatprep.subr.bf16.mxu0 %v6824
    %9397 = vmatpush1.bf16.msra.mxu0 %v6823
    %9398 = vmatprep.subr.bf16.mxu0 %v6834
    %9399 = vmatpush1.bf16.msra.mxu0 %v6833
    %9400 = vmatprep.subr.bf16.mxu0 %v6844
    %9401 = vmatpush1.bf16.msra.mxu0 %v6843
    %9402 = vmatprep.subr.bf16.mxu0 %v6854
    %9403 = vmatpush1.bf16.msra.mxu0 %v6853
    %9404 = vmatprep.subr.bf16.mxu0 %v6864
    %9405 = vmatpush1.bf16.msra.mxu0 %v6863
    %9406 = vmatprep.subr.bf16.mxu0 %v6874
    %9407 = vmatpush1.bf16.msra.mxu0 %v6873
    %9408 = vmatprep.subr.bf16.mxu0 %v6884
    %9409 = vmatpush1.bf16.msra.mxu0 %v6883
    %9410 = vmatprep.subr.bf16.mxu0 %v6894
    %9411 = vmatpush1.bf16.msra.mxu0 %v6893
    %9412 = vmatprep.subr.bf16.mxu0 %v6904
    %9413 = vmatpush1.bf16.msra.mxu0 %v6903
    %9414 = vmatprep.subr.bf16.mxu0 %v6914
    %9415 = vmatpush1.bf16.msra.mxu0 %v6913
    %9416 = vmatprep.subr.bf16.mxu0 %v6924
    %9417 = vmatpush1.bf16.msra.mxu0 %v6923
    %9418 = vmatprep.subr.bf16.mxu0 %v6934
    %9419 = vmatpush1.bf16.msra.mxu0 %v6933
    %9420 = vmatprep.mubr.bf16.mxu0 %v203
    %9421 = vmatmul.mubr.bf16.gmra.mrb[0].mxu0 %v202
    %v9422 = vpop.f32.mrb[0].mxu0
    %v9423 = vadd.f32 %v9382, %v9422
    %v9424 = vpop.f32.mrb[0].mxu0
    %v9425 = vadd.f32 %v9384, %v9424
    %v9426 = vpop.f32.mrb[0].mxu0
    %v9427 = vpop.f32.mrb[0].mxu0
    %9428 = vdwg.mxu0
    %9429 = vmatprep.subr.bf16.mxu0 %v6944
    %9430 = vmatpush1.bf16.msra.mxu0 %v6943
    %9431 = vmatprep.subr.bf16.mxu0 %v6954
    %9432 = vmatpush1.bf16.msra.mxu0 %v6953
    %9433 = vmatprep.subr.bf16.mxu0 %v6964
    %9434 = vmatpush1.bf16.msra.mxu0 %v6963
    %9435 = vmatprep.subr.bf16.mxu0 %v6974
    %9436 = vmatpush1.bf16.msra.mxu0 %v6973
    %9437 = vmatprep.subr.bf16.mxu0 %v6984
    %9438 = vmatpush1.bf16.msra.mxu0 %v6983
    %9439 = vmatprep.subr.bf16.mxu0 %v6994
    %9440 = vmatpush1.bf16.msra.mxu0 %v6993
    %9441 = vmatprep.subr.bf16.mxu0 %v7004
    %9442 = vmatpush1.bf16.msra.mxu0 %v7003
    %9443 = vmatprep.subr.bf16.mxu0 0
    %9444 = vmatpush1.bf16.msra.mxu0 0
    %9445 = vmatprep.subr.bf16.mxu0 0
    %9446 = vmatpush1.bf16.msra.mxu0 0
    %9447 = vmatprep.subr.bf16.mxu0 0
    %9448 = vmatpush1.bf16.msra.mxu0 0
    %9449 = vmatprep.subr.bf16.mxu0 0
    %9450 = vmatpush1.bf16.msra.mxu0 0
    %9451 = vmatprep.subr.bf16.mxu0 0
    %9452 = vmatpush1.bf16.msra.mxu0 0
    %9453 = vmatprep.subr.bf16.mxu0 0
    %9454 = vmatpush1.bf16.msra.mxu0 0
    %9455 = vmatprep.subr.bf16.mxu0 0
    %9456 = vmatpush1.bf16.msra.mxu0 0
    %9457 = vmatprep.subr.bf16.mxu0 0
    %9458 = vmatpush1.bf16.msra.mxu0 0
    %9459 = vmatprep.subr.bf16.mxu0 0
    %9460 = vmatpush1.bf16.msra.mxu0 0
    %9461 = vmatprep.mubr.bf16.mxu0 0
    %9462 = vmatmul.mubr.bf16.gmra.mrb[0].mxu0 %v8361
    %v9463 = vpop.f32.mrb[0].mxu0
    %v9464 = vadd.f32 %v9423, %v9463
    %v9465 = vpop.f32.mrb[0].mxu0
    %v9466 = vadd.f32 %v9425, %v9465
    %v9467 = vpop.f32.mrb[0].mxu0
    %v9468 = vpop.f32.mrb[0].mxu0
    %9469 = vdwg.mxu0
    %9470 = vmatprep.subr.bf16.mxu0 %v5666
    %9471 = vmatpush1.bf16.msra.mxu0 %v5665
    %9472 = vmatprep.subr.bf16.mxu0 %v5676
    %9473 = vmatpush1.bf16.msra.mxu0 %v5675
    %9474 = vmatprep.subr.bf16.mxu0 %v5686
    %9475 = vmatpush1.bf16.msra.mxu0 %v5685
    %9476 = vmatprep.subr.bf16.mxu0 %v5696
    %9477 = vmatpush1.bf16.msra.mxu0 %v5695
    %9478 = vmatprep.subr.bf16.mxu0 %v5706
    %9479 = vmatpush1.bf16.msra.mxu0 %v5705
    %9480 = vmatprep.subr.bf16.mxu0 %v5716
    %9481 = vmatpush1.bf16.msra.mxu0 %v5715
    %9482 = vmatprep.subr.bf16.mxu0 %v5726
    %9483 = vmatpush1.bf16.msra.mxu0 %v5725
    %9484 = vmatprep.subr.bf16.mxu0 %v5736
    %9485 = vmatpush1.bf16.msra.mxu0 %v5735
    %9486 = vmatprep.subr.bf16.mxu0 %v5746
    %9487 = vmatpush1.bf16.msra.mxu0 %v5745
    %9488 = vmatprep.subr.bf16.mxu0 %v5756
    %9489 = vmatpush1.bf16.msra.mxu0 %v5755
    %9490 = vmatprep.subr.bf16.mxu0 %v5766
    %9491 = vmatpush1.bf16.msra.mxu0 %v5765
    %9492 = vmatprep.subr.bf16.mxu0 %v5776
    %9493 = vmatpush1.bf16.msra.mxu0 %v5775
    %9494 = vmatprep.subr.bf16.mxu0 %v5786
    %9495 = vmatpush1.bf16.msra.mxu0 %v5785
    %9496 = vmatprep.subr.bf16.mxu0 %v5796
    %9497 = vmatpush1.bf16.msra.mxu0 %v5795
    %9498 = vmatprep.subr.bf16.mxu0 %v5806
    %9499 = vmatpush1.bf16.msra.mxu0 %v5805
    %9500 = vmatprep.subr.bf16.mxu0 %v5816
    %9501 = vmatpush1.bf16.msra.mxu0 %v5815
    %9502 = vmatprep.mubr.bf16.mxu0 %v189
    %9503 = vmatmul.mubr.bf16.gmra.mrb[0].mxu0 %v188
    %v9504 = vpop.f32.mrb[0].mxu0
    %v9505 = vadd.f32 %v1586, %v9504
    %v9506 = vpop.f32.mrb[0].mxu0
    %v9507 = vadd.f32 %v1590, %v9506
    %v9508 = vpop.f32.mrb[0].mxu0
    %v9509 = vpop.f32.mrb[0].mxu0
    %9510 = vdwg.mxu0
    %9511 = vmatprep.subr.bf16.mxu0 %v5826
    %9512 = vmatpush1.bf16.msra.mxu0 %v5825
    %9513 = vmatprep.subr.bf16.mxu0 %v5836
    %9514 = vmatpush1.bf16.msra.mxu0 %v5835
    %9515 = vmatprep.subr.bf16.mxu0 %v5846
    %9516 = vmatpush1.bf16.msra.mxu0 %v5845
    %9517 = vmatprep.subr.bf16.mxu0 %v5856
    %9518 = vmatpush1.bf16.msra.mxu0 %v5855
    %9519 = vmatprep.subr.bf16.mxu0 %v5866
    %9520 = vmatpush1.bf16.msra.mxu0 %v5865
    %9521 = vmatprep.subr.bf16.mxu0 %v5876
    %9522 = vmatpush1.bf16.msra.mxu0 %v5875
    %9523 = vmatprep.subr.bf16.mxu0 %v5886
    %9524 = vmatpush1.bf16.msra.mxu0 %v5885
    %9525 = vmatprep.subr.bf16.mxu0 %v5896
    %9526 = vmatpush1.bf16.msra.mxu0 %v5895
    %9527 = vmatprep.subr.bf16.mxu0 %v5906
    %9528 = vmatpush1.bf16.msra.mxu0 %v5905
    %9529 = vmatprep.subr.bf16.mxu0 %v5916
    %9530 = vmatpush1.bf16.msra.mxu0 %v5915
    %9531 = vmatprep.subr.bf16.mxu0 %v5926
    %9532 = vmatpush1.bf16.msra.mxu0 %v5925
    %9533 = vmatprep.subr.bf16.mxu0 %v5936
    %9534 = vmatpush1.bf16.msra.mxu0 %v5935
    %9535 = vmatprep.subr.bf16.mxu0 %v5946
    %9536 = vmatpush1.bf16.msra.mxu0 %v5945
    %9537 = vmatprep.subr.bf16.mxu0 %v5956
    %9538 = vmatpush1.bf16.msra.mxu0 %v5955
    %9539 = vmatprep.subr.bf16.mxu0 %v5966
    %9540 = vmatpush1.bf16.msra.mxu0 %v5965
    %9541 = vmatprep.subr.bf16.mxu0 %v5976
    %9542 = vmatpush1.bf16.msra.mxu0 %v5975
    %9543 = vmatprep.mubr.bf16.mxu0 %v191
    %9544 = vmatmul.mubr.bf16.gmra.mrb[0].mxu0 %v190
    %v9545 = vpop.f32.mrb[0].mxu0
    %v9546 = vadd.f32 %v9505, %v9545
    %v9547 = vpop.f32.mrb[0].mxu0
    %v9548 = vadd.f32 %v9507, %v9547
    %v9549 = vpop.f32.mrb[0].mxu0
    %v9550 = vpop.f32.mrb[0].mxu0
    %9551 = vdwg.mxu0
    %9552 = vmatprep.subr.bf16.mxu0 %v5986
    %9553 = vmatpush1.bf16.msra.mxu0 %v5985
    %9554 = vmatprep.subr.bf16.mxu0 %v5996
    %9555 = vmatpush1.bf16.msra.mxu0 %v5995
    %9556 = vmatprep.subr.bf16.mxu0 %v6006
    %9557 = vmatpush1.bf16.msra.mxu0 %v6005
    %9558 = vmatprep.subr.bf16.mxu0 %v6016
    %9559 = vmatpush1.bf16.msra.mxu0 %v6015
    %9560 = vmatprep.subr.bf16.mxu0 %v6026
    %9561 = vmatpush1.bf16.msra.mxu0 %v6025
    %9562 = vmatprep.subr.bf16.mxu0 %v6036
    %9563 = vmatpush1.bf16.msra.mxu0 %v6035
    %9564 = vmatprep.subr.bf16.mxu0 %v6046
    %9565 = vmatpush1.bf16.msra.mxu0 %v6045
    %9566 = vmatprep.subr.bf16.mxu0 %v6056
    %9567 = vmatpush1.bf16.msra.mxu0 %v6055
    %9568 = vmatprep.subr.bf16.mxu0 %v6066
    %9569 = vmatpush1.bf16.msra.mxu0 %v6065
    %9570 = vmatprep.subr.bf16.mxu0 %v6076
    %9571 = vmatpush1.bf16.msra.mxu0 %v6075
    %9572 = vmatprep.subr.bf16.mxu0 %v6086
    %9573 = vmatpush1.bf16.msra.mxu0 %v6085
    %9574 = vmatprep.subr.bf16.mxu0 %v6096
    %9575 = vmatpush1.bf16.msra.mxu0 %v6095
    %9576 = vmatprep.subr.bf16.mxu0 %v6106
    %9577 = vmatpush1.bf16.msra.mxu0 %v6105
    %9578 = vmatprep.subr.bf16.mxu0 %v6116
    %9579 = vmatpush1.bf16.msra.mxu0 %v6115
    %9580 = vmatprep.subr.bf16.mxu0 %v6126
    %9581 = vmatpush1.bf16.msra.mxu0 %v6125
    %9582 = vmatprep.subr.bf16.mxu0 %v6136
    %9583 = vmatpush1.bf16.msra.mxu0 %v6135
    %9584 = vmatprep.mubr.bf16.mxu0 %v193
    %9585 = vmatmul.mubr.bf16.gmra.mrb[0].mxu0 %v192
    %v9586 = vpop.f32.mrb[0].mxu0
    %v9587 = vadd.f32 %v9546, %v9586
    %v9588 = vpop.f32.mrb[0].mxu0
    %v9589 = vadd.f32 %v9548, %v9588
    %v9590 = vpop.f32.mrb[0].mxu0
    %v9591 = vpop.f32.mrb[0].mxu0
    %9592 = vdwg.mxu0
    %9593 = vmatprep.subr.bf16.mxu0 %v6146
    %9594 = vmatpush1.bf16.msra.mxu0 %v6145
    %9595 = vmatprep.subr.bf16.mxu0 %v6156
    %9596 = vmatpush1.bf16.msra.mxu0 %v6155
    %9597 = vmatprep.subr.bf16.mxu0 %v6166
    %9598 = vmatpush1.bf16.msra.mxu0 %v6165
    %9599 = vmatprep.subr.bf16.mxu0 %v6176
    %9600 = vmatpush1.bf16.msra.mxu0 %v6175
    %9601 = vmatprep.subr.bf16.mxu0 %v6186
    %9602 = vmatpush1.bf16.msra.mxu0 %v6185
    %9603 = vmatprep.subr.bf16.mxu0 %v6196
    %9604 = vmatpush1.bf16.msra.mxu0 %v6195
    %9605 = vmatprep.subr.bf16.mxu0 %v6206
    %9606 = vmatpush1.bf16.msra.mxu0 %v6205
    %9607 = vmatprep.subr.bf16.mxu0 %v6216
    %9608 = vmatpush1.bf16.msra.mxu0 %v6215
    %9609 = vmatprep.subr.bf16.mxu0 %v6226
    %9610 = vmatpush1.bf16.msra.mxu0 %v6225
    %9611 = vmatprep.subr.bf16.mxu0 %v6236
    %9612 = vmatpush1.bf16.msra.mxu0 %v6235
    %9613 = vmatprep.subr.bf16.mxu0 %v6246
    %9614 = vmatpush1.bf16.msra.mxu0 %v6245
    %9615 = vmatprep.subr.bf16.mxu0 %v6256
    %9616 = vmatpush1.bf16.msra.mxu0 %v6255
    %9617 = vmatprep.subr.bf16.mxu0 %v6266
    %9618 = vmatpush1.bf16.msra.mxu0 %v6265
    %9619 = vmatprep.subr.bf16.mxu0 %v6276
    %9620 = vmatpush1.bf16.msra.mxu0 %v6275
    %9621 = vmatprep.subr.bf16.mxu0 %v6286
    %9622 = vmatpush1.bf16.msra.mxu0 %v6285
    %9623 = vmatprep.subr.bf16.mxu0 %v6296
    %9624 = vmatpush1.bf16.msra.mxu0 %v6295
    %9625 = vmatprep.mubr.bf16.mxu0 %v195
    %9626 = vmatmul.mubr.bf16.gmra.mrb[0].mxu0 %v194
    %v9627 = vpop.f32.mrb[0].mxu0
    %v9628 = vadd.f32 %v9587, %v9627
    %v9629 = vpop.f32.mrb[0].mxu0
    %v9630 = vadd.f32 %v9589, %v9629
    %v9631 = vpop.f32.mrb[0].mxu0
    %v9632 = vpop.f32.mrb[0].mxu0
    %9633 = vdwg.mxu0
    %9634 = vmatprep.subr.bf16.mxu0 %v6306
    %9635 = vmatpush1.bf16.msra.mxu0 %v6305
    %9636 = vmatprep.subr.bf16.mxu0 %v6316
    %9637 = vmatpush1.bf16.msra.mxu0 %v6315
    %9638 = vmatprep.subr.bf16.mxu0 %v6326
    %9639 = vmatpush1.bf16.msra.mxu0 %v6325
    %9640 = vmatprep.subr.bf16.mxu0 %v6336
    %9641 = vmatpush1.bf16.msra.mxu0 %v6335
    %9642 = vmatprep.subr.bf16.mxu0 %v6346
    %9643 = vmatpush1.bf16.msra.mxu0 %v6345
    %9644 = vmatprep.subr.bf16.mxu0 %v6356
    %9645 = vmatpush1.bf16.msra.mxu0 %v6355
    %9646 = vmatprep.subr.bf16.mxu0 %v6366
    %9647 = vmatpush1.bf16.msra.mxu0 %v6365
    %9648 = vmatprep.subr.bf16.mxu0 %v6376
    %9649 = vmatpush1.bf16.msra.mxu0 %v6375
    %9650 = vmatprep.subr.bf16.mxu0 %v6386
    %9651 = vmatpush1.bf16.msra.mxu0 %v6385
    %9652 = vmatprep.subr.bf16.mxu0 %v6396
    %9653 = vmatpush1.bf16.msra.mxu0 %v6395
    %9654 = vmatprep.subr.bf16.mxu0 %v6406
    %9655 = vmatpush1.bf16.msra.mxu0 %v6405
    %9656 = vmatprep.subr.bf16.mxu0 %v6416
    %9657 = vmatpush1.bf16.msra.mxu0 %v6415
    %9658 = vmatprep.subr.bf16.mxu0 %v6426
    %9659 = vmatpush1.bf16.msra.mxu0 %v6425
    %9660 = vmatprep.subr.bf16.mxu0 %v6436
    %9661 = vmatpush1.bf16.msra.mxu0 %v6435
    %9662 = vmatprep.subr.bf16.mxu0 %v6446
    %9663 = vmatpush1.bf16.msra.mxu0 %v6445
    %9664 = vmatprep.subr.bf16.mxu0 %v6456
    %9665 = vmatpush1.bf16.msra.mxu0 %v6455
    %9666 = vmatprep.mubr.bf16.mxu0 %v197
    %9667 = vmatmul.mubr.bf16.gmra.mrb[0].mxu0 %v196
    %v9668 = vpop.f32.mrb[0].mxu0
    %v9669 = vadd.f32 %v9628, %v9668
    %v9670 = vpop.f32.mrb[0].mxu0
    %v9671 = vadd.f32 %v9630, %v9670
    %v9672 = vpop.f32.mrb[0].mxu0
    %v9673 = vpop.f32.mrb[0].mxu0
    %9674 = vdwg.mxu0
    %9675 = vmatprep.subr.bf16.mxu0 %v6466
    %9676 = vmatpush1.bf16.msra.mxu0 %v6465
    %9677 = vmatprep.subr.bf16.mxu0 %v6476
    %9678 = vmatpush1.bf16.msra.mxu0 %v6475
    %9679 = vmatprep.subr.bf16.mxu0 %v6486
    %9680 = vmatpush1.bf16.msra.mxu0 %v6485
    %9681 = vmatprep.subr.bf16.mxu0 %v6496
    %9682 = vmatpush1.bf16.msra.mxu0 %v6495
    %9683 = vmatprep.subr.bf16.mxu0 %v6506
    %9684 = vmatpush1.bf16.msra.mxu0 %v6505
    %9685 = vmatprep.subr.bf16.mxu0 %v6516
    %9686 = vmatpush1.bf16.msra.mxu0 %v6515
    %9687 = vmatprep.subr.bf16.mxu0 %v6526
    %9688 = vmatpush1.bf16.msra.mxu0 %v6525
    %9689 = vmatprep.subr.bf16.mxu0 %v6536
    %9690 = vmatpush1.bf16.msra.mxu0 %v6535
    %9691 = vmatprep.subr.bf16.mxu0 %v6546
    %9692 = vmatpush1.bf16.msra.mxu0 %v6545
    %9693 = vmatprep.subr.bf16.mxu0 %v6556
    %9694 = vmatpush1.bf16.msra.mxu0 %v6555
    %9695 = vmatprep.subr.bf16.mxu0 %v6566
    %9696 = vmatpush1.bf16.msra.mxu0 %v6565
    %9697 = vmatprep.subr.bf16.mxu0 %v6576
    %9698 = vmatpush1.bf16.msra.mxu0 %v6575
    %9699 = vmatprep.subr.bf16.mxu0 %v6586
    %9700 = vmatpush1.bf16.msra.mxu0 %v6585
    %9701 = vmatprep.subr.bf16.mxu0 %v6596
    %9702 = vmatpush1.bf16.msra.mxu0 %v6595
    %9703 = vmatprep.subr.bf16.mxu0 %v6606
    %9704 = vmatpush1.bf16.msra.mxu0 %v6605
    %9705 = vmatprep.subr.bf16.mxu0 %v6616
    %9706 = vmatpush1.bf16.msra.mxu0 %v6615
    %9707 = vmatprep.mubr.bf16.mxu0 %v199
    %9708 = vmatmul.mubr.bf16.gmra.mrb[0].mxu0 %v198
    %v9709 = vpop.f32.mrb[0].mxu0
    %v9710 = vadd.f32 %v9669, %v9709
    %v9711 = vpop.f32.mrb[0].mxu0
    %v9712 = vadd.f32 %v9671, %v9711
    %v9713 = vpop.f32.mrb[0].mxu0
    %v9714 = vpop.f32.mrb[0].mxu0
    %9715 = vdwg.mxu0
    %9716 = vmatprep.subr.bf16.mxu0 %v6626
    %9717 = vmatpush1.bf16.msra.mxu0 %v6625
    %9718 = vmatprep.subr.bf16.mxu0 %v6636
    %9719 = vmatpush1.bf16.msra.mxu0 %v6635
    %9720 = vmatprep.subr.bf16.mxu0 %v6646
    %9721 = vmatpush1.bf16.msra.mxu0 %v6645
    %9722 = vmatprep.subr.bf16.mxu0 %v6656
    %9723 = vmatpush1.bf16.msra.mxu0 %v6655
    %9724 = vmatprep.subr.bf16.mxu0 %v6666
    %9725 = vmatpush1.bf16.msra.mxu0 %v6665
    %9726 = vmatprep.subr.bf16.mxu0 %v6676
    %9727 = vmatpush1.bf16.msra.mxu0 %v6675
    %9728 = vmatprep.subr.bf16.mxu0 %v6686
    %9729 = vmatpush1.bf16.msra.mxu0 %v6685
    %9730 = vmatprep.subr.bf16.mxu0 %v6696
    %9731 = vmatpush1.bf16.msra.mxu0 %v6695
    %9732 = vmatprep.subr.bf16.mxu0 %v6706
    %9733 = vmatpush1.bf16.msra.mxu0 %v6705
    %9734 = vmatprep.subr.bf16.mxu0 %v6716
    %9735 = vmatpush1.bf16.msra.mxu0 %v6715
    %9736 = vmatprep.subr.bf16.mxu0 %v6726
    %9737 = vmatpush1.bf16.msra.mxu0 %v6725
    %9738 = vmatprep.subr.bf16.mxu0 %v6736
    %9739 = vmatpush1.bf16.msra.mxu0 %v6735
    %9740 = vmatprep.subr.bf16.mxu0 %v6746
    %9741 = vmatpush1.bf16.msra.mxu0 %v6745
    %9742 = vmatprep.subr.bf16.mxu0 %v6756
    %9743 = vmatpush1.bf16.msra.mxu0 %v6755
    %9744 = vmatprep.subr.bf16.mxu0 %v6766
    %9745 = vmatpush1.bf16.msra.mxu0 %v6765
    %9746 = vmatprep.subr.bf16.mxu0 %v6776
    %9747 = vmatpush1.bf16.msra.mxu0 %v6775
    %9748 = vmatprep.mubr.bf16.mxu0 %v201
    %9749 = vmatmul.mubr.bf16.gmra.mrb[0].mxu0 %v200
    %v9750 = vpop.f32.mrb[0].mxu0
    %v9751 = vadd.f32 %v9710, %v9750
    %v9752 = vpop.f32.mrb[0].mxu0
    %v9753 = vadd.f32 %v9712, %v9752
    %v9754 = vpop.f32.mrb[0].mxu0
    %v9755 = vpop.f32.mrb[0].mxu0
    %9756 = vdwg.mxu0
    %9757 = vmatprep.subr.bf16.mxu0 %v6786
    %9758 = vmatpush1.bf16.msra.mxu0 %v6785
    %9759 = vmatprep.subr.bf16.mxu0 %v6796
    %9760 = vmatpush1.bf16.msra.mxu0 %v6795
    %9761 = vmatprep.subr.bf16.mxu0 %v6806
    %9762 = vmatpush1.bf16.msra.mxu0 %v6805
    %9763 = vmatprep.subr.bf16.mxu0 %v6816
    %9764 = vmatpush1.bf16.msra.mxu0 %v6815
    %9765 = vmatprep.subr.bf16.mxu0 %v6826
    %9766 = vmatpush1.bf16.msra.mxu0 %v6825
    %9767 = vmatprep.subr.bf16.mxu0 %v6836
    %9768 = vmatpush1.bf16.msra.mxu0 %v6835
    %9769 = vmatprep.subr.bf16.mxu0 %v6846
    %9770 = vmatpush1.bf16.msra.mxu0 %v6845
    %9771 = vmatprep.subr.bf16.mxu0 %v6856
    %9772 = vmatpush1.bf16.msra.mxu0 %v6855
    %9773 = vmatprep.subr.bf16.mxu0 %v6866
    %9774 = vmatpush1.bf16.msra.mxu0 %v6865
    %9775 = vmatprep.subr.bf16.mxu0 %v6876
    %9776 = vmatpush1.bf16.msra.mxu0 %v6875
    %9777 = vmatprep.subr.bf16.mxu0 %v6886
    %9778 = vmatpush1.bf16.msra.mxu0 %v6885
    %9779 = vmatprep.subr.bf16.mxu0 %v6896
    %9780 = vmatpush1.bf16.msra.mxu0 %v6895
    %9781 = vmatprep.subr.bf16.mxu0 %v6906
    %9782 = vmatpush1.bf16.msra.mxu0 %v6905
    %9783 = vmatprep.subr.bf16.mxu0 %v6916
    %9784 = vmatpush1.bf16.msra.mxu0 %v6915
    %9785 = vmatprep.subr.bf16.mxu0 %v6926
    %9786 = vmatpush1.bf16.msra.mxu0 %v6925
    %9787 = vmatprep.subr.bf16.mxu0 %v6936
    %9788 = vmatpush1.bf16.msra.mxu0 %v6935
    %9789 = vmatprep.mubr.bf16.mxu0 %v203
    %9790 = vmatmul.mubr.bf16.gmra.mrb[0].mxu0 %v202
    %v9791 = vpop.f32.mrb[0].mxu0
    %v9792 = vadd.f32 %v9751, %v9791
    %v9793 = vpop.f32.mrb[0].mxu0
    %v9794 = vadd.f32 %v9753, %v9793
    %v9795 = vpop.f32.mrb[0].mxu0
    %v9796 = vpop.f32.mrb[0].mxu0
    %9797 = vdwg.mxu0
    %9798 = vmatprep.subr.bf16.mxu0 %v6946
    %9799 = vmatpush1.bf16.msra.mxu0 %v6945
    %9800 = vmatprep.subr.bf16.mxu0 %v6956
    %9801 = vmatpush1.bf16.msra.mxu0 %v6955
    %9802 = vmatprep.subr.bf16.mxu0 %v6966
    %9803 = vmatpush1.bf16.msra.mxu0 %v6965
    %9804 = vmatprep.subr.bf16.mxu0 %v6976
    %9805 = vmatpush1.bf16.msra.mxu0 %v6975
    %9806 = vmatprep.subr.bf16.mxu0 %v6986
    %9807 = vmatpush1.bf16.msra.mxu0 %v6985
    %9808 = vmatprep.subr.bf16.mxu0 %v6996
    %9809 = vmatpush1.bf16.msra.mxu0 %v6995
    %9810 = vmatprep.subr.bf16.mxu0 %v7006
    %9811 = vmatpush1.bf16.msra.mxu0 %v7005
    %9812 = vmatprep.subr.bf16.mxu0 0
    %9813 = vmatpush1.bf16.msra.mxu0 0
    %9814 = vmatprep.subr.bf16.mxu0 0
    %9815 = vmatpush1.bf16.msra.mxu0 0
    %9816 = vmatprep.subr.bf16.mxu0 0
    %9817 = vmatpush1.bf16.msra.mxu0 0
    %9818 = vmatprep.subr.bf16.mxu0 0
    %9819 = vmatpush1.bf16.msra.mxu0 0
    %9820 = vmatprep.subr.bf16.mxu0 0
    %9821 = vmatpush1.bf16.msra.mxu0 0
    %9822 = vmatprep.subr.bf16.mxu0 0
    %9823 = vmatpush1.bf16.msra.mxu0 0
    %9824 = vmatprep.subr.bf16.mxu0 0
    %9825 = vmatpush1.bf16.msra.mxu0 0
    %9826 = vmatprep.subr.bf16.mxu0 0
    %9827 = vmatpush1.bf16.msra.mxu0 0
    %9828 = vmatprep.subr.bf16.mxu0 0
    %9829 = vmatpush1.bf16.msra.mxu0 0
    %9830 = vmatprep.mubr.bf16.mxu0 0
    %9831 = vmatmul.mubr.bf16.gmra.mrb[0].mxu0 %v8361
    %v9832 = vpop.f32.mrb[0].mxu0
    %v9833 = vadd.f32 %v9792, %v9832
    %v9834 = vpop.f32.mrb[0].mxu0
    %v9835 = vadd.f32 %v9794, %v9834
    %v9836 = vpop.f32.mrb[0].mxu0
    %v9837 = vpop.f32.mrb[0].mxu0
    %9838 = vdwg.mxu0
    %9839 = vmatprep.subr.bf16.mxu0 %v5668
    %9840 = vmatpush1.bf16.msra.mxu0 %v5667
    %9841 = vmatprep.subr.bf16.mxu0 %v5678
    %9842 = vmatpush1.bf16.msra.mxu0 %v5677
    %9843 = vmatprep.subr.bf16.mxu0 %v5688
    %9844 = vmatpush1.bf16.msra.mxu0 %v5687
    %9845 = vmatprep.subr.bf16.mxu0 %v5698
    %9846 = vmatpush1.bf16.msra.mxu0 %v5697
    %9847 = vmatprep.subr.bf16.mxu0 %v5708
    %9848 = vmatpush1.bf16.msra.mxu0 %v5707
    %9849 = vmatprep.subr.bf16.mxu0 %v5718
    %9850 = vmatpush1.bf16.msra.mxu0 %v5717
    %9851 = vmatprep.subr.bf16.mxu0 %v5728
    %9852 = vmatpush1.bf16.msra.mxu0 %v5727
    %9853 = vmatprep.subr.bf16.mxu0 %v5738
    %9854 = vmatpush1.bf16.msra.mxu0 %v5737
    %9855 = vmatprep.subr.bf16.mxu0 %v5748
    %9856 = vmatpush1.bf16.msra.mxu0 %v5747
    %9857 = vmatprep.subr.bf16.mxu0 %v5758
    %9858 = vmatpush1.bf16.msra.mxu0 %v5757
    %9859 = vmatprep.subr.bf16.mxu0 %v5768
    %9860 = vmatpush1.bf16.msra.mxu0 %v5767
    %9861 = vmatprep.subr.bf16.mxu0 %v5778
    %9862 = vmatpush1.bf16.msra.mxu0 %v5777
    %9863 = vmatprep.subr.bf16.mxu0 %v5788
    %9864 = vmatpush1.bf16.msra.mxu0 %v5787
    %9865 = vmatprep.subr.bf16.mxu0 %v5798
    %9866 = vmatpush1.bf16.msra.mxu0 %v5797
    %9867 = vmatprep.subr.bf16.mxu0 %v5808
    %9868 = vmatpush1.bf16.msra.mxu0 %v5807
    %9869 = vmatprep.subr.bf16.mxu0 %v5818
    %9870 = vmatpush1.bf16.msra.mxu0 %v5817
    %9871 = vmatprep.mubr.bf16.mxu0 %v189
    %9872 = vmatmul.mubr.bf16.gmra.mrb[0].mxu0 %v188
    %v9873 = vpop.f32.mrb[0].mxu0
    %v9874 = vadd.f32 %v1594, %v9873
    %v9875 = vpop.f32.mrb[0].mxu0
    %v9876 = vadd.f32 %v1598, %v9875
    %v9877 = vpop.f32.mrb[0].mxu0
    %v9878 = vpop.f32.mrb[0].mxu0
    %9879 = vdwg.mxu0
    %9880 = vmatprep.subr.bf16.mxu0 %v5828
    %9881 = vmatpush1.bf16.msra.mxu0 %v5827
    %9882 = vmatprep.subr.bf16.mxu0 %v5838
    %9883 = vmatpush1.bf16.msra.mxu0 %v5837
    %9884 = vmatprep.subr.bf16.mxu0 %v5848
    %9885 = vmatpush1.bf16.msra.mxu0 %v5847
    %9886 = vmatprep.subr.bf16.mxu0 %v5858
    %9887 = vmatpush1.bf16.msra.mxu0 %v5857
    %9888 = vmatprep.subr.bf16.mxu0 %v5868
    %9889 = vmatpush1.bf16.msra.mxu0 %v5867
    %9890 = vmatprep.subr.bf16.mxu0 %v5878
    %9891 = vmatpush1.bf16.msra.mxu0 %v5877
    %9892 = vmatprep.subr.bf16.mxu0 %v5888
    %9893 = vmatpush1.bf16.msra.mxu0 %v5887
    %9894 = vmatprep.subr.bf16.mxu0 %v5898
    %9895 = vmatpush1.bf16.msra.mxu0 %v5897
    %9896 = vmatprep.subr.bf16.mxu0 %v5908
    %9897 = vmatpush1.bf16.msra.mxu0 %v5907
    %9898 = vmatprep.subr.bf16.mxu0 %v5918
    %9899 = vmatpush1.bf16.msra.mxu0 %v5917
    %9900 = vmatprep.subr.bf16.mxu0 %v5928
    %9901 = vmatpush1.bf16.msra.mxu0 %v5927
    %9902 = vmatprep.subr.bf16.mxu0 %v5938
    %9903 = vmatpush1.bf16.msra.mxu0 %v5937
    %9904 = vmatprep.subr.bf16.mxu0 %v5948
    %9905 = vmatpush1.bf16.msra.mxu0 %v5947
    %9906 = vmatprep.subr.bf16.mxu0 %v5958
    %9907 = vmatpush1.bf16.msra.mxu0 %v5957
    %9908 = vmatprep.subr.bf16.mxu0 %v5968
    %9909 = vmatpush1.bf16.msra.mxu0 %v5967
    %9910 = vmatprep.subr.bf16.mxu0 %v5978
    %9911 = vmatpush1.bf16.msra.mxu0 %v5977
    %9912 = vmatprep.mubr.bf16.mxu0 %v191
    %9913 = vmatmul.mubr.bf16.gmra.mrb[0].mxu0 %v190
    %v9914 = vpop.f32.mrb[0].mxu0
    %v9915 = vadd.f32 %v9874, %v9914
    %v9916 = vpop.f32.mrb[0].mxu0
    %v9917 = vadd.f32 %v9876, %v9916
    %v9918 = vpop.f32.mrb[0].mxu0
    %v9919 = vpop.f32.mrb[0].mxu0
    %9920 = vdwg.mxu0
    %9921 = vmatprep.subr.bf16.mxu0 %v5988
    %9922 = vmatpush1.bf16.msra.mxu0 %v5987
    %9923 = vmatprep.subr.bf16.mxu0 %v5998
    %9924 = vmatpush1.bf16.msra.mxu0 %v5997
    %9925 = vmatprep.subr.bf16.mxu0 %v6008
    %9926 = vmatpush1.bf16.msra.mxu0 %v6007
    %9927 = vmatprep.subr.bf16.mxu0 %v6018
    %9928 = vmatpush1.bf16.msra.mxu0 %v6017
    %9929 = vmatprep.subr.bf16.mxu0 %v6028
    %9930 = vmatpush1.bf16.msra.mxu0 %v6027
    %9931 = vmatprep.subr.bf16.mxu0 %v6038
    %9932 = vmatpush1.bf16.msra.mxu0 %v6037
    %9933 = vmatprep.subr.bf16.mxu0 %v6048
    %9934 = vmatpush1.bf16.msra.mxu0 %v6047
    %9935 = vmatprep.subr.bf16.mxu0 %v6058
    %9936 = vmatpush1.bf16.msra.mxu0 %v6057
    %9937 = vmatprep.subr.bf16.mxu0 %v6068
    %9938 = vmatpush1.bf16.msra.mxu0 %v6067
    %9939 = vmatprep.subr.bf16.mxu0 %v6078
    %9940 = vmatpush1.bf16.msra.mxu0 %v6077
    %9941 = vmatprep.subr.bf16.mxu0 %v6088
    %9942 = vmatpush1.bf16.msra.mxu0 %v6087
    %9943 = vmatprep.subr.bf16.mxu0 %v6098
    %9944 = vmatpush1.bf16.msra.mxu0 %v6097
    %9945 = vmatprep.subr.bf16.mxu0 %v6108
    %9946 = vmatpush1.bf16.msra.mxu0 %v6107
    %9947 = vmatprep.subr.bf16.mxu0 %v6118
    %9948 = vmatpush1.bf16.msra.mxu0 %v6117
    %9949 = vmatprep.subr.bf16.mxu0 %v6128
    %9950 = vmatpush1.bf16.msra.mxu0 %v6127
    %9951 = vmatprep.subr.bf16.mxu0 %v6138
    %9952 = vmatpush1.bf16.msra.mxu0 %v6137
    %9953 = vmatprep.mubr.bf16.mxu0 %v193
    %9954 = vmatmul.mubr.bf16.gmra.mrb[0].mxu0 %v192
    %v9955 = vpop.f32.mrb[0].mxu0
    %v9956 = vadd.f32 %v9915, %v9955
    %v9957 = vpop.f32.mrb[0].mxu0
    %v9958 = vadd.f32 %v9917, %v9957
    %v9959 = vpop.f32.mrb[0].mxu0
    %v9960 = vpop.f32.mrb[0].mxu0
    %9961 = vdwg.mxu0
    %9962 = vmatprep.subr.bf16.mxu0 %v6148
    %9963 = vmatpush1.bf16.msra.mxu0 %v6147
    %9964 = vmatprep.subr.bf16.mxu0 %v6158
    %9965 = vmatpush1.bf16.msra.mxu0 %v6157
    %9966 = vmatprep.subr.bf16.mxu0 %v6168
    %9967 = vmatpush1.bf16.msra.mxu0 %v6167
    %9968 = vmatprep.subr.bf16.mxu0 %v6178
    %9969 = vmatpush1.bf16.msra.mxu0 %v6177
    %9970 = vmatprep.subr.bf16.mxu0 %v6188
    %9971 = vmatpush1.bf16.msra.mxu0 %v6187
    %9972 = vmatprep.subr.bf16.mxu0 %v6198
    %9973 = vmatpush1.bf16.msra.mxu0 %v6197
    %9974 = vmatprep.subr.bf16.mxu0 %v6208
    %9975 = vmatpush1.bf16.msra.mxu0 %v6207
    %9976 = vmatprep.subr.bf16.mxu0 %v6218
    %9977 = vmatpush1.bf16.msra.mxu0 %v6217
    %9978 = vmatprep.subr.bf16.mxu0 %v6228
    %9979 = vmatpush1.bf16.msra.mxu0 %v6227
    %9980 = vmatprep.subr.bf16.mxu0 %v6238
    %9981 = vmatpush1.bf16.msra.mxu0 %v6237
    %9982 = vmatprep.subr.bf16.mxu0 %v6248
    %9983 = vmatpush1.bf16.msra.mxu0 %v6247
    %9984 = vmatprep.subr.bf16.mxu0 %v6258
    %9985 = vmatpush1.bf16.msra.mxu0 %v6257
    %9986 = vmatprep.subr.bf16.mxu0 %v6268
    %9987 = vmatpush1.bf16.msra.mxu0 %v6267
    %9988 = vmatprep.subr.bf16.mxu0 %v6278
    %9989 = vmatpush1.bf16.msra.mxu0 %v6277
    %9990 = vmatprep.subr.bf16.mxu0 %v6288
    %9991 = vmatpush1.bf16.msra.mxu0 %v6287
    %9992 = vmatprep.subr.bf16.mxu0 %v6298
    %9993 = vmatpush1.bf16.msra.mxu0 %v6297
    %9994 = vmatprep.mubr.bf16.mxu0 %v195
    %9995 = vmatmul.mubr.bf16.gmra.mrb[0].mxu0 %v194
    %v9996 = vpop.f32.mrb[0].mxu0
    %v9997 = vadd.f32 %v9956, %v9996
    %v9998 = vpop.f32.mrb[0].mxu0
    %v9999 = vadd.f32 %v9958, %v9998
    %v10000 = vpop.f32.mrb[0].mxu0
    %v10001 = vpop.f32.mrb[0].mxu0
    %10002 = vdwg.mxu0
    %10003 = vmatprep.subr.bf16.mxu0 %v6308
    %10004 = vmatpush1.bf16.msra.mxu0 %v6307
    %10005 = vmatprep.subr.bf16.mxu0 %v6318
    %10006 = vmatpush1.bf16.msra.mxu0 %v6317
    %10007 = vmatprep.subr.bf16.mxu0 %v6328
    %10008 = vmatpush1.bf16.msra.mxu0 %v6327
    %10009 = vmatprep.subr.bf16.mxu0 %v6338
    %10010 = vmatpush1.bf16.msra.mxu0 %v6337
    %10011 = vmatprep.subr.bf16.mxu0 %v6348
    %10012 = vmatpush1.bf16.msra.mxu0 %v6347
    %10013 = vmatprep.subr.bf16.mxu0 %v6358
    %10014 = vmatpush1.bf16.msra.mxu0 %v6357
    %10015 = vmatprep.subr.bf16.mxu0 %v6368
    %10016 = vmatpush1.bf16.msra.mxu0 %v6367
    %10017 = vmatprep.subr.bf16.mxu0 %v6378
    %10018 = vmatpush1.bf16.msra.mxu0 %v6377
    %10019 = vmatprep.subr.bf16.mxu0 %v6388
    %10020 = vmatpush1.bf16.msra.mxu0 %v6387
    %10021 = vmatprep.subr.bf16.mxu0 %v6398
    %10022 = vmatpush1.bf16.msra.mxu0 %v6397
    %10023 = vmatprep.subr.bf16.mxu0 %v6408
    %10024 = vmatpush1.bf16.msra.mxu0 %v6407
    %10025 = vmatprep.subr.bf16.mxu0 %v6418
    %10026 = vmatpush1.bf16.msra.mxu0 %v6417
    %10027 = vmatprep.subr.bf16.mxu0 %v6428
    %10028 = vmatpush1.bf16.msra.mxu0 %v6427
    %10029 = vmatprep.subr.bf16.mxu0 %v6438
    %10030 = vmatpush1.bf16.msra.mxu0 %v6437
    %10031 = vmatprep.subr.bf16.mxu0 %v6448
    %10032 = vmatpush1.bf16.msra.mxu0 %v6447
    %10033 = vmatprep.subr.bf16.mxu0 %v6458
    %10034 = vmatpush1.bf16.msra.mxu0 %v6457
    %10035 = vmatprep.mubr.bf16.mxu0 %v197
    %10036 = vmatmul.mubr.bf16.gmra.mrb[0].mxu0 %v196
    %v10037 = vpop.f32.mrb[0].mxu0
    %v10038 = vadd.f32 %v9997, %v10037
    %v10039 = vpop.f32.mrb[0].mxu0
    %v10040 = vadd.f32 %v9999, %v10039
    %v10041 = vpop.f32.mrb[0].mxu0
    %v10042 = vpop.f32.mrb[0].mxu0
    %10043 = vdwg.mxu0
    %10044 = vmatprep.subr.bf16.mxu0 %v6468
    %10045 = vmatpush1.bf16.msra.mxu0 %v6467
    %10046 = vmatprep.subr.bf16.mxu0 %v6478
    %10047 = vmatpush1.bf16.msra.mxu0 %v6477
    %10048 = vmatprep.subr.bf16.mxu0 %v6488
    %10049 = vmatpush1.bf16.msra.mxu0 %v6487
    %10050 = vmatprep.subr.bf16.mxu0 %v6498
    %10051 = vmatpush1.bf16.msra.mxu0 %v6497
    %10052 = vmatprep.subr.bf16.mxu0 %v6508
    %10053 = vmatpush1.bf16.msra.mxu0 %v6507
    %10054 = vmatprep.subr.bf16.mxu0 %v6518
    %10055 = vmatpush1.bf16.msra.mxu0 %v6517
    %10056 = vmatprep.subr.bf16.mxu0 %v6528
    %10057 = vmatpush1.bf16.msra.mxu0 %v6527
    %10058 = vmatprep.subr.bf16.mxu0 %v6538
    %10059 = vmatpush1.bf16.msra.mxu0 %v6537
    %10060 = vmatprep.subr.bf16.mxu0 %v6548
    %10061 = vmatpush1.bf16.msra.mxu0 %v6547
    %10062 = vmatprep.subr.bf16.mxu0 %v6558
    %10063 = vmatpush1.bf16.msra.mxu0 %v6557
    %10064 = vmatprep.subr.bf16.mxu0 %v6568
    %10065 = vmatpush1.bf16.msra.mxu0 %v6567
    %10066 = vmatprep.subr.bf16.mxu0 %v6578
    %10067 = vmatpush1.bf16.msra.mxu0 %v6577
    %10068 = vmatprep.subr.bf16.mxu0 %v6588
    %10069 = vmatpush1.bf16.msra.mxu0 %v6587
    %10070 = vmatprep.subr.bf16.mxu0 %v6598
    %10071 = vmatpush1.bf16.msra.mxu0 %v6597
    %10072 = vmatprep.subr.bf16.mxu0 %v6608
    %10073 = vmatpush1.bf16.msra.mxu0 %v6607
    %10074 = vmatprep.subr.bf16.mxu0 %v6618
    %10075 = vmatpush1.bf16.msra.mxu0 %v6617
    %10076 = vmatprep.mubr.bf16.mxu0 %v199
    %10077 = vmatmul.mubr.bf16.gmra.mrb[0].mxu0 %v198
    %v10078 = vpop.f32.mrb[0].mxu0
    %v10079 = vadd.f32 %v10038, %v10078
    %v10080 = vpop.f32.mrb[0].mxu0
    %v10081 = vadd.f32 %v10040, %v10080
    %v10082 = vpop.f32.mrb[0].mxu0
    %v10083 = vpop.f32.mrb[0].mxu0
    %10084 = vdwg.mxu0
    %10085 = vmatprep.subr.bf16.mxu0 %v6628
    %10086 = vmatpush1.bf16.msra.mxu0 %v6627
    %10087 = vmatprep.subr.bf16.mxu0 %v6638
    %10088 = vmatpush1.bf16.msra.mxu0 %v6637
    %10089 = vmatprep.subr.bf16.mxu0 %v6648
    %10090 = vmatpush1.bf16.msra.mxu0 %v6647
    %10091 = vmatprep.subr.bf16.mxu0 %v6658
    %10092 = vmatpush1.bf16.msra.mxu0 %v6657
    %10093 = vmatprep.subr.bf16.mxu0 %v6668
    %10094 = vmatpush1.bf16.msra.mxu0 %v6667
    %10095 = vmatprep.subr.bf16.mxu0 %v6678
    %10096 = vmatpush1.bf16.msra.mxu0 %v6677
    %10097 = vmatprep.subr.bf16.mxu0 %v6688
    %10098 = vmatpush1.bf16.msra.mxu0 %v6687
    %10099 = vmatprep.subr.bf16.mxu0 %v6698
    %10100 = vmatpush1.bf16.msra.mxu0 %v6697
    %10101 = vmatprep.subr.bf16.mxu0 %v6708
    %10102 = vmatpush1.bf16.msra.mxu0 %v6707
    %10103 = vmatprep.subr.bf16.mxu0 %v6718
    %10104 = vmatpush1.bf16.msra.mxu0 %v6717
    %10105 = vmatprep.subr.bf16.mxu0 %v6728
    %10106 = vmatpush1.bf16.msra.mxu0 %v6727
    %10107 = vmatprep.subr.bf16.mxu0 %v6738
    %10108 = vmatpush1.bf16.msra.mxu0 %v6737
    %10109 = vmatprep.subr.bf16.mxu0 %v6748
    %10110 = vmatpush1.bf16.msra.mxu0 %v6747
    %10111 = vmatprep.subr.bf16.mxu0 %v6758
    %10112 = vmatpush1.bf16.msra.mxu0 %v6757
    %10113 = vmatprep.subr.bf16.mxu0 %v6768
    %10114 = vmatpush1.bf16.msra.mxu0 %v6767
    %10115 = vmatprep.subr.bf16.mxu0 %v6778
    %10116 = vmatpush1.bf16.msra.mxu0 %v6777
    %10117 = vmatprep.mubr.bf16.mxu0 %v201
    %10118 = vmatmul.mubr.bf16.gmra.mrb[0].mxu0 %v200
    %v10119 = vpop.f32.mrb[0].mxu0
    %v10120 = vadd.f32 %v10079, %v10119
    %v10121 = vpop.f32.mrb[0].mxu0
    %v10122 = vadd.f32 %v10081, %v10121
    %v10123 = vpop.f32.mrb[0].mxu0
    %v10124 = vpop.f32.mrb[0].mxu0
    %10125 = vdwg.mxu0
    %10126 = vmatprep.subr.bf16.mxu0 %v6788
    %10127 = vmatpush1.bf16.msra.mxu0 %v6787
    %10128 = vmatprep.subr.bf16.mxu0 %v6798
    %10129 = vmatpush1.bf16.msra.mxu0 %v6797
    %10130 = vmatprep.subr.bf16.mxu0 %v6808
    %10131 = vmatpush1.bf16.msra.mxu0 %v6807
    %10132 = vmatprep.subr.bf16.mxu0 %v6818
    %10133 = vmatpush1.bf16.msra.mxu0 %v6817
    %10134 = vmatprep.subr.bf16.mxu0 %v6828
    %10135 = vmatpush1.bf16.msra.mxu0 %v6827
    %10136 = vmatprep.subr.bf16.mxu0 %v6838
    %10137 = vmatpush1.bf16.msra.mxu0 %v6837
    %10138 = vmatprep.subr.bf16.mxu0 %v6848
    %10139 = vmatpush1.bf16.msra.mxu0 %v6847
    %10140 = vmatprep.subr.bf16.mxu0 %v6858
    %10141 = vmatpush1.bf16.msra.mxu0 %v6857
    %10142 = vmatprep.subr.bf16.mxu0 %v6868
    %10143 = vmatpush1.bf16.msra.mxu0 %v6867
    %10144 = vmatprep.subr.bf16.mxu0 %v6878
    %10145 = vmatpush1.bf16.msra.mxu0 %v6877
    %10146 = vmatprep.subr.bf16.mxu0 %v6888
    %10147 = vmatpush1.bf16.msra.mxu0 %v6887
    %10148 = vmatprep.subr.bf16.mxu0 %v6898
    %10149 = vmatpush1.bf16.msra.mxu0 %v6897
    %10150 = vmatprep.subr.bf16.mxu0 %v6908
    %10151 = vmatpush1.bf16.msra.mxu0 %v6907
    %10152 = vmatprep.subr.bf16.mxu0 %v6918
    %10153 = vmatpush1.bf16.msra.mxu0 %v6917
    %10154 = vmatprep.subr.bf16.mxu0 %v6928
    %10155 = vmatpush1.bf16.msra.mxu0 %v6927
    %10156 = vmatprep.subr.bf16.mxu0 %v6938
    %10157 = vmatpush1.bf16.msra.mxu0 %v6937
    %10158 = vmatprep.mubr.bf16.mxu0 %v203
    %10159 = vmatmul.mubr.bf16.gmra.mrb[0].mxu0 %v202
    %v10160 = vpop.f32.mrb[0].mxu0
    %v10161 = vadd.f32 %v10120, %v10160
    %v10162 = vpop.f32.mrb[0].mxu0
    %v10163 = vadd.f32 %v10122, %v10162
    %v10164 = vpop.f32.mrb[0].mxu0
    %v10165 = vpop.f32.mrb[0].mxu0
    %10166 = vdwg.mxu0
    %10167 = vmatprep.subr.bf16.mxu0 %v6948
    %10168 = vmatpush1.bf16.msra.mxu0 %v6947
    %10169 = vmatprep.subr.bf16.mxu0 %v6958
    %10170 = vmatpush1.bf16.msra.mxu0 %v6957
    %10171 = vmatprep.subr.bf16.mxu0 %v6968
    %10172 = vmatpush1.bf16.msra.mxu0 %v6967
    %10173 = vmatprep.subr.bf16.mxu0 %v6978
    %10174 = vmatpush1.bf16.msra.mxu0 %v6977
    %10175 = vmatprep.subr.bf16.mxu0 %v6988
    %10176 = vmatpush1.bf16.msra.mxu0 %v6987
    %10177 = vmatprep.subr.bf16.mxu0 %v6998
    %10178 = vmatpush1.bf16.msra.mxu0 %v6997
    %10179 = vmatprep.subr.bf16.mxu0 %v7008
    %10180 = vmatpush1.bf16.msra.mxu0 %v7007
    %10181 = vmatprep.subr.bf16.mxu0 0
    %10182 = vmatpush1.bf16.msra.mxu0 0
    %10183 = vmatprep.subr.bf16.mxu0 0
    %10184 = vmatpush1.bf16.msra.mxu0 0
    %10185 = vmatprep.subr.bf16.mxu0 0
    %10186 = vmatpush1.bf16.msra.mxu0 0
    %10187 = vmatprep.subr.bf16.mxu0 0
    %10188 = vmatpush1.bf16.msra.mxu0 0
    %10189 = vmatprep.subr.bf16.mxu0 0
    %10190 = vmatpush1.bf16.msra.mxu0 0
    %10191 = vmatprep.subr.bf16.mxu0 0
    %10192 = vmatpush1.bf16.msra.mxu0 0
    %10193 = vmatprep.subr.bf16.mxu0 0
    %10194 = vmatpush1.bf16.msra.mxu0 0
    %10195 = vmatprep.subr.bf16.mxu0 0
    %10196 = vmatpush1.bf16.msra.mxu0 0
    %10197 = vmatprep.subr.bf16.mxu0 0
    %10198 = vmatpush1.bf16.msra.mxu0 0
    %10199 = vmatprep.mubr.bf16.mxu0 0
    %10200 = vmatmul.mubr.bf16.gmra.mrb[0].mxu0 %v8361
    %v10201 = vpop.f32.mrb[0].mxu0
    %v10202 = vadd.f32 %v10161, %v10201
    %v10203 = vpop.f32.mrb[0].mxu0
    %v10204 = vadd.f32 %v10163, %v10203
    %v10205 = vpop.f32.mrb[0].mxu0
    %v10206 = vpop.f32.mrb[0].mxu0
    %10207 = vdwg.mxu0
    %v10208 = vmax.f32 %v8726, 0.0
    %v10209 = vmax.f32 %v8728, 0.0
    %v10210 = vmax.f32 %v9095, 0.0
    %v10211 = vmax.f32 %v9097, 0.0
    %v10212 = vmax.f32 %v9464, 0.0
    %v10213 = vmax.f32 %v9466, 0.0
    %v10214 = vmax.f32 %v9833, 0.0
    %v10215 = vmax.f32 %v9835, 0.0
    %v10216 = vmax.f32 %v10202, 0.0
    %v10217 = vmax.f32 %v10204, 0.0
    %v10218 = vpack.c.bf16 %v10208, %v10208
    %v10219 = vpack.c.bf16 %v10209, %v10209
    %v10220 = vpack.c.bf16 %v10210, %v10210
    %v10221 = vpack.c.bf16 %v10211, %v10211
    %v10222 = vpack.c.bf16 %v10212, %v10212
    %v10223 = vpack.c.bf16 %v10213, %v10213
    %v10224 = vpack.c.bf16 %v10214, %v10214
    %v10225 = vpack.c.bf16 %v10215, %v10215
    %v10226 = vpack.c.bf16 %v10216, %v10216
    %v10227 = vpack.c.bf16 %v10217, %v10217
    %v10228 = vld [vmem:[#allocation7] sm:$0xff]
    %v10229 = vld [vmem:[#allocation7 + $0x8] sm:$0xff]
    %v10230 = vld [vmem:[#allocation7 + $0x10] sm:$0xf]
    %v10231 = vld [vmem:[#allocation7 + $0x14] sm:$0xff]
    %v10232 = vld [vmem:[#allocation7 + $0x1c] sm:$0xff]
    %v10233 = vld [vmem:[#allocation7 + $0x24] sm:$0xf]
    %v10234 = vld [vmem:[#allocation7 + $0x28] sm:$0xff]
    %v10235 = vld [vmem:[#allocation7 + $0x30] sm:$0xff]
    %v10236 = vld [vmem:[#allocation7 + $0x38] sm:$0xf]
    %v10237 = vld [vmem:[#allocation7 + $0x3c] sm:$0xff]
    %v10238 = vld [vmem:[#allocation7 + $0x44] sm:$0xff]
    %v10239 = vld [vmem:[#allocation7 + $0x4c] sm:$0xf]
    %v10240 = vld [vmem:[#allocation7 + $0x50] sm:$0xff]
    %v10241 = vld [vmem:[#allocation7 + $0x58] sm:$0xff]
    %v10242 = vld [vmem:[#allocation7 + $0x60] sm:$0xf]
    %v10243 = vld [vmem:[#allocation7 + $0x64] sm:$0xff]
    %v10244 = vld [vmem:[#allocation7 + $0x6c] sm:$0xff]
    %v10245 = vld [vmem:[#allocation7 + $0x74] sm:$0xf]
    %v10246 = vld [vmem:[#allocation7 + $0x78] sm:$0xff]
    %v10247 = vld [vmem:[#allocation7 + $0x80] sm:$0xff]
    %v10248 = vld [vmem:[#allocation7 + $0x88] sm:$0xf]
    %v10249 = vld [vmem:[#allocation7 + $0x8c] sm:$0xff]
    %v10250 = vld [vmem:[#allocation7 + $0x94] sm:$0xff]
    %v10251 = vld [vmem:[#allocation7 + $0x9c] sm:$0xf]
    %v10252 = vld [vmem:[#allocation7 + $0xa0] sm:$0xff]
    %v10253 = vld [vmem:[#allocation7 + $0xa8] sm:$0xff]
    %v10254 = vld [vmem:[#allocation7 + $0xb0] sm:$0xf]
    %v10255 = vld [vmem:[#allocation7 + $0xb4] sm:$0xff]
    %v10256 = vld [vmem:[#allocation7 + $0xbc] sm:$0xff]
    %v10257 = vld [vmem:[#allocation7 + $0xc4] sm:$0xf]
    %v10258 = vld [vmem:[#allocation7 + $0xc8] sm:$0xff]
    %v10259 = vld [vmem:[#allocation7 + $0xd0] sm:$0xff]
    %v10260 = vld [vmem:[#allocation7 + $0xd8] sm:$0xf]
    %v10261 = vld [vmem:[#allocation7 + $0xdc] sm:$0xff]
    %v10262 = vld [vmem:[#allocation7 + $0xe4] sm:$0xff]
    %v10263 = vld [vmem:[#allocation7 + $0xec] sm:$0xf]
    %v10264 = vld [vmem:[#allocation7 + $0xf0] sm:$0xff]
    %v10265 = vld [vmem:[#allocation7 + $0xf8] sm:$0xff]
    %v10266 = vld [vmem:[#allocation7 + $0x100] sm:$0xf]
    %v10267 = vld [vmem:[#allocation7 + $0x104] sm:$0xff]
    %v10268 = vld [vmem:[#allocation7 + $0x10c] sm:$0xff]
    %v10269 = vld [vmem:[#allocation7 + $0x114] sm:$0xf]
    %v10270 = vld [vmem:[#allocation7 + $0x118] sm:$0xff]
    %v10271 = vld [vmem:[#allocation7 + $0x120] sm:$0xff]
    %v10272 = vld [vmem:[#allocation7 + $0x128] sm:$0xf]
    %v10273 = vld [vmem:[#allocation7 + $0x12c] sm:$0xff]
    %v10274 = vld [vmem:[#allocation7 + $0x134] sm:$0xff]
    %v10275 = vld [vmem:[#allocation7 + $0x13c] sm:$0xf]
    %v10276 = vld [vmem:[#allocation7 + $0x140] sm:$0xff]
    %v10277 = vld [vmem:[#allocation7 + $0x148] sm:$0xff]
    %v10278 = vld [vmem:[#allocation7 + $0x150] sm:$0xf]
    %v10279 = vld [vmem:[#allocation7 + $0x154] sm:$0xff]
    %v10280 = vld [vmem:[#allocation7 + $0x15c] sm:$0xff]
    %v10281 = vld [vmem:[#allocation7 + $0x164] sm:$0xf]
    %v10282 = vld [vmem:[#allocation7 + $0x168] sm:$0xff]
    %v10283 = vld [vmem:[#allocation7 + $0x170] sm:$0xff]
    %v10284 = vld [vmem:[#allocation7 + $0x178] sm:$0xf]
    %v10285 = vld [vmem:[#allocation7 + $0x17c] sm:$0xff]
    %v10286 = vld [vmem:[#allocation7 + $0x184] sm:$0xff]
    %v10287 = vld [vmem:[#allocation7 + $0x18c] sm:$0xf]
    %v10288 = vld [vmem:[#allocation7 + $0x190] sm:$0xff]
    %v10289 = vld [vmem:[#allocation7 + $0x198] sm:$0xff]
    %v10290 = vld [vmem:[#allocation7 + $0x1a0] sm:$0xf]
    %v10291 = vld [vmem:[#allocation7 + $0x1a4] sm:$0xff]
    %v10292 = vld [vmem:[#allocation7 + $0x1ac] sm:$0xff]
    %v10293 = vld [vmem:[#allocation7 + $0x1b4] sm:$0xf]
    %v10294 = vld [vmem:[#allocation7 + $0x1b8] sm:$0xff]
    %v10295 = vld [vmem:[#allocation7 + $0x1c0] sm:$0xff]
    %v10296 = vld [vmem:[#allocation7 + $0x1c8] sm:$0xf]
    %v10297 = vld [vmem:[#allocation7 + $0x1cc] sm:$0xff]
    %v10298 = vld [vmem:[#allocation7 + $0x1d4] sm:$0xff]
    %v10299 = vld [vmem:[#allocation7 + $0x1dc] sm:$0xf]
    %v10300 = vld [vmem:[#allocation7 + $0x1e0] sm:$0xff]
    %v10301 = vld [vmem:[#allocation7 + $0x1e8] sm:$0xff]
    %v10302 = vld [vmem:[#allocation7 + $0x1f0] sm:$0xf]
    %v10303 = vld [vmem:[#allocation7 + $0x1f4] sm:$0xff]
    %v10304 = vld [vmem:[#allocation7 + $0x1fc] sm:$0xff]
    %v10305 = vld [vmem:[#allocation7 + $0x204] sm:$0xf]
    %v10306 = vld [vmem:[#allocation7 + $0x208] sm:$0xff]
    %v10307 = vld [vmem:[#allocation7 + $0x210] sm:$0xff]
    %v10308 = vld [vmem:[#allocation7 + $0x218] sm:$0xf]
    %v10309 = vld [vmem:[#allocation7 + $0x21c] sm:$0xff]
    %v10310 = vld [vmem:[#allocation7 + $0x224] sm:$0xff]
    %v10311 = vld [vmem:[#allocation7 + $0x22c] sm:$0xf]
    %v10312 = vld [vmem:[#allocation7 + $0x230] sm:$0xff]
    %v10313 = vld [vmem:[#allocation7 + $0x238] sm:$0xff]
    %v10314 = vld [vmem:[#allocation7 + $0x240] sm:$0xf]
    %v10315 = vld [vmem:[#allocation7 + $0x244] sm:$0xff]
    %v10316 = vld [vmem:[#allocation7 + $0x24c] sm:$0xff]
    %v10317 = vld [vmem:[#allocation7 + $0x254] sm:$0xf]
    %v10318 = vld [vmem:[#allocation7 + $0x258] sm:$0xff]
    %v10319 = vld [vmem:[#allocation7 + $0x260] sm:$0xff]
    %v10320 = vld [vmem:[#allocation7 + $0x268] sm:$0xf]
    %v10321 = vld [vmem:[#allocation7 + $0x26c] sm:$0xff]
    %v10322 = vld [vmem:[#allocation7 + $0x274] sm:$0xff]
    %v10323 = vld [vmem:[#allocation7 + $0x27c] sm:$0xf]
    %v10324 = vld [vmem:[#allocation7 + $0x280] sm:$0xff]
    %v10325 = vld [vmem:[#allocation7 + $0x288] sm:$0xff]
    %v10326 = vld [vmem:[#allocation7 + $0x290] sm:$0xf]
    %v10327 = vld [vmem:[#allocation7 + $0x294] sm:$0xff]
    %v10328 = vld [vmem:[#allocation7 + $0x29c] sm:$0xff]
    %v10329 = vld [vmem:[#allocation7 + $0x2a4] sm:$0xf]
    %v10330 = vld [vmem:[#allocation7 + $0x2a8] sm:$0xff]
    %v10331 = vld [vmem:[#allocation7 + $0x2b0] sm:$0xff]
    %v10332 = vld [vmem:[#allocation7 + $0x2b8] sm:$0xf]
    %v10333 = vld [vmem:[#allocation7 + $0x2bc] sm:$0xff]
    %v10334 = vld [vmem:[#allocation7 + $0x2c4] sm:$0xff]
    %v10335 = vld [vmem:[#allocation7 + $0x2cc] sm:$0xf]
    %v10336 = vld [vmem:[#allocation7 + $0x2d0] sm:$0xff]
    %v10337 = vld [vmem:[#allocation7 + $0x2d8] sm:$0xff]
    %v10338 = vld [vmem:[#allocation7 + $0x2e0] sm:$0xf]
    %v10339 = vld [vmem:[#allocation7 + $0x2e4] sm:$0xff]
    %v10340 = vld [vmem:[#allocation7 + $0x2ec] sm:$0xff]
    %v10341 = vld [vmem:[#allocation7 + $0x2f4] sm:$0xf]
    %v10342 = vld [vmem:[#allocation7 + $0x2f8] sm:$0xff]
    %v10343 = vld [vmem:[#allocation7 + $0x300] sm:$0xff]
    %v10344 = vld [vmem:[#allocation7 + $0x308] sm:$0xf]
    %v10345 = vld [vmem:[#allocation7 + $0x30c] sm:$0xff]
    %v10346 = vld [vmem:[#allocation7 + $0x314] sm:$0xff]
    %v10347 = vld [vmem:[#allocation7 + $0x31c] sm:$0xf]
    %v10348 = vld [vmem:[#allocation7 + $0x320] sm:$0xff]
    %v10349 = vld [vmem:[#allocation7 + $0x328] sm:$0xff]
    %v10350 = vld [vmem:[#allocation7 + $0x330] sm:$0xf]
    %v10351 = vld [vmem:[#allocation7 + $0x334] sm:$0xff]
    %v10352 = vld [vmem:[#allocation7 + $0x33c] sm:$0xff]
    %v10353 = vld [vmem:[#allocation7 + $0x344] sm:$0xf]
    %v10354 = vld [vmem:[#allocation7 + $0x348] sm:$0xff]
    %v10355 = vld [vmem:[#allocation7 + $0x350] sm:$0xff]
    %v10356 = vld [vmem:[#allocation7 + $0x358] sm:$0xf]
    %v10357 = vld [vmem:[#allocation7 + $0x35c] sm:$0xff]
    %v10358 = vld [vmem:[#allocation7 + $0x364] sm:$0xff]
    %v10359 = vld [vmem:[#allocation7 + $0x36c] sm:$0xf]
    %v10360 = vld [vmem:[#allocation7 + $0x370] sm:$0xff]
    %v10361 = vld [vmem:[#allocation7 + $0x378] sm:$0xff]
    %v10362 = vld [vmem:[#allocation7 + $0x380] sm:$0xf]
    %v10363 = vld [vmem:[#allocation7 + $0x384] sm:$0xff]
    %v10364 = vld [vmem:[#allocation7 + $0x38c] sm:$0xff]
    %v10365 = vld [vmem:[#allocation7 + $0x394] sm:$0xf]
    %v10366 = vld [vmem:[#allocation7 + $0x398] sm:$0xff]
    %v10367 = vld [vmem:[#allocation7 + $0x3a0] sm:$0xff]
    %v10368 = vld [vmem:[#allocation7 + $0x3a8] sm:$0xf]
    %v10369 = vld [vmem:[#allocation7 + $0x3ac] sm:$0xff]
    %v10370 = vld [vmem:[#allocation7 + $0x3b4] sm:$0xff]
    %v10371 = vld [vmem:[#allocation7 + $0x3bc] sm:$0xf]
    %v10372 = vld [vmem:[#allocation7 + $0x3c0] sm:$0xff]
    %v10373 = vld [vmem:[#allocation7 + $0x3c8] sm:$0xff]
    %v10374 = vld [vmem:[#allocation7 + $0x3d0] sm:$0xf]
    %v10375 = vld [vmem:[#allocation7 + $0x3d4] sm:$0xff]
    %v10376 = vld [vmem:[#allocation7 + $0x3dc] sm:$0xff]
    %v10377 = vld [vmem:[#allocation7 + $0x3e4] sm:$0xf]
    %v10378 = vld [vmem:[#allocation7 + $0x3e8] sm:$0xff]
    %v10379 = vld [vmem:[#allocation7 + $0x3f0] sm:$0xff]
    %v10380 = vld [vmem:[#allocation7 + $0x3f8] sm:$0xf]
    %v10381 = vld [vmem:[#allocation7 + $0x3fc] sm:$0xff]
    %v10382 = vld [vmem:[#allocation7 + $0x404] sm:$0xff]
    %v10383 = vld [vmem:[#allocation7 + $0x40c] sm:$0xf]
    %v10384 = vld [vmem:[#allocation7 + $0x410] sm:$0xff]
    %v10385 = vld [vmem:[#allocation7 + $0x418] sm:$0xff]
    %v10386 = vld [vmem:[#allocation7 + $0x420] sm:$0xf]
    %v10387 = vld [vmem:[#allocation7 + $0x424] sm:$0xff]
    %v10388 = vld [vmem:[#allocation7 + $0x42c] sm:$0xff]
    %v10389 = vld [vmem:[#allocation7 + $0x434] sm:$0xf]
    %v10390 = vld [vmem:[#allocation7 + $0x438] sm:$0xff]
    %v10391 = vld [vmem:[#allocation7 + $0x440] sm:$0xff]
    %v10392 = vld [vmem:[#allocation7 + $0x448] sm:$0xf]
    %v10393 = vld [vmem:[#allocation7 + $0x44c] sm:$0xff]
    %v10394 = vld [vmem:[#allocation7 + $0x454] sm:$0xff]
    %v10395 = vld [vmem:[#allocation7 + $0x45c] sm:$0xf]
    %v10396 = vld [vmem:[#allocation7 + $0x460] sm:$0xff]
    %v10397 = vld [vmem:[#allocation7 + $0x468] sm:$0xff]
    %v10398 = vld [vmem:[#allocation7 + $0x470] sm:$0xf]
    %v10399 = vld [vmem:[#allocation7 + $0x474] sm:$0xff]
    %v10400 = vld [vmem:[#allocation7 + $0x47c] sm:$0xff]
    %v10401 = vld [vmem:[#allocation7 + $0x484] sm:$0xf]
    %v10402 = vld [vmem:[#allocation7 + $0x488] sm:$0xff]
    %v10403 = vld [vmem:[#allocation7 + $0x490] sm:$0xff]
    %v10404 = vld [vmem:[#allocation7 + $0x498] sm:$0xf]
    %v10405 = vld [vmem:[#allocation7 + $0x49c] sm:$0xff]
    %v10406 = vld [vmem:[#allocation7 + $0x4a4] sm:$0xff]
    %v10407 = vld [vmem:[#allocation7 + $0x4ac] sm:$0xf]
    %v10408 = vld [vmem:[#allocation7 + $0x4b0] sm:$0xff]
    %v10409 = vld [vmem:[#allocation7 + $0x4b8] sm:$0xff]
    %v10410 = vld [vmem:[#allocation7 + $0x4c0] sm:$0xf]
    %v10411 = vld [vmem:[#allocation7 + $0x4c4] sm:$0xff]
    %v10412 = vld [vmem:[#allocation7 + $0x4cc] sm:$0xff]
    %v10413 = vld [vmem:[#allocation7 + $0x4d4] sm:$0xf]
    %v10414 = vld [vmem:[#allocation7 + $0x4d8] sm:$0xff]
    %v10415 = vld [vmem:[#allocation7 + $0x4e0] sm:$0xff]
    %v10416 = vld [vmem:[#allocation7 + $0x4e8] sm:$0xf]
    %v10417 = vld [vmem:[#allocation7 + $0x4ec] sm:$0xff]
    %v10418 = vld [vmem:[#allocation7 + $0x4f4] sm:$0xff]
    %v10419 = vld [vmem:[#allocation7 + $0x4fc] sm:$0xf]
    %v10420 = vld [vmem:[#allocation7 + $0x500] sm:$0xff]
    %v10421 = vld [vmem:[#allocation7 + $0x508] sm:$0xff]
    %v10422 = vld [vmem:[#allocation7 + $0x510] sm:$0xf]
    %v10423 = vld [vmem:[#allocation7 + $0x514] sm:$0xff]
    %v10424 = vld [vmem:[#allocation7 + $0x51c] sm:$0xff]
    %v10425 = vld [vmem:[#allocation7 + $0x524] sm:$0xf]
    %v10426 = vld [vmem:[#allocation7 + $0x528] sm:$0xff]
    %v10427 = vld [vmem:[#allocation7 + $0x530] sm:$0xff]
    %v10428 = vld [vmem:[#allocation7 + $0x538] sm:$0xf]
    %v10429 = vld [vmem:[#allocation7 + $0x53c] sm:$0xff]
    %v10430 = vld [vmem:[#allocation7 + $0x544] sm:$0xff]
    %v10431 = vld [vmem:[#allocation7 + $0x54c] sm:$0xf]
    %v10432 = vld [vmem:[#allocation7 + $0x550] sm:$0xff]
    %v10433 = vld [vmem:[#allocation7 + $0x558] sm:$0xff]
    %v10434 = vld [vmem:[#allocation7 + $0x560] sm:$0xf]
    %v10435 = vld [vmem:[#allocation7 + $0x564] sm:$0xff]
    %v10436 = vld [vmem:[#allocation7 + $0x56c] sm:$0xff]
    %v10437 = vld [vmem:[#allocation7 + $0x574] sm:$0xf]
    %v10438 = vld [vmem:[#allocation7 + $0x578] sm:$0xff]
    %v10439 = vld [vmem:[#allocation7 + $0x580] sm:$0xff]
    %v10440 = vld [vmem:[#allocation7 + $0x588] sm:$0xf]
    %v10441 = vld [vmem:[#allocation7 + $0x58c] sm:$0xff]
    %v10442 = vld [vmem:[#allocation7 + $0x594] sm:$0xff]
    %v10443 = vld [vmem:[#allocation7 + $0x59c] sm:$0xf]
    %v10444 = vld [vmem:[#allocation7 + $0x5a0] sm:$0xff]
    %v10445 = vld [vmem:[#allocation7 + $0x5a8] sm:$0xff]
    %v10446 = vld [vmem:[#allocation7 + $0x5b0] sm:$0xf]
    %v10447 = vld [vmem:[#allocation7 + $0x5b4] sm:$0xff]
    %v10448 = vld [vmem:[#allocation7 + $0x5bc] sm:$0xff]
    %v10449 = vld [vmem:[#allocation7 + $0x5c4] sm:$0xf]
    %v10450 = vld [vmem:[#allocation7 + $0x5c8] sm:$0xff]
    %v10451 = vld [vmem:[#allocation7 + $0x5d0] sm:$0xff]
    %v10452 = vld [vmem:[#allocation7 + $0x5d8] sm:$0xf]
    %v10453 = vld [vmem:[#allocation7 + $0x5dc] sm:$0xff]
    %v10454 = vld [vmem:[#allocation7 + $0x5e4] sm:$0xff]
    %v10455 = vld [vmem:[#allocation7 + $0x5ec] sm:$0xf]
    %v10456 = vld [vmem:[#allocation7 + $0x5f0] sm:$0xff]
    %v10457 = vld [vmem:[#allocation7 + $0x5f8] sm:$0xff]
    %v10458 = vld [vmem:[#allocation7 + $0x600] sm:$0xf]
    %v10459 = vld [vmem:[#allocation7 + $0x604] sm:$0xff]
    %v10460 = vld [vmem:[#allocation7 + $0x60c] sm:$0xff]
    %v10461 = vld [vmem:[#allocation7 + $0x614] sm:$0xf]
    %v10462 = vld [vmem:[#allocation7 + $0x618] sm:$0xff]
    %v10463 = vld [vmem:[#allocation7 + $0x620] sm:$0xff]
    %v10464 = vld [vmem:[#allocation7 + $0x628] sm:$0xf]
    %v10465 = vld [vmem:[#allocation7 + $0x62c] sm:$0xff]
    %v10466 = vld [vmem:[#allocation7 + $0x634] sm:$0xff]
    %v10467 = vld [vmem:[#allocation7 + $0x63c] sm:$0xf]
    %v10468 = vld [vmem:[#allocation7 + $0x640] sm:$0xff]
    %v10469 = vld [vmem:[#allocation7 + $0x648] sm:$0xff]
    %v10470 = vld [vmem:[#allocation7 + $0x650] sm:$0xf]
    %v10471 = vld [vmem:[#allocation7 + $0x654] sm:$0xff]
    %v10472 = vld [vmem:[#allocation7 + $0x65c] sm:$0xff]
    %v10473 = vld [vmem:[#allocation7 + $0x664] sm:$0xf]
    %v10474 = vld [vmem:[#allocation7 + $0x668] sm:$0xff]
    %v10475 = vld [vmem:[#allocation7 + $0x670] sm:$0xff]
    %v10476 = vld [vmem:[#allocation7 + $0x678] sm:$0xf]
    %v10477 = vld [vmem:[#allocation7 + $0x67c] sm:$0xff]
    %v10478 = vld [vmem:[#allocation7 + $0x684] sm:$0xff]
    %v10479 = vld [vmem:[#allocation7 + $0x68c] sm:$0xf]
    %v10480 = vld [vmem:[#allocation7 + $0x690] sm:$0xff]
    %v10481 = vld [vmem:[#allocation7 + $0x698] sm:$0xff]
    %v10482 = vld [vmem:[#allocation7 + $0x6a0] sm:$0xf]
    %v10483 = vld [vmem:[#allocation7 + $0x6a4] sm:$0xff]
    %v10484 = vld [vmem:[#allocation7 + $0x6ac] sm:$0xff]
    %v10485 = vld [vmem:[#allocation7 + $0x6b4] sm:$0xf]
    %v10486 = vld [vmem:[#allocation7 + $0x6b8] sm:$0xff]
    %v10487 = vld [vmem:[#allocation7 + $0x6c0] sm:$0xff]
    %v10488 = vld [vmem:[#allocation7 + $0x6c8] sm:$0xf]
    %v10489 = vld [vmem:[#allocation7 + $0x6cc] sm:$0xff]
    %v10490 = vld [vmem:[#allocation7 + $0x6d4] sm:$0xff]
    %v10491 = vld [vmem:[#allocation7 + $0x6dc] sm:$0xf]
    %v10492 = vld [vmem:[#allocation7 + $0x6e0] sm:$0xff]
    %v10493 = vld [vmem:[#allocation7 + $0x6e8] sm:$0xff]
    %v10494 = vld [vmem:[#allocation7 + $0x6f0] sm:$0xf]
    %v10495 = vld [vmem:[#allocation7 + $0x6f4] sm:$0xff]
    %v10496 = vld [vmem:[#allocation7 + $0x6fc] sm:$0xff]
    %v10497 = vld [vmem:[#allocation7 + $0x704] sm:$0xf]
    %v10498 = vld [vmem:[#allocation7 + $0x708] sm:$0xff]
    %v10499 = vld [vmem:[#allocation7 + $0x710] sm:$0xff]
    %v10500 = vld [vmem:[#allocation7 + $0x718] sm:$0xf]
    %v10501 = vld [vmem:[#allocation7 + $0x71c] sm:$0xff]
    %v10502 = vld [vmem:[#allocation7 + $0x724] sm:$0xff]
    %v10503 = vld [vmem:[#allocation7 + $0x72c] sm:$0xf]
    %v10504 = vld [vmem:[#allocation7 + $0x730] sm:$0xff]
    %v10505 = vld [vmem:[#allocation7 + $0x738] sm:$0xff]
    %v10506 = vld [vmem:[#allocation7 + $0x740] sm:$0xf]
    %v10507 = vld [vmem:[#allocation7 + $0x744] sm:$0xff]
    %v10508 = vld [vmem:[#allocation7 + $0x74c] sm:$0xff]
    %v10509 = vld [vmem:[#allocation7 + $0x754] sm:$0xf]
    %v10510 = vld [vmem:[#allocation7 + $0x758] sm:$0xff]
    %v10511 = vld [vmem:[#allocation7 + $0x760] sm:$0xff]
    %v10512 = vld [vmem:[#allocation7 + $0x768] sm:$0xf]
    %v10513 = vld [vmem:[#allocation7 + $0x76c] sm:$0xff]
    %v10514 = vld [vmem:[#allocation7 + $0x774] sm:$0xff]
    %v10515 = vld [vmem:[#allocation7 + $0x77c] sm:$0xf]
    %v10516 = vld [vmem:[#allocation7 + $0x780] sm:$0xff]
    %v10517 = vld [vmem:[#allocation7 + $0x788] sm:$0xff]
    %v10518 = vld [vmem:[#allocation7 + $0x790] sm:$0xf]
    %v10519 = vld [vmem:[#allocation7 + $0x794] sm:$0xff]
    %v10520 = vld [vmem:[#allocation7 + $0x79c] sm:$0xff]
    %v10521 = vld [vmem:[#allocation7 + $0x7a4] sm:$0xf]
    %v10522 = vld [vmem:[#allocation7 + $0x7a8] sm:$0xff]
    %v10523 = vld [vmem:[#allocation7 + $0x7b0] sm:$0xff]
    %v10524 = vld [vmem:[#allocation7 + $0x7b8] sm:$0xf]
    %v10525 = vld [vmem:[#allocation7 + $0x7bc] sm:$0xff]
    %v10526 = vld [vmem:[#allocation7 + $0x7c4] sm:$0xff]
    %v10527 = vld [vmem:[#allocation7 + $0x7cc] sm:$0xf]
    %v10528 = vld [vmem:[#allocation7 + $0x7d0] sm:$0xff]
    %v10529 = vld [vmem:[#allocation7 + $0x7d8] sm:$0xff]
    %v10530 = vld [vmem:[#allocation7 + $0x7e0] sm:$0xf]
    %v10531 = vld [vmem:[#allocation7 + $0x7e4] sm:$0xff]
    %v10532 = vld [vmem:[#allocation7 + $0x7ec] sm:$0xff]
    %v10533 = vld [vmem:[#allocation7 + $0x7f4] sm:$0xf]
    %v10534 = vld [vmem:[#allocation7 + $0x7f8] sm:$0xff]
    %v10535 = vld [vmem:[#allocation7 + $0x800] sm:$0xff]
    %v10536 = vld [vmem:[#allocation7 + $0x808] sm:$0xf]
    %v10537 = vld [vmem:[#allocation7 + $0x80c] sm:$0xff]
    %v10538 = vld [vmem:[#allocation7 + $0x814] sm:$0xff]
    %v10539 = vld [vmem:[#allocation7 + $0x81c] sm:$0xf]
    %v10540 = vld [vmem:[#allocation7 + $0x820] sm:$0xff]
    %v10541 = vld [vmem:[#allocation7 + $0x828] sm:$0xff]
    %v10542 = vld [vmem:[#allocation7 + $0x830] sm:$0xf]
    %v10543 = vld [vmem:[#allocation7 + $0x834] sm:$0xff]
    %v10544 = vld [vmem:[#allocation7 + $0x83c] sm:$0xff]
    %v10545 = vld [vmem:[#allocation7 + $0x844] sm:$0xf]
    %v10546 = vld [vmem:[#allocation7 + $0x848] sm:$0xff]
    %v10547 = vld [vmem:[#allocation7 + $0x850] sm:$0xff]
    %v10548 = vld [vmem:[#allocation7 + $0x858] sm:$0xf]
    %v10549 = vld [vmem:[#allocation7 + $0x85c] sm:$0xff]
    %v10550 = vld [vmem:[#allocation7 + $0x864] sm:$0xff]
    %v10551 = vld [vmem:[#allocation7 + $0x86c] sm:$0xf]
    %v10552 = vld [vmem:[#allocation7 + $0x870] sm:$0xff]
    %v10553 = vld [vmem:[#allocation7 + $0x878] sm:$0xff]
    %v10554 = vld [vmem:[#allocation7 + $0x880] sm:$0xf]
    %v10555 = vld [vmem:[#allocation7 + $0x884] sm:$0xff]
    %v10556 = vld [vmem:[#allocation7 + $0x88c] sm:$0xff]
    %v10557 = vld [vmem:[#allocation7 + $0x894] sm:$0xf]
    %v10558 = vld [vmem:[#allocation7 + $0x898] sm:$0xff]
    %v10559 = vld [vmem:[#allocation7 + $0x8a0] sm:$0xff]
    %v10560 = vld [vmem:[#allocation7 + $0x8a8] sm:$0xf]
    %v10561 = vld [vmem:[#allocation7 + $0x8ac] sm:$0xff]
    %v10562 = vld [vmem:[#allocation7 + $0x8b4] sm:$0xff]
    %v10563 = vld [vmem:[#allocation7 + $0x8bc] sm:$0xf]
    %v10564 = vld [vmem:[#allocation7 + $0x8c0] sm:$0xff]
    %v10565 = vld [vmem:[#allocation7 + $0x8c8] sm:$0xff]
    %v10566 = vld [vmem:[#allocation7 + $0x8d0] sm:$0xf]
    %v10567 = vld [vmem:[#allocation7 + $0x8d4] sm:$0xff]
    %v10568 = vld [vmem:[#allocation7 + $0x8dc] sm:$0xff]
    %v10569 = vld [vmem:[#allocation7 + $0x8e4] sm:$0xf]
    %v10570 = vld [vmem:[#allocation7 + $0x8e8] sm:$0xff]
    %v10571 = vld [vmem:[#allocation7 + $0x8f0] sm:$0xff]
    %v10572 = vld [vmem:[#allocation7 + $0x8f8] sm:$0xf]
    %v10573 = vld [vmem:[#allocation7 + $0x8fc] sm:$0xff]
    %v10574 = vld [vmem:[#allocation7 + $0x904] sm:$0xff]
    %v10575 = vld [vmem:[#allocation7 + $0x90c] sm:$0xf]
    %v10576 = vld [vmem:[#allocation7 + $0x910] sm:$0xff]
    %v10577 = vld [vmem:[#allocation7 + $0x918] sm:$0xff]
    %v10578 = vld [vmem:[#allocation7 + $0x920] sm:$0xf]
    %v10579 = vld [vmem:[#allocation7 + $0x924] sm:$0xff]
    %v10580 = vld [vmem:[#allocation7 + $0x92c] sm:$0xff]
    %v10581 = vld [vmem:[#allocation7 + $0x934] sm:$0xf]
    %v10582 = vld [vmem:[#allocation7 + $0x938] sm:$0xff]
    %v10583 = vld [vmem:[#allocation7 + $0x940] sm:$0xff]
    %v10584 = vld [vmem:[#allocation7 + $0x948] sm:$0xf]
    %v10585 = vld [vmem:[#allocation7 + $0x94c] sm:$0xff]
    %v10586 = vld [vmem:[#allocation7 + $0x954] sm:$0xff]
    %v10587 = vld [vmem:[#allocation7 + $0x95c] sm:$0xf]
    %v10588 = vld [vmem:[#allocation7 + $0x960] sm:$0xff]
    %v10589 = vld [vmem:[#allocation7 + $0x968] sm:$0xff]
    %v10590 = vld [vmem:[#allocation7 + $0x970] sm:$0xf]
    %v10591 = vld [vmem:[#allocation7 + $0x974] sm:$0xff]
    %v10592 = vld [vmem:[#allocation7 + $0x97c] sm:$0xff]
    %v10593 = vld [vmem:[#allocation7 + $0x984] sm:$0xf]
    %v10594 = vld [vmem:[#allocation7 + $0x988] sm:$0xff]
    %v10595 = vld [vmem:[#allocation7 + $0x990] sm:$0xff]
    %v10596 = vld [vmem:[#allocation7 + $0x998] sm:$0xf]
    %v10597 = vld [vmem:[#allocation7 + $0x99c] sm:$0xff]
    %v10598 = vld [vmem:[#allocation7 + $0x9a4] sm:$0xff]
    %v10599 = vld [vmem:[#allocation7 + $0x9ac] sm:$0xf]
    %v10600 = vld [vmem:[#allocation7 + $0x9b0] sm:$0xff]
    %v10601 = vld [vmem:[#allocation7 + $0x9b8] sm:$0xff]
    %v10602 = vld [vmem:[#allocation7 + $0x9c0] sm:$0xf]
    %v10603 = vld [vmem:[#allocation7 + $0x9c4] sm:$0xff]
    %v10604 = vld [vmem:[#allocation7 + $0x9cc] sm:$0xff]
    %v10605 = vld [vmem:[#allocation7 + $0x9d4] sm:$0xf]
    %v10606 = vld [vmem:[#allocation7 + $0x9d8] sm:$0xff]
    %v10607 = vld [vmem:[#allocation7 + $0x9e0] sm:$0xff]
    %v10608 = vld [vmem:[#allocation7 + $0x9e8] sm:$0xf]
    %v10609 = vld [vmem:[#allocation7 + $0x9ec] sm:$0xff]
    %v10610 = vld [vmem:[#allocation7 + $0x9f4] sm:$0xff]
    %v10611 = vld [vmem:[#allocation7 + $0x9fc] sm:$0xf]
    %v10612 = vld [vmem:[#allocation7 + $0xa00] sm:$0xff]
    %v10613 = vld [vmem:[#allocation7 + $0xa08] sm:$0xff]
    %v10614 = vld [vmem:[#allocation7 + $0xa10] sm:$0xf]
    %v10615 = vld [vmem:[#allocation7 + $0xa14] sm:$0xff]
    %v10616 = vld [vmem:[#allocation7 + $0xa1c] sm:$0xff]
    %v10617 = vld [vmem:[#allocation7 + $0xa24] sm:$0xf]
    %v10618 = vld [vmem:[#allocation7 + $0xa28] sm:$0xff]
    %v10619 = vld [vmem:[#allocation7 + $0xa30] sm:$0xff]
    %v10620 = vld [vmem:[#allocation7 + $0xa38] sm:$0xf]
    %v10621 = vld [vmem:[#allocation7 + $0xa3c] sm:$0xff]
    %v10622 = vld [vmem:[#allocation7 + $0xa44] sm:$0xff]
    %v10623 = vld [vmem:[#allocation7 + $0xa4c] sm:$0xf]
    %v10624 = vld [vmem:[#allocation7 + $0xa50] sm:$0xff]
    %v10625 = vld [vmem:[#allocation7 + $0xa58] sm:$0xff]
    %v10626 = vld [vmem:[#allocation7 + $0xa60] sm:$0xf]
    %v10627 = vld [vmem:[#allocation7 + $0xa64] sm:$0xff]
    %v10628 = vld [vmem:[#allocation7 + $0xa6c] sm:$0xff]
    %v10629 = vld [vmem:[#allocation7 + $0xa74] sm:$0xf]
    %v10630 = vld [vmem:[#allocation7 + $0xa78] sm:$0xff]
    %v10631 = vld [vmem:[#allocation7 + $0xa80] sm:$0xff]
    %v10632 = vld [vmem:[#allocation7 + $0xa88] sm:$0xf]
    %v10633 = vld [vmem:[#allocation7 + $0xa8c] sm:$0xff]
    %v10634 = vld [vmem:[#allocation7 + $0xa94] sm:$0xff]
    %v10635 = vld [vmem:[#allocation7 + $0xa9c] sm:$0xf]
    %v10636 = vld [vmem:[#allocation7 + $0xaa0] sm:$0xff]
    %v10637 = vld [vmem:[#allocation7 + $0xaa8] sm:$0xff]
    %v10638 = vld [vmem:[#allocation7 + $0xab0] sm:$0xf]
    %v10639 = vld [vmem:[#allocation7 + $0xab4] sm:$0xff]
    %v10640 = vld [vmem:[#allocation7 + $0xabc] sm:$0xff]
    %v10641 = vld [vmem:[#allocation7 + $0xac4] sm:$0xf]
    %v10642 = vld [vmem:[#allocation7 + $0xac8] sm:$0xff]
    %v10643 = vld [vmem:[#allocation7 + $0xad0] sm:$0xff]
    %v10644 = vld [vmem:[#allocation7 + $0xad8] sm:$0xf]
    %v10645 = vld [vmem:[#allocation7 + $0xadc] sm:$0xff]
    %v10646 = vld [vmem:[#allocation7 + $0xae4] sm:$0xff]
    %v10647 = vld [vmem:[#allocation7 + $0xaec] sm:$0xf]
    %v10648 = vld [vmem:[#allocation7 + $0xaf0] sm:$0xff]
    %v10649 = vld [vmem:[#allocation7 + $0xaf8] sm:$0xff]
    %v10650 = vld [vmem:[#allocation7 + $0xb00] sm:$0xf]
    %v10651 = vld [vmem:[#allocation7 + $0xb04] sm:$0xff]
    %v10652 = vld [vmem:[#allocation7 + $0xb0c] sm:$0xff]
    %v10653 = vld [vmem:[#allocation7 + $0xb14] sm:$0xf]
    %v10654 = vld [vmem:[#allocation7 + $0xb18] sm:$0xff]
    %v10655 = vld [vmem:[#allocation7 + $0xb20] sm:$0xff]
    %v10656 = vld [vmem:[#allocation7 + $0xb28] sm:$0xf]
    %v10657 = vld [vmem:[#allocation7 + $0xb2c] sm:$0xff]
    %v10658 = vld [vmem:[#allocation7 + $0xb34] sm:$0xff]
    %v10659 = vld [vmem:[#allocation7 + $0xb3c] sm:$0xf]
    %v10660 = vld [vmem:[#allocation7 + $0xb40] sm:$0xff]
    %v10661 = vld [vmem:[#allocation7 + $0xb48] sm:$0xff]
    %v10662 = vld [vmem:[#allocation7 + $0xb50] sm:$0xf]
    %v10663 = vld [vmem:[#allocation7 + $0xb54] sm:$0xff]
    %v10664 = vld [vmem:[#allocation7 + $0xb5c] sm:$0xff]
    %v10665 = vld [vmem:[#allocation7 + $0xb64] sm:$0xf]
    %v10666 = vld [vmem:[#allocation7 + $0xb68] sm:$0xff]
    %v10667 = vld [vmem:[#allocation7 + $0xb70] sm:$0xff]
    %v10668 = vld [vmem:[#allocation7 + $0xb78] sm:$0xf]
    %v10669 = vld [vmem:[#allocation7 + $0xb7c] sm:$0xff]
    %v10670 = vld [vmem:[#allocation7 + $0xb84] sm:$0xff]
    %v10671 = vld [vmem:[#allocation7 + $0xb8c] sm:$0xf]
    %v10672 = vld [vmem:[#allocation7 + $0xb90] sm:$0xff]
    %v10673 = vld [vmem:[#allocation7 + $0xb98] sm:$0xff]
    %v10674 = vld [vmem:[#allocation7 + $0xba0] sm:$0xf]
    %v10675 = vld [vmem:[#allocation7 + $0xba4] sm:$0xff]
    %v10676 = vld [vmem:[#allocation7 + $0xbac] sm:$0xff]
    %v10677 = vld [vmem:[#allocation7 + $0xbb4] sm:$0xf]
    %v10678 = vld [vmem:[#allocation7 + $0xbb8] sm:$0xff]
    %v10679 = vld [vmem:[#allocation7 + $0xbc0] sm:$0xff]
    %v10680 = vld [vmem:[#allocation7 + $0xbc8] sm:$0xf]
    %v10681 = vld [vmem:[#allocation7 + $0xbcc] sm:$0xff]
    %v10682 = vld [vmem:[#allocation7 + $0xbd4] sm:$0xff]
    %v10683 = vld [vmem:[#allocation7 + $0xbdc] sm:$0xf]
    %v10684 = vld [vmem:[#allocation7 + $0xbe0] sm:$0xff]
    %v10685 = vld [vmem:[#allocation7 + $0xbe8] sm:$0xff]
    %v10686 = vld [vmem:[#allocation7 + $0xbf0] sm:$0xf]
    %v10687 = vld [vmem:[#allocation7 + $0xbf4] sm:$0xff]
    %v10688 = vld [vmem:[#allocation7 + $0xbfc] sm:$0xff]
    %v10689 = vld [vmem:[#allocation7 + $0xc04] sm:$0xf]
    %v10690 = vld [vmem:[#allocation7 + $0xc08] sm:$0xff]
    %v10691 = vld [vmem:[#allocation7 + $0xc10] sm:$0xff]
    %v10692 = vld [vmem:[#allocation7 + $0xc18] sm:$0xf]
    %v10693 = vld [vmem:[#allocation7 + $0xc1c] sm:$0xff]
    %v10694 = vld [vmem:[#allocation7 + $0xc24] sm:$0xff]
    %v10695 = vld [vmem:[#allocation7 + $0xc2c] sm:$0xf]
    %v10696 = vld [vmem:[#allocation7 + $0xc30] sm:$0xff]
    %v10697 = vld [vmem:[#allocation7 + $0xc38] sm:$0xff]
    %v10698 = vld [vmem:[#allocation7 + $0xc40] sm:$0xf]
    %v10699 = vld [vmem:[#allocation7 + $0xc44] sm:$0xff]
    %v10700 = vld [vmem:[#allocation7 + $0xc4c] sm:$0xff]
    %v10701 = vld [vmem:[#allocation7 + $0xc54] sm:$0xf]
    %v10702 = vld [vmem:[#allocation7 + $0xc58] sm:$0xff]
    %v10703 = vld [vmem:[#allocation7 + $0xc60] sm:$0xff]
    %v10704 = vld [vmem:[#allocation7 + $0xc68] sm:$0xf]
    %v10705 = vld [vmem:[#allocation7 + $0xc6c] sm:$0xff]
    %v10706 = vld [vmem:[#allocation7 + $0xc74] sm:$0xff]
    %v10707 = vld [vmem:[#allocation7 + $0xc7c] sm:$0xf]
    %v10708 = vld [vmem:[#allocation9] sm:$0x1f]
    %v10710 = vlaneseq
    %v10711 = vshrl.u32 %v10710, 7
    %v10712 = vsub.s32 0, %v10711
    %v10713 = vrot.slane %v10708, %v10712
    %v10714 = vlaneseq
    %v10715 = vshrl.u32 %v10714, 7
    %v10716 = vsub.s32 1, %v10715
    %v10717 = vrot.slane %v10708, %v10716
    %v10718 = vlaneseq
    %v10719 = vshrl.u32 %v10718, 7
    %v10720 = vsub.s32 2, %v10719
    %v10721 = vrot.slane %v10708, %v10720
    %v10722 = vlaneseq
    %v10723 = vshrl.u32 %v10722, 7
    %v10724 = vsub.s32 3, %v10723
    %v10725 = vrot.slane %v10708, %v10724
    %v10726 = vlaneseq
    %v10727 = vshrl.u32 %v10726, 7
    %v10728 = vsub.s32 4, %v10727
    %v10729 = vrot.slane %v10708, %v10728
    %v11215 = vunpack.c.l.b16 %v10228
    %v11216 = vunpack.c.h.b16 %v10228
    %v11217 = vunpack.c.l.b16 %v10229
    %v11218 = vunpack.c.h.b16 %v10229
    %v11219 = vunpack.c.l.b16 %v10230
    %v11220 = vunpack.c.l.b16 %v10231
    %v11221 = vunpack.c.h.b16 %v10231
    %v11222 = vunpack.c.l.b16 %v10232
    %v11223 = vunpack.c.h.b16 %v10232
    %v11224 = vunpack.c.l.b16 %v10233
    %v11225 = vunpack.c.l.b16 %v10234
    %v11226 = vunpack.c.h.b16 %v10234
    %v11227 = vunpack.c.l.b16 %v10235
    %v11228 = vunpack.c.h.b16 %v10235
    %v11229 = vunpack.c.l.b16 %v10236
    %v11230 = vunpack.c.l.b16 %v10237
    %v11231 = vunpack.c.h.b16 %v10237
    %v11232 = vunpack.c.l.b16 %v10238
    %v11233 = vunpack.c.h.b16 %v10238
    %v11234 = vunpack.c.l.b16 %v10239
    %v11235 = vunpack.c.l.b16 %v10240
    %v11236 = vunpack.c.h.b16 %v10240
    %v11237 = vunpack.c.l.b16 %v10241
    %v11238 = vunpack.c.h.b16 %v10241
    %v11239 = vunpack.c.l.b16 %v10242
    %v11240 = vunpack.c.l.b16 %v10243
    %v11241 = vunpack.c.h.b16 %v10243
    %v11242 = vunpack.c.l.b16 %v10244
    %v11243 = vunpack.c.h.b16 %v10244
    %v11244 = vunpack.c.l.b16 %v10245
    %v11245 = vunpack.c.l.b16 %v10246
    %v11246 = vunpack.c.h.b16 %v10246
    %v11247 = vunpack.c.l.b16 %v10247
    %v11248 = vunpack.c.h.b16 %v10247
    %v11249 = vunpack.c.l.b16 %v10248
    %v11250 = vunpack.c.l.b16 %v10249
    %v11251 = vunpack.c.h.b16 %v10249
    %v11252 = vunpack.c.l.b16 %v10250
    %v11253 = vunpack.c.h.b16 %v10250
    %v11254 = vunpack.c.l.b16 %v10251
    %v11255 = vunpack.c.l.b16 %v10252
    %v11256 = vunpack.c.h.b16 %v10252
    %v11257 = vunpack.c.l.b16 %v10253
    %v11258 = vunpack.c.h.b16 %v10253
    %v11259 = vunpack.c.l.b16 %v10254
    %v11260 = vunpack.c.l.b16 %v10255
    %v11261 = vunpack.c.h.b16 %v10255
    %v11262 = vunpack.c.l.b16 %v10256
    %v11263 = vunpack.c.h.b16 %v10256
    %v11264 = vunpack.c.l.b16 %v10257
    %v11265 = vunpack.c.l.b16 %v10258
    %v11266 = vunpack.c.h.b16 %v10258
    %v11267 = vunpack.c.l.b16 %v10259
    %v11268 = vunpack.c.h.b16 %v10259
    %v11269 = vunpack.c.l.b16 %v10260
    %v11270 = vunpack.c.l.b16 %v10261
    %v11271 = vunpack.c.h.b16 %v10261
    %v11272 = vunpack.c.l.b16 %v10262
    %v11273 = vunpack.c.h.b16 %v10262
    %v11274 = vunpack.c.l.b16 %v10263
    %v11275 = vunpack.c.l.b16 %v10264
    %v11276 = vunpack.c.h.b16 %v10264
    %v11277 = vunpack.c.l.b16 %v10265
    %v11278 = vunpack.c.h.b16 %v10265
    %v11279 = vunpack.c.l.b16 %v10266
    %v11280 = vunpack.c.l.b16 %v10267
    %v11281 = vunpack.c.h.b16 %v10267
    %v11282 = vunpack.c.l.b16 %v10268
    %v11283 = vunpack.c.h.b16 %v10268
    %v11284 = vunpack.c.l.b16 %v10269
    %v11285 = vunpack.c.l.b16 %v10270
    %v11286 = vunpack.c.h.b16 %v10270
    %v11287 = vunpack.c.l.b16 %v10271
    %v11288 = vunpack.c.h.b16 %v10271
    %v11289 = vunpack.c.l.b16 %v10272
    %v11290 = vunpack.c.l.b16 %v10273
    %v11291 = vunpack.c.h.b16 %v10273
    %v11292 = vunpack.c.l.b16 %v10274
    %v11293 = vunpack.c.h.b16 %v10274
    %v11294 = vunpack.c.l.b16 %v10275
    %v11295 = vunpack.c.l.b16 %v10276
    %v11296 = vunpack.c.h.b16 %v10276
    %v11297 = vunpack.c.l.b16 %v10277
    %v11298 = vunpack.c.h.b16 %v10277
    %v11299 = vunpack.c.l.b16 %v10278
    %v11300 = vunpack.c.l.b16 %v10279
    %v11301 = vunpack.c.h.b16 %v10279
    %v11302 = vunpack.c.l.b16 %v10280
    %v11303 = vunpack.c.h.b16 %v10280
    %v11304 = vunpack.c.l.b16 %v10281
    %v11305 = vunpack.c.l.b16 %v10282
    %v11306 = vunpack.c.h.b16 %v10282
    %v11307 = vunpack.c.l.b16 %v10283
    %v11308 = vunpack.c.h.b16 %v10283
    %v11309 = vunpack.c.l.b16 %v10284
    %v11310 = vunpack.c.l.b16 %v10285
    %v11311 = vunpack.c.h.b16 %v10285
    %v11312 = vunpack.c.l.b16 %v10286
    %v11313 = vunpack.c.h.b16 %v10286
    %v11314 = vunpack.c.l.b16 %v10287
    %v11315 = vunpack.c.l.b16 %v10288
    %v11316 = vunpack.c.h.b16 %v10288
    %v11317 = vunpack.c.l.b16 %v10289
    %v11318 = vunpack.c.h.b16 %v10289
    %v11319 = vunpack.c.l.b16 %v10290
    %v11320 = vunpack.c.l.b16 %v10291
    %v11321 = vunpack.c.h.b16 %v10291
    %v11322 = vunpack.c.l.b16 %v10292
    %v11323 = vunpack.c.h.b16 %v10292
    %v11324 = vunpack.c.l.b16 %v10293
    %v11325 = vunpack.c.l.b16 %v10294
    %v11326 = vunpack.c.h.b16 %v10294
    %v11327 = vunpack.c.l.b16 %v10295
    %v11328 = vunpack.c.h.b16 %v10295
    %v11329 = vunpack.c.l.b16 %v10296
    %v11330 = vunpack.c.l.b16 %v10297
    %v11331 = vunpack.c.h.b16 %v10297
    %v11332 = vunpack.c.l.b16 %v10298
    %v11333 = vunpack.c.h.b16 %v10298
    %v11334 = vunpack.c.l.b16 %v10299
    %v11335 = vunpack.c.l.b16 %v10300
    %v11336 = vunpack.c.h.b16 %v10300
    %v11337 = vunpack.c.l.b16 %v10301
    %v11338 = vunpack.c.h.b16 %v10301
    %v11339 = vunpack.c.l.b16 %v10302
    %v11340 = vunpack.c.l.b16 %v10303
    %v11341 = vunpack.c.h.b16 %v10303
    %v11342 = vunpack.c.l.b16 %v10304
    %v11343 = vunpack.c.h.b16 %v10304
    %v11344 = vunpack.c.l.b16 %v10305
    %v11345 = vunpack.c.l.b16 %v10306
    %v11346 = vunpack.c.h.b16 %v10306
    %v11347 = vunpack.c.l.b16 %v10307
    %v11348 = vunpack.c.h.b16 %v10307
    %v11349 = vunpack.c.l.b16 %v10308
    %v11350 = vunpack.c.l.b16 %v10309
    %v11351 = vunpack.c.h.b16 %v10309
    %v11352 = vunpack.c.l.b16 %v10310
    %v11353 = vunpack.c.h.b16 %v10310
    %v11354 = vunpack.c.l.b16 %v10311
    %v11355 = vunpack.c.l.b16 %v10312
    %v11356 = vunpack.c.h.b16 %v10312
    %v11357 = vunpack.c.l.b16 %v10313
    %v11358 = vunpack.c.h.b16 %v10313
    %v11359 = vunpack.c.l.b16 %v10314
    %v11360 = vunpack.c.l.b16 %v10315
    %v11361 = vunpack.c.h.b16 %v10315
    %v11362 = vunpack.c.l.b16 %v10316
    %v11363 = vunpack.c.h.b16 %v10316
    %v11364 = vunpack.c.l.b16 %v10317
    %v11365 = vunpack.c.l.b16 %v10318
    %v11366 = vunpack.c.h.b16 %v10318
    %v11367 = vunpack.c.l.b16 %v10319
    %v11368 = vunpack.c.h.b16 %v10319
    %v11369 = vunpack.c.l.b16 %v10320
    %v11370 = vunpack.c.l.b16 %v10321
    %v11371 = vunpack.c.h.b16 %v10321
    %v11372 = vunpack.c.l.b16 %v10322
    %v11373 = vunpack.c.h.b16 %v10322
    %v11374 = vunpack.c.l.b16 %v10323
    %v11375 = vunpack.c.l.b16 %v10324
    %v11376 = vunpack.c.h.b16 %v10324
    %v11377 = vunpack.c.l.b16 %v10325
    %v11378 = vunpack.c.h.b16 %v10325
    %v11379 = vunpack.c.l.b16 %v10326
    %v11380 = vunpack.c.l.b16 %v10327
    %v11381 = vunpack.c.h.b16 %v10327
    %v11382 = vunpack.c.l.b16 %v10328
    %v11383 = vunpack.c.h.b16 %v10328
    %v11384 = vunpack.c.l.b16 %v10329
    %v11385 = vunpack.c.l.b16 %v10330
    %v11386 = vunpack.c.h.b16 %v10330
    %v11387 = vunpack.c.l.b16 %v10331
    %v11388 = vunpack.c.h.b16 %v10331
    %v11389 = vunpack.c.l.b16 %v10332
    %v11390 = vunpack.c.l.b16 %v10333
    %v11391 = vunpack.c.h.b16 %v10333
    %v11392 = vunpack.c.l.b16 %v10334
    %v11393 = vunpack.c.h.b16 %v10334
    %v11394 = vunpack.c.l.b16 %v10335
    %v11395 = vunpack.c.l.b16 %v10336
    %v11396 = vunpack.c.h.b16 %v10336
    %v11397 = vunpack.c.l.b16 %v10337
    %v11398 = vunpack.c.h.b16 %v10337
    %v11399 = vunpack.c.l.b16 %v10338
    %v11400 = vunpack.c.l.b16 %v10339
    %v11401 = vunpack.c.h.b16 %v10339
    %v11402 = vunpack.c.l.b16 %v10340
    %v11403 = vunpack.c.h.b16 %v10340
    %v11404 = vunpack.c.l.b16 %v10341
    %v11405 = vunpack.c.l.b16 %v10342
    %v11406 = vunpack.c.h.b16 %v10342
    %v11407 = vunpack.c.l.b16 %v10343
    %v11408 = vunpack.c.h.b16 %v10343
    %v11409 = vunpack.c.l.b16 %v10344
    %v11410 = vunpack.c.l.b16 %v10345
    %v11411 = vunpack.c.h.b16 %v10345
    %v11412 = vunpack.c.l.b16 %v10346
    %v11413 = vunpack.c.h.b16 %v10346
    %v11414 = vunpack.c.l.b16 %v10347
    %v11415 = vunpack.c.l.b16 %v10348
    %v11416 = vunpack.c.h.b16 %v10348
    %v11417 = vunpack.c.l.b16 %v10349
    %v11418 = vunpack.c.h.b16 %v10349
    %v11419 = vunpack.c.l.b16 %v10350
    %v11420 = vunpack.c.l.b16 %v10351
    %v11421 = vunpack.c.h.b16 %v10351
    %v11422 = vunpack.c.l.b16 %v10352
    %v11423 = vunpack.c.h.b16 %v10352
    %v11424 = vunpack.c.l.b16 %v10353
    %v11425 = vunpack.c.l.b16 %v10354
    %v11426 = vunpack.c.h.b16 %v10354
    %v11427 = vunpack.c.l.b16 %v10355
    %v11428 = vunpack.c.h.b16 %v10355
    %v11429 = vunpack.c.l.b16 %v10356
    %v11430 = vunpack.c.l.b16 %v10357
    %v11431 = vunpack.c.h.b16 %v10357
    %v11432 = vunpack.c.l.b16 %v10358
    %v11433 = vunpack.c.h.b16 %v10358
    %v11434 = vunpack.c.l.b16 %v10359
    %v11435 = vunpack.c.l.b16 %v10360
    %v11436 = vunpack.c.h.b16 %v10360
    %v11437 = vunpack.c.l.b16 %v10361
    %v11438 = vunpack.c.h.b16 %v10361
    %v11439 = vunpack.c.l.b16 %v10362
    %v11440 = vunpack.c.l.b16 %v10363
    %v11441 = vunpack.c.h.b16 %v10363
    %v11442 = vunpack.c.l.b16 %v10364
    %v11443 = vunpack.c.h.b16 %v10364
    %v11444 = vunpack.c.l.b16 %v10365
    %v11445 = vunpack.c.l.b16 %v10366
    %v11446 = vunpack.c.h.b16 %v10366
    %v11447 = vunpack.c.l.b16 %v10367
    %v11448 = vunpack.c.h.b16 %v10367
    %v11449 = vunpack.c.l.b16 %v10368
    %v11450 = vunpack.c.l.b16 %v10369
    %v11451 = vunpack.c.h.b16 %v10369
    %v11452 = vunpack.c.l.b16 %v10370
    %v11453 = vunpack.c.h.b16 %v10370
    %v11454 = vunpack.c.l.b16 %v10371
    %v11455 = vunpack.c.l.b16 %v10372
    %v11456 = vunpack.c.h.b16 %v10372
    %v11457 = vunpack.c.l.b16 %v10373
    %v11458 = vunpack.c.h.b16 %v10373
    %v11459 = vunpack.c.l.b16 %v10374
    %v11460 = vunpack.c.l.b16 %v10375
    %v11461 = vunpack.c.h.b16 %v10375
    %v11462 = vunpack.c.l.b16 %v10376
    %v11463 = vunpack.c.h.b16 %v10376
    %v11464 = vunpack.c.l.b16 %v10377
    %v11465 = vunpack.c.l.b16 %v10378
    %v11466 = vunpack.c.h.b16 %v10378
    %v11467 = vunpack.c.l.b16 %v10379
    %v11468 = vunpack.c.h.b16 %v10379
    %v11469 = vunpack.c.l.b16 %v10380
    %v11470 = vunpack.c.l.b16 %v10381
    %v11471 = vunpack.c.h.b16 %v10381
    %v11472 = vunpack.c.l.b16 %v10382
    %v11473 = vunpack.c.h.b16 %v10382
    %v11474 = vunpack.c.l.b16 %v10383
    %v11475 = vunpack.c.l.b16 %v10384
    %v11476 = vunpack.c.h.b16 %v10384
    %v11477 = vunpack.c.l.b16 %v10385
    %v11478 = vunpack.c.h.b16 %v10385
    %v11479 = vunpack.c.l.b16 %v10386
    %v11480 = vunpack.c.l.b16 %v10387
    %v11481 = vunpack.c.h.b16 %v10387
    %v11482 = vunpack.c.l.b16 %v10388
    %v11483 = vunpack.c.h.b16 %v10388
    %v11484 = vunpack.c.l.b16 %v10389
    %v11485 = vunpack.c.l.b16 %v10390
    %v11486 = vunpack.c.h.b16 %v10390
    %v11487 = vunpack.c.l.b16 %v10391
    %v11488 = vunpack.c.h.b16 %v10391
    %v11489 = vunpack.c.l.b16 %v10392
    %v11490 = vunpack.c.l.b16 %v10393
    %v11491 = vunpack.c.h.b16 %v10393
    %v11492 = vunpack.c.l.b16 %v10394
    %v11493 = vunpack.c.h.b16 %v10394
    %v11494 = vunpack.c.l.b16 %v10395
    %v11495 = vunpack.c.l.b16 %v10396
    %v11496 = vunpack.c.h.b16 %v10396
    %v11497 = vunpack.c.l.b16 %v10397
    %v11498 = vunpack.c.h.b16 %v10397
    %v11499 = vunpack.c.l.b16 %v10398
    %v11500 = vunpack.c.l.b16 %v10399
    %v11501 = vunpack.c.h.b16 %v10399
    %v11502 = vunpack.c.l.b16 %v10400
    %v11503 = vunpack.c.h.b16 %v10400
    %v11504 = vunpack.c.l.b16 %v10401
    %v11505 = vunpack.c.l.b16 %v10402
    %v11506 = vunpack.c.h.b16 %v10402
    %v11507 = vunpack.c.l.b16 %v10403
    %v11508 = vunpack.c.h.b16 %v10403
    %v11509 = vunpack.c.l.b16 %v10404
    %v11510 = vunpack.c.l.b16 %v10405
    %v11511 = vunpack.c.h.b16 %v10405
    %v11512 = vunpack.c.l.b16 %v10406
    %v11513 = vunpack.c.h.b16 %v10406
    %v11514 = vunpack.c.l.b16 %v10407
    %v11515 = vunpack.c.l.b16 %v10408
    %v11516 = vunpack.c.h.b16 %v10408
    %v11517 = vunpack.c.l.b16 %v10409
    %v11518 = vunpack.c.h.b16 %v10409
    %v11519 = vunpack.c.l.b16 %v10410
    %v11520 = vunpack.c.l.b16 %v10411
    %v11521 = vunpack.c.h.b16 %v10411
    %v11522 = vunpack.c.l.b16 %v10412
    %v11523 = vunpack.c.h.b16 %v10412
    %v11524 = vunpack.c.l.b16 %v10413
    %v11525 = vunpack.c.l.b16 %v10414
    %v11526 = vunpack.c.h.b16 %v10414
    %v11527 = vunpack.c.l.b16 %v10415
    %v11528 = vunpack.c.h.b16 %v10415
    %v11529 = vunpack.c.l.b16 %v10416
    %v11530 = vunpack.c.l.b16 %v10417
    %v11531 = vunpack.c.h.b16 %v10417
    %v11532 = vunpack.c.l.b16 %v10418
    %v11533 = vunpack.c.h.b16 %v10418
    %v11534 = vunpack.c.l.b16 %v10419
    %v11535 = vunpack.c.l.b16 %v10420
    %v11536 = vunpack.c.h.b16 %v10420
    %v11537 = vunpack.c.l.b16 %v10421
    %v11538 = vunpack.c.h.b16 %v10421
    %v11539 = vunpack.c.l.b16 %v10422
    %v11540 = vunpack.c.l.b16 %v10423
    %v11541 = vunpack.c.h.b16 %v10423
    %v11542 = vunpack.c.l.b16 %v10424
    %v11543 = vunpack.c.h.b16 %v10424
    %v11544 = vunpack.c.l.b16 %v10425
    %v11545 = vunpack.c.l.b16 %v10426
    %v11546 = vunpack.c.h.b16 %v10426
    %v11547 = vunpack.c.l.b16 %v10427
    %v11548 = vunpack.c.h.b16 %v10427
    %v11549 = vunpack.c.l.b16 %v10428
    %v11550 = vunpack.c.l.b16 %v10429
    %v11551 = vunpack.c.h.b16 %v10429
    %v11552 = vunpack.c.l.b16 %v10430
    %v11553 = vunpack.c.h.b16 %v10430
    %v11554 = vunpack.c.l.b16 %v10431
    %v11555 = vunpack.c.l.b16 %v10432
    %v11556 = vunpack.c.h.b16 %v10432
    %v11557 = vunpack.c.l.b16 %v10433
    %v11558 = vunpack.c.h.b16 %v10433
    %v11559 = vunpack.c.l.b16 %v10434
    %v11560 = vunpack.c.l.b16 %v10435
    %v11561 = vunpack.c.h.b16 %v10435
    %v11562 = vunpack.c.l.b16 %v10436
    %v11563 = vunpack.c.h.b16 %v10436
    %v11564 = vunpack.c.l.b16 %v10437
    %v11565 = vunpack.c.l.b16 %v10438
    %v11566 = vunpack.c.h.b16 %v10438
    %v11567 = vunpack.c.l.b16 %v10439
    %v11568 = vunpack.c.h.b16 %v10439
    %v11569 = vunpack.c.l.b16 %v10440
    %v11570 = vunpack.c.l.b16 %v10441
    %v11571 = vunpack.c.h.b16 %v10441
    %v11572 = vunpack.c.l.b16 %v10442
    %v11573 = vunpack.c.h.b16 %v10442
    %v11574 = vunpack.c.l.b16 %v10443
    %v11575 = vunpack.c.l.b16 %v10444
    %v11576 = vunpack.c.h.b16 %v10444
    %v11577 = vunpack.c.l.b16 %v10445
    %v11578 = vunpack.c.h.b16 %v10445
    %v11579 = vunpack.c.l.b16 %v10446
    %v11580 = vunpack.c.l.b16 %v10447
    %v11581 = vunpack.c.h.b16 %v10447
    %v11582 = vunpack.c.l.b16 %v10448
    %v11583 = vunpack.c.h.b16 %v10448
    %v11584 = vunpack.c.l.b16 %v10449
    %v11585 = vunpack.c.l.b16 %v10450
    %v11586 = vunpack.c.h.b16 %v10450
    %v11587 = vunpack.c.l.b16 %v10451
    %v11588 = vunpack.c.h.b16 %v10451
    %v11589 = vunpack.c.l.b16 %v10452
    %v11590 = vunpack.c.l.b16 %v10453
    %v11591 = vunpack.c.h.b16 %v10453
    %v11592 = vunpack.c.l.b16 %v10454
    %v11593 = vunpack.c.h.b16 %v10454
    %v11594 = vunpack.c.l.b16 %v10455
    %v11595 = vunpack.c.l.b16 %v10456
    %v11596 = vunpack.c.h.b16 %v10456
    %v11597 = vunpack.c.l.b16 %v10457
    %v11598 = vunpack.c.h.b16 %v10457
    %v11599 = vunpack.c.l.b16 %v10458
    %v11600 = vunpack.c.l.b16 %v10459
    %v11601 = vunpack.c.h.b16 %v10459
    %v11602 = vunpack.c.l.b16 %v10460
    %v11603 = vunpack.c.h.b16 %v10460
    %v11604 = vunpack.c.l.b16 %v10461
    %v11605 = vunpack.c.l.b16 %v10462
    %v11606 = vunpack.c.h.b16 %v10462
    %v11607 = vunpack.c.l.b16 %v10463
    %v11608 = vunpack.c.h.b16 %v10463
    %v11609 = vunpack.c.l.b16 %v10464
    %v11610 = vunpack.c.l.b16 %v10465
    %v11611 = vunpack.c.h.b16 %v10465
    %v11612 = vunpack.c.l.b16 %v10466
    %v11613 = vunpack.c.h.b16 %v10466
    %v11614 = vunpack.c.l.b16 %v10467
    %v11615 = vunpack.c.l.b16 %v10468
    %v11616 = vunpack.c.h.b16 %v10468
    %v11617 = vunpack.c.l.b16 %v10469
    %v11618 = vunpack.c.h.b16 %v10469
    %v11619 = vunpack.c.l.b16 %v10470
    %v11620 = vunpack.c.l.b16 %v10471
    %v11621 = vunpack.c.h.b16 %v10471
    %v11622 = vunpack.c.l.b16 %v10472
    %v11623 = vunpack.c.h.b16 %v10472
    %v11624 = vunpack.c.l.b16 %v10473
    %v11625 = vunpack.c.l.b16 %v10474
    %v11626 = vunpack.c.h.b16 %v10474
    %v11627 = vunpack.c.l.b16 %v10475
    %v11628 = vunpack.c.h.b16 %v10475
    %v11629 = vunpack.c.l.b16 %v10476
    %v11630 = vunpack.c.l.b16 %v10477
    %v11631 = vunpack.c.h.b16 %v10477
    %v11632 = vunpack.c.l.b16 %v10478
    %v11633 = vunpack.c.h.b16 %v10478
    %v11634 = vunpack.c.l.b16 %v10479
    %v11635 = vunpack.c.l.b16 %v10480
    %v11636 = vunpack.c.h.b16 %v10480
    %v11637 = vunpack.c.l.b16 %v10481
    %v11638 = vunpack.c.h.b16 %v10481
    %v11639 = vunpack.c.l.b16 %v10482
    %v11640 = vunpack.c.l.b16 %v10483
    %v11641 = vunpack.c.h.b16 %v10483
    %v11642 = vunpack.c.l.b16 %v10484
    %v11643 = vunpack.c.h.b16 %v10484
    %v11644 = vunpack.c.l.b16 %v10485
    %v11645 = vunpack.c.l.b16 %v10486
    %v11646 = vunpack.c.h.b16 %v10486
    %v11647 = vunpack.c.l.b16 %v10487
    %v11648 = vunpack.c.h.b16 %v10487
    %v11649 = vunpack.c.l.b16 %v10488
    %v11650 = vunpack.c.l.b16 %v10489
    %v11651 = vunpack.c.h.b16 %v10489
    %v11652 = vunpack.c.l.b16 %v10490
    %v11653 = vunpack.c.h.b16 %v10490
    %v11654 = vunpack.c.l.b16 %v10491
    %v11655 = vunpack.c.l.b16 %v10492
    %v11656 = vunpack.c.h.b16 %v10492
    %v11657 = vunpack.c.l.b16 %v10493
    %v11658 = vunpack.c.h.b16 %v10493
    %v11659 = vunpack.c.l.b16 %v10494
    %v11660 = vunpack.c.l.b16 %v10495
    %v11661 = vunpack.c.h.b16 %v10495
    %v11662 = vunpack.c.l.b16 %v10496
    %v11663 = vunpack.c.h.b16 %v10496
    %v11664 = vunpack.c.l.b16 %v10497
    %v11665 = vunpack.c.l.b16 %v10498
    %v11666 = vunpack.c.h.b16 %v10498
    %v11667 = vunpack.c.l.b16 %v10499
    %v11668 = vunpack.c.h.b16 %v10499
    %v11669 = vunpack.c.l.b16 %v10500
    %v11670 = vunpack.c.l.b16 %v10501
    %v11671 = vunpack.c.h.b16 %v10501
    %v11672 = vunpack.c.l.b16 %v10502
    %v11673 = vunpack.c.h.b16 %v10502
    %v11674 = vunpack.c.l.b16 %v10503
    %v11675 = vunpack.c.l.b16 %v10504
    %v11676 = vunpack.c.h.b16 %v10504
    %v11677 = vunpack.c.l.b16 %v10505
    %v11678 = vunpack.c.h.b16 %v10505
    %v11679 = vunpack.c.l.b16 %v10506
    %v11680 = vunpack.c.l.b16 %v10507
    %v11681 = vunpack.c.h.b16 %v10507
    %v11682 = vunpack.c.l.b16 %v10508
    %v11683 = vunpack.c.h.b16 %v10508
    %v11684 = vunpack.c.l.b16 %v10509
    %v11685 = vunpack.c.l.b16 %v10510
    %v11686 = vunpack.c.h.b16 %v10510
    %v11687 = vunpack.c.l.b16 %v10511
    %v11688 = vunpack.c.h.b16 %v10511
    %v11689 = vunpack.c.l.b16 %v10512
    %v11690 = vunpack.c.l.b16 %v10513
    %v11691 = vunpack.c.h.b16 %v10513
    %v11692 = vunpack.c.l.b16 %v10514
    %v11693 = vunpack.c.h.b16 %v10514
    %v11694 = vunpack.c.l.b16 %v10515
    %v11695 = vunpack.c.l.b16 %v10516
    %v11696 = vunpack.c.h.b16 %v10516
    %v11697 = vunpack.c.l.b16 %v10517
    %v11698 = vunpack.c.h.b16 %v10517
    %v11699 = vunpack.c.l.b16 %v10518
    %v11700 = vunpack.c.l.b16 %v10519
    %v11701 = vunpack.c.h.b16 %v10519
    %v11702 = vunpack.c.l.b16 %v10520
    %v11703 = vunpack.c.h.b16 %v10520
    %v11704 = vunpack.c.l.b16 %v10521
    %v11705 = vunpack.c.l.b16 %v10522
    %v11706 = vunpack.c.h.b16 %v10522
    %v11707 = vunpack.c.l.b16 %v10523
    %v11708 = vunpack.c.h.b16 %v10523
    %v11709 = vunpack.c.l.b16 %v10524
    %v11710 = vunpack.c.l.b16 %v10525
    %v11711 = vunpack.c.h.b16 %v10525
    %v11712 = vunpack.c.l.b16 %v10526
    %v11713 = vunpack.c.h.b16 %v10526
    %v11714 = vunpack.c.l.b16 %v10527
    %v11715 = vunpack.c.l.b16 %v10528
    %v11716 = vunpack.c.h.b16 %v10528
    %v11717 = vunpack.c.l.b16 %v10529
    %v11718 = vunpack.c.h.b16 %v10529
    %v11719 = vunpack.c.l.b16 %v10530
    %v11720 = vunpack.c.l.b16 %v10531
    %v11721 = vunpack.c.h.b16 %v10531
    %v11722 = vunpack.c.l.b16 %v10532
    %v11723 = vunpack.c.h.b16 %v10532
    %v11724 = vunpack.c.l.b16 %v10533
    %v11725 = vunpack.c.l.b16 %v10534
    %v11726 = vunpack.c.h.b16 %v10534
    %v11727 = vunpack.c.l.b16 %v10535
    %v11728 = vunpack.c.h.b16 %v10535
    %v11729 = vunpack.c.l.b16 %v10536
    %v11730 = vunpack.c.l.b16 %v10537
    %v11731 = vunpack.c.h.b16 %v10537
    %v11732 = vunpack.c.l.b16 %v10538
    %v11733 = vunpack.c.h.b16 %v10538
    %v11734 = vunpack.c.l.b16 %v10539
    %v11735 = vunpack.c.l.b16 %v10540
    %v11736 = vunpack.c.h.b16 %v10540
    %v11737 = vunpack.c.l.b16 %v10541
    %v11738 = vunpack.c.h.b16 %v10541
    %v11739 = vunpack.c.l.b16 %v10542
    %v11740 = vunpack.c.l.b16 %v10543
    %v11741 = vunpack.c.h.b16 %v10543
    %v11742 = vunpack.c.l.b16 %v10544
    %v11743 = vunpack.c.h.b16 %v10544
    %v11744 = vunpack.c.l.b16 %v10545
    %v11745 = vunpack.c.l.b16 %v10546
    %v11746 = vunpack.c.h.b16 %v10546
    %v11747 = vunpack.c.l.b16 %v10547
    %v11748 = vunpack.c.h.b16 %v10547
    %v11749 = vunpack.c.l.b16 %v10548
    %v11750 = vunpack.c.l.b16 %v10549
    %v11751 = vunpack.c.h.b16 %v10549
    %v11752 = vunpack.c.l.b16 %v10550
    %v11753 = vunpack.c.h.b16 %v10550
    %v11754 = vunpack.c.l.b16 %v10551
    %v11755 = vunpack.c.l.b16 %v10552
    %v11756 = vunpack.c.h.b16 %v10552
    %v11757 = vunpack.c.l.b16 %v10553
    %v11758 = vunpack.c.h.b16 %v10553
    %v11759 = vunpack.c.l.b16 %v10554
    %v11760 = vunpack.c.l.b16 %v10555
    %v11761 = vunpack.c.h.b16 %v10555
    %v11762 = vunpack.c.l.b16 %v10556
    %v11763 = vunpack.c.h.b16 %v10556
    %v11764 = vunpack.c.l.b16 %v10557
    %v11765 = vunpack.c.l.b16 %v10558
    %v11766 = vunpack.c.h.b16 %v10558
    %v11767 = vunpack.c.l.b16 %v10559
    %v11768 = vunpack.c.h.b16 %v10559
    %v11769 = vunpack.c.l.b16 %v10560
    %v11770 = vunpack.c.l.b16 %v10561
    %v11771 = vunpack.c.h.b16 %v10561
    %v11772 = vunpack.c.l.b16 %v10562
    %v11773 = vunpack.c.h.b16 %v10562
    %v11774 = vunpack.c.l.b16 %v10563
    %v11775 = vunpack.c.l.b16 %v10564
    %v11776 = vunpack.c.h.b16 %v10564
    %v11777 = vunpack.c.l.b16 %v10565
    %v11778 = vunpack.c.h.b16 %v10565
    %v11779 = vunpack.c.l.b16 %v10566
    %v11780 = vunpack.c.l.b16 %v10567
    %v11781 = vunpack.c.h.b16 %v10567
    %v11782 = vunpack.c.l.b16 %v10568
    %v11783 = vunpack.c.h.b16 %v10568
    %v11784 = vunpack.c.l.b16 %v10569
    %v11785 = vunpack.c.l.b16 %v10570
    %v11786 = vunpack.c.h.b16 %v10570
    %v11787 = vunpack.c.l.b16 %v10571
    %v11788 = vunpack.c.h.b16 %v10571
    %v11789 = vunpack.c.l.b16 %v10572
    %v11790 = vunpack.c.l.b16 %v10573
    %v11791 = vunpack.c.h.b16 %v10573
    %v11792 = vunpack.c.l.b16 %v10574
    %v11793 = vunpack.c.h.b16 %v10574
    %v11794 = vunpack.c.l.b16 %v10575
    %v11795 = vunpack.c.l.b16 %v10576
    %v11796 = vunpack.c.h.b16 %v10576
    %v11797 = vunpack.c.l.b16 %v10577
    %v11798 = vunpack.c.h.b16 %v10577
    %v11799 = vunpack.c.l.b16 %v10578
    %v11800 = vunpack.c.l.b16 %v10579
    %v11801 = vunpack.c.h.b16 %v10579
    %v11802 = vunpack.c.l.b16 %v10580
    %v11803 = vunpack.c.h.b16 %v10580
    %v11804 = vunpack.c.l.b16 %v10581
    %v11805 = vunpack.c.l.b16 %v10582
    %v11806 = vunpack.c.h.b16 %v10582
    %v11807 = vunpack.c.l.b16 %v10583
    %v11808 = vunpack.c.h.b16 %v10583
    %v11809 = vunpack.c.l.b16 %v10584
    %v11810 = vunpack.c.l.b16 %v10585
    %v11811 = vunpack.c.h.b16 %v10585
    %v11812 = vunpack.c.l.b16 %v10586
    %v11813 = vunpack.c.h.b16 %v10586
    %v11814 = vunpack.c.l.b16 %v10587
    %v11815 = vunpack.c.l.b16 %v10588
    %v11816 = vunpack.c.h.b16 %v10588
    %v11817 = vunpack.c.l.b16 %v10589
    %v11818 = vunpack.c.h.b16 %v10589
    %v11819 = vunpack.c.l.b16 %v10590
    %v11820 = vunpack.c.l.b16 %v10591
    %v11821 = vunpack.c.h.b16 %v10591
    %v11822 = vunpack.c.l.b16 %v10592
    %v11823 = vunpack.c.h.b16 %v10592
    %v11824 = vunpack.c.l.b16 %v10593
    %v11825 = vunpack.c.l.b16 %v10594
    %v11826 = vunpack.c.h.b16 %v10594
    %v11827 = vunpack.c.l.b16 %v10595
    %v11828 = vunpack.c.h.b16 %v10595
    %v11829 = vunpack.c.l.b16 %v10596
    %v11830 = vunpack.c.l.b16 %v10597
    %v11831 = vunpack.c.h.b16 %v10597
    %v11832 = vunpack.c.l.b16 %v10598
    %v11833 = vunpack.c.h.b16 %v10598
    %v11834 = vunpack.c.l.b16 %v10599
    %v11835 = vunpack.c.l.b16 %v10600
    %v11836 = vunpack.c.h.b16 %v10600
    %v11837 = vunpack.c.l.b16 %v10601
    %v11838 = vunpack.c.h.b16 %v10601
    %v11839 = vunpack.c.l.b16 %v10602
    %v11840 = vunpack.c.l.b16 %v10603
    %v11841 = vunpack.c.h.b16 %v10603
    %v11842 = vunpack.c.l.b16 %v10604
    %v11843 = vunpack.c.h.b16 %v10604
    %v11844 = vunpack.c.l.b16 %v10605
    %v11845 = vunpack.c.l.b16 %v10606
    %v11846 = vunpack.c.h.b16 %v10606
    %v11847 = vunpack.c.l.b16 %v10607
    %v11848 = vunpack.c.h.b16 %v10607
    %v11849 = vunpack.c.l.b16 %v10608
    %v11850 = vunpack.c.l.b16 %v10609
    %v11851 = vunpack.c.h.b16 %v10609
    %v11852 = vunpack.c.l.b16 %v10610
    %v11853 = vunpack.c.h.b16 %v10610
    %v11854 = vunpack.c.l.b16 %v10611
    %v11855 = vunpack.c.l.b16 %v10612
    %v11856 = vunpack.c.h.b16 %v10612
    %v11857 = vunpack.c.l.b16 %v10613
    %v11858 = vunpack.c.h.b16 %v10613
    %v11859 = vunpack.c.l.b16 %v10614
    %v11860 = vunpack.c.l.b16 %v10615
    %v11861 = vunpack.c.h.b16 %v10615
    %v11862 = vunpack.c.l.b16 %v10616
    %v11863 = vunpack.c.h.b16 %v10616
    %v11864 = vunpack.c.l.b16 %v10617
    %v11865 = vunpack.c.l.b16 %v10618
    %v11866 = vunpack.c.h.b16 %v10618
    %v11867 = vunpack.c.l.b16 %v10619
    %v11868 = vunpack.c.h.b16 %v10619
    %v11869 = vunpack.c.l.b16 %v10620
    %v11870 = vunpack.c.l.b16 %v10621
    %v11871 = vunpack.c.h.b16 %v10621
    %v11872 = vunpack.c.l.b16 %v10622
    %v11873 = vunpack.c.h.b16 %v10622
    %v11874 = vunpack.c.l.b16 %v10623
    %v11875 = vunpack.c.l.b16 %v10624
    %v11876 = vunpack.c.h.b16 %v10624
    %v11877 = vunpack.c.l.b16 %v10625
    %v11878 = vunpack.c.h.b16 %v10625
    %v11879 = vunpack.c.l.b16 %v10626
    %v11880 = vunpack.c.l.b16 %v10627
    %v11881 = vunpack.c.h.b16 %v10627
    %v11882 = vunpack.c.l.b16 %v10628
    %v11883 = vunpack.c.h.b16 %v10628
    %v11884 = vunpack.c.l.b16 %v10629
    %v11885 = vunpack.c.l.b16 %v10630
    %v11886 = vunpack.c.h.b16 %v10630
    %v11887 = vunpack.c.l.b16 %v10631
    %v11888 = vunpack.c.h.b16 %v10631
    %v11889 = vunpack.c.l.b16 %v10632
    %v11890 = vunpack.c.l.b16 %v10633
    %v11891 = vunpack.c.h.b16 %v10633
    %v11892 = vunpack.c.l.b16 %v10634
    %v11893 = vunpack.c.h.b16 %v10634
    %v11894 = vunpack.c.l.b16 %v10635
    %v11895 = vunpack.c.l.b16 %v10636
    %v11896 = vunpack.c.h.b16 %v10636
    %v11897 = vunpack.c.l.b16 %v10637
    %v11898 = vunpack.c.h.b16 %v10637
    %v11899 = vunpack.c.l.b16 %v10638
    %v11900 = vunpack.c.l.b16 %v10639
    %v11901 = vunpack.c.h.b16 %v10639
    %v11902 = vunpack.c.l.b16 %v10640
    %v11903 = vunpack.c.h.b16 %v10640
    %v11904 = vunpack.c.l.b16 %v10641
    %v11905 = vunpack.c.l.b16 %v10642
    %v11906 = vunpack.c.h.b16 %v10642
    %v11907 = vunpack.c.l.b16 %v10643
    %v11908 = vunpack.c.h.b16 %v10643
    %v11909 = vunpack.c.l.b16 %v10644
    %v11910 = vunpack.c.l.b16 %v10645
    %v11911 = vunpack.c.h.b16 %v10645
    %v11912 = vunpack.c.l.b16 %v10646
    %v11913 = vunpack.c.h.b16 %v10646
    %v11914 = vunpack.c.l.b16 %v10647
    %v11915 = vunpack.c.l.b16 %v10648
    %v11916 = vunpack.c.h.b16 %v10648
    %v11917 = vunpack.c.l.b16 %v10649
    %v11918 = vunpack.c.h.b16 %v10649
    %v11919 = vunpack.c.l.b16 %v10650
    %v11920 = vunpack.c.l.b16 %v10651
    %v11921 = vunpack.c.h.b16 %v10651
    %v11922 = vunpack.c.l.b16 %v10652
    %v11923 = vunpack.c.h.b16 %v10652
    %v11924 = vunpack.c.l.b16 %v10653
    %v11925 = vunpack.c.l.b16 %v10654
    %v11926 = vunpack.c.h.b16 %v10654
    %v11927 = vunpack.c.l.b16 %v10655
    %v11928 = vunpack.c.h.b16 %v10655
    %v11929 = vunpack.c.l.b16 %v10656
    %v11930 = vunpack.c.l.b16 %v10657
    %v11931 = vunpack.c.h.b16 %v10657
    %v11932 = vunpack.c.l.b16 %v10658
    %v11933 = vunpack.c.h.b16 %v10658
    %v11934 = vunpack.c.l.b16 %v10659
    %v11935 = vunpack.c.l.b16 %v10660
    %v11936 = vunpack.c.h.b16 %v10660
    %v11937 = vunpack.c.l.b16 %v10661
    %v11938 = vunpack.c.h.b16 %v10661
    %v11939 = vunpack.c.l.b16 %v10662
    %v11940 = vunpack.c.l.b16 %v10663
    %v11941 = vunpack.c.h.b16 %v10663
    %v11942 = vunpack.c.l.b16 %v10664
    %v11943 = vunpack.c.h.b16 %v10664
    %v11944 = vunpack.c.l.b16 %v10665
    %v11945 = vunpack.c.l.b16 %v10666
    %v11946 = vunpack.c.h.b16 %v10666
    %v11947 = vunpack.c.l.b16 %v10667
    %v11948 = vunpack.c.h.b16 %v10667
    %v11949 = vunpack.c.l.b16 %v10668
    %v11950 = vunpack.c.l.b16 %v10669
    %v11951 = vunpack.c.h.b16 %v10669
    %v11952 = vunpack.c.l.b16 %v10670
    %v11953 = vunpack.c.h.b16 %v10670
    %v11954 = vunpack.c.l.b16 %v10671
    %v11955 = vunpack.c.l.b16 %v10672
    %v11956 = vunpack.c.h.b16 %v10672
    %v11957 = vunpack.c.l.b16 %v10673
    %v11958 = vunpack.c.h.b16 %v10673
    %v11959 = vunpack.c.l.b16 %v10674
    %v11960 = vunpack.c.l.b16 %v10675
    %v11961 = vunpack.c.h.b16 %v10675
    %v11962 = vunpack.c.l.b16 %v10676
    %v11963 = vunpack.c.h.b16 %v10676
    %v11964 = vunpack.c.l.b16 %v10677
    %v11965 = vunpack.c.l.b16 %v10678
    %v11966 = vunpack.c.h.b16 %v10678
    %v11967 = vunpack.c.l.b16 %v10679
    %v11968 = vunpack.c.h.b16 %v10679
    %v11969 = vunpack.c.l.b16 %v10680
    %v11970 = vunpack.c.l.b16 %v10681
    %v11971 = vunpack.c.h.b16 %v10681
    %v11972 = vunpack.c.l.b16 %v10682
    %v11973 = vunpack.c.h.b16 %v10682
    %v11974 = vunpack.c.l.b16 %v10683
    %v11975 = vunpack.c.l.b16 %v10684
    %v11976 = vunpack.c.h.b16 %v10684
    %v11977 = vunpack.c.l.b16 %v10685
    %v11978 = vunpack.c.h.b16 %v10685
    %v11979 = vunpack.c.l.b16 %v10686
    %v11980 = vunpack.c.l.b16 %v10687
    %v11981 = vunpack.c.h.b16 %v10687
    %v11982 = vunpack.c.l.b16 %v10688
    %v11983 = vunpack.c.h.b16 %v10688
    %v11984 = vunpack.c.l.b16 %v10689
    %v11985 = vunpack.c.l.b16 %v10690
    %v11986 = vunpack.c.h.b16 %v10690
    %v11987 = vunpack.c.l.b16 %v10691
    %v11988 = vunpack.c.h.b16 %v10691
    %v11989 = vunpack.c.l.b16 %v10692
    %v11990 = vunpack.c.l.b16 %v10693
    %v11991 = vunpack.c.h.b16 %v10693
    %v11992 = vunpack.c.l.b16 %v10694
    %v11993 = vunpack.c.h.b16 %v10694
    %v11994 = vunpack.c.l.b16 %v10695
    %v11995 = vunpack.c.l.b16 %v10696
    %v11996 = vunpack.c.h.b16 %v10696
    %v11997 = vunpack.c.l.b16 %v10697
    %v11998 = vunpack.c.h.b16 %v10697
    %v11999 = vunpack.c.l.b16 %v10698
    %v12000 = vunpack.c.l.b16 %v10699
    %v12001 = vunpack.c.h.b16 %v10699
    %v12002 = vunpack.c.l.b16 %v10700
    %v12003 = vunpack.c.h.b16 %v10700
    %v12004 = vunpack.c.l.b16 %v10701
    %v12005 = vunpack.c.l.b16 %v10702
    %v12006 = vunpack.c.h.b16 %v10702
    %v12007 = vunpack.c.l.b16 %v10703
    %v12008 = vunpack.c.h.b16 %v10703
    %v12009 = vunpack.c.l.b16 %v10704
    %v12010 = vunpack.c.l.b16 %v10705
    %v12011 = vunpack.c.h.b16 %v10705
    %v12012 = vunpack.c.l.b16 %v10706
    %v12013 = vunpack.c.h.b16 %v10706
    %v12014 = vunpack.c.l.b16 %v10707
    %v12015 = vpack.c.b16 %v11220, %v11215
    %v12016 = vpack.c.b16 %v11221, %v11216
    %v12017 = vpack.c.b16 %v11222, %v11217
    %v12018 = vpack.c.b16 %v11223, %v11218
    %v12019 = vpack.c.b16 %v11224, %v11219
    %v12020 = vpack.c.b16 %v11230, %v11225
    %v12021 = vpack.c.b16 %v11231, %v11226
    %v12022 = vpack.c.b16 %v11232, %v11227
    %v12023 = vpack.c.b16 %v11233, %v11228
    %v12024 = vpack.c.b16 %v11234, %v11229
    %v12025 = vpack.c.b16 %v11240, %v11235
    %v12026 = vpack.c.b16 %v11241, %v11236
    %v12027 = vpack.c.b16 %v11242, %v11237
    %v12028 = vpack.c.b16 %v11243, %v11238
    %v12029 = vpack.c.b16 %v11244, %v11239
    %v12030 = vpack.c.b16 %v11250, %v11245
    %v12031 = vpack.c.b16 %v11251, %v11246
    %v12032 = vpack.c.b16 %v11252, %v11247
    %v12033 = vpack.c.b16 %v11253, %v11248
    %v12034 = vpack.c.b16 %v11254, %v11249
    %v12035 = vpack.c.b16 %v11260, %v11255
    %v12036 = vpack.c.b16 %v11261, %v11256
    %v12037 = vpack.c.b16 %v11262, %v11257
    %v12038 = vpack.c.b16 %v11263, %v11258
    %v12039 = vpack.c.b16 %v11264, %v11259
    %v12040 = vpack.c.b16 %v11270, %v11265
    %v12041 = vpack.c.b16 %v11271, %v11266
    %v12042 = vpack.c.b16 %v11272, %v11267
    %v12043 = vpack.c.b16 %v11273, %v11268
    %v12044 = vpack.c.b16 %v11274, %v11269
    %v12045 = vpack.c.b16 %v11280, %v11275
    %v12046 = vpack.c.b16 %v11281, %v11276
    %v12047 = vpack.c.b16 %v11282, %v11277
    %v12048 = vpack.c.b16 %v11283, %v11278
    %v12049 = vpack.c.b16 %v11284, %v11279
    %v12050 = vpack.c.b16 %v11290, %v11285
    %v12051 = vpack.c.b16 %v11291, %v11286
    %v12052 = vpack.c.b16 %v11292, %v11287
    %v12053 = vpack.c.b16 %v11293, %v11288
    %v12054 = vpack.c.b16 %v11294, %v11289
    %v12055 = vpack.c.b16 %v11300, %v11295
    %v12056 = vpack.c.b16 %v11301, %v11296
    %v12057 = vpack.c.b16 %v11302, %v11297
    %v12058 = vpack.c.b16 %v11303, %v11298
    %v12059 = vpack.c.b16 %v11304, %v11299
    %v12060 = vpack.c.b16 %v11310, %v11305
    %v12061 = vpack.c.b16 %v11311, %v11306
    %v12062 = vpack.c.b16 %v11312, %v11307
    %v12063 = vpack.c.b16 %v11313, %v11308
    %v12064 = vpack.c.b16 %v11314, %v11309
    %v12065 = vpack.c.b16 %v11320, %v11315
    %v12066 = vpack.c.b16 %v11321, %v11316
    %v12067 = vpack.c.b16 %v11322, %v11317
    %v12068 = vpack.c.b16 %v11323, %v11318
    %v12069 = vpack.c.b16 %v11324, %v11319
    %v12070 = vpack.c.b16 %v11330, %v11325
    %v12071 = vpack.c.b16 %v11331, %v11326
    %v12072 = vpack.c.b16 %v11332, %v11327
    %v12073 = vpack.c.b16 %v11333, %v11328
    %v12074 = vpack.c.b16 %v11334, %v11329
    %v12075 = vpack.c.b16 %v11340, %v11335
    %v12076 = vpack.c.b16 %v11341, %v11336
    %v12077 = vpack.c.b16 %v11342, %v11337
    %v12078 = vpack.c.b16 %v11343, %v11338
    %v12079 = vpack.c.b16 %v11344, %v11339
    %v12080 = vpack.c.b16 %v11350, %v11345
    %v12081 = vpack.c.b16 %v11351, %v11346
    %v12082 = vpack.c.b16 %v11352, %v11347
    %v12083 = vpack.c.b16 %v11353, %v11348
    %v12084 = vpack.c.b16 %v11354, %v11349
    %v12085 = vpack.c.b16 %v11360, %v11355
    %v12086 = vpack.c.b16 %v11361, %v11356
    %v12087 = vpack.c.b16 %v11362, %v11357
    %v12088 = vpack.c.b16 %v11363, %v11358
    %v12089 = vpack.c.b16 %v11364, %v11359
    %v12090 = vpack.c.b16 %v11370, %v11365
    %v12091 = vpack.c.b16 %v11371, %v11366
    %v12092 = vpack.c.b16 %v11372, %v11367
    %v12093 = vpack.c.b16 %v11373, %v11368
    %v12094 = vpack.c.b16 %v11374, %v11369
    %v12095 = vpack.c.b16 %v11380, %v11375
    %v12096 = vpack.c.b16 %v11381, %v11376
    %v12097 = vpack.c.b16 %v11382, %v11377
    %v12098 = vpack.c.b16 %v11383, %v11378
    %v12099 = vpack.c.b16 %v11384, %v11379
    %v12100 = vpack.c.b16 %v11390, %v11385
    %v12101 = vpack.c.b16 %v11391, %v11386
    %v12102 = vpack.c.b16 %v11392, %v11387
    %v12103 = vpack.c.b16 %v11393, %v11388
    %v12104 = vpack.c.b16 %v11394, %v11389
    %v12105 = vpack.c.b16 %v11400, %v11395
    %v12106 = vpack.c.b16 %v11401, %v11396
    %v12107 = vpack.c.b16 %v11402, %v11397
    %v12108 = vpack.c.b16 %v11403, %v11398
    %v12109 = vpack.c.b16 %v11404, %v11399
    %v12110 = vpack.c.b16 %v11410, %v11405
    %v12111 = vpack.c.b16 %v11411, %v11406
    %v12112 = vpack.c.b16 %v11412, %v11407
    %v12113 = vpack.c.b16 %v11413, %v11408
    %v12114 = vpack.c.b16 %v11414, %v11409
    %v12115 = vpack.c.b16 %v11420, %v11415
    %v12116 = vpack.c.b16 %v11421, %v11416
    %v12117 = vpack.c.b16 %v11422, %v11417
    %v12118 = vpack.c.b16 %v11423, %v11418
    %v12119 = vpack.c.b16 %v11424, %v11419
    %v12120 = vpack.c.b16 %v11430, %v11425
    %v12121 = vpack.c.b16 %v11431, %v11426
    %v12122 = vpack.c.b16 %v11432, %v11427
    %v12123 = vpack.c.b16 %v11433, %v11428
    %v12124 = vpack.c.b16 %v11434, %v11429
    %v12125 = vpack.c.b16 %v11440, %v11435
    %v12126 = vpack.c.b16 %v11441, %v11436
    %v12127 = vpack.c.b16 %v11442, %v11437
    %v12128 = vpack.c.b16 %v11443, %v11438
    %v12129 = vpack.c.b16 %v11444, %v11439
    %v12130 = vpack.c.b16 %v11450, %v11445
    %v12131 = vpack.c.b16 %v11451, %v11446
    %v12132 = vpack.c.b16 %v11452, %v11447
    %v12133 = vpack.c.b16 %v11453, %v11448
    %v12134 = vpack.c.b16 %v11454, %v11449
    %v12135 = vpack.c.b16 %v11460, %v11455
    %v12136 = vpack.c.b16 %v11461, %v11456
    %v12137 = vpack.c.b16 %v11462, %v11457
    %v12138 = vpack.c.b16 %v11463, %v11458
    %v12139 = vpack.c.b16 %v11464, %v11459
    %v12140 = vpack.c.b16 %v11470, %v11465
    %v12141 = vpack.c.b16 %v11471, %v11466
    %v12142 = vpack.c.b16 %v11472, %v11467
    %v12143 = vpack.c.b16 %v11473, %v11468
    %v12144 = vpack.c.b16 %v11474, %v11469
    %v12145 = vpack.c.b16 %v11480, %v11475
    %v12146 = vpack.c.b16 %v11481, %v11476
    %v12147 = vpack.c.b16 %v11482, %v11477
    %v12148 = vpack.c.b16 %v11483, %v11478
    %v12149 = vpack.c.b16 %v11484, %v11479
    %v12150 = vpack.c.b16 %v11490, %v11485
    %v12151 = vpack.c.b16 %v11491, %v11486
    %v12152 = vpack.c.b16 %v11492, %v11487
    %v12153 = vpack.c.b16 %v11493, %v11488
    %v12154 = vpack.c.b16 %v11494, %v11489
    %v12155 = vpack.c.b16 %v11500, %v11495
    %v12156 = vpack.c.b16 %v11501, %v11496
    %v12157 = vpack.c.b16 %v11502, %v11497
    %v12158 = vpack.c.b16 %v11503, %v11498
    %v12159 = vpack.c.b16 %v11504, %v11499
    %v12160 = vpack.c.b16 %v11510, %v11505
    %v12161 = vpack.c.b16 %v11511, %v11506
    %v12162 = vpack.c.b16 %v11512, %v11507
    %v12163 = vpack.c.b16 %v11513, %v11508
    %v12164 = vpack.c.b16 %v11514, %v11509
    %v12165 = vpack.c.b16 %v11520, %v11515
    %v12166 = vpack.c.b16 %v11521, %v11516
    %v12167 = vpack.c.b16 %v11522, %v11517
    %v12168 = vpack.c.b16 %v11523, %v11518
    %v12169 = vpack.c.b16 %v11524, %v11519
    %v12170 = vpack.c.b16 %v11530, %v11525
    %v12171 = vpack.c.b16 %v11531, %v11526
    %v12172 = vpack.c.b16 %v11532, %v11527
    %v12173 = vpack.c.b16 %v11533, %v11528
    %v12174 = vpack.c.b16 %v11534, %v11529
    %v12175 = vpack.c.b16 %v11540, %v11535
    %v12176 = vpack.c.b16 %v11541, %v11536
    %v12177 = vpack.c.b16 %v11542, %v11537
    %v12178 = vpack.c.b16 %v11543, %v11538
    %v12179 = vpack.c.b16 %v11544, %v11539
    %v12180 = vpack.c.b16 %v11550, %v11545
    %v12181 = vpack.c.b16 %v11551, %v11546
    %v12182 = vpack.c.b16 %v11552, %v11547
    %v12183 = vpack.c.b16 %v11553, %v11548
    %v12184 = vpack.c.b16 %v11554, %v11549
    %v12185 = vpack.c.b16 %v11560, %v11555
    %v12186 = vpack.c.b16 %v11561, %v11556
    %v12187 = vpack.c.b16 %v11562, %v11557
    %v12188 = vpack.c.b16 %v11563, %v11558
    %v12189 = vpack.c.b16 %v11564, %v11559
    %v12190 = vpack.c.b16 %v11570, %v11565
    %v12191 = vpack.c.b16 %v11571, %v11566
    %v12192 = vpack.c.b16 %v11572, %v11567
    %v12193 = vpack.c.b16 %v11573, %v11568
    %v12194 = vpack.c.b16 %v11574, %v11569
    %v12195 = vpack.c.b16 %v11580, %v11575
    %v12196 = vpack.c.b16 %v11581, %v11576
    %v12197 = vpack.c.b16 %v11582, %v11577
    %v12198 = vpack.c.b16 %v11583, %v11578
    %v12199 = vpack.c.b16 %v11584, %v11579
    %v12200 = vpack.c.b16 %v11590, %v11585
    %v12201 = vpack.c.b16 %v11591, %v11586
    %v12202 = vpack.c.b16 %v11592, %v11587
    %v12203 = vpack.c.b16 %v11593, %v11588
    %v12204 = vpack.c.b16 %v11594, %v11589
    %v12205 = vpack.c.b16 %v11600, %v11595
    %v12206 = vpack.c.b16 %v11601, %v11596
    %v12207 = vpack.c.b16 %v11602, %v11597
    %v12208 = vpack.c.b16 %v11603, %v11598
    %v12209 = vpack.c.b16 %v11604, %v11599
    %v12210 = vpack.c.b16 %v11610, %v11605
    %v12211 = vpack.c.b16 %v11611, %v11606
    %v12212 = vpack.c.b16 %v11612, %v11607
    %v12213 = vpack.c.b16 %v11613, %v11608
    %v12214 = vpack.c.b16 %v11614, %v11609
    %v12215 = vpack.c.b16 %v11620, %v11615
    %v12216 = vpack.c.b16 %v11621, %v11616
    %v12217 = vpack.c.b16 %v11622, %v11617
    %v12218 = vpack.c.b16 %v11623, %v11618
    %v12219 = vpack.c.b16 %v11624, %v11619
    %v12220 = vpack.c.b16 %v11630, %v11625
    %v12221 = vpack.c.b16 %v11631, %v11626
    %v12222 = vpack.c.b16 %v11632, %v11627
    %v12223 = vpack.c.b16 %v11633, %v11628
    %v12224 = vpack.c.b16 %v11634, %v11629
    %v12225 = vpack.c.b16 %v11640, %v11635
    %v12226 = vpack.c.b16 %v11641, %v11636
    %v12227 = vpack.c.b16 %v11642, %v11637
    %v12228 = vpack.c.b16 %v11643, %v11638
    %v12229 = vpack.c.b16 %v11644, %v11639
    %v12230 = vpack.c.b16 %v11650, %v11645
    %v12231 = vpack.c.b16 %v11651, %v11646
    %v12232 = vpack.c.b16 %v11652, %v11647
    %v12233 = vpack.c.b16 %v11653, %v11648
    %v12234 = vpack.c.b16 %v11654, %v11649
    %v12235 = vpack.c.b16 %v11660, %v11655
    %v12236 = vpack.c.b16 %v11661, %v11656
    %v12237 = vpack.c.b16 %v11662, %v11657
    %v12238 = vpack.c.b16 %v11663, %v11658
    %v12239 = vpack.c.b16 %v11664, %v11659
    %v12240 = vpack.c.b16 %v11670, %v11665
    %v12241 = vpack.c.b16 %v11671, %v11666
    %v12242 = vpack.c.b16 %v11672, %v11667
    %v12243 = vpack.c.b16 %v11673, %v11668
    %v12244 = vpack.c.b16 %v11674, %v11669
    %v12245 = vpack.c.b16 %v11680, %v11675
    %v12246 = vpack.c.b16 %v11681, %v11676
    %v12247 = vpack.c.b16 %v11682, %v11677
    %v12248 = vpack.c.b16 %v11683, %v11678
    %v12249 = vpack.c.b16 %v11684, %v11679
    %v12250 = vpack.c.b16 %v11690, %v11685
    %v12251 = vpack.c.b16 %v11691, %v11686
    %v12252 = vpack.c.b16 %v11692, %v11687
    %v12253 = vpack.c.b16 %v11693, %v11688
    %v12254 = vpack.c.b16 %v11694, %v11689
    %v12255 = vpack.c.b16 %v11700, %v11695
    %v12256 = vpack.c.b16 %v11701, %v11696
    %v12257 = vpack.c.b16 %v11702, %v11697
    %v12258 = vpack.c.b16 %v11703, %v11698
    %v12259 = vpack.c.b16 %v11704, %v11699
    %v12260 = vpack.c.b16 %v11710, %v11705
    %v12261 = vpack.c.b16 %v11711, %v11706
    %v12262 = vpack.c.b16 %v11712, %v11707
    %v12263 = vpack.c.b16 %v11713, %v11708
    %v12264 = vpack.c.b16 %v11714, %v11709
    %v12265 = vpack.c.b16 %v11720, %v11715
    %v12266 = vpack.c.b16 %v11721, %v11716
    %v12267 = vpack.c.b16 %v11722, %v11717
    %v12268 = vpack.c.b16 %v11723, %v11718
    %v12269 = vpack.c.b16 %v11724, %v11719
    %v12270 = vpack.c.b16 %v11730, %v11725
    %v12271 = vpack.c.b16 %v11731, %v11726
    %v12272 = vpack.c.b16 %v11732, %v11727
    %v12273 = vpack.c.b16 %v11733, %v11728
    %v12274 = vpack.c.b16 %v11734, %v11729
    %v12275 = vpack.c.b16 %v11740, %v11735
    %v12276 = vpack.c.b16 %v11741, %v11736
    %v12277 = vpack.c.b16 %v11742, %v11737
    %v12278 = vpack.c.b16 %v11743, %v11738
    %v12279 = vpack.c.b16 %v11744, %v11739
    %v12280 = vpack.c.b16 %v11750, %v11745
    %v12281 = vpack.c.b16 %v11751, %v11746
    %v12282 = vpack.c.b16 %v11752, %v11747
    %v12283 = vpack.c.b16 %v11753, %v11748
    %v12284 = vpack.c.b16 %v11754, %v11749
    %v12285 = vpack.c.b16 %v11760, %v11755
    %v12286 = vpack.c.b16 %v11761, %v11756
    %v12287 = vpack.c.b16 %v11762, %v11757
    %v12288 = vpack.c.b16 %v11763, %v11758
    %v12289 = vpack.c.b16 %v11764, %v11759
    %v12290 = vpack.c.b16 %v11770, %v11765
    %v12291 = vpack.c.b16 %v11771, %v11766
    %v12292 = vpack.c.b16 %v11772, %v11767
    %v12293 = vpack.c.b16 %v11773, %v11768
    %v12294 = vpack.c.b16 %v11774, %v11769
    %v12295 = vpack.c.b16 %v11780, %v11775
    %v12296 = vpack.c.b16 %v11781, %v11776
    %v12297 = vpack.c.b16 %v11782, %v11777
    %v12298 = vpack.c.b16 %v11783, %v11778
    %v12299 = vpack.c.b16 %v11784, %v11779
    %v12300 = vpack.c.b16 %v11790, %v11785
    %v12301 = vpack.c.b16 %v11791, %v11786
    %v12302 = vpack.c.b16 %v11792, %v11787
    %v12303 = vpack.c.b16 %v11793, %v11788
    %v12304 = vpack.c.b16 %v11794, %v11789
    %v12305 = vpack.c.b16 %v11800, %v11795
    %v12306 = vpack.c.b16 %v11801, %v11796
    %v12307 = vpack.c.b16 %v11802, %v11797
    %v12308 = vpack.c.b16 %v11803, %v11798
    %v12309 = vpack.c.b16 %v11804, %v11799
    %v12310 = vpack.c.b16 %v11810, %v11805
    %v12311 = vpack.c.b16 %v11811, %v11806
    %v12312 = vpack.c.b16 %v11812, %v11807
    %v12313 = vpack.c.b16 %v11813, %v11808
    %v12314 = vpack.c.b16 %v11814, %v11809
    %v12315 = vpack.c.b16 %v11820, %v11815
    %v12316 = vpack.c.b16 %v11821, %v11816
    %v12317 = vpack.c.b16 %v11822, %v11817
    %v12318 = vpack.c.b16 %v11823, %v11818
    %v12319 = vpack.c.b16 %v11824, %v11819
    %v12320 = vpack.c.b16 %v11830, %v11825
    %v12321 = vpack.c.b16 %v11831, %v11826
    %v12322 = vpack.c.b16 %v11832, %v11827
    %v12323 = vpack.c.b16 %v11833, %v11828
    %v12324 = vpack.c.b16 %v11834, %v11829
    %v12325 = vpack.c.b16 %v11840, %v11835
    %v12326 = vpack.c.b16 %v11841, %v11836
    %v12327 = vpack.c.b16 %v11842, %v11837
    %v12328 = vpack.c.b16 %v11843, %v11838
    %v12329 = vpack.c.b16 %v11844, %v11839
    %v12330 = vpack.c.b16 %v11850, %v11845
    %v12331 = vpack.c.b16 %v11851, %v11846
    %v12332 = vpack.c.b16 %v11852, %v11847
    %v12333 = vpack.c.b16 %v11853, %v11848
    %v12334 = vpack.c.b16 %v11854, %v11849
    %v12335 = vpack.c.b16 %v11860, %v11855
    %v12336 = vpack.c.b16 %v11861, %v11856
    %v12337 = vpack.c.b16 %v11862, %v11857
    %v12338 = vpack.c.b16 %v11863, %v11858
    %v12339 = vpack.c.b16 %v11864, %v11859
    %v12340 = vpack.c.b16 %v11870, %v11865
    %v12341 = vpack.c.b16 %v11871, %v11866
    %v12342 = vpack.c.b16 %v11872, %v11867
    %v12343 = vpack.c.b16 %v11873, %v11868
    %v12344 = vpack.c.b16 %v11874, %v11869
    %v12345 = vpack.c.b16 %v11880, %v11875
    %v12346 = vpack.c.b16 %v11881, %v11876
    %v12347 = vpack.c.b16 %v11882, %v11877
    %v12348 = vpack.c.b16 %v11883, %v11878
    %v12349 = vpack.c.b16 %v11884, %v11879
    %v12350 = vpack.c.b16 %v11890, %v11885
    %v12351 = vpack.c.b16 %v11891, %v11886
    %v12352 = vpack.c.b16 %v11892, %v11887
    %v12353 = vpack.c.b16 %v11893, %v11888
    %v12354 = vpack.c.b16 %v11894, %v11889
    %v12355 = vpack.c.b16 %v11900, %v11895
    %v12356 = vpack.c.b16 %v11901, %v11896
    %v12357 = vpack.c.b16 %v11902, %v11897
    %v12358 = vpack.c.b16 %v11903, %v11898
    %v12359 = vpack.c.b16 %v11904, %v11899
    %v12360 = vpack.c.b16 %v11910, %v11905
    %v12361 = vpack.c.b16 %v11911, %v11906
    %v12362 = vpack.c.b16 %v11912, %v11907
    %v12363 = vpack.c.b16 %v11913, %v11908
    %v12364 = vpack.c.b16 %v11914, %v11909
    %v12365 = vpack.c.b16 %v11920, %v11915
    %v12366 = vpack.c.b16 %v11921, %v11916
    %v12367 = vpack.c.b16 %v11922, %v11917
    %v12368 = vpack.c.b16 %v11923, %v11918
    %v12369 = vpack.c.b16 %v11924, %v11919
    %v12370 = vpack.c.b16 %v11930, %v11925
    %v12371 = vpack.c.b16 %v11931, %v11926
    %v12372 = vpack.c.b16 %v11932, %v11927
    %v12373 = vpack.c.b16 %v11933, %v11928
    %v12374 = vpack.c.b16 %v11934, %v11929
    %v12375 = vpack.c.b16 %v11940, %v11935
    %v12376 = vpack.c.b16 %v11941, %v11936
    %v12377 = vpack.c.b16 %v11942, %v11937
    %v12378 = vpack.c.b16 %v11943, %v11938
    %v12379 = vpack.c.b16 %v11944, %v11939
    %v12380 = vpack.c.b16 %v11950, %v11945
    %v12381 = vpack.c.b16 %v11951, %v11946
    %v12382 = vpack.c.b16 %v11952, %v11947
    %v12383 = vpack.c.b16 %v11953, %v11948
    %v12384 = vpack.c.b16 %v11954, %v11949
    %v12385 = vpack.c.b16 %v11960, %v11955
    %v12386 = vpack.c.b16 %v11961, %v11956
    %v12387 = vpack.c.b16 %v11962, %v11957
    %v12388 = vpack.c.b16 %v11963, %v11958
    %v12389 = vpack.c.b16 %v11964, %v11959
    %v12390 = vpack.c.b16 %v11970, %v11965
    %v12391 = vpack.c.b16 %v11971, %v11966
    %v12392 = vpack.c.b16 %v11972, %v11967
    %v12393 = vpack.c.b16 %v11973, %v11968
    %v12394 = vpack.c.b16 %v11974, %v11969
    %v12395 = vpack.c.b16 %v11980, %v11975
    %v12396 = vpack.c.b16 %v11981, %v11976
    %v12397 = vpack.c.b16 %v11982, %v11977
    %v12398 = vpack.c.b16 %v11983, %v11978
    %v12399 = vpack.c.b16 %v11984, %v11979
    %v12400 = vpack.c.b16 %v11990, %v11985
    %v12401 = vpack.c.b16 %v11991, %v11986
    %v12402 = vpack.c.b16 %v11992, %v11987
    %v12403 = vpack.c.b16 %v11993, %v11988
    %v12404 = vpack.c.b16 %v11994, %v11989
    %v12405 = vpack.c.b16 %v12000, %v11995
    %v12406 = vpack.c.b16 %v12001, %v11996
    %v12407 = vpack.c.b16 %v12002, %v11997
    %v12408 = vpack.c.b16 %v12003, %v11998
    %v12409 = vpack.c.b16 %v12004, %v11999
    %v12410 = vpack.c.b16 %v12010, %v12005
    %v12411 = vpack.c.b16 %v12011, %v12006
    %v12412 = vpack.c.b16 %v12012, %v12007
    %v12413 = vpack.c.b16 %v12013, %v12008
    %v12414 = vpack.c.b16 %v12014, %v12009
    %12815 = vmatprep.subr.bf16.mxu0 %v12016
    %12816 = vmatpush1.bf16.msra.mxu0 %v12015
    %12817 = vmatprep.subr.bf16.mxu0 %v12021
    %12818 = vmatpush1.bf16.msra.mxu0 %v12020
    %12819 = vmatprep.subr.bf16.mxu0 %v12026
    %12820 = vmatpush1.bf16.msra.mxu0 %v12025
    %12821 = vmatprep.subr.bf16.mxu0 %v12031
    %12822 = vmatpush1.bf16.msra.mxu0 %v12030
    %12823 = vmatprep.subr.bf16.mxu0 %v12036
    %12824 = vmatpush1.bf16.msra.mxu0 %v12035
    %12825 = vmatprep.subr.bf16.mxu0 %v12041
    %12826 = vmatpush1.bf16.msra.mxu0 %v12040
    %12827 = vmatprep.subr.bf16.mxu0 %v12046
    %12828 = vmatpush1.bf16.msra.mxu0 %v12045
    %12829 = vmatprep.subr.bf16.mxu0 %v12051
    %12830 = vmatpush1.bf16.msra.mxu0 %v12050
    %12831 = vmatprep.subr.bf16.mxu0 %v12056
    %12832 = vmatpush1.bf16.msra.mxu0 %v12055
    %12833 = vmatprep.subr.bf16.mxu0 %v12061
    %12834 = vmatpush1.bf16.msra.mxu0 %v12060
    %12835 = vmatprep.subr.bf16.mxu0 %v12066
    %12836 = vmatpush1.bf16.msra.mxu0 %v12065
    %12837 = vmatprep.subr.bf16.mxu0 %v12071
    %12838 = vmatpush1.bf16.msra.mxu0 %v12070
    %12839 = vmatprep.subr.bf16.mxu0 %v12076
    %12840 = vmatpush1.bf16.msra.mxu0 %v12075
    %12841 = vmatprep.subr.bf16.mxu0 %v12081
    %12842 = vmatpush1.bf16.msra.mxu0 %v12080
    %12843 = vmatprep.subr.bf16.mxu0 %v12086
    %12844 = vmatpush1.bf16.msra.mxu0 %v12085
    %12845 = vmatprep.subr.bf16.mxu0 %v12091
    %12846 = vmatpush1.bf16.msra.mxu0 %v12090
    %12847 = vmatprep.mubr.bf16.mxu0 %v10219
    %12848 = vmatmul.mubr.bf16.gmra.mrb[0].mxu0 %v10218
    %v12849 = vpop.f32.mrb[0].mxu0
    %v12850 = vadd.f32 %v10713, %v12849
    %v12851 = vpop.f32.mrb[0].mxu0
    %v12852 = vadd.f32 %v10717, %v12851
    %v12853 = vpop.f32.mrb[0].mxu0
    %v12854 = vpop.f32.mrb[0].mxu0
    %12855 = vdwg.mxu0
    %12856 = vmatprep.subr.bf16.mxu0 %v12096
    %12857 = vmatpush1.bf16.msra.mxu0 %v12095
    %12858 = vmatprep.subr.bf16.mxu0 %v12101
    %12859 = vmatpush1.bf16.msra.mxu0 %v12100
    %12860 = vmatprep.subr.bf16.mxu0 %v12106
    %12861 = vmatpush1.bf16.msra.mxu0 %v12105
    %12862 = vmatprep.subr.bf16.mxu0 %v12111
    %12863 = vmatpush1.bf16.msra.mxu0 %v12110
    %12864 = vmatprep.subr.bf16.mxu0 %v12116
    %12865 = vmatpush1.bf16.msra.mxu0 %v12115
    %12866 = vmatprep.subr.bf16.mxu0 %v12121
    %12867 = vmatpush1.bf16.msra.mxu0 %v12120
    %12868 = vmatprep.subr.bf16.mxu0 %v12126
    %12869 = vmatpush1.bf16.msra.mxu0 %v12125
    %12870 = vmatprep.subr.bf16.mxu0 %v12131
    %12871 = vmatpush1.bf16.msra.mxu0 %v12130
    %12872 = vmatprep.subr.bf16.mxu0 %v12136
    %12873 = vmatpush1.bf16.msra.mxu0 %v12135
    %12874 = vmatprep.subr.bf16.mxu0 %v12141
    %12875 = vmatpush1.bf16.msra.mxu0 %v12140
    %12876 = vmatprep.subr.bf16.mxu0 %v12146
    %12877 = vmatpush1.bf16.msra.mxu0 %v12145
    %12878 = vmatprep.subr.bf16.mxu0 %v12151
    %12879 = vmatpush1.bf16.msra.mxu0 %v12150
    %12880 = vmatprep.subr.bf16.mxu0 %v12156
    %12881 = vmatpush1.bf16.msra.mxu0 %v12155
    %12882 = vmatprep.subr.bf16.mxu0 %v12161
    %12883 = vmatpush1.bf16.msra.mxu0 %v12160
    %12884 = vmatprep.subr.bf16.mxu0 %v12166
    %12885 = vmatpush1.bf16.msra.mxu0 %v12165
    %12886 = vmatprep.subr.bf16.mxu0 %v12171
    %12887 = vmatpush1.bf16.msra.mxu0 %v12170
    %12888 = vmatprep.mubr.bf16.mxu0 %v10221
    %12889 = vmatmul.mubr.bf16.gmra.mrb[0].mxu0 %v10220
    %v12890 = vpop.f32.mrb[0].mxu0
    %v12891 = vadd.f32 %v12850, %v12890
    %v12892 = vpop.f32.mrb[0].mxu0
    %v12893 = vadd.f32 %v12852, %v12892
    %v12894 = vpop.f32.mrb[0].mxu0
    %v12895 = vpop.f32.mrb[0].mxu0
    %12896 = vdwg.mxu0
    %12897 = vmatprep.subr.bf16.mxu0 %v12176
    %12898 = vmatpush1.bf16.msra.mxu0 %v12175
    %12899 = vmatprep.subr.bf16.mxu0 %v12181
    %12900 = vmatpush1.bf16.msra.mxu0 %v12180
    %12901 = vmatprep.subr.bf16.mxu0 %v12186
    %12902 = vmatpush1.bf16.msra.mxu0 %v12185
    %12903 = vmatprep.subr.bf16.mxu0 %v12191
    %12904 = vmatpush1.bf16.msra.mxu0 %v12190
    %12905 = vmatprep.subr.bf16.mxu0 %v12196
    %12906 = vmatpush1.bf16.msra.mxu0 %v12195
    %12907 = vmatprep.subr.bf16.mxu0 %v12201
    %12908 = vmatpush1.bf16.msra.mxu0 %v12200
    %12909 = vmatprep.subr.bf16.mxu0 %v12206
    %12910 = vmatpush1.bf16.msra.mxu0 %v12205
    %12911 = vmatprep.subr.bf16.mxu0 %v12211
    %12912 = vmatpush1.bf16.msra.mxu0 %v12210
    %12913 = vmatprep.subr.bf16.mxu0 %v12216
    %12914 = vmatpush1.bf16.msra.mxu0 %v12215
    %12915 = vmatprep.subr.bf16.mxu0 %v12221
    %12916 = vmatpush1.bf16.msra.mxu0 %v12220
    %12917 = vmatprep.subr.bf16.mxu0 %v12226
    %12918 = vmatpush1.bf16.msra.mxu0 %v12225
    %12919 = vmatprep.subr.bf16.mxu0 %v12231
    %12920 = vmatpush1.bf16.msra.mxu0 %v12230
    %12921 = vmatprep.subr.bf16.mxu0 %v12236
    %12922 = vmatpush1.bf16.msra.mxu0 %v12235
    %12923 = vmatprep.subr.bf16.mxu0 %v12241
    %12924 = vmatpush1.bf16.msra.mxu0 %v12240
    %12925 = vmatprep.subr.bf16.mxu0 %v12246
    %12926 = vmatpush1.bf16.msra.mxu0 %v12245
    %12927 = vmatprep.subr.bf16.mxu0 %v12251
    %12928 = vmatpush1.bf16.msra.mxu0 %v12250
    %12929 = vmatprep.mubr.bf16.mxu0 %v10223
    %12930 = vmatmul.mubr.bf16.gmra.mrb[0].mxu0 %v10222
    %v12931 = vpop.f32.mrb[0].mxu0
    %v12932 = vadd.f32 %v12891, %v12931
    %v12933 = vpop.f32.mrb[0].mxu0
    %v12934 = vadd.f32 %v12893, %v12933
    %v12935 = vpop.f32.mrb[0].mxu0
    %v12936 = vpop.f32.mrb[0].mxu0
    %12937 = vdwg.mxu0
    %12938 = vmatprep.subr.bf16.mxu0 %v12256
    %12939 = vmatpush1.bf16.msra.mxu0 %v12255
    %12940 = vmatprep.subr.bf16.mxu0 %v12261
    %12941 = vmatpush1.bf16.msra.mxu0 %v12260
    %12942 = vmatprep.subr.bf16.mxu0 %v12266
    %12943 = vmatpush1.bf16.msra.mxu0 %v12265
    %12944 = vmatprep.subr.bf16.mxu0 %v12271
    %12945 = vmatpush1.bf16.msra.mxu0 %v12270
    %12946 = vmatprep.subr.bf16.mxu0 %v12276
    %12947 = vmatpush1.bf16.msra.mxu0 %v12275
    %12948 = vmatprep.subr.bf16.mxu0 %v12281
    %12949 = vmatpush1.bf16.msra.mxu0 %v12280
    %12950 = vmatprep.subr.bf16.mxu0 %v12286
    %12951 = vmatpush1.bf16.msra.mxu0 %v12285
    %12952 = vmatprep.subr.bf16.mxu0 %v12291
    %12953 = vmatpush1.bf16.msra.mxu0 %v12290
    %12954 = vmatprep.subr.bf16.mxu0 %v12296
    %12955 = vmatpush1.bf16.msra.mxu0 %v12295
    %12956 = vmatprep.subr.bf16.mxu0 %v12301
    %12957 = vmatpush1.bf16.msra.mxu0 %v12300
    %12958 = vmatprep.subr.bf16.mxu0 %v12306
    %12959 = vmatpush1.bf16.msra.mxu0 %v12305
    %12960 = vmatprep.subr.bf16.mxu0 %v12311
    %12961 = vmatpush1.bf16.msra.mxu0 %v12310
    %12962 = vmatprep.subr.bf16.mxu0 %v12316
    %12963 = vmatpush1.bf16.msra.mxu0 %v12315
    %12964 = vmatprep.subr.bf16.mxu0 %v12321
    %12965 = vmatpush1.bf16.msra.mxu0 %v12320
    %12966 = vmatprep.subr.bf16.mxu0 %v12326
    %12967 = vmatpush1.bf16.msra.mxu0 %v12325
    %12968 = vmatprep.subr.bf16.mxu0 %v12331
    %12969 = vmatpush1.bf16.msra.mxu0 %v12330
    %12970 = vmatprep.mubr.bf16.mxu0 %v10225
    %12971 = vmatmul.mubr.bf16.gmra.mrb[0].mxu0 %v10224
    %v12972 = vpop.f32.mrb[0].mxu0
    %v12973 = vadd.f32 %v12932, %v12972
    %v12974 = vpop.f32.mrb[0].mxu0
    %v12975 = vadd.f32 %v12934, %v12974
    %v12976 = vpop.f32.mrb[0].mxu0
    %v12977 = vpop.f32.mrb[0].mxu0
    %12978 = vdwg.mxu0
    %12979 = vmatprep.subr.bf16.mxu0 %v12336
    %12980 = vmatpush1.bf16.msra.mxu0 %v12335
    %12981 = vmatprep.subr.bf16.mxu0 %v12341
    %12982 = vmatpush1.bf16.msra.mxu0 %v12340
    %12983 = vmatprep.subr.bf16.mxu0 %v12346
    %12984 = vmatpush1.bf16.msra.mxu0 %v12345
    %12985 = vmatprep.subr.bf16.mxu0 %v12351
    %12986 = vmatpush1.bf16.msra.mxu0 %v12350
    %12987 = vmatprep.subr.bf16.mxu0 %v12356
    %12988 = vmatpush1.bf16.msra.mxu0 %v12355
    %12989 = vmatprep.subr.bf16.mxu0 %v12361
    %12990 = vmatpush1.bf16.msra.mxu0 %v12360
    %12991 = vmatprep.subr.bf16.mxu0 %v12366
    %12992 = vmatpush1.bf16.msra.mxu0 %v12365
    %12993 = vmatprep.subr.bf16.mxu0 %v12371
    %12994 = vmatpush1.bf16.msra.mxu0 %v12370
    %12995 = vmatprep.subr.bf16.mxu0 %v12376
    %12996 = vmatpush1.bf16.msra.mxu0 %v12375
    %12997 = vmatprep.subr.bf16.mxu0 %v12381
    %12998 = vmatpush1.bf16.msra.mxu0 %v12380
    %12999 = vmatprep.subr.bf16.mxu0 %v12386
    %13000 = vmatpush1.bf16.msra.mxu0 %v12385
    %13001 = vmatprep.subr.bf16.mxu0 %v12391
    %13002 = vmatpush1.bf16.msra.mxu0 %v12390
    %13003 = vmatprep.subr.bf16.mxu0 %v12396
    %13004 = vmatpush1.bf16.msra.mxu0 %v12395
    %13005 = vmatprep.subr.bf16.mxu0 %v12401
    %13006 = vmatpush1.bf16.msra.mxu0 %v12400
    %13007 = vmatprep.subr.bf16.mxu0 %v12406
    %13008 = vmatpush1.bf16.msra.mxu0 %v12405
    %13009 = vmatprep.subr.bf16.mxu0 %v12411
    %13010 = vmatpush1.bf16.msra.mxu0 %v12410
    %13011 = vmatprep.mubr.bf16.mxu0 %v10227
    %13012 = vmatmul.mubr.bf16.gmra.mrb[0].mxu0 %v10226
    %v13013 = vpop.f32.mrb[0].mxu0
    %v13014 = vadd.f32 %v12973, %v13013
    %v13015 = vpop.f32.mrb[0].mxu0
    %v13016 = vadd.f32 %v12975, %v13015
    %v13017 = vpop.f32.mrb[0].mxu0
    %v13018 = vpop.f32.mrb[0].mxu0
    %13019 = vdwg.mxu0
    %13020 = vmatprep.subr.bf16.mxu0 %v12018
    %13021 = vmatpush1.bf16.msra.mxu0 %v12017
    %13022 = vmatprep.subr.bf16.mxu0 %v12023
    %13023 = vmatpush1.bf16.msra.mxu0 %v12022
    %13024 = vmatprep.subr.bf16.mxu0 %v12028
    %13025 = vmatpush1.bf16.msra.mxu0 %v12027
    %13026 = vmatprep.subr.bf16.mxu0 %v12033
    %13027 = vmatpush1.bf16.msra.mxu0 %v12032
    %13028 = vmatprep.subr.bf16.mxu0 %v12038
    %13029 = vmatpush1.bf16.msra.mxu0 %v12037
    %13030 = vmatprep.subr.bf16.mxu0 %v12043
    %13031 = vmatpush1.bf16.msra.mxu0 %v12042
    %13032 = vmatprep.subr.bf16.mxu0 %v12048
    %13033 = vmatpush1.bf16.msra.mxu0 %v12047
    %13034 = vmatprep.subr.bf16.mxu0 %v12053
    %13035 = vmatpush1.bf16.msra.mxu0 %v12052
    %13036 = vmatprep.subr.bf16.mxu0 %v12058
    %13037 = vmatpush1.bf16.msra.mxu0 %v12057
    %13038 = vmatprep.subr.bf16.mxu0 %v12063
    %13039 = vmatpush1.bf16.msra.mxu0 %v12062
    %13040 = vmatprep.subr.bf16.mxu0 %v12068
    %13041 = vmatpush1.bf16.msra.mxu0 %v12067
    %13042 = vmatprep.subr.bf16.mxu0 %v12073
    %13043 = vmatpush1.bf16.msra.mxu0 %v12072
    %13044 = vmatprep.subr.bf16.mxu0 %v12078
    %13045 = vmatpush1.bf16.msra.mxu0 %v12077
    %13046 = vmatprep.subr.bf16.mxu0 %v12083
    %13047 = vmatpush1.bf16.msra.mxu0 %v12082
    %13048 = vmatprep.subr.bf16.mxu0 %v12088
    %13049 = vmatpush1.bf16.msra.mxu0 %v12087
    %13050 = vmatprep.subr.bf16.mxu0 %v12093
    %13051 = vmatpush1.bf16.msra.mxu0 %v12092
    %13052 = vmatprep.mubr.bf16.mxu0 %v10219
    %13053 = vmatmul.mubr.bf16.gmra.mrb[0].mxu0 %v10218
    %v13054 = vpop.f32.mrb[0].mxu0
    %v13055 = vadd.f32 %v10721, %v13054
    %v13056 = vpop.f32.mrb[0].mxu0
    %v13057 = vadd.f32 %v10725, %v13056
    %v13058 = vpop.f32.mrb[0].mxu0
    %v13059 = vpop.f32.mrb[0].mxu0
    %13060 = vdwg.mxu0
    %13061 = vmatprep.subr.bf16.mxu0 %v12098
    %13062 = vmatpush1.bf16.msra.mxu0 %v12097
    %13063 = vmatprep.subr.bf16.mxu0 %v12103
    %13064 = vmatpush1.bf16.msra.mxu0 %v12102
    %13065 = vmatprep.subr.bf16.mxu0 %v12108
    %13066 = vmatpush1.bf16.msra.mxu0 %v12107
    %13067 = vmatprep.subr.bf16.mxu0 %v12113
    %13068 = vmatpush1.bf16.msra.mxu0 %v12112
    %13069 = vmatprep.subr.bf16.mxu0 %v12118
    %13070 = vmatpush1.bf16.msra.mxu0 %v12117
    %13071 = vmatprep.subr.bf16.mxu0 %v12123
    %13072 = vmatpush1.bf16.msra.mxu0 %v12122
    %13073 = vmatprep.subr.bf16.mxu0 %v12128
    %13074 = vmatpush1.bf16.msra.mxu0 %v12127
    %13075 = vmatprep.subr.bf16.mxu0 %v12133
    %13076 = vmatpush1.bf16.msra.mxu0 %v12132
    %13077 = vmatprep.subr.bf16.mxu0 %v12138
    %13078 = vmatpush1.bf16.msra.mxu0 %v12137
    %13079 = vmatprep.subr.bf16.mxu0 %v12143
    %13080 = vmatpush1.bf16.msra.mxu0 %v12142
    %13081 = vmatprep.subr.bf16.mxu0 %v12148
    %13082 = vmatpush1.bf16.msra.mxu0 %v12147
    %13083 = vmatprep.subr.bf16.mxu0 %v12153
    %13084 = vmatpush1.bf16.msra.mxu0 %v12152
    %13085 = vmatprep.subr.bf16.mxu0 %v12158
    %13086 = vmatpush1.bf16.msra.mxu0 %v12157
    %13087 = vmatprep.subr.bf16.mxu0 %v12163
    %13088 = vmatpush1.bf16.msra.mxu0 %v12162
    %13089 = vmatprep.subr.bf16.mxu0 %v12168
    %13090 = vmatpush1.bf16.msra.mxu0 %v12167
    %13091 = vmatprep.subr.bf16.mxu0 %v12173
    %13092 = vmatpush1.bf16.msra.mxu0 %v12172
    %13093 = vmatprep.mubr.bf16.mxu0 %v10221
    %13094 = vmatmul.mubr.bf16.gmra.mrb[0].mxu0 %v10220
    %v13095 = vpop.f32.mrb[0].mxu0
    %v13096 = vadd.f32 %v13055, %v13095
    %v13097 = vpop.f32.mrb[0].mxu0
    %v13098 = vadd.f32 %v13057, %v13097
    %v13099 = vpop.f32.mrb[0].mxu0
    %v13100 = vpop.f32.mrb[0].mxu0
    %13101 = vdwg.mxu0
    %13102 = vmatprep.subr.bf16.mxu0 %v12178
    %13103 = vmatpush1.bf16.msra.mxu0 %v12177
    %13104 = vmatprep.subr.bf16.mxu0 %v12183
    %13105 = vmatpush1.bf16.msra.mxu0 %v12182
    %13106 = vmatprep.subr.bf16.mxu0 %v12188
    %13107 = vmatpush1.bf16.msra.mxu0 %v12187
    %13108 = vmatprep.subr.bf16.mxu0 %v12193
    %13109 = vmatpush1.bf16.msra.mxu0 %v12192
    %13110 = vmatprep.subr.bf16.mxu0 %v12198
    %13111 = vmatpush1.bf16.msra.mxu0 %v12197
    %13112 = vmatprep.subr.bf16.mxu0 %v12203
    %13113 = vmatpush1.bf16.msra.mxu0 %v12202
    %13114 = vmatprep.subr.bf16.mxu0 %v12208
    %13115 = vmatpush1.bf16.msra.mxu0 %v12207
    %13116 = vmatprep.subr.bf16.mxu0 %v12213
    %13117 = vmatpush1.bf16.msra.mxu0 %v12212
    %13118 = vmatprep.subr.bf16.mxu0 %v12218
    %13119 = vmatpush1.bf16.msra.mxu0 %v12217
    %13120 = vmatprep.subr.bf16.mxu0 %v12223
    %13121 = vmatpush1.bf16.msra.mxu0 %v12222
    %13122 = vmatprep.subr.bf16.mxu0 %v12228
    %13123 = vmatpush1.bf16.msra.mxu0 %v12227
    %13124 = vmatprep.subr.bf16.mxu0 %v12233
    %13125 = vmatpush1.bf16.msra.mxu0 %v12232
    %13126 = vmatprep.subr.bf16.mxu0 %v12238
    %13127 = vmatpush1.bf16.msra.mxu0 %v12237
    %13128 = vmatprep.subr.bf16.mxu0 %v12243
    %13129 = vmatpush1.bf16.msra.mxu0 %v12242
    %13130 = vmatprep.subr.bf16.mxu0 %v12248
    %13131 = vmatpush1.bf16.msra.mxu0 %v12247
    %13132 = vmatprep.subr.bf16.mxu0 %v12253
    %13133 = vmatpush1.bf16.msra.mxu0 %v12252
    %13134 = vmatprep.mubr.bf16.mxu0 %v10223
    %13135 = vmatmul.mubr.bf16.gmra.mrb[0].mxu0 %v10222
    %v13136 = vpop.f32.mrb[0].mxu0
    %v13137 = vadd.f32 %v13096, %v13136
    %v13138 = vpop.f32.mrb[0].mxu0
    %v13139 = vadd.f32 %v13098, %v13138
    %v13140 = vpop.f32.mrb[0].mxu0
    %v13141 = vpop.f32.mrb[0].mxu0
    %13142 = vdwg.mxu0
    %13143 = vmatprep.subr.bf16.mxu0 %v12258
    %13144 = vmatpush1.bf16.msra.mxu0 %v12257
    %13145 = vmatprep.subr.bf16.mxu0 %v12263
    %13146 = vmatpush1.bf16.msra.mxu0 %v12262
    %13147 = vmatprep.subr.bf16.mxu0 %v12268
    %13148 = vmatpush1.bf16.msra.mxu0 %v12267
    %13149 = vmatprep.subr.bf16.mxu0 %v12273
    %13150 = vmatpush1.bf16.msra.mxu0 %v12272
    %13151 = vmatprep.subr.bf16.mxu0 %v12278
    %13152 = vmatpush1.bf16.msra.mxu0 %v12277
    %13153 = vmatprep.subr.bf16.mxu0 %v12283
    %13154 = vmatpush1.bf16.msra.mxu0 %v12282
    %13155 = vmatprep.subr.bf16.mxu0 %v12288
    %13156 = vmatpush1.bf16.msra.mxu0 %v12287
    %13157 = vmatprep.subr.bf16.mxu0 %v12293
    %13158 = vmatpush1.bf16.msra.mxu0 %v12292
    %13159 = vmatprep.subr.bf16.mxu0 %v12298
    %13160 = vmatpush1.bf16.msra.mxu0 %v12297
    %13161 = vmatprep.subr.bf16.mxu0 %v12303
    %13162 = vmatpush1.bf16.msra.mxu0 %v12302
    %13163 = vmatprep.subr.bf16.mxu0 %v12308
    %13164 = vmatpush1.bf16.msra.mxu0 %v12307
    %13165 = vmatprep.subr.bf16.mxu0 %v12313
    %13166 = vmatpush1.bf16.msra.mxu0 %v12312
    %13167 = vmatprep.subr.bf16.mxu0 %v12318
    %13168 = vmatpush1.bf16.msra.mxu0 %v12317
    %13169 = vmatprep.subr.bf16.mxu0 %v12323
    %13170 = vmatpush1.bf16.msra.mxu0 %v12322
    %13171 = vmatprep.subr.bf16.mxu0 %v12328
    %13172 = vmatpush1.bf16.msra.mxu0 %v12327
    %13173 = vmatprep.subr.bf16.mxu0 %v12333
    %13174 = vmatpush1.bf16.msra.mxu0 %v12332
    %13175 = vmatprep.mubr.bf16.mxu0 %v10225
    %13176 = vmatmul.mubr.bf16.gmra.mrb[0].mxu0 %v10224
    %v13177 = vpop.f32.mrb[0].mxu0
    %v13178 = vadd.f32 %v13137, %v13177
    %v13179 = vpop.f32.mrb[0].mxu0
    %v13180 = vadd.f32 %v13139, %v13179
    %v13181 = vpop.f32.mrb[0].mxu0
    %v13182 = vpop.f32.mrb[0].mxu0
    %13183 = vdwg.mxu0
    %13184 = vmatprep.subr.bf16.mxu0 %v12338
    %13185 = vmatpush1.bf16.msra.mxu0 %v12337
    %13186 = vmatprep.subr.bf16.mxu0 %v12343
    %13187 = vmatpush1.bf16.msra.mxu0 %v12342
    %13188 = vmatprep.subr.bf16.mxu0 %v12348
    %13189 = vmatpush1.bf16.msra.mxu0 %v12347
    %13190 = vmatprep.subr.bf16.mxu0 %v12353
    %13191 = vmatpush1.bf16.msra.mxu0 %v12352
    %13192 = vmatprep.subr.bf16.mxu0 %v12358
    %13193 = vmatpush1.bf16.msra.mxu0 %v12357
    %13194 = vmatprep.subr.bf16.mxu0 %v12363
    %13195 = vmatpush1.bf16.msra.mxu0 %v12362
    %13196 = vmatprep.subr.bf16.mxu0 %v12368
    %13197 = vmatpush1.bf16.msra.mxu0 %v12367
    %13198 = vmatprep.subr.bf16.mxu0 %v12373
    %13199 = vmatpush1.bf16.msra.mxu0 %v12372
    %13200 = vmatprep.subr.bf16.mxu0 %v12378
    %13201 = vmatpush1.bf16.msra.mxu0 %v12377
    %13202 = vmatprep.subr.bf16.mxu0 %v12383
    %13203 = vmatpush1.bf16.msra.mxu0 %v12382
    %13204 = vmatprep.subr.bf16.mxu0 %v12388
    %13205 = vmatpush1.bf16.msra.mxu0 %v12387
    %13206 = vmatprep.subr.bf16.mxu0 %v12393
    %13207 = vmatpush1.bf16.msra.mxu0 %v12392
    %13208 = vmatprep.subr.bf16.mxu0 %v12398
    %13209 = vmatpush1.bf16.msra.mxu0 %v12397
    %13210 = vmatprep.subr.bf16.mxu0 %v12403
    %13211 = vmatpush1.bf16.msra.mxu0 %v12402
    %13212 = vmatprep.subr.bf16.mxu0 %v12408
    %13213 = vmatpush1.bf16.msra.mxu0 %v12407
    %13214 = vmatprep.subr.bf16.mxu0 %v12413
    %13215 = vmatpush1.bf16.msra.mxu0 %v12412
    %13216 = vmatprep.mubr.bf16.mxu0 %v10227
    %13217 = vmatmul.mubr.bf16.gmra.mrb[0].mxu0 %v10226
    %v13218 = vpop.f32.mrb[0].mxu0
    %v13219 = vadd.f32 %v13178, %v13218
    %v13220 = vpop.f32.mrb[0].mxu0
    %v13221 = vadd.f32 %v13180, %v13220
    %v13222 = vpop.f32.mrb[0].mxu0
    %v13223 = vpop.f32.mrb[0].mxu0
    %13224 = vdwg.mxu0
    %13225 = vmatprep.subr.bf16.mxu0 0
    %13226 = vmatpush1.bf16.msra.mxu0 %v12019
    %13227 = vmatprep.subr.bf16.mxu0 0
    %13228 = vmatpush1.bf16.msra.mxu0 %v12024
    %13229 = vmatprep.subr.bf16.mxu0 0
    %13230 = vmatpush1.bf16.msra.mxu0 %v12029
    %13231 = vmatprep.subr.bf16.mxu0 0
    %13232 = vmatpush1.bf16.msra.mxu0 %v12034
    %13233 = vmatprep.subr.bf16.mxu0 0
    %13234 = vmatpush1.bf16.msra.mxu0 %v12039
    %13235 = vmatprep.subr.bf16.mxu0 0
    %13236 = vmatpush1.bf16.msra.mxu0 %v12044
    %13237 = vmatprep.subr.bf16.mxu0 0
    %13238 = vmatpush1.bf16.msra.mxu0 %v12049
    %13239 = vmatprep.subr.bf16.mxu0 0
    %13240 = vmatpush1.bf16.msra.mxu0 %v12054
    %13241 = vmatprep.subr.bf16.mxu0 0
    %13242 = vmatpush1.bf16.msra.mxu0 %v12059
    %13243 = vmatprep.subr.bf16.mxu0 0
    %13244 = vmatpush1.bf16.msra.mxu0 %v12064
    %13245 = vmatprep.subr.bf16.mxu0 0
    %13246 = vmatpush1.bf16.msra.mxu0 %v12069
    %13247 = vmatprep.subr.bf16.mxu0 0
    %13248 = vmatpush1.bf16.msra.mxu0 %v12074
    %13249 = vmatprep.subr.bf16.mxu0 0
    %13250 = vmatpush1.bf16.msra.mxu0 %v12079
    %13251 = vmatprep.subr.bf16.mxu0 0
    %13252 = vmatpush1.bf16.msra.mxu0 %v12084
    %13253 = vmatprep.subr.bf16.mxu0 0
    %13254 = vmatpush1.bf16.msra.mxu0 %v12089
    %13255 = vmatprep.subr.bf16.mxu0 0
    %13256 = vmatpush1.bf16.msra.mxu0 %v12094
    %13257 = vmatprep.mubr.bf16.mxu0 %v10219
    %13258 = vmatmul.mubr.bf16.gmra.mrb[0].mxu0 %v10218
    %v13259 = vpop.f32.mrb[0].mxu0
    %v13260 = vadd.f32 %v10729, %v13259
    %v13261 = vpop.f32.mrb[0].mxu0
    %v13262 = vpop.f32.mrb[0].mxu0
    %v13263 = vpop.f32.mrb[0].mxu0
    %13264 = vdwg.mxu0
    %13265 = vmatprep.subr.bf16.mxu0 0
    %13266 = vmatpush1.bf16.msra.mxu0 %v12099
    %13267 = vmatprep.subr.bf16.mxu0 0
    %13268 = vmatpush1.bf16.msra.mxu0 %v12104
    %13269 = vmatprep.subr.bf16.mxu0 0
    %13270 = vmatpush1.bf16.msra.mxu0 %v12109
    %13271 = vmatprep.subr.bf16.mxu0 0
    %13272 = vmatpush1.bf16.msra.mxu0 %v12114
    %13273 = vmatprep.subr.bf16.mxu0 0
    %13274 = vmatpush1.bf16.msra.mxu0 %v12119
    %13275 = vmatprep.subr.bf16.mxu0 0
    %13276 = vmatpush1.bf16.msra.mxu0 %v12124
    %13277 = vmatprep.subr.bf16.mxu0 0
    %13278 = vmatpush1.bf16.msra.mxu0 %v12129
    %13279 = vmatprep.subr.bf16.mxu0 0
    %13280 = vmatpush1.bf16.msra.mxu0 %v12134
    %13281 = vmatprep.subr.bf16.mxu0 0
    %13282 = vmatpush1.bf16.msra.mxu0 %v12139
    %13283 = vmatprep.subr.bf16.mxu0 0
    %13284 = vmatpush1.bf16.msra.mxu0 %v12144
    %13285 = vmatprep.subr.bf16.mxu0 0
    %13286 = vmatpush1.bf16.msra.mxu0 %v12149
    %13287 = vmatprep.subr.bf16.mxu0 0
    %13288 = vmatpush1.bf16.msra.mxu0 %v12154
    %13289 = vmatprep.subr.bf16.mxu0 0
    %13290 = vmatpush1.bf16.msra.mxu0 %v12159
    %13291 = vmatprep.subr.bf16.mxu0 0
    %13292 = vmatpush1.bf16.msra.mxu0 %v12164
    %13293 = vmatprep.subr.bf16.mxu0 0
    %13294 = vmatpush1.bf16.msra.mxu0 %v12169
    %13295 = vmatprep.subr.bf16.mxu0 0
    %13296 = vmatpush1.bf16.msra.mxu0 %v12174
    %13297 = vmatprep.mubr.bf16.mxu0 %v10221
    %13298 = vmatmul.mubr.bf16.gmra.mrb[0].mxu0 %v10220
    %v13299 = vpop.f32.mrb[0].mxu0
    %v13300 = vadd.f32 %v13260, %v13299
    %v13301 = vpop.f32.mrb[0].mxu0
    %v13302 = vpop.f32.mrb[0].mxu0
    %v13303 = vpop.f32.mrb[0].mxu0
    %13304 = vdwg.mxu0
    %13305 = vmatprep.subr.bf16.mxu0 0
    %13306 = vmatpush1.bf16.msra.mxu0 %v12179
    %13307 = vmatprep.subr.bf16.mxu0 0
    %13308 = vmatpush1.bf16.msra.mxu0 %v12184
    %13309 = vmatprep.subr.bf16.mxu0 0
    %13310 = vmatpush1.bf16.msra.mxu0 %v12189
    %13311 = vmatprep.subr.bf16.mxu0 0
    %13312 = vmatpush1.bf16.msra.mxu0 %v12194
    %13313 = vmatprep.subr.bf16.mxu0 0
    %13314 = vmatpush1.bf16.msra.mxu0 %v12199
    %13315 = vmatprep.subr.bf16.mxu0 0
    %13316 = vmatpush1.bf16.msra.mxu0 %v12204
    %13317 = vmatprep.subr.bf16.mxu0 0
    %13318 = vmatpush1.bf16.msra.mxu0 %v12209
    %13319 = vmatprep.subr.bf16.mxu0 0
    %13320 = vmatpush1.bf16.msra.mxu0 %v12214
    %13321 = vmatprep.subr.bf16.mxu0 0
    %13322 = vmatpush1.bf16.msra.mxu0 %v12219
    %13323 = vmatprep.subr.bf16.mxu0 0
    %13324 = vmatpush1.bf16.msra.mxu0 %v12224
    %13325 = vmatprep.subr.bf16.mxu0 0
    %13326 = vmatpush1.bf16.msra.mxu0 %v12229
    %13327 = vmatprep.subr.bf16.mxu0 0
    %13328 = vmatpush1.bf16.msra.mxu0 %v12234
    %13329 = vmatprep.subr.bf16.mxu0 0
    %13330 = vmatpush1.bf16.msra.mxu0 %v12239
    %13331 = vmatprep.subr.bf16.mxu0 0
    %13332 = vmatpush1.bf16.msra.mxu0 %v12244
    %13333 = vmatprep.subr.bf16.mxu0 0
    %13334 = vmatpush1.bf16.msra.mxu0 %v12249
    %13335 = vmatprep.subr.bf16.mxu0 0
    %13336 = vmatpush1.bf16.msra.mxu0 %v12254
    %13337 = vmatprep.mubr.bf16.mxu0 %v10223
    %13338 = vmatmul.mubr.bf16.gmra.mrb[0].mxu0 %v10222
    %v13339 = vpop.f32.mrb[0].mxu0
    %v13340 = vadd.f32 %v13300, %v13339
    %v13341 = vpop.f32.mrb[0].mxu0
    %v13342 = vpop.f32.mrb[0].mxu0
    %v13343 = vpop.f32.mrb[0].mxu0
    %13344 = vdwg.mxu0
    %13345 = vmatprep.subr.bf16.mxu0 0
    %13346 = vmatpush1.bf16.msra.mxu0 %v12259
    %13347 = vmatprep.subr.bf16.mxu0 0
    %13348 = vmatpush1.bf16.msra.mxu0 %v12264
    %13349 = vmatprep.subr.bf16.mxu0 0
    %13350 = vmatpush1.bf16.msra.mxu0 %v12269
    %13351 = vmatprep.subr.bf16.mxu0 0
    %13352 = vmatpush1.bf16.msra.mxu0 %v12274
    %13353 = vmatprep.subr.bf16.mxu0 0
    %13354 = vmatpush1.bf16.msra.mxu0 %v12279
    %13355 = vmatprep.subr.bf16.mxu0 0
    %13356 = vmatpush1.bf16.msra.mxu0 %v12284
    %13357 = vmatprep.subr.bf16.mxu0 0
    %13358 = vmatpush1.bf16.msra.mxu0 %v12289
    %13359 = vmatprep.subr.bf16.mxu0 0
    %13360 = vmatpush1.bf16.msra.mxu0 %v12294
    %13361 = vmatprep.subr.bf16.mxu0 0
    %13362 = vmatpush1.bf16.msra.mxu0 %v12299
    %13363 = vmatprep.subr.bf16.mxu0 0
    %13364 = vmatpush1.bf16.msra.mxu0 %v12304
    %13365 = vmatprep.subr.bf16.mxu0 0
    %13366 = vmatpush1.bf16.msra.mxu0 %v12309
    %13367 = vmatprep.subr.bf16.mxu0 0
    %13368 = vmatpush1.bf16.msra.mxu0 %v12314
    %13369 = vmatprep.subr.bf16.mxu0 0
    %13370 = vmatpush1.bf16.msra.mxu0 %v12319
    %13371 = vmatprep.subr.bf16.mxu0 0
    %13372 = vmatpush1.bf16.msra.mxu0 %v12324
    %13373 = vmatprep.subr.bf16.mxu0 0
    %13374 = vmatpush1.bf16.msra.mxu0 %v12329
    %13375 = vmatprep.subr.bf16.mxu0 0
    %13376 = vmatpush1.bf16.msra.mxu0 %v12334
    %13377 = vmatprep.mubr.bf16.mxu0 %v10225
    %13378 = vmatmul.mubr.bf16.gmra.mrb[0].mxu0 %v10224
    %v13379 = vpop.f32.mrb[0].mxu0
    %v13380 = vadd.f32 %v13340, %v13379
    %v13381 = vpop.f32.mrb[0].mxu0
    %v13382 = vpop.f32.mrb[0].mxu0
    %v13383 = vpop.f32.mrb[0].mxu0
    %13384 = vdwg.mxu0
    %13385 = vmatprep.subr.bf16.mxu0 0
    %13386 = vmatpush1.bf16.msra.mxu0 %v12339
    %13387 = vmatprep.subr.bf16.mxu0 0
    %13388 = vmatpush1.bf16.msra.mxu0 %v12344
    %13389 = vmatprep.subr.bf16.mxu0 0
    %13390 = vmatpush1.bf16.msra.mxu0 %v12349
    %13391 = vmatprep.subr.bf16.mxu0 0
    %13392 = vmatpush1.bf16.msra.mxu0 %v12354
    %13393 = vmatprep.subr.bf16.mxu0 0
    %13394 = vmatpush1.bf16.msra.mxu0 %v12359
    %13395 = vmatprep.subr.bf16.mxu0 0
    %13396 = vmatpush1.bf16.msra.mxu0 %v12364
    %13397 = vmatprep.subr.bf16.mxu0 0
    %13398 = vmatpush1.bf16.msra.mxu0 %v12369
    %13399 = vmatprep.subr.bf16.mxu0 0
    %13400 = vmatpush1.bf16.msra.mxu0 %v12374
    %13401 = vmatprep.subr.bf16.mxu0 0
    %13402 = vmatpush1.bf16.msra.mxu0 %v12379
    %13403 = vmatprep.subr.bf16.mxu0 0
    %13404 = vmatpush1.bf16.msra.mxu0 %v12384
    %13405 = vmatprep.subr.bf16.mxu0 0
    %13406 = vmatpush1.bf16.msra.mxu0 %v12389
    %13407 = vmatprep.subr.bf16.mxu0 0
    %13408 = vmatpush1.bf16.msra.mxu0 %v12394
    %13409 = vmatprep.subr.bf16.mxu0 0
    %13410 = vmatpush1.bf16.msra.mxu0 %v12399
    %13411 = vmatprep.subr.bf16.mxu0 0
    %13412 = vmatpush1.bf16.msra.mxu0 %v12404
    %13413 = vmatprep.subr.bf16.mxu0 0
    %13414 = vmatpush1.bf16.msra.mxu0 %v12409
    %13415 = vmatprep.subr.bf16.mxu0 0
    %13416 = vmatpush1.bf16.msra.mxu0 %v12414
    %13417 = vmatprep.mubr.bf16.mxu0 %v10227
    %13418 = vmatmul.mubr.bf16.gmra.mrb[0].mxu0 %v10226
    %v13419 = vpop.f32.mrb[0].mxu0
    %v13420 = vadd.f32 %v13380, %v13419
    %v13421 = vpop.f32.mrb[0].mxu0
    %v13422 = vpop.f32.mrb[0].mxu0
    %v13423 = vpop.f32.mrb[0].mxu0
    %13424 = vdwg.mxu0
    %v13425 = vmax.f32 %v13014, 0.0
    %v13426 = vmax.f32 %v13016, 0.0
    %v13427 = vmax.f32 %v13219, 0.0
    %v13428 = vmax.f32 %v13221, 0.0
    %v13429 = vmax.f32 %v13420, 0.0
    %v13430 = vld [vmem:[%s5] sm:$0xff]
    %v13431 = vld [vmem:[%s5 + $0x8] sm:$0xff]
    %v13432 = vld [vmem:[%s5 + $0x10] sm:$0xff]
    %v13433 = vld [vmem:[%s5 + $0x18] sm:$0xff]
    %v13434 = vld [vmem:[%s5 + $0x20] sm:$0xff]
    %v13435 = vld [vmem:[%s5 + $0x28] sm:$0xff]
    %v13436 = vld [vmem:[%s5 + $0x30] sm:$0xff]
    %v13437 = vld [vmem:[%s5 + $0x38] sm:$0xff]
    %v13438 = vld [vmem:[%s5 + $0x40] sm:$0xff]
    %v13439 = vld [vmem:[%s5 + $0x48] sm:$0xff]
    %v13440 = vld [vmem:[%s5 + $0x50] sm:$0xff]
    %v13441 = vld [vmem:[%s5 + $0x58] sm:$0xff]
    %v13442 = vld [vmem:[%s5 + $0x60] sm:$0xff]
    %v13443 = vld [vmem:[%s5 + $0x68] sm:$0xff]
    %v13444 = vld [vmem:[%s5 + $0x70] sm:$0xff]
    %v13445 = vld [vmem:[%s5 + $0x78] sm:$0xff]
    %v13446 = vld [vmem:[%s5 + $0x80] sm:$0xff]
    %v13447 = vld [vmem:[%s5 + $0x88] sm:$0xff]
    %v13448 = vld [vmem:[%s5 + $0x90] sm:$0xff]
    %v13449 = vld [vmem:[%s5 + $0x98] sm:$0xff]
    %v13450 = vld [vmem:[%s5 + $0xa0] sm:$0xff]
    %v13451 = vld [vmem:[%s5 + $0xa8] sm:$0xff]
    %v13452 = vld [vmem:[%s5 + $0xb0] sm:$0xff]
    %v13453 = vld [vmem:[%s5 + $0xb8] sm:$0xff]
    %v13454 = vld [vmem:[%s5 + $0xc0] sm:$0xff]
    %v13455 = vld [vmem:[%s5 + $0xc8] sm:$0xff]
    %v13456 = vld [vmem:[%s5 + $0xd0] sm:$0xff]
    %v13457 = vld [vmem:[%s5 + $0xd8] sm:$0xff]
    %v13458 = vld [vmem:[%s5 + $0xe0] sm:$0xff]
    %v13459 = vld [vmem:[%s5 + $0xe8] sm:$0xff]
    %v13460 = vld [vmem:[%s5 + $0xf0] sm:$0xff]
    %v13461 = vld [vmem:[%s5 + $0xf8] sm:$0xff]
    %v13462 = vld [vmem:[%s5 + $0x100] sm:$0xff]
    %v13463 = vld [vmem:[%s5 + $0x108] sm:$0xff]
    %v13464 = vld [vmem:[%s5 + $0x110] sm:$0xff]
    %v13465 = vld [vmem:[%s5 + $0x118] sm:$0xff]
    %v13466 = vld [vmem:[%s5 + $0x120] sm:$0xff]
    %v13467 = vld [vmem:[%s5 + $0x128] sm:$0xff]
    %v13468 = vld [vmem:[%s5 + $0x130] sm:$0xff]
    %v13469 = vld [vmem:[%s5 + $0x138] sm:$0xff]
    %v13470 = vld [vmem:[%s5 + $0x140] sm:$0xff]
    %v13471 = vld [vmem:[%s5 + $0x148] sm:$0xff]
    %v13472 = vld [vmem:[%s5 + $0x150] sm:$0xff]
    %v13473 = vld [vmem:[%s5 + $0x158] sm:$0xff]
    %v13474 = vld [vmem:[%s5 + $0x160] sm:$0xff]
    %v13475 = vld [vmem:[%s5 + $0x168] sm:$0xff]
    %v13476 = vld [vmem:[%s5 + $0x170] sm:$0xff]
    %v13477 = vld [vmem:[%s5 + $0x178] sm:$0xff]
    %v13478 = vld [vmem:[%s5 + $0x180] sm:$0xff]
    %v13479 = vld [vmem:[%s5 + $0x188] sm:$0xff]
    %v13480 = vld [vmem:[%s5 + $0x190] sm:$0xff]
    %v13481 = vld [vmem:[%s5 + $0x198] sm:$0xff]
    %v13482 = vld [vmem:[%s5 + $0x1a0] sm:$0xff]
    %v13483 = vld [vmem:[%s5 + $0x1a8] sm:$0xff]
    %v13484 = vld [vmem:[%s5 + $0x1b0] sm:$0xff]
    %v13485 = vld [vmem:[%s5 + $0x1b8] sm:$0xff]
    %v13486 = vld [vmem:[%s5 + $0x1c0] sm:$0xff]
    %v13487 = vld [vmem:[%s5 + $0x1c8] sm:$0xff]
    %v13488 = vld [vmem:[%s5 + $0x1d0] sm:$0xff]
    %v13489 = vld [vmem:[%s5 + $0x1d8] sm:$0xff]
    %v13490 = vld [vmem:[%s5 + $0x1e0] sm:$0xff]
    %v13491 = vld [vmem:[%s5 + $0x1e8] sm:$0xff]
    %v13492 = vld [vmem:[%s5 + $0x1f0] sm:$0xff]
    %v13493 = vld [vmem:[%s5 + $0x1f8] sm:$0xff]
    %v13494 = vld [vmem:[%s5 + $0x200] sm:$0xff]
    %v13495 = vld [vmem:[%s5 + $0x208] sm:$0xff]
    %v13496 = vld [vmem:[%s5 + $0x210] sm:$0xff]
    %v13497 = vld [vmem:[%s5 + $0x218] sm:$0xff]
    %v13498 = vld [vmem:[%s5 + $0x220] sm:$0xff]
    %v13499 = vld [vmem:[%s5 + $0x228] sm:$0xff]
    %v13500 = vld [vmem:[%s5 + $0x230] sm:$0xff]
    %v13501 = vld [vmem:[%s5 + $0x238] sm:$0xff]
    %v13502 = vld [vmem:[%s5 + $0x240] sm:$0xff]
    %v13503 = vld [vmem:[%s5 + $0x248] sm:$0xff]
    %v13504 = vld [vmem:[%s5 + $0x250] sm:$0xff]
    %v13505 = vld [vmem:[%s5 + $0x258] sm:$0xff]
    %v13506 = vld [vmem:[%s5 + $0x260] sm:$0xff]
    %v13507 = vld [vmem:[%s5 + $0x268] sm:$0xff]
    %v13508 = vld [vmem:[%s5 + $0x270] sm:$0xff]
    %v13509 = vld [vmem:[%s5 + $0x278] sm:$0xff]
    %13510 = vmatprep.subr.mxu0 0.0
    %13511 = vmatpush1.msra.mxu0 %v13430
    %13512 = vmatprep.subr.mxu0 0.0
    %13513 = vmatpush1.msra.mxu0 %v13431
    %13514 = vmatprep.subr.mxu0 0.0
    %13515 = vmatpush1.msra.mxu0 %v13432
    %13516 = vmatprep.subr.mxu0 0.0
    %13517 = vmatpush1.msra.mxu0 %v13433
    %13518 = vmatprep.subr.mxu0 0.0
    %13519 = vmatpush1.msra.mxu0 %v13434
    %13520 = vmatprep.subr.mxu0 0.0
    %13521 = vmatpush1.msra.mxu0 %v13435
    %13522 = vmatprep.subr.mxu0 0.0
    %13523 = vmatpush1.msra.mxu0 %v13436
    %13524 = vmatprep.subr.mxu0 0.0
    %13525 = vmatpush1.msra.mxu0 %v13437
    %13526 = vmatprep.subr.mxu0 0.0
    %13527 = vmatpush1.msra.mxu0 %v13438
    %13528 = vmatprep.subr.mxu0 0.0
    %13529 = vmatpush1.msra.mxu0 %v13439
    %13530 = vmatprep.subr.mxu0 0.0
    %13531 = vmatpush1.msra.mxu0 %v13440
    %13532 = vmatprep.subr.mxu0 0.0
    %13533 = vmatpush1.msra.mxu0 %v13441
    %13534 = vmatprep.subr.mxu0 0.0
    %13535 = vmatpush1.msra.mxu0 %v13442
    %13536 = vmatprep.subr.mxu0 0.0
    %13537 = vmatpush1.msra.mxu0 %v13443
    %13538 = vmatprep.subr.mxu0 0.0
    %13539 = vmatpush1.msra.mxu0 %v13444
    %13540 = vmatprep.subr.mxu0 0.0
    %13541 = vmatpush1.msra.mxu0 %v13445
    %13542 = vmatprep.subr.mxu0 0.0
    %13543 = vmatpush1.msra.mxu0 %v13446
    %13544 = vmatprep.subr.mxu0 0.0
    %13545 = vmatpush1.msra.mxu0 %v13447
    %13546 = vmatprep.subr.mxu0 0.0
    %13547 = vmatpush1.msra.mxu0 %v13448
    %13548 = vmatprep.subr.mxu0 0.0
    %13549 = vmatpush1.msra.mxu0 %v13449
    %13550 = vmatprep.subr.mxu0 0.0
    %13551 = vmatpush1.msra.mxu0 %v13450
    %13552 = vmatprep.subr.mxu0 0.0
    %13553 = vmatpush1.msra.mxu0 %v13451
    %13554 = vmatprep.subr.mxu0 0.0
    %13555 = vmatpush1.msra.mxu0 %v13452
    %13556 = vmatprep.subr.mxu0 0.0
    %13557 = vmatpush1.msra.mxu0 %v13453
    %13558 = vmatprep.subr.mxu0 0.0
    %13559 = vmatpush1.msra.mxu0 %v13454
    %13560 = vmatprep.subr.mxu0 0.0
    %13561 = vmatpush1.msra.mxu0 %v13455
    %13562 = vmatprep.subr.mxu0 0.0
    %13563 = vmatpush1.msra.mxu0 %v13456
    %13564 = vmatprep.subr.mxu0 0.0
    %13565 = vmatpush1.msra.mxu0 %v13457
    %13566 = vmatprep.subr.mxu0 0.0
    %13567 = vmatpush1.msra.mxu0 %v13458
    %13568 = vmatprep.subr.mxu0 0.0
    %13569 = vmatpush1.msra.mxu0 %v13459
    %13570 = vmatprep.subr.mxu0 0.0
    %13571 = vmatpush1.msra.mxu0 %v13460
    %13572 = vmatprep.subr.mxu0 0.0
    %13573 = vmatpush1.msra.mxu0 %v13461
    %13574 = vmatprep.mubr.f32.mxu0 %v13426
    %13575 = vmatmul.mubr.f32.gmra.mrb[0].mxu0 %v13425
    %v13576 = vpop.f32.mrb[0].mxu0
    %v13577 = vadd.f32 0.0, %v13576
    %v13578 = vpop.f32.mrb[0].mxu0
    %13579 = vdwg.mxu0
    %13580 = vmatprep.subr.mxu0 0.0
    %13581 = vmatpush1.msra.mxu0 %v13462
    %13582 = vmatprep.subr.mxu0 0.0
    %13583 = vmatpush1.msra.mxu0 %v13463
    %13584 = vmatprep.subr.mxu0 0.0
    %13585 = vmatpush1.msra.mxu0 %v13464
    %13586 = vmatprep.subr.mxu0 0.0
    %13587 = vmatpush1.msra.mxu0 %v13465
    %13588 = vmatprep.subr.mxu0 0.0
    %13589 = vmatpush1.msra.mxu0 %v13466
    %13590 = vmatprep.subr.mxu0 0.0
    %13591 = vmatpush1.msra.mxu0 %v13467
    %13592 = vmatprep.subr.mxu0 0.0
    %13593 = vmatpush1.msra.mxu0 %v13468
    %13594 = vmatprep.subr.mxu0 0.0
    %13595 = vmatpush1.msra.mxu0 %v13469
    %13596 = vmatprep.subr.mxu0 0.0
    %13597 = vmatpush1.msra.mxu0 %v13470
    %13598 = vmatprep.subr.mxu0 0.0
    %13599 = vmatpush1.msra.mxu0 %v13471
    %13600 = vmatprep.subr.mxu0 0.0
    %13601 = vmatpush1.msra.mxu0 %v13472
    %13602 = vmatprep.subr.mxu0 0.0
    %13603 = vmatpush1.msra.mxu0 %v13473
    %13604 = vmatprep.subr.mxu0 0.0
    %13605 = vmatpush1.msra.mxu0 %v13474
    %13606 = vmatprep.subr.mxu0 0.0
    %13607 = vmatpush1.msra.mxu0 %v13475
    %13608 = vmatprep.subr.mxu0 0.0
    %13609 = vmatpush1.msra.mxu0 %v13476
    %13610 = vmatprep.subr.mxu0 0.0
    %13611 = vmatpush1.msra.mxu0 %v13477
    %13612 = vmatprep.subr.mxu0 0.0
    %13613 = vmatpush1.msra.mxu0 %v13478
    %13614 = vmatprep.subr.mxu0 0.0
    %13615 = vmatpush1.msra.mxu0 %v13479
    %13616 = vmatprep.subr.mxu0 0.0
    %13617 = vmatpush1.msra.mxu0 %v13480
    %13618 = vmatprep.subr.mxu0 0.0
    %13619 = vmatpush1.msra.mxu0 %v13481
    %13620 = vmatprep.subr.mxu0 0.0
    %13621 = vmatpush1.msra.mxu0 %v13482
    %13622 = vmatprep.subr.mxu0 0.0
    %13623 = vmatpush1.msra.mxu0 %v13483
    %13624 = vmatprep.subr.mxu0 0.0
    %13625 = vmatpush1.msra.mxu0 %v13484
    %13626 = vmatprep.subr.mxu0 0.0
    %13627 = vmatpush1.msra.mxu0 %v13485
    %13628 = vmatprep.subr.mxu0 0.0
    %13629 = vmatpush1.msra.mxu0 %v13486
    %13630 = vmatprep.subr.mxu0 0.0
    %13631 = vmatpush1.msra.mxu0 %v13487
    %13632 = vmatprep.subr.mxu0 0.0
    %13633 = vmatpush1.msra.mxu0 %v13488
    %13634 = vmatprep.subr.mxu0 0.0
    %13635 = vmatpush1.msra.mxu0 %v13489
    %13636 = vmatprep.subr.mxu0 0.0
    %13637 = vmatpush1.msra.mxu0 %v13490
    %13638 = vmatprep.subr.mxu0 0.0
    %13639 = vmatpush1.msra.mxu0 %v13491
    %13640 = vmatprep.subr.mxu0 0.0
    %13641 = vmatpush1.msra.mxu0 %v13492
    %13642 = vmatprep.subr.mxu0 0.0
    %13643 = vmatpush1.msra.mxu0 %v13493
    %13644 = vmatprep.mubr.f32.mxu0 %v13428
    %13645 = vmatmul.mubr.f32.gmra.mrb[0].mxu0 %v13427
    %v13646 = vpop.f32.mrb[0].mxu0
    %v13647 = vadd.f32 %v13577, %v13646
    %v13648 = vpop.f32.mrb[0].mxu0
    %13649 = vdwg.mxu0
    %13650 = vmatprep.subr.mxu0 0.0
    %13651 = vmatpush1.msra.mxu0 %v13494
    %13652 = vmatprep.subr.mxu0 0.0
    %13653 = vmatpush1.msra.mxu0 %v13495
    %13654 = vmatprep.subr.mxu0 0.0
    %13655 = vmatpush1.msra.mxu0 %v13496
    %13656 = vmatprep.subr.mxu0 0.0
    %13657 = vmatpush1.msra.mxu0 %v13497
    %13658 = vmatprep.subr.mxu0 0.0
    %13659 = vmatpush1.msra.mxu0 %v13498
    %13660 = vmatprep.subr.mxu0 0.0
    %13661 = vmatpush1.msra.mxu0 %v13499
    %13662 = vmatprep.subr.mxu0 0.0
    %13663 = vmatpush1.msra.mxu0 %v13500
    %13664 = vmatprep.subr.mxu0 0.0
    %13665 = vmatpush1.msra.mxu0 %v13501
    %13666 = vmatprep.subr.mxu0 0.0
    %13667 = vmatpush1.msra.mxu0 %v13502
    %13668 = vmatprep.subr.mxu0 0.0
    %13669 = vmatpush1.msra.mxu0 %v13503
    %13670 = vmatprep.subr.mxu0 0.0
    %13671 = vmatpush1.msra.mxu0 %v13504
    %13672 = vmatprep.subr.mxu0 0.0
    %13673 = vmatpush1.msra.mxu0 %v13505
    %13674 = vmatprep.subr.mxu0 0.0
    %13675 = vmatpush1.msra.mxu0 %v13506
    %13676 = vmatprep.subr.mxu0 0.0
    %13677 = vmatpush1.msra.mxu0 %v13507
    %13678 = vmatprep.subr.mxu0 0.0
    %13679 = vmatpush1.msra.mxu0 %v13508
    %13680 = vmatprep.subr.mxu0 0.0
    %13681 = vmatpush1.msra.mxu0 %v13509
    %13682 = vmatprep.subr.mxu0 0.0
    %13683 = vmatpush1.msra.mxu0 0.0
    %13684 = vmatprep.subr.mxu0 0.0
    %13685 = vmatpush1.msra.mxu0 0.0
    %13686 = vmatprep.subr.mxu0 0.0
    %13687 = vmatpush1.msra.mxu0 0.0
    %13688 = vmatprep.subr.mxu0 0.0
    %13689 = vmatpush1.msra.mxu0 0.0
    %13690 = vmatprep.subr.mxu0 0.0
    %13691 = vmatpush1.msra.mxu0 0.0
    %13692 = vmatprep.subr.mxu0 0.0
    %13693 = vmatpush1.msra.mxu0 0.0
    %13694 = vmatprep.subr.mxu0 0.0
    %13695 = vmatpush1.msra.mxu0 0.0
    %13696 = vmatprep.subr.mxu0 0.0
    %13697 = vmatpush1.msra.mxu0 0.0
    %13698 = vmatprep.subr.mxu0 0.0
    %13699 = vmatpush1.msra.mxu0 0.0
    %13700 = vmatprep.subr.mxu0 0.0
    %13701 = vmatpush1.msra.mxu0 0.0
    %13702 = vmatprep.subr.mxu0 0.0
    %13703 = vmatpush1.msra.mxu0 0.0
    %13704 = vmatprep.subr.mxu0 0.0
    %13705 = vmatpush1.msra.mxu0 0.0
    %13706 = vmatprep.subr.mxu0 0.0
    %13707 = vmatpush1.msra.mxu0 0.0
    %13708 = vmatprep.subr.mxu0 0.0
    %13709 = vmatpush1.msra.mxu0 0.0
    %13710 = vmatprep.subr.mxu0 0.0
    %13711 = vmatpush1.msra.mxu0 0.0
    %13712 = vmatprep.subr.mxu0 0.0
    %13713 = vmatpush1.msra.mxu0 0.0
    %13714 = vmatprep.mubr.f32.mxu0 0.0
    %13715 = vmatmul.mubr.f32.gmra.mrb[0].mxu0 %v13429
    %v13716 = vpop.f32.mrb[0].mxu0
    %v13717 = vadd.f32 %v13647, %v13716
    %v13718 = vpop.f32.mrb[0].mxu0
    %13719 = vdwg.mxu0
    %v13720 = vld [vmem:[#allocation10] sm:$0xff]
    %v13721 = vld [vmem:[#allocation10 + $0x8] sm:$0xff]
    %v13722 = vld [vmem:[#allocation10 + $0x10] sm:$0xff]
    %v13723 = vld [vmem:[#allocation10 + $0x18] sm:$0xff]
    %v13724 = vld [vmem:[#allocation10 + $0x20] sm:$0xff]
    %v13725 = vld [vmem:[#allocation10 + $0x28] sm:$0xff]
    %v13726 = vld [vmem:[#allocation10 + $0x30] sm:$0xff]
    %v13727 = vld [vmem:[#allocation10 + $0x38] sm:$0xf]
    %vm13728 = vcmask 490496
    %v13730 = vsel %vm13728, %v13717, 0
    %vm13732 = vcmask 1043456
    %v13734 = vsel %vm13732, %v13727, 0
    %13736 = vmatprep.subr.mxu0 0.0
    %13737 = vmatpush1.msra.mxu0 %v13720
    %13738 = vmatprep.subr.mxu0 0.0
    %13739 = vmatpush1.msra.mxu0 %v13721
    %13740 = vmatprep.subr.mxu0 0.0
    %13741 = vmatpush1.msra.mxu0 %v13722
    %13742 = vmatprep.subr.mxu0 0.0
    %13743 = vmatpush1.msra.mxu0 %v13723
    %13744 = vmatprep.subr.mxu0 0.0
    %13745 = vmatpush1.msra.mxu0 %v13724
    %13746 = vmatprep.subr.mxu0 0.0
    %13747 = vmatpush1.msra.mxu0 %v13725
    %13748 = vmatprep.subr.mxu0 0.0
    %13749 = vmatpush1.msra.mxu0 %v13726
    %13750 = vmatprep.subr.mxu0 0.0
    %13751 = vmatpush1.msra.mxu0 %v13734
    %13752 = vmatprep.subr.mxu0 0.0
    %13753 = vmatpush1.msra.mxu0 0.0
    %13754 = vmatprep.subr.mxu0 0.0
    %13755 = vmatpush1.msra.mxu0 0.0
    %13756 = vmatprep.subr.mxu0 0.0
    %13757 = vmatpush1.msra.mxu0 0.0
    %13758 = vmatprep.subr.mxu0 0.0
    %13759 = vmatpush1.msra.mxu0 0.0
    %13760 = vmatprep.subr.mxu0 0.0
    %13761 = vmatpush1.msra.mxu0 0.0
    %13762 = vmatprep.subr.mxu0 0.0
    %13763 = vmatpush1.msra.mxu0 0.0
    %13764 = vmatprep.subr.mxu0 0.0
    %13765 = vmatpush1.msra.mxu0 0.0
    %13766 = vmatprep.subr.mxu0 0.0
    %13767 = vmatpush1.msra.mxu0 0.0
    %13768 = vmatprep.subr.mxu0 0.0
    %13769 = vmatpush1.msra.mxu0 0.0
    %13770 = vmatprep.subr.mxu0 0.0
    %13771 = vmatpush1.msra.mxu0 0.0
    %13772 = vmatprep.subr.mxu0 0.0
    %13773 = vmatpush1.msra.mxu0 0.0
    %13774 = vmatprep.subr.mxu0 0.0
    %13775 = vmatpush1.msra.mxu0 0.0
    %13776 = vmatprep.subr.mxu0 0.0
    %13777 = vmatpush1.msra.mxu0 0.0
    %13778 = vmatprep.subr.mxu0 0.0
    %13779 = vmatpush1.msra.mxu0 0.0
    %13780 = vmatprep.subr.mxu0 0.0
    %13781 = vmatpush1.msra.mxu0 0.0
    %13782 = vmatprep.subr.mxu0 0.0
    %13783 = vmatpush1.msra.mxu0 0.0
    %13784 = vmatprep.subr.mxu0 0.0
    %13785 = vmatpush1.msra.mxu0 0.0
    %13786 = vmatprep.subr.mxu0 0.0
    %13787 = vmatpush1.msra.mxu0 0.0
    %13788 = vmatprep.subr.mxu0 0.0
    %13789 = vmatpush1.msra.mxu0 0.0
    %13790 = vmatprep.subr.mxu0 0.0
    %13791 = vmatpush1.msra.mxu0 0.0
    %13792 = vmatprep.subr.mxu0 0.0
    %13793 = vmatpush1.msra.mxu0 0.0
    %13794 = vmatprep.subr.mxu0 0.0
    %13795 = vmatpush1.msra.mxu0 0.0
    %13796 = vmatprep.subr.mxu0 0.0
    %13797 = vmatpush1.msra.mxu0 0.0
    %13798 = vmatprep.subr.mxu0 0.0
    %13799 = vmatpush1.msra.mxu0 0.0
    %13800 = vmatprep.mubr.f32.mxu0 0.0
    %13801 = vmatmul.mubr.f32.gmra.mrb[0].mxu0 %v13730
    %v13802 = vpop.f32.mrb[0].mxu0
    %v13803 = vadd.f32 0.0, %v13802
    %v13804 = vpop.f32.mrb[0].mxu0
    %13805 = vdwg.mxu0
    %v13806 = vsel %vm13728, %v13803, -inf
    %13807 = vmax.xlane.f32.xlu0 %v13806
    %v13808 = vpop.xlane.xlu0 %13807
    %v13809 = vsub.f32 %v13803, %v13808
    %v13810 = vmul.f32 %v13809, 1.442695
    %v13811 = vpow.pop %v13810
    %v13812 = vld [vmem:[#allocation12] sm:$0xff]
    %v13813 = vld [vmem:[#allocation12 + $0x8] sm:$0xff]
    %v13814 = vld [vmem:[#allocation12 + $0x10] sm:$0xff]
    %v13815 = vld [vmem:[#allocation12 + $0x18] sm:$0xff]
    %v13816 = vld [vmem:[#allocation12 + $0x20] sm:$0xff]
    %v13817 = vld [vmem:[#allocation12 + $0x28] sm:$0xff]
    %v13818 = vld [vmem:[#allocation12 + $0x30] sm:$0xff]
    %v13819 = vld [vmem:[#allocation12 + $0x38] sm:$0xf]
    %v13821 = vsel %vm13728, %v13811, 0
    %v13824 = vsel %vm13732, %v13819, 0
    %13826 = vmatprep.subr.mxu0 0.0
    %13827 = vmatpush1.msra.mxu0 %v13812
    %13828 = vmatprep.subr.mxu0 0.0
    %13829 = vmatpush1.msra.mxu0 %v13813
    %13830 = vmatprep.subr.mxu0 0.0
    %13831 = vmatpush1.msra.mxu0 %v13814
    %13832 = vmatprep.subr.mxu0 0.0
    %13833 = vmatpush1.msra.mxu0 %v13815
    %13834 = vmatprep.subr.mxu0 0.0
    %13835 = vmatpush1.msra.mxu0 %v13816
    %13836 = vmatprep.subr.mxu0 0.0
    %13837 = vmatpush1.msra.mxu0 %v13817
    %13838 = vmatprep.subr.mxu0 0.0
    %13839 = vmatpush1.msra.mxu0 %v13818
    %13840 = vmatprep.subr.mxu0 0.0
    %13841 = vmatpush1.msra.mxu0 %v13824
    %13842 = vmatprep.subr.mxu0 0.0
    %13843 = vmatpush1.msra.mxu0 0.0
    %13844 = vmatprep.subr.mxu0 0.0
    %13845 = vmatpush1.msra.mxu0 0.0
    %13846 = vmatprep.subr.mxu0 0.0
    %13847 = vmatpush1.msra.mxu0 0.0
    %13848 = vmatprep.subr.mxu0 0.0
    %13849 = vmatpush1.msra.mxu0 0.0
    %13850 = vmatprep.subr.mxu0 0.0
    %13851 = vmatpush1.msra.mxu0 0.0
    %13852 = vmatprep.subr.mxu0 0.0
    %13853 = vmatpush1.msra.mxu0 0.0
    %13854 = vmatprep.subr.mxu0 0.0
    %13855 = vmatpush1.msra.mxu0 0.0
    %13856 = vmatprep.subr.mxu0 0.0
    %13857 = vmatpush1.msra.mxu0 0.0
    %13858 = vmatprep.subr.mxu0 0.0
    %13859 = vmatpush1.msra.mxu0 0.0
    %13860 = vmatprep.subr.mxu0 0.0
    %13861 = vmatpush1.msra.mxu0 0.0
    %13862 = vmatprep.subr.mxu0 0.0
    %13863 = vmatpush1.msra.mxu0 0.0
    %13864 = vmatprep.subr.mxu0 0.0
    %13865 = vmatpush1.msra.mxu0 0.0
    %13866 = vmatprep.subr.mxu0 0.0
    %13867 = vmatpush1.msra.mxu0 0.0
    %13868 = vmatprep.subr.mxu0 0.0
    %13869 = vmatpush1.msra.mxu0 0.0
    %13870 = vmatprep.subr.mxu0 0.0
    %13871 = vmatpush1.msra.mxu0 0.0
    %13872 = vmatprep.subr.mxu0 0.0
    %13873 = vmatpush1.msra.mxu0 0.0
    %13874 = vmatprep.subr.mxu0 0.0
    %13875 = vmatpush1.msra.mxu0 0.0
    %13876 = vmatprep.subr.mxu0 0.0
    %13877 = vmatpush1.msra.mxu0 0.0
    %13878 = vmatprep.subr.mxu0 0.0
    %13879 = vmatpush1.msra.mxu0 0.0
    %13880 = vmatprep.subr.mxu0 0.0
    %13881 = vmatpush1.msra.mxu0 0.0
    %13882 = vmatprep.subr.mxu0 0.0
    %13883 = vmatpush1.msra.mxu0 0.0
    %13884 = vmatprep.subr.mxu0 0.0
    %13885 = vmatpush1.msra.mxu0 0.0
    %13886 = vmatprep.subr.mxu0 0.0
    %13887 = vmatpush1.msra.mxu0 0.0
    %13888 = vmatprep.subr.mxu0 0.0
    %13889 = vmatpush1.msra.mxu0 0.0
    %13890 = vmatprep.mubr.f32.mxu0 0.0
    %13891 = vmatmul.mubr.f32.gmra.mrb[0].mxu0 %v13821
    %v13892 = vpop.f32.mrb[0].mxu0
    %v13893 = vadd.f32 0.0, %v13892
    %v13894 = vpop.f32.mrb[0].mxu0
    %13895 = vdwg.mxu0
    %v13896 = vrcp.pop %v13893
    %v13897 = vmul.f32 %v13811, %v13896
    %v13898 = vld [vmem:[#allocation13] sm:$0x1]
    %v13900 = vlaneseq
    %v13901 = vshrl.u32 %v13900, 7
    %v13902 = vsub.s32 0, %v13901
    %v13903 = vrot.slane %v13898, %v13902
    %v13905 = vmul.f32 %v13903, %v13897
    %v13906 = vsub.f32 1.0, %v13898
    %v13908 = vlaneseq
    %v13909 = vshrl.u32 %v13908, 7
    %v13910 = vsub.s32 0, %v13909
    %v13911 = vrot.slane %v13906, %v13910
    %v13913 = vadd.f32 %v13905, %v13911
    %v13914 = vmul.f32 %v13717, %v13913
    %v13915 = vld [vmem:[%s9] sm:$0xff]
    %v13916 = vld [vmem:[%s9 + $0x8] sm:$0xff]
    %v13917 = vld [vmem:[%s9 + $0x10] sm:$0xff]
    %v13918 = vld [vmem:[%s9 + $0x18] sm:$0xff]
    %v13919 = vld [vmem:[%s9 + $0x20] sm:$0xff]
    %v13920 = vld [vmem:[%s9 + $0x28] sm:$0xff]
    %v13921 = vld [vmem:[%s9 + $0x30] sm:$0xff]
    %v13922 = vld [vmem:[%s9 + $0x38] sm:$0xf]
    %v13923 = vld [vmem:[#allocation15] sm:$0x1]
    %v13925 = vlaneseq
    %v13926 = vshrl.u32 %v13925, 7
    %v13927 = vsub.s32 0, %v13926
    %v13928 = vrot.slane %v13923, %v13927
    %v13931 = vsel %vm13728, %v13914, 0
    %v13934 = vsel %vm13732, %v13922, 0
    %13936 = vmatprep.subr.mxu0 0.0
    %13937 = vmatpush1.msra.mxu0 %v13915
    %13938 = vmatprep.subr.mxu0 0.0
    %13939 = vmatpush1.msra.mxu0 %v13916
    %13940 = vmatprep.subr.mxu0 0.0
    %13941 = vmatpush1.msra.mxu0 %v13917
    %13942 = vmatprep.subr.mxu0 0.0
    %13943 = vmatpush1.msra.mxu0 %v13918
    %13944 = vmatprep.subr.mxu0 0.0
    %13945 = vmatpush1.msra.mxu0 %v13919
    %13946 = vmatprep.subr.mxu0 0.0
    %13947 = vmatpush1.msra.mxu0 %v13920
    %13948 = vmatprep.subr.mxu0 0.0
    %13949 = vmatpush1.msra.mxu0 %v13921
    %13950 = vmatprep.subr.mxu0 0.0
    %13951 = vmatpush1.msra.mxu0 %v13934
    %13952 = vmatprep.subr.mxu0 0.0
    %13953 = vmatpush1.msra.mxu0 0.0
    %13954 = vmatprep.subr.mxu0 0.0
    %13955 = vmatpush1.msra.mxu0 0.0
    %13956 = vmatprep.subr.mxu0 0.0
    %13957 = vmatpush1.msra.mxu0 0.0
    %13958 = vmatprep.subr.mxu0 0.0
    %13959 = vmatpush1.msra.mxu0 0.0
    %13960 = vmatprep.subr.mxu0 0.0
    %13961 = vmatpush1.msra.mxu0 0.0
    %13962 = vmatprep.subr.mxu0 0.0
    %13963 = vmatpush1.msra.mxu0 0.0
    %13964 = vmatprep.subr.mxu0 0.0
    %13965 = vmatpush1.msra.mxu0 0.0
    %13966 = vmatprep.subr.mxu0 0.0
    %13967 = vmatpush1.msra.mxu0 0.0
    %13968 = vmatprep.subr.mxu0 0.0
    %13969 = vmatpush1.msra.mxu0 0.0
    %13970 = vmatprep.subr.mxu0 0.0
    %13971 = vmatpush1.msra.mxu0 0.0
    %13972 = vmatprep.subr.mxu0 0.0
    %13973 = vmatpush1.msra.mxu0 0.0
    %13974 = vmatprep.subr.mxu0 0.0
    %13975 = vmatpush1.msra.mxu0 0.0
    %13976 = vmatprep.subr.mxu0 0.0
    %13977 = vmatpush1.msra.mxu0 0.0
    %13978 = vmatprep.subr.mxu0 0.0
    %13979 = vmatpush1.msra.mxu0 0.0
    %13980 = vmatprep.subr.mxu0 0.0
    %13981 = vmatpush1.msra.mxu0 0.0
    %13982 = vmatprep.subr.mxu0 0.0
    %13983 = vmatpush1.msra.mxu0 0.0
    %13984 = vmatprep.subr.mxu0 0.0
    %13985 = vmatpush1.msra.mxu0 0.0
    %13986 = vmatprep.subr.mxu0 0.0
    %13987 = vmatpush1.msra.mxu0 0.0
    %13988 = vmatprep.subr.mxu0 0.0
    %13989 = vmatpush1.msra.mxu0 0.0
    %13990 = vmatprep.subr.mxu0 0.0
    %13991 = vmatpush1.msra.mxu0 0.0
    %13992 = vmatprep.subr.mxu0 0.0
    %13993 = vmatpush1.msra.mxu0 0.0
    %13994 = vmatprep.subr.mxu0 0.0
    %13995 = vmatpush1.msra.mxu0 0.0
    %13996 = vmatprep.subr.mxu0 0.0
    %13997 = vmatpush1.msra.mxu0 0.0
    %13998 = vmatprep.subr.mxu0 0.0
    %13999 = vmatpush1.msra.mxu0 0.0
    %14000 = vmatprep.mubr.f32.mxu0 0.0
    %14001 = vmatmul.mubr.f32.gmra.mrb[0].mxu0 %v13931
    %v14002 = vpop.f32.mrb[0].mxu0
    %v14003 = vadd.f32 %v13928, %v14002
    %v14004 = vpop.f32.mrb[0].mxu0
    %14005 = vdwg.mxu0
    %vm14006 = vcmask 97280
    %v14007 = vsel %vm14006, %v14003, -inf
    %14008 = vmax.xlane.f32.xlu0 %v14007
    %v14009 = vpop.xlane.xlu0 %14008
    %v14010 = vsub.f32 %v14003, %v14009
    %v14011 = vmul.f32 %v14010, 1.442695
    %v14012 = vpow.pop %v14011
    %v14013 = vld [vmem:[#allocation16] sm:$0xff]
    %v14014 = vld [vmem:[#allocation16 + $0x8] sm:$0xf]
    %v14016 = vsel %vm14006, %v14012, 0
    %v14019 = vsel %vm13732, %v14014, 0
    %14021 = vmatprep.subr.mxu0 0.0
    %14022 = vmatpush1.msra.mxu0 %v14013
    %14023 = vmatprep.subr.mxu0 0.0
    %14024 = vmatpush1.msra.mxu0 %v14019
    %14025 = vmatprep.subr.mxu0 0.0
    %14026 = vmatpush1.msra.mxu0 0.0
    %14027 = vmatprep.subr.mxu0 0.0
    %14028 = vmatpush1.msra.mxu0 0.0
    %14029 = vmatprep.subr.mxu0 0.0
    %14030 = vmatpush1.msra.mxu0 0.0
    %14031 = vmatprep.subr.mxu0 0.0
    %14032 = vmatpush1.msra.mxu0 0.0
    %14033 = vmatprep.subr.mxu0 0.0
    %14034 = vmatpush1.msra.mxu0 0.0
    %14035 = vmatprep.subr.mxu0 0.0
    %14036 = vmatpush1.msra.mxu0 0.0
    %14037 = vmatprep.subr.mxu0 0.0
    %14038 = vmatpush1.msra.mxu0 0.0
    %14039 = vmatprep.subr.mxu0 0.0
    %14040 = vmatpush1.msra.mxu0 0.0
    %14041 = vmatprep.subr.mxu0 0.0
    %14042 = vmatpush1.msra.mxu0 0.0
    %14043 = vmatprep.subr.mxu0 0.0
    %14044 = vmatpush1.msra.mxu0 0.0
    %14045 = vmatprep.subr.mxu0 0.0
    %14046 = vmatpush1.msra.mxu0 0.0
    %14047 = vmatprep.subr.mxu0 0.0
    %14048 = vmatpush1.msra.mxu0 0.0
    %14049 = vmatprep.subr.mxu0 0.0
    %14050 = vmatpush1.msra.mxu0 0.0
    %14051 = vmatprep.subr.mxu0 0.0
    %14052 = vmatpush1.msra.mxu0 0.0
    %14053 = vmatprep.subr.mxu0 0.0
    %14054 = vmatpush1.msra.mxu0 0.0
    %14055 = vmatprep.subr.mxu0 0.0
    %14056 = vmatpush1.msra.mxu0 0.0
    %14057 = vmatprep.subr.mxu0 0.0
    %14058 = vmatpush1.msra.mxu0 0.0
    %14059 = vmatprep.subr.mxu0 0.0
    %14060 = vmatpush1.msra.mxu0 0.0
    %14061 = vmatprep.subr.mxu0 0.0
    %14062 = vmatpush1.msra.mxu0 0.0
    %14063 = vmatprep.subr.mxu0 0.0
    %14064 = vmatpush1.msra.mxu0 0.0
    %14065 = vmatprep.subr.mxu0 0.0
    %14066 = vmatpush1.msra.mxu0 0.0
    %14067 = vmatprep.subr.mxu0 0.0
    %14068 = vmatpush1.msra.mxu0 0.0
    %14069 = vmatprep.subr.mxu0 0.0
    %14070 = vmatpush1.msra.mxu0 0.0
    %14071 = vmatprep.subr.mxu0 0.0
    %14072 = vmatpush1.msra.mxu0 0.0
    %14073 = vmatprep.subr.mxu0 0.0
    %14074 = vmatpush1.msra.mxu0 0.0
    %14075 = vmatprep.subr.mxu0 0.0
    %14076 = vmatpush1.msra.mxu0 0.0
    %14077 = vmatprep.subr.mxu0 0.0
    %14078 = vmatpush1.msra.mxu0 0.0
    %14079 = vmatprep.subr.mxu0 0.0
    %14080 = vmatpush1.msra.mxu0 0.0
    %14081 = vmatprep.subr.mxu0 0.0
    %14082 = vmatpush1.msra.mxu0 0.0
    %14083 = vmatprep.subr.mxu0 0.0
    %14084 = vmatpush1.msra.mxu0 0.0
    %14085 = vmatprep.mubr.f32.mxu0 0.0
    %14086 = vmatmul.mubr.f32.gmra.mrb[0].mxu0 %v14016
    %v14087 = vpop.f32.mrb[0].mxu0
    %v14088 = vadd.f32 0.0, %v14087
    %v14089 = vpop.f32.mrb[0].mxu0
    %14090 = vdwg.mxu0
    %v14091 = vrcp.pop %v14088
    %v14092 = vmul.f32 %v14012, %v14091
    %v14093 = vld [vmem:[%s12] sm:$0xff]
    %v14094 = vld [vmem:[%s12 + $0x8] sm:$0xf]
    %v14096 = vsel %vm14006, %v14092, 0
    %v14099 = vsel %vm13732, %v14094, 0
    %14101 = vmatprep.subr.mxu0 0.0
    %14102 = vmatpush1.msra.mxu0 %v14093
    %14103 = vmatprep.subr.mxu0 0.0
    %14104 = vmatpush1.msra.mxu0 %v14099
    %14105 = vmatprep.subr.mxu0 0.0
    %14106 = vmatpush1.msra.mxu0 0.0
    %14107 = vmatprep.subr.mxu0 0.0
    %14108 = vmatpush1.msra.mxu0 0.0
    %14109 = vmatprep.subr.mxu0 0.0
    %14110 = vmatpush1.msra.mxu0 0.0
    %14111 = vmatprep.subr.mxu0 0.0
    %14112 = vmatpush1.msra.mxu0 0.0
    %14113 = vmatprep.subr.mxu0 0.0
    %14114 = vmatpush1.msra.mxu0 0.0
    %14115 = vmatprep.subr.mxu0 0.0
    %14116 = vmatpush1.msra.mxu0 0.0
    %14117 = vmatprep.subr.mxu0 0.0
    %14118 = vmatpush1.msra.mxu0 0.0
    %14119 = vmatprep.subr.mxu0 0.0
    %14120 = vmatpush1.msra.mxu0 0.0
    %14121 = vmatprep.subr.mxu0 0.0
    %14122 = vmatpush1.msra.mxu0 0.0
    %14123 = vmatprep.subr.mxu0 0.0
    %14124 = vmatpush1.msra.mxu0 0.0
    %14125 = vmatprep.subr.mxu0 0.0
    %14126 = vmatpush1.msra.mxu0 0.0
    %14127 = vmatprep.subr.mxu0 0.0
    %14128 = vmatpush1.msra.mxu0 0.0
    %14129 = vmatprep.subr.mxu0 0.0
    %14130 = vmatpush1.msra.mxu0 0.0
    %14131 = vmatprep.subr.mxu0 0.0
    %14132 = vmatpush1.msra.mxu0 0.0
    %14133 = vmatprep.subr.mxu0 0.0
    %14134 = vmatpush1.msra.mxu0 0.0
    %14135 = vmatprep.subr.mxu0 0.0
    %14136 = vmatpush1.msra.mxu0 0.0
    %14137 = vmatprep.subr.mxu0 0.0
    %14138 = vmatpush1.msra.mxu0 0.0
    %14139 = vmatprep.subr.mxu0 0.0
    %14140 = vmatpush1.msra.mxu0 0.0
    %14141 = vmatprep.subr.mxu0 0.0
    %14142 = vmatpush1.msra.mxu0 0.0
    %14143 = vmatprep.subr.mxu0 0.0
    %14144 = vmatpush1.msra.mxu0 0.0
    %14145 = vmatprep.subr.mxu0 0.0
    %14146 = vmatpush1.msra.mxu0 0.0
    %14147 = vmatprep.subr.mxu0 0.0
    %14148 = vmatpush1.msra.mxu0 0.0
    %14149 = vmatprep.subr.mxu0 0.0
    %14150 = vmatpush1.msra.mxu0 0.0
    %14151 = vmatprep.subr.mxu0 0.0
    %14152 = vmatpush1.msra.mxu0 0.0
    %14153 = vmatprep.subr.mxu0 0.0
    %14154 = vmatpush1.msra.mxu0 0.0
    %14155 = vmatprep.subr.mxu0 0.0
    %14156 = vmatpush1.msra.mxu0 0.0
    %14157 = vmatprep.subr.mxu0 0.0
    %14158 = vmatpush1.msra.mxu0 0.0
    %14159 = vmatprep.subr.mxu0 0.0
    %14160 = vmatpush1.msra.mxu0 0.0
    %14161 = vmatprep.subr.mxu0 0.0
    %14162 = vmatpush1.msra.mxu0 0.0
    %14163 = vmatprep.subr.mxu0 0.0
    %14164 = vmatpush1.msra.mxu0 0.0
    %14165 = vmatprep.mubr.f32.mxu0 0.0
    %14166 = vmatmul.mubr.f32.gmra.mrb[0].mxu0 %v14096
    %v14167 = vpop.f32.mrb[0].mxu0
    %v14168 = vadd.f32 0.0, %v14167
    %v14169 = vpop.f32.mrb[0].mxu0
    %14170 = vdwg.mxu0
    %vm14171 = vcmask 23552
    %v14172 = vsel %vm14171, %v14168, -inf
    %14173 = vmax.xlane.f32.xlu0 %v14172
    %v14174 = vpop.xlane.xlu0 %14173
    %v14175 = vsub.f32 %v14168, %v14174
    %v14176 = vmul.f32 %v14175, 1.442695
    %v14177 = vpow.pop %v14176
    %v14178 = vsel %vm14171, %v14177, 0.0
    %14179 = vadd.xlane.f32.xlu0 %v14178
    %v14180 = vpop.xlane.xlu0 %14179
    %v14181 = vrcp.pop %v14180
    %v14182 = vmul.f32 %v14177, %v14181
    %14183 = vst.msk [vmem:[%s13] sm:$0xff] %vm14171, %v14182
    // Predicated region
    $region94: #{tpu_custom_call.1} parent=1 // pred_check
      _
    $region95: #{tpu_custom_call.1} parent=1 // pred_check_branch
      %14185 = sbr.rel (0) target = $region97
    $region96: #{tpu_custom_call.1} parent=1 // pred_region
      _
    $region97: #{tpu_custom_call.1} parent=1 // pred_fallthru
      _
    // Predicated region
    $region98: #{tpu_custom_call.1} parent=1 // pred_check
      _
    $region99: #{tpu_custom_call.1} parent=1 // pred_check_branch
      %14187 = sbr.rel (0) target = $region101
    $region100: #{tpu_custom_call.1} parent=1 // pred_region
      _
    $region101: #{tpu_custom_call.1} parent=1 // pred_fallthru
      _
    %14188 = vsyncpa [#allocation3], 1
    %14189 = vsyncpa [#allocation5], 1
    %14190 = vsyncpa [#allocation8], 1
    %14191 = vsyncpa [#allocation11], 1
    %14192 = vsyncpa [#allocation14], 1
    %14193 = vsyncpa [#allocation17], 1

</llo_original>
